<compile_context>
chip_gen: v7x
topology: tpu7x:2x2x1
jax: 0.10.0
libtpu: 0.0.40
codegen_flags: <defaults>
</compile_context>

<pallas_src>
import functools

import jax
import jax.numpy as jnp
from jax.experimental import pallas as pl
from jax.experimental.pallas import tpu as pltpu


def _attn_kernel(x_ref, wqkv_ref, wp_ref, bp_ref, o_ref, *, heads):
    # x_ref:    (1, C, N)  bf16   -- channel-first tokens for this batch element
    # wqkv_ref: (3C, C)    bf16   -- qkv conv weight, scale pre-folded into q rows
    # wp_ref:   (C, C)     bf16   -- proj conv weight
    # bp_ref:   (C, 1)     f32    -- proj bias (broadcast over tokens)
    # o_ref:    (1, C, N)  f32    -- channel-first output (lane-dense N-last store)
    x = x_ref[0]                         # (C, N) bf16
    C, N = x.shape
    d = C // heads

    # Fused q/k/v 1x1-conv projection as ONE MXU matmul, channel-first:
    # qkv^T = W_qkv @ x  -> (3C, N), f32 accumulation.
    qkvT = jnp.dot(wqkv_ref[...], x, preferred_element_type=jnp.float32)   # (3C, N)

    # Head split: channel index = h*d + i, matching 'B (h d) H W -> B h (H W) d'.
    qT = qkvT[:C].reshape(heads, d, N)             # (h, d, N)  (scale already folded)
    kT = qkvT[C:2 * C].reshape(heads, d, N)        # (h, d, N)
    vT = qkvT[2 * C:].reshape(heads, d, N)         # (h, d, N)

    # One transpose puts q in (h, N, d); k/v stay (h, d, N) so both attention
    # matmuls below are in natural MXU contraction forms.
    q = jnp.transpose(qT, (0, 2, 1)).astype(jnp.bfloat16)   # (h, N, d)
    k = kT.astype(jnp.bfloat16)                              # (h, d, N)
    v = vT.astype(jnp.bfloat16)                              # (h, d, N)

    # Batched-over-heads scores: s[h] = q[h] @ k[h]  -> (h, Nq, Nk), f32 accumulate.
    s = jax.lax.dot_general(q, k, (((2,), (1,)), ((0,), (0,))),
                            preferred_element_type=jnp.float32)

    # Softmax in f32 (row-stable); denominator reciprocal on the EUP.
    s = s - jnp.max(s, axis=-1, keepdims=True)
    p = jnp.exp(s)
    p = p * pl.reciprocal(jnp.sum(p, axis=-1, keepdims=True), approx=True)
    p = p.astype(jnp.bfloat16)                               # (h, Nq, Nk)

    # out^T[h] = v[h] @ p[h]^T : contract the key axis (last dim of both) -> (h, d, Nq).
    outT = jax.lax.dot_general(v, p, (((2,), (2,)), ((0,), (0,))),
                               preferred_element_type=jnp.float32)

    # Merge heads back to channels: (h, d, N) -> (C, N), channel = h*d + i,
    # matching 'B h (H W) d -> B (h d) H W'.
    out_allT = outT.reshape(C, N).astype(jnp.bfloat16)

    # Output 1x1-conv projection, channel-first: res^T = W_p @ out^T + b.
    resT = jnp.dot(wp_ref[...], out_allT,
                   preferred_element_type=jnp.float32) + bp_ref[...]
    o_ref[0] = resT.astype(o_ref.dtype)


def attention_pallas(x_nchw, qkv_weight, proj_weight, proj_bias, heads):
    """x_nchw: (B, C, H, W) f32; qkv_weight: (3C, C); proj_weight: (C, C); proj_bias: (C,)."""
    B, C, H, W = x_nchw.shape
    assert C % heads == 0
    d = C // heads
    N = H * W
    scale = float(d) ** (-0.5)

    # Channel-first token layout: pure reshape (no transpose), cast once to bf16.
    x_cn = x_nchw.reshape(B, C, N).astype(jnp.bfloat16)

    # Fold the attention scale into the q rows of the qkv weight; cast weights once.
    wqkv = jnp.concatenate([qkv_weight[:C] * scale, qkv_weight[C:]], axis=0)
    wqkv = wqkv.astype(jnp.bfloat16)                      # (3C, C)
    wp = proj_weight.astype(jnp.bfloat16)                 # (C, C)
    bp = proj_bias.reshape(C, 1).astype(jnp.float32)      # (C, 1)

    kernel = functools.partial(_attn_kernel, heads=heads)

    out_cn = pl.pallas_call(
        kernel,
        out_shape=jax.ShapeDtypeStruct((B, C, N), jnp.float32),
        grid_spec=pltpu.PrefetchScalarGridSpec(
            num_scalar_prefetch=0,
            grid=(B,),
            in_specs=[
                pl.BlockSpec((1, C, N), lambda b: (b, 0, 0)),      # x tokens (per batch)
                pl.BlockSpec((3 * C, C), lambda b: (0, 0)),        # qkv weight (resident)
                pl.BlockSpec((C, C), lambda b: (0, 0)),            # proj weight (resident)
                pl.BlockSpec((C, 1), lambda b: (0, 0)),            # proj bias (resident)
            ],
            out_specs=pl.BlockSpec((1, C, N), lambda b: (b, 0, 0)),
        ),
        compiler_params=pltpu.CompilerParams(
            dimension_semantics=("parallel",),
        ),
    )(x_cn, wqkv, wp, bp)

    # (B, C, N) -> NCHW is a pure reshape (no transpose).
    return out_cn.reshape(B, C, H, W)


def attention_reference(x_nchw, qkv_weight, proj_weight, proj_bias, heads):
    """Pure-JAX f32 reference mirroring the PyTorch module semantics."""
    B, C, H, W = x_nchw.shape
    d = C // heads
    N = H * W
    scale = float(d) ** (-0.5)
    x_tok = jnp.transpose(x_nchw.reshape(B, C, N), (0, 2, 1))        # (B, N, C)
    qkv = jnp.einsum("bnc,oc->bno", x_tok, qkv_weight)               # (B, N, 3C)
    q, k, v = jnp.split(qkv, 3, axis=-1)

    def to_heads(t):
        return jnp.transpose(t.reshape(B, N, heads, d), (0, 2, 1, 3))  # (B, h, N, d)

    q, k, v = map(to_heads, (q, k, v))
    q = q * scale
    att = jnp.einsum("bhxd,bhyd->bhxy", q, k)
    att = jax.nn.softmax(att, axis=-1)
    out = jnp.einsum("bhxy,bhyd->bhxd", att, v)                      # (B, h, N, d)
    out = jnp.transpose(out, (0, 2, 1, 3)).reshape(B, N, C)          # (B, N, heads*d)
    out = jnp.einsum("bnc,oc->bno", out, proj_weight) + proj_bias
    return jnp.transpose(out, (0, 2, 1)).reshape(B, C, H, W)


if __name__ == "__main__":
    B, C, H, W = 2, 32, 16, 16      # N = H*W = 256 tokens -> lane-dense last dim
    heads = 8

    key = jax.random.PRNGKey(0)
    kx, kqkv, kpw, kpb = jax.random.split(key, 4)

    x = jax.random.normal(kx, (B, C, H, W), dtype=jnp.float32)
    qkv_weight = jax.random.normal(kqkv, (3 * C, C), dtype=jnp.float32) * 0.1   # Conv2d(dim, 3*dim, 1), bias=False
    proj_weight = jax.random.normal(kpw, (C, C), dtype=jnp.float32) * 0.1       # Conv2d(dim, dim, 1)
    proj_bias = jax.random.normal(kpb, (C,), dtype=jnp.float32) * 0.1

    out = attention_pallas(x, qkv_weight, proj_weight, proj_bias, heads)
    out = jax.block_until_ready(out)

    ref = attention_reference(x, qkv_weight, proj_weight, proj_bias, heads)
    assert out.shape == (B, C, H, W)
    # Tolerance reflects bf16 MXU operands (per perf review) + approx EUP reciprocal;
    # softmax and all accumulations stay f32.
    assert jnp.allclose(out, ref, atol=1e-2, rtol=1e-2), "mismatch vs reference"

    print("KERNEL_OK")
</pallas_src>

<mosaic_0001>
module attributes {stable_mosaic.version = 11 : i64} {
  func.func @_attn_kernel(%arg0: i32, %arg1: memref<1x32x256xbf16, #tpu.memory_space<vmem>>, %arg2: memref<96x32xbf16, #tpu.memory_space<vmem>>, %arg3: memref<32x32xbf16, #tpu.memory_space<vmem>>, %arg4: memref<32x1xf32, #tpu.memory_space<vmem>>, %arg5: memref<1x32x256xf32, #tpu.memory_space<vmem>>) attributes {dimension_semantics = [#tpu.dimension_semantics<parallel>], iteration_bounds = array<i64: 2>, scalar_prefetch = 0 : i64, scratch_operands = 0 : i64, tpu.core_type = #tpu.core_type<tc>, window_params = [{transform_indices = @transform_0, window_bounds = array<i64: 1, 32, 256>}, {pipeline_mode = #tpu.pipeline_mode<synchronous>, transform_indices = @transform_1, window_bounds = array<i64: 96, 32>}, {pipeline_mode = #tpu.pipeline_mode<synchronous>, transform_indices = @transform_2, window_bounds = array<i64: 32, 32>}, {pipeline_mode = #tpu.pipeline_mode<synchronous>, transform_indices = @transform_3, window_bounds = array<i64: 32, 1>}, {transform_indices = @transform_4, window_bounds = array<i64: 1, 32, 256>}]} {
    %c0 = arith.constant 0 : index
    %c0_0 = arith.constant 0 : index
    %c0_1 = arith.constant 0 : index
    %0 = vector.load %arg1[%c0, %c0_0, %c0_1] : memref<1x32x256xbf16, #tpu.memory_space<vmem>>, vector<1x32x256xbf16>
    %1 = vector.shape_cast %0 : vector<1x32x256xbf16> to vector<32x256xbf16>
    %c0_2 = arith.constant 0 : index
    %c0_3 = arith.constant 0 : index
    %2 = vector.load %arg2[%c0_2, %c0_3] : memref<96x32xbf16, #tpu.memory_space<vmem>>, vector<96x32xbf16>
    %cst = arith.constant dense<0.000000e+00> : vector<96x256xf32>
    %3 = tpu.matmul %2, %1, %cst {dimension_numbers = #tpu.dot_dimension_numbers<[1], [0], [0], [1], [0, 0, 1, 1], [], []>} : vector<96x32xbf16>, vector<32x256xbf16>, vector<96x256xf32> -> vector<96x256xf32>
    %4 = vector.extract_strided_slice %3 {offsets = [0, 0], sizes = [32, 256], strides = [1, 1]} : vector<96x256xf32> to vector<32x256xf32>
    %5 = vector.shape_cast %4 : vector<32x256xf32> to vector<8x4x256xf32>
    %6 = vector.extract_strided_slice %3 {offsets = [32, 0], sizes = [32, 256], strides = [1, 1]} : vector<96x256xf32> to vector<32x256xf32>
    %7 = vector.shape_cast %6 : vector<32x256xf32> to vector<8x4x256xf32>
    %8 = vector.extract_strided_slice %3 {offsets = [64, 0], sizes = [32, 256], strides = [1, 1]} : vector<96x256xf32> to vector<32x256xf32>
    %9 = vector.shape_cast %8 : vector<32x256xf32> to vector<8x4x256xf32>
    %10 = tpu.transpose %5, [0, 2, 1] : vector<8x4x256xf32> -> vector<8x256x4xf32>
    %11 = arith.truncf %10 : vector<8x256x4xf32> to vector<8x256x4xbf16>
    %12 = arith.truncf %7 : vector<8x4x256xf32> to vector<8x4x256xbf16>
    %13 = arith.truncf %9 : vector<8x4x256xf32> to vector<8x4x256xbf16>
    %cst_4 = arith.constant dense<0.000000e+00> : vector<8x256x256xf32>
    %14 = tpu.matmul %11, %12, %cst_4 {dimension_numbers = #tpu.dot_dimension_numbers<[2], [1], [1], [2], [0, 0, 0, 1, 1, 2], [0], [0]>} : vector<8x256x4xbf16>, vector<8x4x256xbf16>, vector<8x256x256xf32> -> vector<8x256x256xf32>
    %cst_5 = arith.constant dense<0xFF800000> : vector<8x256xf32>
    %15 = vector.multi_reduction <maximumf>, %14, %cst_5 [2] : vector<8x256x256xf32> to vector<8x256xf32>
    %16 = vector.shape_cast %15 : vector<8x256xf32> to vector<8x256x1xf32>
    %17 = vector.broadcast %16 : vector<8x256x1xf32> to vector<8x256x256xf32>
    %18 = arith.subf %14, %17 : vector<8x256x256xf32>
    %19 = math.exp %18 : vector<8x256x256xf32>
    %cst_6 = arith.constant dense<0.000000e+00> : vector<8x256xf32>
    %20 = vector.multi_reduction <add>, %19, %cst_6 [2] : vector<8x256x256xf32> to vector<8x256xf32>
    %21 = vector.shape_cast %20 : vector<8x256xf32> to vector<8x256x1xf32>
    %22 = tpu.reciprocal %21 {approx = true} : vector<8x256x1xf32> -> vector<8x256x1xf32>
    %23 = vector.broadcast %22 : vector<8x256x1xf32> to vector<8x256x256xf32>
    %24 = arith.mulf %19, %23 : vector<8x256x256xf32>
    %25 = arith.truncf %24 : vector<8x256x256xf32> to vector<8x256x256xbf16>
    %cst_7 = arith.constant dense<0.000000e+00> : vector<8x4x256xf32>
    %26 = tpu.matmul %13, %25, %cst_7 {dimension_numbers = #tpu.dot_dimension_numbers<[2], [2], [1], [1], [0, 0, 0, 1, 1, 1], [0], [0]>} : vector<8x4x256xbf16>, vector<8x256x256xbf16>, vector<8x4x256xf32> -> vector<8x4x256xf32>
    %27 = vector.shape_cast %26 : vector<8x4x256xf32> to vector<32x256xf32>
    %28 = arith.truncf %27 : vector<32x256xf32> to vector<32x256xbf16>
    %c0_8 = arith.constant 0 : index
    %c0_9 = arith.constant 0 : index
    %29 = vector.load %arg3[%c0_8, %c0_9] : memref<32x32xbf16, #tpu.memory_space<vmem>>, vector<32x32xbf16>
    %cst_10 = arith.constant dense<0.000000e+00> : vector<32x256xf32>
    %30 = tpu.matmul %29, %28, %cst_10 {dimension_numbers = #tpu.dot_dimension_numbers<[1], [0], [0], [1], [0, 0, 1, 1], [], []>} : vector<32x32xbf16>, vector<32x256xbf16>, vector<32x256xf32> -> vector<32x256xf32>
    %c0_11 = arith.constant 0 : index
    %c0_12 = arith.constant 0 : index
    %31 = vector.load %arg4[%c0_11, %c0_12] : memref<32x1xf32, #tpu.memory_space<vmem>>, vector<32x1xf32>
    %32 = vector.broadcast %31 : vector<32x1xf32> to vector<32x256xf32>
    %33 = arith.addf %30, %32 : vector<32x256xf32>
    %c0_13 = arith.constant 0 : index
    %c0_14 = arith.constant 0 : index
    %c0_15 = arith.constant 0 : index
    %34 = vector.load %arg5[%c0_13, %c0_14, %c0_15] : memref<1x32x256xf32, #tpu.memory_space<vmem>>, vector<1x32x256xf32>
    %35 = vector.shape_cast %34 : vector<1x32x256xf32> to vector<32x256xf32>
    %36 = vector.shape_cast %33 : vector<32x256xf32> to vector<1x32x256xf32>
    tpu.vector_store %arg5[%c0_13, %c0_14, %c0_15], %36 {strides = array<i32>} : memref<1x32x256xf32, #tpu.memory_space<vmem>>, vector<1x32x256xf32>,
    return
  }
  func.func @transform_0(%arg0: i32) -> (i32, i32, i32) {
    %c0_i32 = arith.constant 0 : i32
    %c0_i32_0 = arith.constant 0 : i32
    %c0_i32_1 = arith.constant 0 : i32
    return %arg0, %c0_i32, %c0_i32_0 : i32, i32, i32
  }
  func.func @transform_1(%arg0: i32) -> (i32, i32) {
    %c0_i32 = arith.constant 0 : i32
    %c0_i32_0 = arith.constant 0 : i32
    %c0_i32_1 = arith.constant 0 : i32
    return %c0_i32, %c0_i32_0 : i32, i32
  }
  func.func @transform_2(%arg0: i32) -> (i32, i32) {
    %c0_i32 = arith.constant 0 : i32
    %c0_i32_0 = arith.constant 0 : i32
    %c0_i32_1 = arith.constant 0 : i32
    return %c0_i32, %c0_i32_0 : i32, i32
  }
  func.func @transform_3(%arg0: i32) -> (i32, i32) {
    %c0_i32 = arith.constant 0 : i32
    %c0_i32_0 = arith.constant 0 : i32
    %c0_i32_1 = arith.constant 0 : i32
    return %c0_i32, %c0_i32_0 : i32, i32
  }
  func.func @transform_4(%arg0: i32) -> (i32, i32, i32) {
    %c0_i32 = arith.constant 0 : i32
    %c0_i32_0 = arith.constant 0 : i32
    %c0_i32_1 = arith.constant 0 : i32
    return %arg0, %c0_i32, %c0_i32_0 : i32, i32, i32
  }
}

</mosaic_0001>

<llo_original>
// kernel: tpu_custom_call.1
$region0: #{tpu_custom_call.1}
  #allocation0 [shape = 'u32[]', space=smem, size = 0x4, offset = 0x4, fixed_abs, tag = 'smem constant byte address 0x4 - core index']
  #allocation1 [shape = 'u32[144,128]{1,0:T(1,128)}', space=vmem, size = 0x12000, scoped, tag = 'internal scratch']
  %s0 = inlined_call_operand.vmem [shape: bf16[2,32,256], index: 0, kind: input, shape index: {}]
  %s1 = inlined_call_operand.vmem [shape: bf16[96,32], index: 1, kind: input, shape index: {}]
  %s2 = inlined_call_operand.vmem [shape: bf16[32,32], index: 2, kind: input, shape index: {}]
  %s3 = inlined_call_operand.vmem [shape: f32[32,1], index: 3, kind: input, shape index: {}]
  %s4 = inlined_call_operand.hbm [shape: f32[2,32,256], index: 4, kind: output, shape index: {}]
  %s5 = sld [smem:[#allocation0]]
  $region49: #{tpu_custom_call.1} parent=0
    _
  %s7 = ssub.s32 1, %s5
  %s8 = scalar_select 0, %s7, %s5
  $region1: #{tpu_custom_call.1} parent=0
    #allocation2 [shape = 'u8[65536]{0}', space=vmem, size = 0x10000, scoped, tag = 'output window, operand 0']
    #allocation3 [shape = 's32[2]{0}', space=sflag, size = 0x8, scoped, tag = 'scoped memory for tpu_custom_call.1']
    %9 = vsyncpa [#allocation3], 0
    %s10 = scalar_lea.sflag [#allocation3], 1
    %11 = vsyncpa %s10, 0
    loop: start=0, step=1, limit=4
    $region2: #{tpu_custom_call.1} parent=1 // loop_pre_header
      _
    $region3: #{tpu_custom_call.1} parent=1 // loop_header
      %s13 = sphi 0, %s17
      %p14 = scmp.ge.s32.totalorder %s13, 4
      %s23 = sphi 0, %s25
      %s26 = sphi 0, %s23
      %s27 = sphi 0, %s26
      %s43 = sphi 0, %s27
      %s47 = sphi 0, %s47
      %s49 = sphi 0, %s47
      %s50 = sphi 0, %s49
      %s64 = sphi 0, %s50
      %s68 = sphi 0, %s68
      %s70 = sphi 0, %s68
      %s71 = sphi 0, %s70
      %s85 = sphi 0, %s71
      %s89 = sphi 0, %s89
      %s91 = sphi 0, %s89
      %s92 = sphi 0, %s91
      %s106 = sphi 0, %s92
      %s112 = sphi 0, %s114
      %s115 = sphi 0, %s112
      %s116 = sphi 0, %s115
      %s132 = sphi 0, %s116
    $region4: #{tpu_custom_call.1} parent=1 // loop_header_branch
      %16 = sbr.rel (%p14) target = $region8
    $region5: #{tpu_custom_call.1} parent=1 // loop_body
      %s18 = ssub.s32 %s13, 1
      %s19 = ssub.s32 %s13, 2
      %s20 = sadd.s32 %s13, 1
      %s21 = ssub.s32 %s13, %s20
      %p22 = scmp.eq.s32.totalorder %s21, 0
      %s24 = sadd.s32 %s23, 1
      %s25 = scalar_select %p22, %s23, %s24
      %p28 = pneg %p22
      %p29 = scmp.eq.s32.totalorder %s13, 1
      %p30 = por %p28, %p29
      %p31 = scmp.ne.s32.totalorder %s23, %s26
      %p32 = scmp.eq.s32.totalorder %s13, 0
      %p33 = por %p31, %p32
      %p34 = scmp.ne.s32.totalorder %s23, %s26
      %p35 = scmp.eq.s32.totalorder %s18, 1
      %p36 = por %p34, %p35
      %p37 = scmp.ne.s32.totalorder %s26, %s27
      %p38 = scmp.eq.s32.totalorder %s18, 0
      %p39 = por %p37, %p38
      %p40 = scmp.ne.s32.totalorder %s26, %s27
      %p41 = scmp.eq.s32.totalorder %s19, 1
      %p42 = por %p40, %p41
      %p44 = scmp.ne.s32.totalorder %s27, %s43
      %p45 = scmp.eq.s32.totalorder %s19, 0
      %p46 = por %p44, %p45
      %s48 = sadd.s32 %s47, 1
      %p51 = scmp.eq.s32.totalorder %s13, 1
      %p52 = scmp.ne.s32.totalorder %s47, %s49
      %p53 = scmp.eq.s32.totalorder %s13, 0
      %p54 = por %p52, %p53
      %p55 = scmp.ne.s32.totalorder %s47, %s49
      %p56 = scmp.eq.s32.totalorder %s18, 1
      %p57 = por %p55, %p56
      %p58 = scmp.ne.s32.totalorder %s49, %s50
      %p59 = scmp.eq.s32.totalorder %s18, 0
      %p60 = por %p58, %p59
      %p61 = scmp.ne.s32.totalorder %s49, %s50
      %p62 = scmp.eq.s32.totalorder %s19, 1
      %p63 = por %p61, %p62
      %p65 = scmp.ne.s32.totalorder %s50, %s64
      %p66 = scmp.eq.s32.totalorder %s19, 0
      %p67 = por %p65, %p66
      %s69 = sadd.s32 %s68, 1
      %p72 = scmp.eq.s32.totalorder %s13, 1
      %p73 = scmp.ne.s32.totalorder %s68, %s70
      %p74 = scmp.eq.s32.totalorder %s13, 0
      %p75 = por %p73, %p74
      %p76 = scmp.ne.s32.totalorder %s68, %s70
      %p77 = scmp.eq.s32.totalorder %s18, 1
      %p78 = por %p76, %p77
      %p79 = scmp.ne.s32.totalorder %s70, %s71
      %p80 = scmp.eq.s32.totalorder %s18, 0
      %p81 = por %p79, %p80
      %p82 = scmp.ne.s32.totalorder %s70, %s71
      %p83 = scmp.eq.s32.totalorder %s19, 1
      %p84 = por %p82, %p83
      %p86 = scmp.ne.s32.totalorder %s71, %s85
      %p87 = scmp.eq.s32.totalorder %s19, 0
      %p88 = por %p86, %p87
      %s90 = sadd.s32 %s89, 1
      %p93 = scmp.eq.s32.totalorder %s13, 1
      %p94 = scmp.ne.s32.totalorder %s89, %s91
      %p95 = scmp.eq.s32.totalorder %s13, 0
      %p96 = por %p94, %p95
      %p97 = scmp.ne.s32.totalorder %s89, %s91
      %p98 = scmp.eq.s32.totalorder %s18, 1
      %p99 = por %p97, %p98
      %p100 = scmp.ne.s32.totalorder %s91, %s92
      %p101 = scmp.eq.s32.totalorder %s18, 0
      %p102 = por %p100, %p101
      %p103 = scmp.ne.s32.totalorder %s91, %s92
      %p104 = scmp.eq.s32.totalorder %s19, 1
      %p105 = por %p103, %p104
      %p107 = scmp.ne.s32.totalorder %s92, %s106
      %p108 = scmp.eq.s32.totalorder %s19, 0
      %p109 = por %p107, %p108
      %s110 = ssub.s32 %s13, %s20
      %p111 = scmp.eq.s32.totalorder %s110, 0
      %s113 = sadd.s32 %s112, 1
      %s114 = scalar_select %p111, %s112, %s113
      %p117 = pneg %p111
      %p118 = scmp.eq.s32.totalorder %s13, 1
      %p119 = por %p117, %p118
      %p120 = scmp.ne.s32.totalorder %s112, %s115
      %p121 = scmp.eq.s32.totalorder %s13, 0
      %p122 = por %p120, %p121
      %p123 = scmp.ne.s32.totalorder %s112, %s115
      %p124 = scmp.eq.s32.totalorder %s18, 1
      %p125 = por %p123, %p124
      %p126 = scmp.ne.s32.totalorder %s115, %s116
      %p127 = scmp.eq.s32.totalorder %s18, 0
      %p128 = por %p126, %p127
      %p129 = scmp.ne.s32.totalorder %s115, %s116
      %p130 = scmp.eq.s32.totalorder %s19, 1
      %p131 = por %p129, %p130
      %p133 = scmp.ne.s32.totalorder %s116, %s132
      %p134 = scmp.eq.s32.totalorder %s19, 0
      %p135 = por %p133, %p134
      %p136 = scmp.le.s32.totalorder 1, %s13
      %p137 = scmp.lt.s32.totalorder %s13, 3
      %p138 = pnand %p136, %p137
      %p139 = pneg %p138
      // Predicated region
      $region9: #{tpu_custom_call.1} parent=5 // pred_check
        _
      $region10: #{tpu_custom_call.1} parent=5 // pred_check_branch
        %141 = sbr.rel (%p138) target = $region12
      $region11: #{tpu_custom_call.1} parent=5 // pred_region
        %s142 = ssub.s32 %s13, 1
        // Predicated region
        $region13: #{tpu_custom_call.1} parent=11 // pred_check
          %p143 = pneg %p60
        $region14: #{tpu_custom_call.1} parent=11 // pred_check_branch
          %145 = sbr.rel (%p143) target = $region16
        $region15: #{tpu_custom_call.1} parent=11 // pred_region
          _
        $region16: #{tpu_custom_call.1} parent=11 // pred_fallthru
          _
        // Predicated region
        $region17: #{tpu_custom_call.1} parent=11 // pred_check
          %p146 = pneg %p81
        $region18: #{tpu_custom_call.1} parent=11 // pred_check_branch
          %148 = sbr.rel (%p146) target = $region20
        $region19: #{tpu_custom_call.1} parent=11 // pred_region
          _
        $region20: #{tpu_custom_call.1} parent=11 // pred_fallthru
          _
        // Predicated region
        $region21: #{tpu_custom_call.1} parent=11 // pred_check
          %p149 = pneg %p102
        $region22: #{tpu_custom_call.1} parent=11 // pred_check_branch
          %151 = sbr.rel (%p149) target = $region24
        $region23: #{tpu_custom_call.1} parent=11 // pred_region
          _
        $region24: #{tpu_custom_call.1} parent=11 // pred_fallthru
          _
      $region12: #{tpu_custom_call.1} parent=5 // pred_fallthru
        _
      %p152 = scmp.lt.s32.totalorder %s13, 2
      // Predicated region
      $region25: #{tpu_custom_call.1} parent=5 // pred_check
        %p153 = pneg %p152
      $region26: #{tpu_custom_call.1} parent=5 // pred_check_branch
        %155 = sbr.rel (%p153) target = $region28
      $region27: #{tpu_custom_call.1} parent=5 // pred_region
        // Predicated region
        $region29: #{tpu_custom_call.1} parent=27 // pred_check
          %p156 = pneg %p33
        $region30: #{tpu_custom_call.1} parent=27 // pred_check_branch
          %158 = sbr.rel (%p156) target = $region32
        $region31: #{tpu_custom_call.1} parent=27 // pred_region
          %p159 = scmp.lt.s32.totalorder %s13, 1
          %s160 = scalar_select %p159, %s13, 1
          %s161 = smul.addr %s160, 8
          %s162 = smul.addr %s161, 4
          %s163 = scalar_lea.vmem %s0, %s162
        $region32: #{tpu_custom_call.1} parent=27 // pred_fallthru
          _
      $region28: #{tpu_custom_call.1} parent=5 // pred_fallthru
        _
      %p164 = scmp.le.s32.totalorder 1, %s13
      %p165 = scmp.lt.s32.totalorder %s13, 3
      %p166 = pnand %p164, %p165
      %p167 = pneg %p166
      // Predicated region
      $region33: #{tpu_custom_call.1} parent=5 // pred_check
        _
      $region34: #{tpu_custom_call.1} parent=5 // pred_check_branch
        %169 = sbr.rel (%p166) target = $region36
      $region35: #{tpu_custom_call.1} parent=5 // pred_region
        %s170 = ssub.s32 %s13, 1
        %p171 = scmp.lt.s32.totalorder %s18, 1
        %s172 = scalar_select %p171, %s18, 1
        %s173 = smul.addr %s172, 8
        %s174 = smul.addr %s173, 4
        %s175 = scalar_lea.vmem %s0, %s174
        %p176 = pneg %p39
        %p177 = pneg %p36
        %p178 = pneg %p60
        %p179 = pneg %p57
        %p180 = pneg %p81
        %p181 = pneg %p78
        %p182 = pneg %p102
        %p183 = pneg %p99
        %p184 = pneg %p128
        %p185 = pneg %p125
        %s186 = sand.u32 %s115, 1
        %s187 = scalar_lea.sflag [#allocation3], %s186
        %s188 = sand.u32 %s115, 1
        %s189 = smul.addr %s188, 64
        %s190 = scalar_lea.vmem [#allocation2], %s189
        %p191 = scmp.lt.s32.totalorder %s18, 1
        %s192 = scalar_select %p191, %s18, 1
        %s193 = smul.addr %s192, 8
        %s194 = smul.addr %s193, 4
        %s195 = scalar_lea.vmem %s0, %s194
        %v197 = vld [vmem:[%s195] sm:$0xff]
        %v198 = vld [vmem:[%s195 + $0x8] sm:$0xff]
        %v199 = vld [vmem:[%s195 + $0x10] sm:$0xff]
        %v200 = vld [vmem:[%s195 + $0x18] sm:$0xff]
        %v201 = vld [vmem:[%s1] sm:$0xf]
        %v202 = vld [vmem:[%s1 + $0x4] sm:$0xf]
        %v203 = vld [vmem:[%s1 + $0x8] sm:$0xf]
        %v204 = vld [vmem:[%s1 + $0xc] sm:$0xf]
        %v205 = vld [vmem:[%s1 + $0x10] sm:$0xf]
        %v206 = vld [vmem:[%s1 + $0x14] sm:$0xf]
        %v207 = vld [vmem:[%s1 + $0x18] sm:$0xf]
        %v208 = vld [vmem:[%s1 + $0x1c] sm:$0xf]
        %v209 = vld [vmem:[%s1 + $0x20] sm:$0xf]
        %v210 = vld [vmem:[%s1 + $0x24] sm:$0xf]
        %v211 = vld [vmem:[%s1 + $0x28] sm:$0xf]
        %v212 = vld [vmem:[%s1 + $0x2c] sm:$0xf]
        %v225 = vunpack.c.l.b16 %v201
        %v226 = vunpack.c.l.b16 %v202
        %v227 = vunpack.c.l.b16 %v203
        %v228 = vunpack.c.l.b16 %v204
        %v229 = vunpack.c.l.b16 %v205
        %v230 = vunpack.c.l.b16 %v206
        %v231 = vunpack.c.l.b16 %v207
        %v232 = vunpack.c.l.b16 %v208
        %v233 = vunpack.c.l.b16 %v209
        %v234 = vunpack.c.l.b16 %v210
        %v235 = vunpack.c.l.b16 %v211
        %v236 = vunpack.c.l.b16 %v212
        %v237 = vpack.c.b16 %v226, %v225
        %v238 = vpack.c.b16 %v228, %v227
        %v239 = vpack.c.b16 %v230, %v229
        %v240 = vpack.c.b16 %v232, %v231
        %v241 = vpack.c.b16 %v234, %v233
        %v242 = vpack.c.b16 %v236, %v235
        %v247 = vunpack.c.l.b16 %v197
        %v248 = vunpack.c.h.b16 %v197
        %v249 = vunpack.c.l.b16 %v198
        %v250 = vunpack.c.h.b16 %v198
        %v251 = vunpack.c.l.b16 %v199
        %v252 = vunpack.c.h.b16 %v199
        %v253 = vunpack.c.l.b16 %v200
        %v254 = vunpack.c.h.b16 %v200
        %v255 = vpack.c.b16 %v249, %v247
        %v256 = vpack.c.b16 %v250, %v248
        %v257 = vpack.c.b16 %v253, %v251
        %v258 = vpack.c.b16 %v254, %v252
        %vm263 = vcmask 261120
        %v265 = vsel %vm263, %v237, 0
        %v268 = vsel %vm263, %v238, 0
        %v271 = vsel %vm263, %v239, 0
        %v274 = vsel %vm263, %v240, 0
        %v277 = vsel %vm263, %v241, 0
        %v280 = vsel %vm263, %v242, 0
        %282 = vmatprep.subr.bf16.mxu0 %v256
        %283 = vmatpush1.bf16.msra.mxu0 %v255
        %284 = vmatprep.subr.bf16.mxu0 %v258
        %285 = vmatpush1.bf16.msra.mxu0 %v257
        %286 = vmatprep.subr.bf16.mxu0 0
        %287 = vmatpush1.bf16.msra.mxu0 0
        %288 = vmatprep.subr.bf16.mxu0 0
        %289 = vmatpush1.bf16.msra.mxu0 0
        %290 = vmatprep.subr.bf16.mxu0 0
        %291 = vmatpush1.bf16.msra.mxu0 0
        %292 = vmatprep.subr.bf16.mxu0 0
        %293 = vmatpush1.bf16.msra.mxu0 0
        %294 = vmatprep.subr.bf16.mxu0 0
        %295 = vmatpush1.bf16.msra.mxu0 0
        %296 = vmatprep.subr.bf16.mxu0 0
        %297 = vmatpush1.bf16.msra.mxu0 0
        %298 = vmatprep.subr.bf16.mxu0 0
        %299 = vmatpush1.bf16.msra.mxu0 0
        %300 = vmatprep.subr.bf16.mxu0 0
        %301 = vmatpush1.bf16.msra.mxu0 0
        %302 = vmatprep.subr.bf16.mxu0 0
        %303 = vmatpush1.bf16.msra.mxu0 0
        %304 = vmatprep.subr.bf16.mxu0 0
        %305 = vmatpush1.bf16.msra.mxu0 0
        %306 = vmatprep.subr.bf16.mxu0 0
        %307 = vmatpush1.bf16.msra.mxu0 0
        %308 = vmatprep.subr.bf16.mxu0 0
        %309 = vmatpush1.bf16.msra.mxu0 0
        %310 = vmatprep.subr.bf16.mxu0 0
        %311 = vmatpush1.bf16.msra.mxu0 0
        %312 = vmatprep.subr.bf16.mxu0 0
        %313 = vmatpush1.bf16.msra.mxu0 0
        %314 = vmatprep.mubr.bf16.mxu0 0
        %315 = vmatmul.mubr.bf16.gmra.mrb[0].mxu0 %v265
        %v316 = vpop.f32.mrb[0].mxu0
        %v317 = vadd.f32 0.0, %v316
        %v318 = vpop.f32.mrb[0].mxu0
        %v319 = vadd.f32 0.0, %v318
        %v320 = vpop.f32.mrb[0].mxu0
        %v321 = vadd.f32 0.0, %v320
        %v322 = vpop.f32.mrb[0].mxu0
        %v323 = vadd.f32 0.0, %v322
        %324 = vmatprep.mubr.bf16.mxu0 0
        %325 = vmatmul.mubr.bf16.gmra.mrb[0].mxu0 %v268
        %v326 = vpop.f32.mrb[0].mxu0
        %v327 = vadd.f32 0.0, %v326
        %v328 = vpop.f32.mrb[0].mxu0
        %v329 = vadd.f32 0.0, %v328
        %v330 = vpop.f32.mrb[0].mxu0
        %v331 = vadd.f32 0.0, %v330
        %v332 = vpop.f32.mrb[0].mxu0
        %v333 = vadd.f32 0.0, %v332
        %334 = vmatprep.mubr.bf16.mxu0 0
        %335 = vmatmul.mubr.bf16.gmra.mrb[0].mxu0 %v271
        %v336 = vpop.f32.mrb[0].mxu0
        %v337 = vadd.f32 0.0, %v336
        %v338 = vpop.f32.mrb[0].mxu0
        %v339 = vadd.f32 0.0, %v338
        %v340 = vpop.f32.mrb[0].mxu0
        %v341 = vadd.f32 0.0, %v340
        %v342 = vpop.f32.mrb[0].mxu0
        %v343 = vadd.f32 0.0, %v342
        %344 = vmatprep.mubr.bf16.mxu0 0
        %345 = vmatmul.mubr.bf16.gmra.mrb[0].mxu0 %v274
        %v346 = vpop.f32.mrb[0].mxu0
        %v347 = vadd.f32 0.0, %v346
        %v348 = vpop.f32.mrb[0].mxu0
        %v349 = vadd.f32 0.0, %v348
        %v350 = vpop.f32.mrb[0].mxu0
        %v351 = vadd.f32 0.0, %v350
        %v352 = vpop.f32.mrb[0].mxu0
        %v353 = vadd.f32 0.0, %v352
        %354 = vmatprep.mubr.bf16.mxu0 0
        %355 = vmatmul.mubr.bf16.gmra.mrb[0].mxu0 %v277
        %v356 = vpop.f32.mrb[0].mxu0
        %v357 = vadd.f32 0.0, %v356
        %v358 = vpop.f32.mrb[0].mxu0
        %v359 = vadd.f32 0.0, %v358
        %v360 = vpop.f32.mrb[0].mxu0
        %v361 = vadd.f32 0.0, %v360
        %v362 = vpop.f32.mrb[0].mxu0
        %v363 = vadd.f32 0.0, %v362
        %364 = vmatprep.mubr.bf16.mxu0 0
        %365 = vmatmul.mubr.bf16.gmra.mrb[0].mxu0 %v280
        %v366 = vpop.f32.mrb[0].mxu0
        %v367 = vadd.f32 0.0, %v366
        %v368 = vpop.f32.mrb[0].mxu0
        %v369 = vadd.f32 0.0, %v368
        %v370 = vpop.f32.mrb[0].mxu0
        %v371 = vadd.f32 0.0, %v370
        %v372 = vpop.f32.mrb[0].mxu0
        %v373 = vadd.f32 0.0, %v372
        %374 = vdwg.mxu0
        %v383 = vcombine.low %v317, %v319
        %v384 = vcombine.high %v317, %v319
        %v385 = vcombine.low %v321, %v323
        %v386 = vcombine.high %v321, %v323
        %v387 = vcombine.low %v327, %v329
        %v388 = vcombine.high %v327, %v329
        %v389 = vcombine.low %v331, %v333
        %v390 = vcombine.high %v331, %v333
        %v407 = vcombine.low %v337, %v339
        %v408 = vcombine.high %v337, %v339
        %v409 = vcombine.low %v341, %v343
        %v410 = vcombine.high %v341, %v343
        %v411 = vcombine.low %v347, %v349
        %v412 = vcombine.high %v347, %v349
        %v413 = vcombine.low %v351, %v353
        %v414 = vcombine.high %v351, %v353
        %v431 = vcombine.low %v357, %v359
        %v432 = vcombine.high %v357, %v359
        %v433 = vcombine.low %v361, %v363
        %v434 = vcombine.high %v361, %v363
        %v435 = vcombine.low %v367, %v369
        %v436 = vcombine.high %v367, %v369
        %v437 = vcombine.low %v371, %v373
        %v438 = vcombine.high %v371, %v373
        %v447 = vcombine.high %v383, %v383
        %v448 = vcombine.high %v384, %v384
        %v449 = vcombine.high %v385, %v385
        %v450 = vcombine.high %v386, %v386
        %v451 = vcombine.high %v387, %v387
        %v452 = vcombine.high %v388, %v388
        %v453 = vcombine.high %v389, %v389
        %v454 = vcombine.high %v390, %v390
        %463 = vxpose.xlu0.b32.start [1/16] %v383, 128
        %464 = vxpose.xlu0.b32.cont [2/16] 0.0, 128
        %465 = vxpose.xlu0.b32.cont [3/16] 0.0, 128
        %466 = vxpose.xlu0.b32.cont [4/16] 0.0, 128
        %467 = vxpose.xlu0.b32.cont [5/16] 0.0, 128
        %468 = vxpose.xlu0.b32.cont [6/16] 0.0, 128
        %469 = vxpose.xlu0.b32.cont [7/16] 0.0, 128
        %470 = vxpose.xlu0.b32.cont [8/16] 0.0, 128
        %471 = vxpose.xlu0.b32.cont [9/16] 0.0, 128
        %472 = vxpose.xlu0.b32.cont [10/16] 0.0, 128
        %473 = vxpose.xlu0.b32.cont [11/16] 0.0, 128
        %474 = vxpose.xlu0.b32.cont [12/16] 0.0, 128
        %475 = vxpose.xlu0.b32.cont [13/16] 0.0, 128
        %476 = vxpose.xlu0.b32.cont [14/16] 0.0, 128
        %477 = vxpose.xlu0.b32.cont [15/16] 0.0, 128
        %478 = vxpose.xlu0.b32.end [16/16] 0.0, 128
        %v479 = vpop.trf.xlu0
        %v480 = vpop.trf.xlu0
        %v481 = vpop.trf.xlu0
        %v482 = vpop.trf.xlu0
        %v483 = vpop.trf.xlu0
        %v484 = vpop.trf.xlu0
        %v485 = vpop.trf.xlu0
        %v486 = vpop.trf.xlu0
        %v487 = vpop.trf.xlu0
        %v488 = vpop.trf.xlu0
        %v489 = vpop.trf.xlu0
        %v490 = vpop.trf.xlu0
        %v491 = vpop.trf.xlu0
        %v492 = vpop.trf.xlu0
        %v493 = vpop.trf.xlu0
        %v494 = vpop.trf.xlu0
        %495 = vxpose.xlu0.b32.start [1/16] %v447, 128
        %496 = vxpose.xlu0.b32.cont [2/16] 0.0, 128
        %497 = vxpose.xlu0.b32.cont [3/16] 0.0, 128
        %498 = vxpose.xlu0.b32.cont [4/16] 0.0, 128
        %499 = vxpose.xlu0.b32.cont [5/16] 0.0, 128
        %500 = vxpose.xlu0.b32.cont [6/16] 0.0, 128
        %501 = vxpose.xlu0.b32.cont [7/16] 0.0, 128
        %502 = vxpose.xlu0.b32.cont [8/16] 0.0, 128
        %503 = vxpose.xlu0.b32.cont [9/16] 0.0, 128
        %504 = vxpose.xlu0.b32.cont [10/16] 0.0, 128
        %505 = vxpose.xlu0.b32.cont [11/16] 0.0, 128
        %506 = vxpose.xlu0.b32.cont [12/16] 0.0, 128
        %507 = vxpose.xlu0.b32.cont [13/16] 0.0, 128
        %508 = vxpose.xlu0.b32.cont [14/16] 0.0, 128
        %509 = vxpose.xlu0.b32.cont [15/16] 0.0, 128
        %510 = vxpose.xlu0.b32.end [16/16] 0.0, 128
        %v511 = vpop.trf.xlu0
        %v512 = vpop.trf.xlu0
        %v513 = vpop.trf.xlu0
        %v514 = vpop.trf.xlu0
        %v515 = vpop.trf.xlu0
        %v516 = vpop.trf.xlu0
        %v517 = vpop.trf.xlu0
        %v518 = vpop.trf.xlu0
        %v519 = vpop.trf.xlu0
        %v520 = vpop.trf.xlu0
        %v521 = vpop.trf.xlu0
        %v522 = vpop.trf.xlu0
        %v523 = vpop.trf.xlu0
        %v524 = vpop.trf.xlu0
        %v525 = vpop.trf.xlu0
        %v526 = vpop.trf.xlu0
        %527 = vxpose.xlu0.b32.start [1/16] %v384, 128
        %528 = vxpose.xlu0.b32.cont [2/16] 0.0, 128
        %529 = vxpose.xlu0.b32.cont [3/16] 0.0, 128
        %530 = vxpose.xlu0.b32.cont [4/16] 0.0, 128
        %531 = vxpose.xlu0.b32.cont [5/16] 0.0, 128
        %532 = vxpose.xlu0.b32.cont [6/16] 0.0, 128
        %533 = vxpose.xlu0.b32.cont [7/16] 0.0, 128
        %534 = vxpose.xlu0.b32.cont [8/16] 0.0, 128
        %535 = vxpose.xlu0.b32.cont [9/16] 0.0, 128
        %536 = vxpose.xlu0.b32.cont [10/16] 0.0, 128
        %537 = vxpose.xlu0.b32.cont [11/16] 0.0, 128
        %538 = vxpose.xlu0.b32.cont [12/16] 0.0, 128
        %539 = vxpose.xlu0.b32.cont [13/16] 0.0, 128
        %540 = vxpose.xlu0.b32.cont [14/16] 0.0, 128
        %541 = vxpose.xlu0.b32.cont [15/16] 0.0, 128
        %542 = vxpose.xlu0.b32.end [16/16] 0.0, 128
        %v543 = vpop.trf.xlu0
        %v544 = vpop.trf.xlu0
        %v545 = vpop.trf.xlu0
        %v546 = vpop.trf.xlu0
        %v547 = vpop.trf.xlu0
        %v548 = vpop.trf.xlu0
        %v549 = vpop.trf.xlu0
        %v550 = vpop.trf.xlu0
        %v551 = vpop.trf.xlu0
        %v552 = vpop.trf.xlu0
        %v553 = vpop.trf.xlu0
        %v554 = vpop.trf.xlu0
        %v555 = vpop.trf.xlu0
        %v556 = vpop.trf.xlu0
        %v557 = vpop.trf.xlu0
        %v558 = vpop.trf.xlu0
        %559 = vxpose.xlu0.b32.start [1/16] %v448, 128
        %560 = vxpose.xlu0.b32.cont [2/16] 0.0, 128
        %561 = vxpose.xlu0.b32.cont [3/16] 0.0, 128
        %562 = vxpose.xlu0.b32.cont [4/16] 0.0, 128
        %563 = vxpose.xlu0.b32.cont [5/16] 0.0, 128
        %564 = vxpose.xlu0.b32.cont [6/16] 0.0, 128
        %565 = vxpose.xlu0.b32.cont [7/16] 0.0, 128
        %566 = vxpose.xlu0.b32.cont [8/16] 0.0, 128
        %567 = vxpose.xlu0.b32.cont [9/16] 0.0, 128
        %568 = vxpose.xlu0.b32.cont [10/16] 0.0, 128
        %569 = vxpose.xlu0.b32.cont [11/16] 0.0, 128
        %570 = vxpose.xlu0.b32.cont [12/16] 0.0, 128
        %571 = vxpose.xlu0.b32.cont [13/16] 0.0, 128
        %572 = vxpose.xlu0.b32.cont [14/16] 0.0, 128
        %573 = vxpose.xlu0.b32.cont [15/16] 0.0, 128
        %574 = vxpose.xlu0.b32.end [16/16] 0.0, 128
        %v575 = vpop.trf.xlu0
        %v576 = vpop.trf.xlu0
        %v577 = vpop.trf.xlu0
        %v578 = vpop.trf.xlu0
        %v579 = vpop.trf.xlu0
        %v580 = vpop.trf.xlu0
        %v581 = vpop.trf.xlu0
        %v582 = vpop.trf.xlu0
        %v583 = vpop.trf.xlu0
        %v584 = vpop.trf.xlu0
        %v585 = vpop.trf.xlu0
        %v586 = vpop.trf.xlu0
        %v587 = vpop.trf.xlu0
        %v588 = vpop.trf.xlu0
        %v589 = vpop.trf.xlu0
        %v590 = vpop.trf.xlu0
        %591 = vxpose.xlu0.b32.start [1/16] %v385, 128
        %592 = vxpose.xlu0.b32.cont [2/16] 0.0, 128
        %593 = vxpose.xlu0.b32.cont [3/16] 0.0, 128
        %594 = vxpose.xlu0.b32.cont [4/16] 0.0, 128
        %595 = vxpose.xlu0.b32.cont [5/16] 0.0, 128
        %596 = vxpose.xlu0.b32.cont [6/16] 0.0, 128
        %597 = vxpose.xlu0.b32.cont [7/16] 0.0, 128
        %598 = vxpose.xlu0.b32.cont [8/16] 0.0, 128
        %599 = vxpose.xlu0.b32.cont [9/16] 0.0, 128
        %600 = vxpose.xlu0.b32.cont [10/16] 0.0, 128
        %601 = vxpose.xlu0.b32.cont [11/16] 0.0, 128
        %602 = vxpose.xlu0.b32.cont [12/16] 0.0, 128
        %603 = vxpose.xlu0.b32.cont [13/16] 0.0, 128
        %604 = vxpose.xlu0.b32.cont [14/16] 0.0, 128
        %605 = vxpose.xlu0.b32.cont [15/16] 0.0, 128
        %606 = vxpose.xlu0.b32.end [16/16] 0.0, 128
        %v607 = vpop.trf.xlu0
        %v608 = vpop.trf.xlu0
        %v609 = vpop.trf.xlu0
        %v610 = vpop.trf.xlu0
        %v611 = vpop.trf.xlu0
        %v612 = vpop.trf.xlu0
        %v613 = vpop.trf.xlu0
        %v614 = vpop.trf.xlu0
        %v615 = vpop.trf.xlu0
        %v616 = vpop.trf.xlu0
        %v617 = vpop.trf.xlu0
        %v618 = vpop.trf.xlu0
        %v619 = vpop.trf.xlu0
        %v620 = vpop.trf.xlu0
        %v621 = vpop.trf.xlu0
        %v622 = vpop.trf.xlu0
        %623 = vxpose.xlu0.b32.start [1/16] %v449, 128
        %624 = vxpose.xlu0.b32.cont [2/16] 0.0, 128
        %625 = vxpose.xlu0.b32.cont [3/16] 0.0, 128
        %626 = vxpose.xlu0.b32.cont [4/16] 0.0, 128
        %627 = vxpose.xlu0.b32.cont [5/16] 0.0, 128
        %628 = vxpose.xlu0.b32.cont [6/16] 0.0, 128
        %629 = vxpose.xlu0.b32.cont [7/16] 0.0, 128
        %630 = vxpose.xlu0.b32.cont [8/16] 0.0, 128
        %631 = vxpose.xlu0.b32.cont [9/16] 0.0, 128
        %632 = vxpose.xlu0.b32.cont [10/16] 0.0, 128
        %633 = vxpose.xlu0.b32.cont [11/16] 0.0, 128
        %634 = vxpose.xlu0.b32.cont [12/16] 0.0, 128
        %635 = vxpose.xlu0.b32.cont [13/16] 0.0, 128
        %636 = vxpose.xlu0.b32.cont [14/16] 0.0, 128
        %637 = vxpose.xlu0.b32.cont [15/16] 0.0, 128
        %638 = vxpose.xlu0.b32.end [16/16] 0.0, 128
        %v639 = vpop.trf.xlu0
        %v640 = vpop.trf.xlu0
        %v641 = vpop.trf.xlu0
        %v642 = vpop.trf.xlu0
        %v643 = vpop.trf.xlu0
        %v644 = vpop.trf.xlu0
        %v645 = vpop.trf.xlu0
        %v646 = vpop.trf.xlu0
        %v647 = vpop.trf.xlu0
        %v648 = vpop.trf.xlu0
        %v649 = vpop.trf.xlu0
        %v650 = vpop.trf.xlu0
        %v651 = vpop.trf.xlu0
        %v652 = vpop.trf.xlu0
        %v653 = vpop.trf.xlu0
        %v654 = vpop.trf.xlu0
        %655 = vxpose.xlu0.b32.start [1/16] %v386, 128
        %656 = vxpose.xlu0.b32.cont [2/16] 0.0, 128
        %657 = vxpose.xlu0.b32.cont [3/16] 0.0, 128
        %658 = vxpose.xlu0.b32.cont [4/16] 0.0, 128
        %659 = vxpose.xlu0.b32.cont [5/16] 0.0, 128
        %660 = vxpose.xlu0.b32.cont [6/16] 0.0, 128
        %661 = vxpose.xlu0.b32.cont [7/16] 0.0, 128
        %662 = vxpose.xlu0.b32.cont [8/16] 0.0, 128
        %663 = vxpose.xlu0.b32.cont [9/16] 0.0, 128
        %664 = vxpose.xlu0.b32.cont [10/16] 0.0, 128
        %665 = vxpose.xlu0.b32.cont [11/16] 0.0, 128
        %666 = vxpose.xlu0.b32.cont [12/16] 0.0, 128
        %667 = vxpose.xlu0.b32.cont [13/16] 0.0, 128
        %668 = vxpose.xlu0.b32.cont [14/16] 0.0, 128
        %669 = vxpose.xlu0.b32.cont [15/16] 0.0, 128
        %670 = vxpose.xlu0.b32.end [16/16] 0.0, 128
        %v671 = vpop.trf.xlu0
        %v672 = vpop.trf.xlu0
        %v673 = vpop.trf.xlu0
        %v674 = vpop.trf.xlu0
        %v675 = vpop.trf.xlu0
        %v676 = vpop.trf.xlu0
        %v677 = vpop.trf.xlu0
        %v678 = vpop.trf.xlu0
        %v679 = vpop.trf.xlu0
        %v680 = vpop.trf.xlu0
        %v681 = vpop.trf.xlu0
        %v682 = vpop.trf.xlu0
        %v683 = vpop.trf.xlu0
        %v684 = vpop.trf.xlu0
        %v685 = vpop.trf.xlu0
        %v686 = vpop.trf.xlu0
        %687 = vxpose.xlu0.b32.start [1/16] %v450, 128
        %688 = vxpose.xlu0.b32.cont [2/16] 0.0, 128
        %689 = vxpose.xlu0.b32.cont [3/16] 0.0, 128
        %690 = vxpose.xlu0.b32.cont [4/16] 0.0, 128
        %691 = vxpose.xlu0.b32.cont [5/16] 0.0, 128
        %692 = vxpose.xlu0.b32.cont [6/16] 0.0, 128
        %693 = vxpose.xlu0.b32.cont [7/16] 0.0, 128
        %694 = vxpose.xlu0.b32.cont [8/16] 0.0, 128
        %695 = vxpose.xlu0.b32.cont [9/16] 0.0, 128
        %696 = vxpose.xlu0.b32.cont [10/16] 0.0, 128
        %697 = vxpose.xlu0.b32.cont [11/16] 0.0, 128
        %698 = vxpose.xlu0.b32.cont [12/16] 0.0, 128
        %699 = vxpose.xlu0.b32.cont [13/16] 0.0, 128
        %700 = vxpose.xlu0.b32.cont [14/16] 0.0, 128
        %701 = vxpose.xlu0.b32.cont [15/16] 0.0, 128
        %702 = vxpose.xlu0.b32.end [16/16] 0.0, 128
        %v703 = vpop.trf.xlu0
        %v704 = vpop.trf.xlu0
        %v705 = vpop.trf.xlu0
        %v706 = vpop.trf.xlu0
        %v707 = vpop.trf.xlu0
        %v708 = vpop.trf.xlu0
        %v709 = vpop.trf.xlu0
        %v710 = vpop.trf.xlu0
        %v711 = vpop.trf.xlu0
        %v712 = vpop.trf.xlu0
        %v713 = vpop.trf.xlu0
        %v714 = vpop.trf.xlu0
        %v715 = vpop.trf.xlu0
        %v716 = vpop.trf.xlu0
        %v717 = vpop.trf.xlu0
        %v718 = vpop.trf.xlu0
        %719 = vxpose.xlu0.b32.start [1/16] %v387, 128
        %720 = vxpose.xlu0.b32.cont [2/16] 0.0, 128
        %721 = vxpose.xlu0.b32.cont [3/16] 0.0, 128
        %722 = vxpose.xlu0.b32.cont [4/16] 0.0, 128
        %723 = vxpose.xlu0.b32.cont [5/16] 0.0, 128
        %724 = vxpose.xlu0.b32.cont [6/16] 0.0, 128
        %725 = vxpose.xlu0.b32.cont [7/16] 0.0, 128
        %726 = vxpose.xlu0.b32.cont [8/16] 0.0, 128
        %727 = vxpose.xlu0.b32.cont [9/16] 0.0, 128
        %728 = vxpose.xlu0.b32.cont [10/16] 0.0, 128
        %729 = vxpose.xlu0.b32.cont [11/16] 0.0, 128
        %730 = vxpose.xlu0.b32.cont [12/16] 0.0, 128
        %731 = vxpose.xlu0.b32.cont [13/16] 0.0, 128
        %732 = vxpose.xlu0.b32.cont [14/16] 0.0, 128
        %733 = vxpose.xlu0.b32.cont [15/16] 0.0, 128
        %734 = vxpose.xlu0.b32.end [16/16] 0.0, 128
        %v735 = vpop.trf.xlu0
        %v736 = vpop.trf.xlu0
        %v737 = vpop.trf.xlu0
        %v738 = vpop.trf.xlu0
        %v739 = vpop.trf.xlu0
        %v740 = vpop.trf.xlu0
        %v741 = vpop.trf.xlu0
        %v742 = vpop.trf.xlu0
        %v743 = vpop.trf.xlu0
        %v744 = vpop.trf.xlu0
        %v745 = vpop.trf.xlu0
        %v746 = vpop.trf.xlu0
        %v747 = vpop.trf.xlu0
        %v748 = vpop.trf.xlu0
        %v749 = vpop.trf.xlu0
        %v750 = vpop.trf.xlu0
        %751 = vxpose.xlu0.b32.start [1/16] %v451, 128
        %752 = vxpose.xlu0.b32.cont [2/16] 0.0, 128
        %753 = vxpose.xlu0.b32.cont [3/16] 0.0, 128
        %754 = vxpose.xlu0.b32.cont [4/16] 0.0, 128
        %755 = vxpose.xlu0.b32.cont [5/16] 0.0, 128
        %756 = vxpose.xlu0.b32.cont [6/16] 0.0, 128
        %757 = vxpose.xlu0.b32.cont [7/16] 0.0, 128
        %758 = vxpose.xlu0.b32.cont [8/16] 0.0, 128
        %759 = vxpose.xlu0.b32.cont [9/16] 0.0, 128
        %760 = vxpose.xlu0.b32.cont [10/16] 0.0, 128
        %761 = vxpose.xlu0.b32.cont [11/16] 0.0, 128
        %762 = vxpose.xlu0.b32.cont [12/16] 0.0, 128
        %763 = vxpose.xlu0.b32.cont [13/16] 0.0, 128
        %764 = vxpose.xlu0.b32.cont [14/16] 0.0, 128
        %765 = vxpose.xlu0.b32.cont [15/16] 0.0, 128
        %766 = vxpose.xlu0.b32.end [16/16] 0.0, 128
        %v767 = vpop.trf.xlu0
        %v768 = vpop.trf.xlu0
        %v769 = vpop.trf.xlu0
        %v770 = vpop.trf.xlu0
        %v771 = vpop.trf.xlu0
        %v772 = vpop.trf.xlu0
        %v773 = vpop.trf.xlu0
        %v774 = vpop.trf.xlu0
        %v775 = vpop.trf.xlu0
        %v776 = vpop.trf.xlu0
        %v777 = vpop.trf.xlu0
        %v778 = vpop.trf.xlu0
        %v779 = vpop.trf.xlu0
        %v780 = vpop.trf.xlu0
        %v781 = vpop.trf.xlu0
        %v782 = vpop.trf.xlu0
        %783 = vxpose.xlu0.b32.start [1/16] %v388, 128
        %784 = vxpose.xlu0.b32.cont [2/16] 0.0, 128
        %785 = vxpose.xlu0.b32.cont [3/16] 0.0, 128
        %786 = vxpose.xlu0.b32.cont [4/16] 0.0, 128
        %787 = vxpose.xlu0.b32.cont [5/16] 0.0, 128
        %788 = vxpose.xlu0.b32.cont [6/16] 0.0, 128
        %789 = vxpose.xlu0.b32.cont [7/16] 0.0, 128
        %790 = vxpose.xlu0.b32.cont [8/16] 0.0, 128
        %791 = vxpose.xlu0.b32.cont [9/16] 0.0, 128
        %792 = vxpose.xlu0.b32.cont [10/16] 0.0, 128
        %793 = vxpose.xlu0.b32.cont [11/16] 0.0, 128
        %794 = vxpose.xlu0.b32.cont [12/16] 0.0, 128
        %795 = vxpose.xlu0.b32.cont [13/16] 0.0, 128
        %796 = vxpose.xlu0.b32.cont [14/16] 0.0, 128
        %797 = vxpose.xlu0.b32.cont [15/16] 0.0, 128
        %798 = vxpose.xlu0.b32.end [16/16] 0.0, 128
        %v799 = vpop.trf.xlu0
        %v800 = vpop.trf.xlu0
        %v801 = vpop.trf.xlu0
        %v802 = vpop.trf.xlu0
        %v803 = vpop.trf.xlu0
        %v804 = vpop.trf.xlu0
        %v805 = vpop.trf.xlu0
        %v806 = vpop.trf.xlu0
        %v807 = vpop.trf.xlu0
        %v808 = vpop.trf.xlu0
        %v809 = vpop.trf.xlu0
        %v810 = vpop.trf.xlu0
        %v811 = vpop.trf.xlu0
        %v812 = vpop.trf.xlu0
        %v813 = vpop.trf.xlu0
        %v814 = vpop.trf.xlu0
        %815 = vxpose.xlu0.b32.start [1/16] %v452, 128
        %816 = vxpose.xlu0.b32.cont [2/16] 0.0, 128
        %817 = vxpose.xlu0.b32.cont [3/16] 0.0, 128
        %818 = vxpose.xlu0.b32.cont [4/16] 0.0, 128
        %819 = vxpose.xlu0.b32.cont [5/16] 0.0, 128
        %820 = vxpose.xlu0.b32.cont [6/16] 0.0, 128
        %821 = vxpose.xlu0.b32.cont [7/16] 0.0, 128
        %822 = vxpose.xlu0.b32.cont [8/16] 0.0, 128
        %823 = vxpose.xlu0.b32.cont [9/16] 0.0, 128
        %824 = vxpose.xlu0.b32.cont [10/16] 0.0, 128
        %825 = vxpose.xlu0.b32.cont [11/16] 0.0, 128
        %826 = vxpose.xlu0.b32.cont [12/16] 0.0, 128
        %827 = vxpose.xlu0.b32.cont [13/16] 0.0, 128
        %828 = vxpose.xlu0.b32.cont [14/16] 0.0, 128
        %829 = vxpose.xlu0.b32.cont [15/16] 0.0, 128
        %830 = vxpose.xlu0.b32.end [16/16] 0.0, 128
        %v831 = vpop.trf.xlu0
        %v832 = vpop.trf.xlu0
        %v833 = vpop.trf.xlu0
        %v834 = vpop.trf.xlu0
        %v835 = vpop.trf.xlu0
        %v836 = vpop.trf.xlu0
        %v837 = vpop.trf.xlu0
        %v838 = vpop.trf.xlu0
        %v839 = vpop.trf.xlu0
        %v840 = vpop.trf.xlu0
        %v841 = vpop.trf.xlu0
        %v842 = vpop.trf.xlu0
        %v843 = vpop.trf.xlu0
        %v844 = vpop.trf.xlu0
        %v845 = vpop.trf.xlu0
        %v846 = vpop.trf.xlu0
        %847 = vxpose.xlu0.b32.start [1/16] %v389, 128
        %848 = vxpose.xlu0.b32.cont [2/16] 0.0, 128
        %849 = vxpose.xlu0.b32.cont [3/16] 0.0, 128
        %850 = vxpose.xlu0.b32.cont [4/16] 0.0, 128
        %851 = vxpose.xlu0.b32.cont [5/16] 0.0, 128
        %852 = vxpose.xlu0.b32.cont [6/16] 0.0, 128
        %853 = vxpose.xlu0.b32.cont [7/16] 0.0, 128
        %854 = vxpose.xlu0.b32.cont [8/16] 0.0, 128
        %855 = vxpose.xlu0.b32.cont [9/16] 0.0, 128
        %856 = vxpose.xlu0.b32.cont [10/16] 0.0, 128
        %857 = vxpose.xlu0.b32.cont [11/16] 0.0, 128
        %858 = vxpose.xlu0.b32.cont [12/16] 0.0, 128
        %859 = vxpose.xlu0.b32.cont [13/16] 0.0, 128
        %860 = vxpose.xlu0.b32.cont [14/16] 0.0, 128
        %861 = vxpose.xlu0.b32.cont [15/16] 0.0, 128
        %862 = vxpose.xlu0.b32.end [16/16] 0.0, 128
        %v863 = vpop.trf.xlu0
        %v864 = vpop.trf.xlu0
        %v865 = vpop.trf.xlu0
        %v866 = vpop.trf.xlu0
        %v867 = vpop.trf.xlu0
        %v868 = vpop.trf.xlu0
        %v869 = vpop.trf.xlu0
        %v870 = vpop.trf.xlu0
        %v871 = vpop.trf.xlu0
        %v872 = vpop.trf.xlu0
        %v873 = vpop.trf.xlu0
        %v874 = vpop.trf.xlu0
        %v875 = vpop.trf.xlu0
        %v876 = vpop.trf.xlu0
        %v877 = vpop.trf.xlu0
        %v878 = vpop.trf.xlu0
        %879 = vxpose.xlu0.b32.start [1/16] %v453, 128
        %880 = vxpose.xlu0.b32.cont [2/16] 0.0, 128
        %881 = vxpose.xlu0.b32.cont [3/16] 0.0, 128
        %882 = vxpose.xlu0.b32.cont [4/16] 0.0, 128
        %883 = vxpose.xlu0.b32.cont [5/16] 0.0, 128
        %884 = vxpose.xlu0.b32.cont [6/16] 0.0, 128
        %885 = vxpose.xlu0.b32.cont [7/16] 0.0, 128
        %886 = vxpose.xlu0.b32.cont [8/16] 0.0, 128
        %887 = vxpose.xlu0.b32.cont [9/16] 0.0, 128
        %888 = vxpose.xlu0.b32.cont [10/16] 0.0, 128
        %889 = vxpose.xlu0.b32.cont [11/16] 0.0, 128
        %890 = vxpose.xlu0.b32.cont [12/16] 0.0, 128
        %891 = vxpose.xlu0.b32.cont [13/16] 0.0, 128
        %892 = vxpose.xlu0.b32.cont [14/16] 0.0, 128
        %893 = vxpose.xlu0.b32.cont [15/16] 0.0, 128
        %894 = vxpose.xlu0.b32.end [16/16] 0.0, 128
        %v895 = vpop.trf.xlu0
        %v896 = vpop.trf.xlu0
        %v897 = vpop.trf.xlu0
        %v898 = vpop.trf.xlu0
        %v899 = vpop.trf.xlu0
        %v900 = vpop.trf.xlu0
        %v901 = vpop.trf.xlu0
        %v902 = vpop.trf.xlu0
        %v903 = vpop.trf.xlu0
        %v904 = vpop.trf.xlu0
        %v905 = vpop.trf.xlu0
        %v906 = vpop.trf.xlu0
        %v907 = vpop.trf.xlu0
        %v908 = vpop.trf.xlu0
        %v909 = vpop.trf.xlu0
        %v910 = vpop.trf.xlu0
        %911 = vxpose.xlu0.b32.start [1/16] %v390, 128
        %912 = vxpose.xlu0.b32.cont [2/16] 0.0, 128
        %913 = vxpose.xlu0.b32.cont [3/16] 0.0, 128
        %914 = vxpose.xlu0.b32.cont [4/16] 0.0, 128
        %915 = vxpose.xlu0.b32.cont [5/16] 0.0, 128
        %916 = vxpose.xlu0.b32.cont [6/16] 0.0, 128
        %917 = vxpose.xlu0.b32.cont [7/16] 0.0, 128
        %918 = vxpose.xlu0.b32.cont [8/16] 0.0, 128
        %919 = vxpose.xlu0.b32.cont [9/16] 0.0, 128
        %920 = vxpose.xlu0.b32.cont [10/16] 0.0, 128
        %921 = vxpose.xlu0.b32.cont [11/16] 0.0, 128
        %922 = vxpose.xlu0.b32.cont [12/16] 0.0, 128
        %923 = vxpose.xlu0.b32.cont [13/16] 0.0, 128
        %924 = vxpose.xlu0.b32.cont [14/16] 0.0, 128
        %925 = vxpose.xlu0.b32.cont [15/16] 0.0, 128
        %926 = vxpose.xlu0.b32.end [16/16] 0.0, 128
        %v927 = vpop.trf.xlu0
        %v928 = vpop.trf.xlu0
        %v929 = vpop.trf.xlu0
        %v930 = vpop.trf.xlu0
        %v931 = vpop.trf.xlu0
        %v932 = vpop.trf.xlu0
        %v933 = vpop.trf.xlu0
        %v934 = vpop.trf.xlu0
        %v935 = vpop.trf.xlu0
        %v936 = vpop.trf.xlu0
        %v937 = vpop.trf.xlu0
        %v938 = vpop.trf.xlu0
        %v939 = vpop.trf.xlu0
        %v940 = vpop.trf.xlu0
        %v941 = vpop.trf.xlu0
        %v942 = vpop.trf.xlu0
        %943 = vxpose.xlu0.b32.start [1/16] %v454, 128
        %944 = vxpose.xlu0.b32.cont [2/16] 0.0, 128
        %945 = vxpose.xlu0.b32.cont [3/16] 0.0, 128
        %946 = vxpose.xlu0.b32.cont [4/16] 0.0, 128
        %947 = vxpose.xlu0.b32.cont [5/16] 0.0, 128
        %948 = vxpose.xlu0.b32.cont [6/16] 0.0, 128
        %949 = vxpose.xlu0.b32.cont [7/16] 0.0, 128
        %950 = vxpose.xlu0.b32.cont [8/16] 0.0, 128
        %951 = vxpose.xlu0.b32.cont [9/16] 0.0, 128
        %952 = vxpose.xlu0.b32.cont [10/16] 0.0, 128
        %953 = vxpose.xlu0.b32.cont [11/16] 0.0, 128
        %954 = vxpose.xlu0.b32.cont [12/16] 0.0, 128
        %955 = vxpose.xlu0.b32.cont [13/16] 0.0, 128
        %956 = vxpose.xlu0.b32.cont [14/16] 0.0, 128
        %957 = vxpose.xlu0.b32.cont [15/16] 0.0, 128
        %958 = vxpose.xlu0.b32.end [16/16] 0.0, 128
        %v959 = vpop.trf.xlu0
        %v960 = vpop.trf.xlu0
        %v961 = vpop.trf.xlu0
        %v962 = vpop.trf.xlu0
        %v963 = vpop.trf.xlu0
        %v964 = vpop.trf.xlu0
        %v965 = vpop.trf.xlu0
        %v966 = vpop.trf.xlu0
        %v967 = vpop.trf.xlu0
        %v968 = vpop.trf.xlu0
        %v969 = vpop.trf.xlu0
        %v970 = vpop.trf.xlu0
        %v971 = vpop.trf.xlu0
        %v972 = vpop.trf.xlu0
        %v973 = vpop.trf.xlu0
        %v974 = vpop.trf.xlu0
        %v975 = vpack.c.bf16 %v480, %v479
        %v976 = vpack.c.bf16 %v482, %v481
        %v977 = vpack.c.bf16 %v484, %v483
        %v978 = vpack.c.bf16 %v486, %v485
        %v979 = vpack.c.bf16 %v488, %v487
        %v980 = vpack.c.bf16 %v490, %v489
        %v981 = vpack.c.bf16 %v492, %v491
        %v982 = vpack.c.bf16 %v494, %v493
        %v983 = vpack.c.bf16 %v512, %v511
        %v984 = vpack.c.bf16 %v514, %v513
        %v985 = vpack.c.bf16 %v516, %v515
        %v986 = vpack.c.bf16 %v518, %v517
        %v987 = vpack.c.bf16 %v520, %v519
        %v988 = vpack.c.bf16 %v522, %v521
        %v989 = vpack.c.bf16 %v524, %v523
        %v990 = vpack.c.bf16 %v526, %v525
        %v991 = vpack.c.bf16 %v544, %v543
        %v992 = vpack.c.bf16 %v546, %v545
        %v993 = vpack.c.bf16 %v548, %v547
        %v994 = vpack.c.bf16 %v550, %v549
        %v995 = vpack.c.bf16 %v552, %v551
        %v996 = vpack.c.bf16 %v554, %v553
        %v997 = vpack.c.bf16 %v556, %v555
        %v998 = vpack.c.bf16 %v558, %v557
        %v999 = vpack.c.bf16 %v576, %v575
        %v1000 = vpack.c.bf16 %v578, %v577
        %v1001 = vpack.c.bf16 %v580, %v579
        %v1002 = vpack.c.bf16 %v582, %v581
        %v1003 = vpack.c.bf16 %v584, %v583
        %v1004 = vpack.c.bf16 %v586, %v585
        %v1005 = vpack.c.bf16 %v588, %v587
        %v1006 = vpack.c.bf16 %v590, %v589
        %v1007 = vpack.c.bf16 %v608, %v607
        %v1008 = vpack.c.bf16 %v610, %v609
        %v1009 = vpack.c.bf16 %v612, %v611
        %v1010 = vpack.c.bf16 %v614, %v613
        %v1011 = vpack.c.bf16 %v616, %v615
        %v1012 = vpack.c.bf16 %v618, %v617
        %v1013 = vpack.c.bf16 %v620, %v619
        %v1014 = vpack.c.bf16 %v622, %v621
        %v1015 = vpack.c.bf16 %v640, %v639
        %v1016 = vpack.c.bf16 %v642, %v641
        %v1017 = vpack.c.bf16 %v644, %v643
        %v1018 = vpack.c.bf16 %v646, %v645
        %v1019 = vpack.c.bf16 %v648, %v647
        %v1020 = vpack.c.bf16 %v650, %v649
        %v1021 = vpack.c.bf16 %v652, %v651
        %v1022 = vpack.c.bf16 %v654, %v653
        %v1023 = vpack.c.bf16 %v672, %v671
        %v1024 = vpack.c.bf16 %v674, %v673
        %v1025 = vpack.c.bf16 %v676, %v675
        %v1026 = vpack.c.bf16 %v678, %v677
        %v1027 = vpack.c.bf16 %v680, %v679
        %v1028 = vpack.c.bf16 %v682, %v681
        %v1029 = vpack.c.bf16 %v684, %v683
        %v1030 = vpack.c.bf16 %v686, %v685
        %v1031 = vpack.c.bf16 %v704, %v703
        %v1032 = vpack.c.bf16 %v706, %v705
        %v1033 = vpack.c.bf16 %v708, %v707
        %v1034 = vpack.c.bf16 %v710, %v709
        %v1035 = vpack.c.bf16 %v712, %v711
        %v1036 = vpack.c.bf16 %v714, %v713
        %v1037 = vpack.c.bf16 %v716, %v715
        %v1038 = vpack.c.bf16 %v718, %v717
        %v1039 = vpack.c.bf16 %v736, %v735
        %v1040 = vpack.c.bf16 %v738, %v737
        %v1041 = vpack.c.bf16 %v740, %v739
        %v1042 = vpack.c.bf16 %v742, %v741
        %v1043 = vpack.c.bf16 %v744, %v743
        %v1044 = vpack.c.bf16 %v746, %v745
        %v1045 = vpack.c.bf16 %v748, %v747
        %v1046 = vpack.c.bf16 %v750, %v749
        %v1047 = vpack.c.bf16 %v768, %v767
        %v1048 = vpack.c.bf16 %v770, %v769
        %v1049 = vpack.c.bf16 %v772, %v771
        %v1050 = vpack.c.bf16 %v774, %v773
        %v1051 = vpack.c.bf16 %v776, %v775
        %v1052 = vpack.c.bf16 %v778, %v777
        %v1053 = vpack.c.bf16 %v780, %v779
        %v1054 = vpack.c.bf16 %v782, %v781
        %v1055 = vpack.c.bf16 %v800, %v799
        %v1056 = vpack.c.bf16 %v802, %v801
        %v1057 = vpack.c.bf16 %v804, %v803
        %v1058 = vpack.c.bf16 %v806, %v805
        %v1059 = vpack.c.bf16 %v808, %v807
        %v1060 = vpack.c.bf16 %v810, %v809
        %v1061 = vpack.c.bf16 %v812, %v811
        %v1062 = vpack.c.bf16 %v814, %v813
        %v1063 = vpack.c.bf16 %v832, %v831
        %v1064 = vpack.c.bf16 %v834, %v833
        %v1065 = vpack.c.bf16 %v836, %v835
        %v1066 = vpack.c.bf16 %v838, %v837
        %v1067 = vpack.c.bf16 %v840, %v839
        %v1068 = vpack.c.bf16 %v842, %v841
        %v1069 = vpack.c.bf16 %v844, %v843
        %v1070 = vpack.c.bf16 %v846, %v845
        %v1071 = vpack.c.bf16 %v864, %v863
        %v1072 = vpack.c.bf16 %v866, %v865
        %v1073 = vpack.c.bf16 %v868, %v867
        %v1074 = vpack.c.bf16 %v870, %v869
        %v1075 = vpack.c.bf16 %v872, %v871
        %v1076 = vpack.c.bf16 %v874, %v873
        %v1077 = vpack.c.bf16 %v876, %v875
        %v1078 = vpack.c.bf16 %v878, %v877
        %v1079 = vpack.c.bf16 %v896, %v895
        %v1080 = vpack.c.bf16 %v898, %v897
        %v1081 = vpack.c.bf16 %v900, %v899
        %v1082 = vpack.c.bf16 %v902, %v901
        %v1083 = vpack.c.bf16 %v904, %v903
        %v1084 = vpack.c.bf16 %v906, %v905
        %v1085 = vpack.c.bf16 %v908, %v907
        %v1086 = vpack.c.bf16 %v910, %v909
        %v1087 = vpack.c.bf16 %v928, %v927
        %v1088 = vpack.c.bf16 %v930, %v929
        %v1089 = vpack.c.bf16 %v932, %v931
        %v1090 = vpack.c.bf16 %v934, %v933
        %v1091 = vpack.c.bf16 %v936, %v935
        %v1092 = vpack.c.bf16 %v938, %v937
        %v1093 = vpack.c.bf16 %v940, %v939
        %v1094 = vpack.c.bf16 %v942, %v941
        %v1095 = vpack.c.bf16 %v960, %v959
        %v1096 = vpack.c.bf16 %v962, %v961
        %v1097 = vpack.c.bf16 %v964, %v963
        %v1098 = vpack.c.bf16 %v966, %v965
        %v1099 = vpack.c.bf16 %v968, %v967
        %v1100 = vpack.c.bf16 %v970, %v969
        %v1101 = vpack.c.bf16 %v972, %v971
        %v1102 = vpack.c.bf16 %v974, %v973
        %v1103 = vcombine.high %v407, %v407
        %v1104 = vcombine.high %v408, %v408
        %v1105 = vcombine.high %v409, %v409
        %v1106 = vcombine.high %v410, %v410
        %v1107 = vcombine.high %v411, %v411
        %v1108 = vcombine.high %v412, %v412
        %v1109 = vcombine.high %v413, %v413
        %v1110 = vcombine.high %v414, %v414
        %v1119 = vpack.c.bf16 %v407, %v407
        %v1120 = vpack.c.bf16 %v1103, %v1103
        %v1121 = vpack.c.bf16 %v408, %v408
        %v1122 = vpack.c.bf16 %v1104, %v1104
        %v1123 = vpack.c.bf16 %v409, %v409
        %v1124 = vpack.c.bf16 %v1105, %v1105
        %v1125 = vpack.c.bf16 %v410, %v410
        %v1126 = vpack.c.bf16 %v1106, %v1106
        %v1127 = vpack.c.bf16 %v411, %v411
        %v1128 = vpack.c.bf16 %v1107, %v1107
        %v1129 = vpack.c.bf16 %v412, %v412
        %v1130 = vpack.c.bf16 %v1108, %v1108
        %v1131 = vpack.c.bf16 %v413, %v413
        %v1132 = vpack.c.bf16 %v1109, %v1109
        %v1133 = vpack.c.bf16 %v414, %v414
        %v1134 = vpack.c.bf16 %v1110, %v1110
        %v1135 = vcombine.high %v431, %v431
        %v1136 = vcombine.high %v432, %v432
        %v1137 = vcombine.high %v433, %v433
        %v1138 = vcombine.high %v434, %v434
        %v1139 = vcombine.high %v435, %v435
        %v1140 = vcombine.high %v436, %v436
        %v1141 = vcombine.high %v437, %v437
        %v1142 = vcombine.high %v438, %v438
        %v1151 = vpack.c.bf16 %v431, %v431
        %v1152 = vpack.c.bf16 %v1135, %v1135
        %v1153 = vpack.c.bf16 %v432, %v432
        %v1154 = vpack.c.bf16 %v1136, %v1136
        %v1155 = vpack.c.bf16 %v433, %v433
        %v1156 = vpack.c.bf16 %v1137, %v1137
        %v1157 = vpack.c.bf16 %v434, %v434
        %v1158 = vpack.c.bf16 %v1138, %v1138
        %v1159 = vpack.c.bf16 %v435, %v435
        %v1160 = vpack.c.bf16 %v1139, %v1139
        %v1161 = vpack.c.bf16 %v436, %v436
        %v1162 = vpack.c.bf16 %v1140, %v1140
        %v1163 = vpack.c.bf16 %v437, %v437
        %v1164 = vpack.c.bf16 %v1141, %v1141
        %v1165 = vpack.c.bf16 %v438, %v438
        %v1166 = vpack.c.bf16 %v1142, %v1142
        %vm1167 = vcmask 31744
        %v1169 = vsel %vm1167, %v975, 0
        %v1172 = vsel %vm1167, %v976, 0
        %v1175 = vsel %vm1167, %v977, 0
        %v1178 = vsel %vm1167, %v978, 0
        %v1181 = vsel %vm1167, %v979, 0
        %v1184 = vsel %vm1167, %v980, 0
        %v1187 = vsel %vm1167, %v981, 0
        %v1190 = vsel %vm1167, %v982, 0
        %v1193 = vsel %vm1167, %v983, 0
        %v1196 = vsel %vm1167, %v984, 0
        %v1199 = vsel %vm1167, %v985, 0
        %v1202 = vsel %vm1167, %v986, 0
        %v1205 = vsel %vm1167, %v987, 0
        %v1208 = vsel %vm1167, %v988, 0
        %v1211 = vsel %vm1167, %v989, 0
        %v1214 = vsel %vm1167, %v990, 0
        %vm1216 = vcmask 1041408
        %v1218 = vsel %vm1216, %v1119, 0
        %v1221 = vsel %vm1216, %v1120, 0
        %1223 = vmatprep.subr.bf16.mxu0 %v1221
        %1224 = vmatpush1.bf16.msra.mxu0 %v1218
        %1225 = vmatprep.subr.bf16.mxu0 0
        %1226 = vmatpush1.bf16.msra.mxu0 0
        %1227 = vmatprep.subr.bf16.mxu0 0
        %1228 = vmatpush1.bf16.msra.mxu0 0
        %1229 = vmatprep.subr.bf16.mxu0 0
        %1230 = vmatpush1.bf16.msra.mxu0 0
        %1231 = vmatprep.subr.bf16.mxu0 0
        %1232 = vmatpush1.bf16.msra.mxu0 0
        %1233 = vmatprep.subr.bf16.mxu0 0
        %1234 = vmatpush1.bf16.msra.mxu0 0
        %1235 = vmatprep.subr.bf16.mxu0 0
        %1236 = vmatpush1.bf16.msra.mxu0 0
        %1237 = vmatprep.subr.bf16.mxu0 0
        %1238 = vmatpush1.bf16.msra.mxu0 0
        %1239 = vmatprep.subr.bf16.mxu0 0
        %1240 = vmatpush1.bf16.msra.mxu0 0
        %1241 = vmatprep.subr.bf16.mxu0 0
        %1242 = vmatpush1.bf16.msra.mxu0 0
        %1243 = vmatprep.subr.bf16.mxu0 0
        %1244 = vmatpush1.bf16.msra.mxu0 0
        %1245 = vmatprep.subr.bf16.mxu0 0
        %1246 = vmatpush1.bf16.msra.mxu0 0
        %1247 = vmatprep.subr.bf16.mxu0 0
        %1248 = vmatpush1.bf16.msra.mxu0 0
        %1249 = vmatprep.subr.bf16.mxu0 0
        %1250 = vmatpush1.bf16.msra.mxu0 0
        %1251 = vmatprep.subr.bf16.mxu0 0
        %1252 = vmatpush1.bf16.msra.mxu0 0
        %1253 = vmatprep.subr.bf16.mxu0 0
        %1254 = vmatpush1.bf16.msra.mxu0 0
        %1255 = vmatprep.mubr.bf16.mxu0 0
        %1256 = vmatmul.mubr.bf16.gmra.mrb[0].mxu0 %v1169
        %v1257 = vpop.f32.mrb[0].mxu0
        %v1258 = vadd.f32 0.0, %v1257
        %v1259 = vpop.f32.mrb[0].mxu0
        %v1260 = vadd.f32 0.0, %v1259
        %v1261 = vpop.f32.mrb[0].mxu0
        %v1262 = vadd.f32 0.0, %v1261
        %v1263 = vpop.f32.mrb[0].mxu0
        %v1264 = vadd.f32 0.0, %v1263
        %1265 = vmatprep.mubr.bf16.mxu0 0
        %1266 = vmatmul.mubr.bf16.gmra.mrb[0].mxu0 %v1172
        %v1267 = vpop.f32.mrb[0].mxu0
        %v1268 = vadd.f32 0.0, %v1267
        %v1269 = vpop.f32.mrb[0].mxu0
        %v1270 = vadd.f32 0.0, %v1269
        %v1271 = vpop.f32.mrb[0].mxu0
        %v1272 = vadd.f32 0.0, %v1271
        %v1273 = vpop.f32.mrb[0].mxu0
        %v1274 = vadd.f32 0.0, %v1273
        %1275 = vmatprep.mubr.bf16.mxu0 0
        %1276 = vmatmul.mubr.bf16.gmra.mrb[0].mxu0 %v1175
        %v1277 = vpop.f32.mrb[0].mxu0
        %v1278 = vadd.f32 0.0, %v1277
        %v1279 = vpop.f32.mrb[0].mxu0
        %v1280 = vadd.f32 0.0, %v1279
        %v1281 = vpop.f32.mrb[0].mxu0
        %v1282 = vadd.f32 0.0, %v1281
        %v1283 = vpop.f32.mrb[0].mxu0
        %v1284 = vadd.f32 0.0, %v1283
        %1285 = vmatprep.mubr.bf16.mxu0 0
        %1286 = vmatmul.mubr.bf16.gmra.mrb[0].mxu0 %v1178
        %v1287 = vpop.f32.mrb[0].mxu0
        %v1288 = vadd.f32 0.0, %v1287
        %v1289 = vpop.f32.mrb[0].mxu0
        %v1290 = vadd.f32 0.0, %v1289
        %v1291 = vpop.f32.mrb[0].mxu0
        %v1292 = vadd.f32 0.0, %v1291
        %v1293 = vpop.f32.mrb[0].mxu0
        %v1294 = vadd.f32 0.0, %v1293
        %1295 = vmatprep.mubr.bf16.mxu0 0
        %1296 = vmatmul.mubr.bf16.gmra.mrb[0].mxu0 %v1181
        %v1297 = vpop.f32.mrb[0].mxu0
        %v1298 = vadd.f32 0.0, %v1297
        %v1299 = vpop.f32.mrb[0].mxu0
        %v1300 = vadd.f32 0.0, %v1299
        %v1301 = vpop.f32.mrb[0].mxu0
        %v1302 = vadd.f32 0.0, %v1301
        %v1303 = vpop.f32.mrb[0].mxu0
        %v1304 = vadd.f32 0.0, %v1303
        %1305 = vmatprep.mubr.bf16.mxu0 0
        %1306 = vmatmul.mubr.bf16.gmra.mrb[0].mxu0 %v1184
        %v1307 = vpop.f32.mrb[0].mxu0
        %v1308 = vadd.f32 0.0, %v1307
        %v1309 = vpop.f32.mrb[0].mxu0
        %v1310 = vadd.f32 0.0, %v1309
        %v1311 = vpop.f32.mrb[0].mxu0
        %v1312 = vadd.f32 0.0, %v1311
        %v1313 = vpop.f32.mrb[0].mxu0
        %v1314 = vadd.f32 0.0, %v1313
        %1315 = vmatprep.mubr.bf16.mxu0 0
        %1316 = vmatmul.mubr.bf16.gmra.mrb[0].mxu0 %v1187
        %v1317 = vpop.f32.mrb[0].mxu0
        %v1318 = vadd.f32 0.0, %v1317
        %v1319 = vpop.f32.mrb[0].mxu0
        %v1320 = vadd.f32 0.0, %v1319
        %v1321 = vpop.f32.mrb[0].mxu0
        %v1322 = vadd.f32 0.0, %v1321
        %v1323 = vpop.f32.mrb[0].mxu0
        %v1324 = vadd.f32 0.0, %v1323
        %1325 = vmatprep.mubr.bf16.mxu0 0
        %1326 = vmatmul.mubr.bf16.gmra.mrb[0].mxu0 %v1190
        %v1327 = vpop.f32.mrb[0].mxu0
        %v1328 = vadd.f32 0.0, %v1327
        %v1329 = vpop.f32.mrb[0].mxu0
        %v1330 = vadd.f32 0.0, %v1329
        %v1331 = vpop.f32.mrb[0].mxu0
        %v1332 = vadd.f32 0.0, %v1331
        %v1333 = vpop.f32.mrb[0].mxu0
        %v1334 = vadd.f32 0.0, %v1333
        %1335 = vmatprep.mubr.bf16.mxu0 0
        %1336 = vmatmul.mubr.bf16.gmra.mrb[0].mxu0 %v1193
        %v1337 = vpop.f32.mrb[0].mxu0
        %v1338 = vadd.f32 0.0, %v1337
        %v1339 = vpop.f32.mrb[0].mxu0
        %v1340 = vadd.f32 0.0, %v1339
        %v1341 = vpop.f32.mrb[0].mxu0
        %v1342 = vadd.f32 0.0, %v1341
        %v1343 = vpop.f32.mrb[0].mxu0
        %v1344 = vadd.f32 0.0, %v1343
        %1345 = vmatprep.mubr.bf16.mxu0 0
        %1346 = vmatmul.mubr.bf16.gmra.mrb[0].mxu0 %v1196
        %v1347 = vpop.f32.mrb[0].mxu0
        %v1348 = vadd.f32 0.0, %v1347
        %v1349 = vpop.f32.mrb[0].mxu0
        %v1350 = vadd.f32 0.0, %v1349
        %v1351 = vpop.f32.mrb[0].mxu0
        %v1352 = vadd.f32 0.0, %v1351
        %v1353 = vpop.f32.mrb[0].mxu0
        %v1354 = vadd.f32 0.0, %v1353
        %1355 = vmatprep.mubr.bf16.mxu0 0
        %1356 = vmatmul.mubr.bf16.gmra.mrb[0].mxu0 %v1199
        %v1357 = vpop.f32.mrb[0].mxu0
        %v1358 = vadd.f32 0.0, %v1357
        %v1359 = vpop.f32.mrb[0].mxu0
        %v1360 = vadd.f32 0.0, %v1359
        %v1361 = vpop.f32.mrb[0].mxu0
        %v1362 = vadd.f32 0.0, %v1361
        %v1363 = vpop.f32.mrb[0].mxu0
        %v1364 = vadd.f32 0.0, %v1363
        %1365 = vmatprep.mubr.bf16.mxu0 0
        %1366 = vmatmul.mubr.bf16.gmra.mrb[0].mxu0 %v1202
        %v1367 = vpop.f32.mrb[0].mxu0
        %v1368 = vadd.f32 0.0, %v1367
        %v1369 = vpop.f32.mrb[0].mxu0
        %v1370 = vadd.f32 0.0, %v1369
        %v1371 = vpop.f32.mrb[0].mxu0
        %v1372 = vadd.f32 0.0, %v1371
        %v1373 = vpop.f32.mrb[0].mxu0
        %v1374 = vadd.f32 0.0, %v1373
        %1375 = vmatprep.mubr.bf16.mxu0 0
        %1376 = vmatmul.mubr.bf16.gmra.mrb[0].mxu0 %v1205
        %v1377 = vpop.f32.mrb[0].mxu0
        %v1378 = vadd.f32 0.0, %v1377
        %v1379 = vpop.f32.mrb[0].mxu0
        %v1380 = vadd.f32 0.0, %v1379
        %v1381 = vpop.f32.mrb[0].mxu0
        %v1382 = vadd.f32 0.0, %v1381
        %v1383 = vpop.f32.mrb[0].mxu0
        %v1384 = vadd.f32 0.0, %v1383
        %1385 = vmatprep.mubr.bf16.mxu0 0
        %1386 = vmatmul.mubr.bf16.gmra.mrb[0].mxu0 %v1208
        %v1387 = vpop.f32.mrb[0].mxu0
        %v1388 = vadd.f32 0.0, %v1387
        %v1389 = vpop.f32.mrb[0].mxu0
        %v1390 = vadd.f32 0.0, %v1389
        %v1391 = vpop.f32.mrb[0].mxu0
        %v1392 = vadd.f32 0.0, %v1391
        %v1393 = vpop.f32.mrb[0].mxu0
        %v1394 = vadd.f32 0.0, %v1393
        %1395 = vmatprep.mubr.bf16.mxu0 0
        %1396 = vmatmul.mubr.bf16.gmra.mrb[0].mxu0 %v1211
        %v1397 = vpop.f32.mrb[0].mxu0
        %v1398 = vadd.f32 0.0, %v1397
        %v1399 = vpop.f32.mrb[0].mxu0
        %v1400 = vadd.f32 0.0, %v1399
        %v1401 = vpop.f32.mrb[0].mxu0
        %v1402 = vadd.f32 0.0, %v1401
        %v1403 = vpop.f32.mrb[0].mxu0
        %v1404 = vadd.f32 0.0, %v1403
        %1405 = vmatprep.mubr.bf16.mxu0 0
        %1406 = vmatmul.mubr.bf16.gmra.mrb[0].mxu0 %v1214
        %v1407 = vpop.f32.mrb[0].mxu0
        %v1408 = vadd.f32 0.0, %v1407
        %v1409 = vpop.f32.mrb[0].mxu0
        %v1410 = vadd.f32 0.0, %v1409
        %v1411 = vpop.f32.mrb[0].mxu0
        %v1412 = vadd.f32 0.0, %v1411
        %v1413 = vpop.f32.mrb[0].mxu0
        %v1414 = vadd.f32 0.0, %v1413
        %1415 = vdwg.mxu0
        %v1417 = vsel %vm1167, %v991, 0
        %v1420 = vsel %vm1167, %v992, 0
        %v1423 = vsel %vm1167, %v993, 0
        %v1426 = vsel %vm1167, %v994, 0
        %v1429 = vsel %vm1167, %v995, 0
        %v1432 = vsel %vm1167, %v996, 0
        %v1435 = vsel %vm1167, %v997, 0
        %v1438 = vsel %vm1167, %v998, 0
        %v1441 = vsel %vm1167, %v999, 0
        %v1444 = vsel %vm1167, %v1000, 0
        %v1447 = vsel %vm1167, %v1001, 0
        %v1450 = vsel %vm1167, %v1002, 0
        %v1453 = vsel %vm1167, %v1003, 0
        %v1456 = vsel %vm1167, %v1004, 0
        %v1459 = vsel %vm1167, %v1005, 0
        %v1462 = vsel %vm1167, %v1006, 0
        %v1465 = vsel %vm1216, %v1121, 0
        %v1468 = vsel %vm1216, %v1122, 0
        %1470 = vmatprep.subr.bf16.mxu0 %v1468
        %1471 = vmatpush1.bf16.msra.mxu0 %v1465
        %1472 = vmatprep.subr.bf16.mxu0 0
        %1473 = vmatpush1.bf16.msra.mxu0 0
        %1474 = vmatprep.subr.bf16.mxu0 0
        %1475 = vmatpush1.bf16.msra.mxu0 0
        %1476 = vmatprep.subr.bf16.mxu0 0
        %1477 = vmatpush1.bf16.msra.mxu0 0
        %1478 = vmatprep.subr.bf16.mxu0 0
        %1479 = vmatpush1.bf16.msra.mxu0 0
        %1480 = vmatprep.subr.bf16.mxu0 0
        %1481 = vmatpush1.bf16.msra.mxu0 0
        %1482 = vmatprep.subr.bf16.mxu0 0
        %1483 = vmatpush1.bf16.msra.mxu0 0
        %1484 = vmatprep.subr.bf16.mxu0 0
        %1485 = vmatpush1.bf16.msra.mxu0 0
        %1486 = vmatprep.subr.bf16.mxu0 0
        %1487 = vmatpush1.bf16.msra.mxu0 0
        %1488 = vmatprep.subr.bf16.mxu0 0
        %1489 = vmatpush1.bf16.msra.mxu0 0
        %1490 = vmatprep.subr.bf16.mxu0 0
        %1491 = vmatpush1.bf16.msra.mxu0 0
        %1492 = vmatprep.subr.bf16.mxu0 0
        %1493 = vmatpush1.bf16.msra.mxu0 0
        %1494 = vmatprep.subr.bf16.mxu0 0
        %1495 = vmatpush1.bf16.msra.mxu0 0
        %1496 = vmatprep.subr.bf16.mxu0 0
        %1497 = vmatpush1.bf16.msra.mxu0 0
        %1498 = vmatprep.subr.bf16.mxu0 0
        %1499 = vmatpush1.bf16.msra.mxu0 0
        %1500 = vmatprep.subr.bf16.mxu0 0
        %1501 = vmatpush1.bf16.msra.mxu0 0
        %1502 = vmatprep.mubr.bf16.mxu0 0
        %1503 = vmatmul.mubr.bf16.gmra.mrb[0].mxu0 %v1417
        %v1504 = vpop.f32.mrb[0].mxu0
        %v1505 = vadd.f32 0.0, %v1504
        %v1506 = vpop.f32.mrb[0].mxu0
        %v1507 = vadd.f32 0.0, %v1506
        %v1508 = vpop.f32.mrb[0].mxu0
        %v1509 = vadd.f32 0.0, %v1508
        %v1510 = vpop.f32.mrb[0].mxu0
        %v1511 = vadd.f32 0.0, %v1510
        %1512 = vmatprep.mubr.bf16.mxu0 0
        %1513 = vmatmul.mubr.bf16.gmra.mrb[0].mxu0 %v1420
        %v1514 = vpop.f32.mrb[0].mxu0
        %v1515 = vadd.f32 0.0, %v1514
        %v1516 = vpop.f32.mrb[0].mxu0
        %v1517 = vadd.f32 0.0, %v1516
        %v1518 = vpop.f32.mrb[0].mxu0
        %v1519 = vadd.f32 0.0, %v1518
        %v1520 = vpop.f32.mrb[0].mxu0
        %v1521 = vadd.f32 0.0, %v1520
        %1522 = vmatprep.mubr.bf16.mxu0 0
        %1523 = vmatmul.mubr.bf16.gmra.mrb[0].mxu0 %v1423
        %v1524 = vpop.f32.mrb[0].mxu0
        %v1525 = vadd.f32 0.0, %v1524
        %v1526 = vpop.f32.mrb[0].mxu0
        %v1527 = vadd.f32 0.0, %v1526
        %v1528 = vpop.f32.mrb[0].mxu0
        %v1529 = vadd.f32 0.0, %v1528
        %v1530 = vpop.f32.mrb[0].mxu0
        %v1531 = vadd.f32 0.0, %v1530
        %1532 = vmatprep.mubr.bf16.mxu0 0
        %1533 = vmatmul.mubr.bf16.gmra.mrb[0].mxu0 %v1426
        %v1534 = vpop.f32.mrb[0].mxu0
        %v1535 = vadd.f32 0.0, %v1534
        %v1536 = vpop.f32.mrb[0].mxu0
        %v1537 = vadd.f32 0.0, %v1536
        %v1538 = vpop.f32.mrb[0].mxu0
        %v1539 = vadd.f32 0.0, %v1538
        %v1540 = vpop.f32.mrb[0].mxu0
        %v1541 = vadd.f32 0.0, %v1540
        %1542 = vmatprep.mubr.bf16.mxu0 0
        %1543 = vmatmul.mubr.bf16.gmra.mrb[0].mxu0 %v1429
        %v1544 = vpop.f32.mrb[0].mxu0
        %v1545 = vadd.f32 0.0, %v1544
        %v1546 = vpop.f32.mrb[0].mxu0
        %v1547 = vadd.f32 0.0, %v1546
        %v1548 = vpop.f32.mrb[0].mxu0
        %v1549 = vadd.f32 0.0, %v1548
        %v1550 = vpop.f32.mrb[0].mxu0
        %v1551 = vadd.f32 0.0, %v1550
        %1552 = vmatprep.mubr.bf16.mxu0 0
        %1553 = vmatmul.mubr.bf16.gmra.mrb[0].mxu0 %v1432
        %v1554 = vpop.f32.mrb[0].mxu0
        %v1555 = vadd.f32 0.0, %v1554
        %v1556 = vpop.f32.mrb[0].mxu0
        %v1557 = vadd.f32 0.0, %v1556
        %v1558 = vpop.f32.mrb[0].mxu0
        %v1559 = vadd.f32 0.0, %v1558
        %v1560 = vpop.f32.mrb[0].mxu0
        %v1561 = vadd.f32 0.0, %v1560
        %1562 = vmatprep.mubr.bf16.mxu0 0
        %1563 = vmatmul.mubr.bf16.gmra.mrb[0].mxu0 %v1435
        %v1564 = vpop.f32.mrb[0].mxu0
        %v1565 = vadd.f32 0.0, %v1564
        %v1566 = vpop.f32.mrb[0].mxu0
        %v1567 = vadd.f32 0.0, %v1566
        %v1568 = vpop.f32.mrb[0].mxu0
        %v1569 = vadd.f32 0.0, %v1568
        %v1570 = vpop.f32.mrb[0].mxu0
        %v1571 = vadd.f32 0.0, %v1570
        %1572 = vmatprep.mubr.bf16.mxu0 0
        %1573 = vmatmul.mubr.bf16.gmra.mrb[0].mxu0 %v1438
        %v1574 = vpop.f32.mrb[0].mxu0
        %v1575 = vadd.f32 0.0, %v1574
        %v1576 = vpop.f32.mrb[0].mxu0
        %v1577 = vadd.f32 0.0, %v1576
        %v1578 = vpop.f32.mrb[0].mxu0
        %v1579 = vadd.f32 0.0, %v1578
        %v1580 = vpop.f32.mrb[0].mxu0
        %v1581 = vadd.f32 0.0, %v1580
        %1582 = vmatprep.mubr.bf16.mxu0 0
        %1583 = vmatmul.mubr.bf16.gmra.mrb[0].mxu0 %v1441
        %v1584 = vpop.f32.mrb[0].mxu0
        %v1585 = vadd.f32 0.0, %v1584
        %v1586 = vpop.f32.mrb[0].mxu0
        %v1587 = vadd.f32 0.0, %v1586
        %v1588 = vpop.f32.mrb[0].mxu0
        %v1589 = vadd.f32 0.0, %v1588
        %v1590 = vpop.f32.mrb[0].mxu0
        %v1591 = vadd.f32 0.0, %v1590
        %1592 = vmatprep.mubr.bf16.mxu0 0
        %1593 = vmatmul.mubr.bf16.gmra.mrb[0].mxu0 %v1444
        %v1594 = vpop.f32.mrb[0].mxu0
        %v1595 = vadd.f32 0.0, %v1594
        %v1596 = vpop.f32.mrb[0].mxu0
        %v1597 = vadd.f32 0.0, %v1596
        %v1598 = vpop.f32.mrb[0].mxu0
        %v1599 = vadd.f32 0.0, %v1598
        %v1600 = vpop.f32.mrb[0].mxu0
        %v1601 = vadd.f32 0.0, %v1600
        %1602 = vmatprep.mubr.bf16.mxu0 0
        %1603 = vmatmul.mubr.bf16.gmra.mrb[0].mxu0 %v1447
        %v1604 = vpop.f32.mrb[0].mxu0
        %v1605 = vadd.f32 0.0, %v1604
        %v1606 = vpop.f32.mrb[0].mxu0
        %v1607 = vadd.f32 0.0, %v1606
        %v1608 = vpop.f32.mrb[0].mxu0
        %v1609 = vadd.f32 0.0, %v1608
        %v1610 = vpop.f32.mrb[0].mxu0
        %v1611 = vadd.f32 0.0, %v1610
        %1612 = vmatprep.mubr.bf16.mxu0 0
        %1613 = vmatmul.mubr.bf16.gmra.mrb[0].mxu0 %v1450
        %v1614 = vpop.f32.mrb[0].mxu0
        %v1615 = vadd.f32 0.0, %v1614
        %v1616 = vpop.f32.mrb[0].mxu0
        %v1617 = vadd.f32 0.0, %v1616
        %v1618 = vpop.f32.mrb[0].mxu0
        %v1619 = vadd.f32 0.0, %v1618
        %v1620 = vpop.f32.mrb[0].mxu0
        %v1621 = vadd.f32 0.0, %v1620
        %1622 = vmatprep.mubr.bf16.mxu0 0
        %1623 = vmatmul.mubr.bf16.gmra.mrb[0].mxu0 %v1453
        %v1624 = vpop.f32.mrb[0].mxu0
        %v1625 = vadd.f32 0.0, %v1624
        %v1626 = vpop.f32.mrb[0].mxu0
        %v1627 = vadd.f32 0.0, %v1626
        %v1628 = vpop.f32.mrb[0].mxu0
        %v1629 = vadd.f32 0.0, %v1628
        %v1630 = vpop.f32.mrb[0].mxu0
        %v1631 = vadd.f32 0.0, %v1630
        %1632 = vmatprep.mubr.bf16.mxu0 0
        %1633 = vmatmul.mubr.bf16.gmra.mrb[0].mxu0 %v1456
        %v1634 = vpop.f32.mrb[0].mxu0
        %v1635 = vadd.f32 0.0, %v1634
        %v1636 = vpop.f32.mrb[0].mxu0
        %v1637 = vadd.f32 0.0, %v1636
        %v1638 = vpop.f32.mrb[0].mxu0
        %v1639 = vadd.f32 0.0, %v1638
        %v1640 = vpop.f32.mrb[0].mxu0
        %v1641 = vadd.f32 0.0, %v1640
        %1642 = vmatprep.mubr.bf16.mxu0 0
        %1643 = vmatmul.mubr.bf16.gmra.mrb[0].mxu0 %v1459
        %v1644 = vpop.f32.mrb[0].mxu0
        %v1645 = vadd.f32 0.0, %v1644
        %v1646 = vpop.f32.mrb[0].mxu0
        %v1647 = vadd.f32 0.0, %v1646
        %v1648 = vpop.f32.mrb[0].mxu0
        %v1649 = vadd.f32 0.0, %v1648
        %v1650 = vpop.f32.mrb[0].mxu0
        %v1651 = vadd.f32 0.0, %v1650
        %1652 = vmatprep.mubr.bf16.mxu0 0
        %1653 = vmatmul.mubr.bf16.gmra.mrb[0].mxu0 %v1462
        %v1654 = vpop.f32.mrb[0].mxu0
        %v1655 = vadd.f32 0.0, %v1654
        %v1656 = vpop.f32.mrb[0].mxu0
        %v1657 = vadd.f32 0.0, %v1656
        %v1658 = vpop.f32.mrb[0].mxu0
        %v1659 = vadd.f32 0.0, %v1658
        %v1660 = vpop.f32.mrb[0].mxu0
        %v1661 = vadd.f32 0.0, %v1660
        %1662 = vdwg.mxu0
        %v1664 = vsel %vm1167, %v1007, 0
        %v1667 = vsel %vm1167, %v1008, 0
        %v1670 = vsel %vm1167, %v1009, 0
        %v1673 = vsel %vm1167, %v1010, 0
        %v1676 = vsel %vm1167, %v1011, 0
        %v1679 = vsel %vm1167, %v1012, 0
        %v1682 = vsel %vm1167, %v1013, 0
        %v1685 = vsel %vm1167, %v1014, 0
        %v1688 = vsel %vm1167, %v1015, 0
        %v1691 = vsel %vm1167, %v1016, 0
        %v1694 = vsel %vm1167, %v1017, 0
        %v1697 = vsel %vm1167, %v1018, 0
        %v1700 = vsel %vm1167, %v1019, 0
        %v1703 = vsel %vm1167, %v1020, 0
        %v1706 = vsel %vm1167, %v1021, 0
        %v1709 = vsel %vm1167, %v1022, 0
        %v1712 = vsel %vm1216, %v1123, 0
        %v1715 = vsel %vm1216, %v1124, 0
        %1717 = vmatprep.subr.bf16.mxu0 %v1715
        %1718 = vmatpush1.bf16.msra.mxu0 %v1712
        %1719 = vmatprep.subr.bf16.mxu0 0
        %1720 = vmatpush1.bf16.msra.mxu0 0
        %1721 = vmatprep.subr.bf16.mxu0 0
        %1722 = vmatpush1.bf16.msra.mxu0 0
        %1723 = vmatprep.subr.bf16.mxu0 0
        %1724 = vmatpush1.bf16.msra.mxu0 0
        %1725 = vmatprep.subr.bf16.mxu0 0
        %1726 = vmatpush1.bf16.msra.mxu0 0
        %1727 = vmatprep.subr.bf16.mxu0 0
        %1728 = vmatpush1.bf16.msra.mxu0 0
        %1729 = vmatprep.subr.bf16.mxu0 0
        %1730 = vmatpush1.bf16.msra.mxu0 0
        %1731 = vmatprep.subr.bf16.mxu0 0
        %1732 = vmatpush1.bf16.msra.mxu0 0
        %1733 = vmatprep.subr.bf16.mxu0 0
        %1734 = vmatpush1.bf16.msra.mxu0 0
        %1735 = vmatprep.subr.bf16.mxu0 0
        %1736 = vmatpush1.bf16.msra.mxu0 0
        %1737 = vmatprep.subr.bf16.mxu0 0
        %1738 = vmatpush1.bf16.msra.mxu0 0
        %1739 = vmatprep.subr.bf16.mxu0 0
        %1740 = vmatpush1.bf16.msra.mxu0 0
        %1741 = vmatprep.subr.bf16.mxu0 0
        %1742 = vmatpush1.bf16.msra.mxu0 0
        %1743 = vmatprep.subr.bf16.mxu0 0
        %1744 = vmatpush1.bf16.msra.mxu0 0
        %1745 = vmatprep.subr.bf16.mxu0 0
        %1746 = vmatpush1.bf16.msra.mxu0 0
        %1747 = vmatprep.subr.bf16.mxu0 0
        %1748 = vmatpush1.bf16.msra.mxu0 0
        %1749 = vmatprep.mubr.bf16.mxu0 0
        %1750 = vmatmul.mubr.bf16.gmra.mrb[0].mxu0 %v1664
        %v1751 = vpop.f32.mrb[0].mxu0
        %v1752 = vadd.f32 0.0, %v1751
        %v1753 = vpop.f32.mrb[0].mxu0
        %v1754 = vadd.f32 0.0, %v1753
        %v1755 = vpop.f32.mrb[0].mxu0
        %v1756 = vadd.f32 0.0, %v1755
        %v1757 = vpop.f32.mrb[0].mxu0
        %v1758 = vadd.f32 0.0, %v1757
        %1759 = vmatprep.mubr.bf16.mxu0 0
        %1760 = vmatmul.mubr.bf16.gmra.mrb[0].mxu0 %v1667
        %v1761 = vpop.f32.mrb[0].mxu0
        %v1762 = vadd.f32 0.0, %v1761
        %v1763 = vpop.f32.mrb[0].mxu0
        %v1764 = vadd.f32 0.0, %v1763
        %v1765 = vpop.f32.mrb[0].mxu0
        %v1766 = vadd.f32 0.0, %v1765
        %v1767 = vpop.f32.mrb[0].mxu0
        %v1768 = vadd.f32 0.0, %v1767
        %1769 = vmatprep.mubr.bf16.mxu0 0
        %1770 = vmatmul.mubr.bf16.gmra.mrb[0].mxu0 %v1670
        %v1771 = vpop.f32.mrb[0].mxu0
        %v1772 = vadd.f32 0.0, %v1771
        %v1773 = vpop.f32.mrb[0].mxu0
        %v1774 = vadd.f32 0.0, %v1773
        %v1775 = vpop.f32.mrb[0].mxu0
        %v1776 = vadd.f32 0.0, %v1775
        %v1777 = vpop.f32.mrb[0].mxu0
        %v1778 = vadd.f32 0.0, %v1777
        %1779 = vmatprep.mubr.bf16.mxu0 0
        %1780 = vmatmul.mubr.bf16.gmra.mrb[0].mxu0 %v1673
        %v1781 = vpop.f32.mrb[0].mxu0
        %v1782 = vadd.f32 0.0, %v1781
        %v1783 = vpop.f32.mrb[0].mxu0
        %v1784 = vadd.f32 0.0, %v1783
        %v1785 = vpop.f32.mrb[0].mxu0
        %v1786 = vadd.f32 0.0, %v1785
        %v1787 = vpop.f32.mrb[0].mxu0
        %v1788 = vadd.f32 0.0, %v1787
        %1789 = vmatprep.mubr.bf16.mxu0 0
        %1790 = vmatmul.mubr.bf16.gmra.mrb[0].mxu0 %v1676
        %v1791 = vpop.f32.mrb[0].mxu0
        %v1792 = vadd.f32 0.0, %v1791
        %v1793 = vpop.f32.mrb[0].mxu0
        %v1794 = vadd.f32 0.0, %v1793
        %v1795 = vpop.f32.mrb[0].mxu0
        %v1796 = vadd.f32 0.0, %v1795
        %v1797 = vpop.f32.mrb[0].mxu0
        %v1798 = vadd.f32 0.0, %v1797
        %1799 = vmatprep.mubr.bf16.mxu0 0
        %1800 = vmatmul.mubr.bf16.gmra.mrb[0].mxu0 %v1679
        %v1801 = vpop.f32.mrb[0].mxu0
        %v1802 = vadd.f32 0.0, %v1801
        %v1803 = vpop.f32.mrb[0].mxu0
        %v1804 = vadd.f32 0.0, %v1803
        %v1805 = vpop.f32.mrb[0].mxu0
        %v1806 = vadd.f32 0.0, %v1805
        %v1807 = vpop.f32.mrb[0].mxu0
        %v1808 = vadd.f32 0.0, %v1807
        %1809 = vmatprep.mubr.bf16.mxu0 0
        %1810 = vmatmul.mubr.bf16.gmra.mrb[0].mxu0 %v1682
        %v1811 = vpop.f32.mrb[0].mxu0
        %v1812 = vadd.f32 0.0, %v1811
        %v1813 = vpop.f32.mrb[0].mxu0
        %v1814 = vadd.f32 0.0, %v1813
        %v1815 = vpop.f32.mrb[0].mxu0
        %v1816 = vadd.f32 0.0, %v1815
        %v1817 = vpop.f32.mrb[0].mxu0
        %v1818 = vadd.f32 0.0, %v1817
        %1819 = vmatprep.mubr.bf16.mxu0 0
        %1820 = vmatmul.mubr.bf16.gmra.mrb[0].mxu0 %v1685
        %v1821 = vpop.f32.mrb[0].mxu0
        %v1822 = vadd.f32 0.0, %v1821
        %v1823 = vpop.f32.mrb[0].mxu0
        %v1824 = vadd.f32 0.0, %v1823
        %v1825 = vpop.f32.mrb[0].mxu0
        %v1826 = vadd.f32 0.0, %v1825
        %v1827 = vpop.f32.mrb[0].mxu0
        %v1828 = vadd.f32 0.0, %v1827
        %1829 = vmatprep.mubr.bf16.mxu0 0
        %1830 = vmatmul.mubr.bf16.gmra.mrb[0].mxu0 %v1688
        %v1831 = vpop.f32.mrb[0].mxu0
        %v1832 = vadd.f32 0.0, %v1831
        %v1833 = vpop.f32.mrb[0].mxu0
        %v1834 = vadd.f32 0.0, %v1833
        %v1835 = vpop.f32.mrb[0].mxu0
        %v1836 = vadd.f32 0.0, %v1835
        %v1837 = vpop.f32.mrb[0].mxu0
        %v1838 = vadd.f32 0.0, %v1837
        %1839 = vmatprep.mubr.bf16.mxu0 0
        %1840 = vmatmul.mubr.bf16.gmra.mrb[0].mxu0 %v1691
        %v1841 = vpop.f32.mrb[0].mxu0
        %v1842 = vadd.f32 0.0, %v1841
        %v1843 = vpop.f32.mrb[0].mxu0
        %v1844 = vadd.f32 0.0, %v1843
        %v1845 = vpop.f32.mrb[0].mxu0
        %v1846 = vadd.f32 0.0, %v1845
        %v1847 = vpop.f32.mrb[0].mxu0
        %v1848 = vadd.f32 0.0, %v1847
        %1849 = vmatprep.mubr.bf16.mxu0 0
        %1850 = vmatmul.mubr.bf16.gmra.mrb[0].mxu0 %v1694
        %v1851 = vpop.f32.mrb[0].mxu0
        %v1852 = vadd.f32 0.0, %v1851
        %v1853 = vpop.f32.mrb[0].mxu0
        %v1854 = vadd.f32 0.0, %v1853
        %v1855 = vpop.f32.mrb[0].mxu0
        %v1856 = vadd.f32 0.0, %v1855
        %v1857 = vpop.f32.mrb[0].mxu0
        %v1858 = vadd.f32 0.0, %v1857
        %1859 = vmatprep.mubr.bf16.mxu0 0
        %1860 = vmatmul.mubr.bf16.gmra.mrb[0].mxu0 %v1697
        %v1861 = vpop.f32.mrb[0].mxu0
        %v1862 = vadd.f32 0.0, %v1861
        %v1863 = vpop.f32.mrb[0].mxu0
        %v1864 = vadd.f32 0.0, %v1863
        %v1865 = vpop.f32.mrb[0].mxu0
        %v1866 = vadd.f32 0.0, %v1865
        %v1867 = vpop.f32.mrb[0].mxu0
        %v1868 = vadd.f32 0.0, %v1867
        %1869 = vmatprep.mubr.bf16.mxu0 0
        %1870 = vmatmul.mubr.bf16.gmra.mrb[0].mxu0 %v1700
        %v1871 = vpop.f32.mrb[0].mxu0
        %v1872 = vadd.f32 0.0, %v1871
        %v1873 = vpop.f32.mrb[0].mxu0
        %v1874 = vadd.f32 0.0, %v1873
        %v1875 = vpop.f32.mrb[0].mxu0
        %v1876 = vadd.f32 0.0, %v1875
        %v1877 = vpop.f32.mrb[0].mxu0
        %v1878 = vadd.f32 0.0, %v1877
        %1879 = vmatprep.mubr.bf16.mxu0 0
        %1880 = vmatmul.mubr.bf16.gmra.mrb[0].mxu0 %v1703
        %v1881 = vpop.f32.mrb[0].mxu0
        %v1882 = vadd.f32 0.0, %v1881
        %v1883 = vpop.f32.mrb[0].mxu0
        %v1884 = vadd.f32 0.0, %v1883
        %v1885 = vpop.f32.mrb[0].mxu0
        %v1886 = vadd.f32 0.0, %v1885
        %v1887 = vpop.f32.mrb[0].mxu0
        %v1888 = vadd.f32 0.0, %v1887
        %1889 = vmatprep.mubr.bf16.mxu0 0
        %1890 = vmatmul.mubr.bf16.gmra.mrb[0].mxu0 %v1706
        %v1891 = vpop.f32.mrb[0].mxu0
        %v1892 = vadd.f32 0.0, %v1891
        %v1893 = vpop.f32.mrb[0].mxu0
        %v1894 = vadd.f32 0.0, %v1893
        %v1895 = vpop.f32.mrb[0].mxu0
        %v1896 = vadd.f32 0.0, %v1895
        %v1897 = vpop.f32.mrb[0].mxu0
        %v1898 = vadd.f32 0.0, %v1897
        %1899 = vmatprep.mubr.bf16.mxu0 0
        %1900 = vmatmul.mubr.bf16.gmra.mrb[0].mxu0 %v1709
        %v1901 = vpop.f32.mrb[0].mxu0
        %v1902 = vadd.f32 0.0, %v1901
        %v1903 = vpop.f32.mrb[0].mxu0
        %v1904 = vadd.f32 0.0, %v1903
        %v1905 = vpop.f32.mrb[0].mxu0
        %v1906 = vadd.f32 0.0, %v1905
        %v1907 = vpop.f32.mrb[0].mxu0
        %v1908 = vadd.f32 0.0, %v1907
        %1909 = vdwg.mxu0
        %v1911 = vsel %vm1167, %v1023, 0
        %v1914 = vsel %vm1167, %v1024, 0
        %v1917 = vsel %vm1167, %v1025, 0
        %v1920 = vsel %vm1167, %v1026, 0
        %v1923 = vsel %vm1167, %v1027, 0
        %v1926 = vsel %vm1167, %v1028, 0
        %v1929 = vsel %vm1167, %v1029, 0
        %v1932 = vsel %vm1167, %v1030, 0
        %v1935 = vsel %vm1167, %v1031, 0
        %v1938 = vsel %vm1167, %v1032, 0
        %v1941 = vsel %vm1167, %v1033, 0
        %v1944 = vsel %vm1167, %v1034, 0
        %v1947 = vsel %vm1167, %v1035, 0
        %v1950 = vsel %vm1167, %v1036, 0
        %v1953 = vsel %vm1167, %v1037, 0
        %v1956 = vsel %vm1167, %v1038, 0
        %v1959 = vsel %vm1216, %v1125, 0
        %v1962 = vsel %vm1216, %v1126, 0
        %1964 = vmatprep.subr.bf16.mxu0 %v1962
        %1965 = vmatpush1.bf16.msra.mxu0 %v1959
        %1966 = vmatprep.subr.bf16.mxu0 0
        %1967 = vmatpush1.bf16.msra.mxu0 0
        %1968 = vmatprep.subr.bf16.mxu0 0
        %1969 = vmatpush1.bf16.msra.mxu0 0
        %1970 = vmatprep.subr.bf16.mxu0 0
        %1971 = vmatpush1.bf16.msra.mxu0 0
        %1972 = vmatprep.subr.bf16.mxu0 0
        %1973 = vmatpush1.bf16.msra.mxu0 0
        %1974 = vmatprep.subr.bf16.mxu0 0
        %1975 = vmatpush1.bf16.msra.mxu0 0
        %1976 = vmatprep.subr.bf16.mxu0 0
        %1977 = vmatpush1.bf16.msra.mxu0 0
        %1978 = vmatprep.subr.bf16.mxu0 0
        %1979 = vmatpush1.bf16.msra.mxu0 0
        %1980 = vmatprep.subr.bf16.mxu0 0
        %1981 = vmatpush1.bf16.msra.mxu0 0
        %1982 = vmatprep.subr.bf16.mxu0 0
        %1983 = vmatpush1.bf16.msra.mxu0 0
        %1984 = vmatprep.subr.bf16.mxu0 0
        %1985 = vmatpush1.bf16.msra.mxu0 0
        %1986 = vmatprep.subr.bf16.mxu0 0
        %1987 = vmatpush1.bf16.msra.mxu0 0
        %1988 = vmatprep.subr.bf16.mxu0 0
        %1989 = vmatpush1.bf16.msra.mxu0 0
        %1990 = vmatprep.subr.bf16.mxu0 0
        %1991 = vmatpush1.bf16.msra.mxu0 0
        %1992 = vmatprep.subr.bf16.mxu0 0
        %1993 = vmatpush1.bf16.msra.mxu0 0
        %1994 = vmatprep.subr.bf16.mxu0 0
        %1995 = vmatpush1.bf16.msra.mxu0 0
        %1996 = vmatprep.mubr.bf16.mxu0 0
        %1997 = vmatmul.mubr.bf16.gmra.mrb[0].mxu0 %v1911
        %v1998 = vpop.f32.mrb[0].mxu0
        %v1999 = vadd.f32 0.0, %v1998
        %v2000 = vpop.f32.mrb[0].mxu0
        %v2001 = vadd.f32 0.0, %v2000
        %v2002 = vpop.f32.mrb[0].mxu0
        %v2003 = vadd.f32 0.0, %v2002
        %v2004 = vpop.f32.mrb[0].mxu0
        %v2005 = vadd.f32 0.0, %v2004
        %2006 = vmatprep.mubr.bf16.mxu0 0
        %2007 = vmatmul.mubr.bf16.gmra.mrb[0].mxu0 %v1914
        %v2008 = vpop.f32.mrb[0].mxu0
        %v2009 = vadd.f32 0.0, %v2008
        %v2010 = vpop.f32.mrb[0].mxu0
        %v2011 = vadd.f32 0.0, %v2010
        %v2012 = vpop.f32.mrb[0].mxu0
        %v2013 = vadd.f32 0.0, %v2012
        %v2014 = vpop.f32.mrb[0].mxu0
        %v2015 = vadd.f32 0.0, %v2014
        %2016 = vmatprep.mubr.bf16.mxu0 0
        %2017 = vmatmul.mubr.bf16.gmra.mrb[0].mxu0 %v1917
        %v2018 = vpop.f32.mrb[0].mxu0
        %v2019 = vadd.f32 0.0, %v2018
        %v2020 = vpop.f32.mrb[0].mxu0
        %v2021 = vadd.f32 0.0, %v2020
        %v2022 = vpop.f32.mrb[0].mxu0
        %v2023 = vadd.f32 0.0, %v2022
        %v2024 = vpop.f32.mrb[0].mxu0
        %v2025 = vadd.f32 0.0, %v2024
        %2026 = vmatprep.mubr.bf16.mxu0 0
        %2027 = vmatmul.mubr.bf16.gmra.mrb[0].mxu0 %v1920
        %v2028 = vpop.f32.mrb[0].mxu0
        %v2029 = vadd.f32 0.0, %v2028
        %v2030 = vpop.f32.mrb[0].mxu0
        %v2031 = vadd.f32 0.0, %v2030
        %v2032 = vpop.f32.mrb[0].mxu0
        %v2033 = vadd.f32 0.0, %v2032
        %v2034 = vpop.f32.mrb[0].mxu0
        %v2035 = vadd.f32 0.0, %v2034
        %2036 = vmatprep.mubr.bf16.mxu0 0
        %2037 = vmatmul.mubr.bf16.gmra.mrb[0].mxu0 %v1923
        %v2038 = vpop.f32.mrb[0].mxu0
        %v2039 = vadd.f32 0.0, %v2038
        %v2040 = vpop.f32.mrb[0].mxu0
        %v2041 = vadd.f32 0.0, %v2040
        %v2042 = vpop.f32.mrb[0].mxu0
        %v2043 = vadd.f32 0.0, %v2042
        %v2044 = vpop.f32.mrb[0].mxu0
        %v2045 = vadd.f32 0.0, %v2044
        %2046 = vmatprep.mubr.bf16.mxu0 0
        %2047 = vmatmul.mubr.bf16.gmra.mrb[0].mxu0 %v1926
        %v2048 = vpop.f32.mrb[0].mxu0
        %v2049 = vadd.f32 0.0, %v2048
        %v2050 = vpop.f32.mrb[0].mxu0
        %v2051 = vadd.f32 0.0, %v2050
        %v2052 = vpop.f32.mrb[0].mxu0
        %v2053 = vadd.f32 0.0, %v2052
        %v2054 = vpop.f32.mrb[0].mxu0
        %v2055 = vadd.f32 0.0, %v2054
        %2056 = vmatprep.mubr.bf16.mxu0 0
        %2057 = vmatmul.mubr.bf16.gmra.mrb[0].mxu0 %v1929
        %v2058 = vpop.f32.mrb[0].mxu0
        %v2059 = vadd.f32 0.0, %v2058
        %v2060 = vpop.f32.mrb[0].mxu0
        %v2061 = vadd.f32 0.0, %v2060
        %v2062 = vpop.f32.mrb[0].mxu0
        %v2063 = vadd.f32 0.0, %v2062
        %v2064 = vpop.f32.mrb[0].mxu0
        %v2065 = vadd.f32 0.0, %v2064
        %2066 = vmatprep.mubr.bf16.mxu0 0
        %2067 = vmatmul.mubr.bf16.gmra.mrb[0].mxu0 %v1932
        %v2068 = vpop.f32.mrb[0].mxu0
        %v2069 = vadd.f32 0.0, %v2068
        %v2070 = vpop.f32.mrb[0].mxu0
        %v2071 = vadd.f32 0.0, %v2070
        %v2072 = vpop.f32.mrb[0].mxu0
        %v2073 = vadd.f32 0.0, %v2072
        %v2074 = vpop.f32.mrb[0].mxu0
        %v2075 = vadd.f32 0.0, %v2074
        %2076 = vmatprep.mubr.bf16.mxu0 0
        %2077 = vmatmul.mubr.bf16.gmra.mrb[0].mxu0 %v1935
        %v2078 = vpop.f32.mrb[0].mxu0
        %v2079 = vadd.f32 0.0, %v2078
        %v2080 = vpop.f32.mrb[0].mxu0
        %v2081 = vadd.f32 0.0, %v2080
        %v2082 = vpop.f32.mrb[0].mxu0
        %v2083 = vadd.f32 0.0, %v2082
        %v2084 = vpop.f32.mrb[0].mxu0
        %v2085 = vadd.f32 0.0, %v2084
        %2086 = vmatprep.mubr.bf16.mxu0 0
        %2087 = vmatmul.mubr.bf16.gmra.mrb[0].mxu0 %v1938
        %v2088 = vpop.f32.mrb[0].mxu0
        %v2089 = vadd.f32 0.0, %v2088
        %v2090 = vpop.f32.mrb[0].mxu0
        %v2091 = vadd.f32 0.0, %v2090
        %v2092 = vpop.f32.mrb[0].mxu0
        %v2093 = vadd.f32 0.0, %v2092
        %v2094 = vpop.f32.mrb[0].mxu0
        %v2095 = vadd.f32 0.0, %v2094
        %2096 = vmatprep.mubr.bf16.mxu0 0
        %2097 = vmatmul.mubr.bf16.gmra.mrb[0].mxu0 %v1941
        %v2098 = vpop.f32.mrb[0].mxu0
        %v2099 = vadd.f32 0.0, %v2098
        %v2100 = vpop.f32.mrb[0].mxu0
        %v2101 = vadd.f32 0.0, %v2100
        %v2102 = vpop.f32.mrb[0].mxu0
        %v2103 = vadd.f32 0.0, %v2102
        %v2104 = vpop.f32.mrb[0].mxu0
        %v2105 = vadd.f32 0.0, %v2104
        %2106 = vmatprep.mubr.bf16.mxu0 0
        %2107 = vmatmul.mubr.bf16.gmra.mrb[0].mxu0 %v1944
        %v2108 = vpop.f32.mrb[0].mxu0
        %v2109 = vadd.f32 0.0, %v2108
        %v2110 = vpop.f32.mrb[0].mxu0
        %v2111 = vadd.f32 0.0, %v2110
        %v2112 = vpop.f32.mrb[0].mxu0
        %v2113 = vadd.f32 0.0, %v2112
        %v2114 = vpop.f32.mrb[0].mxu0
        %v2115 = vadd.f32 0.0, %v2114
        %2116 = vmatprep.mubr.bf16.mxu0 0
        %2117 = vmatmul.mubr.bf16.gmra.mrb[0].mxu0 %v1947
        %v2118 = vpop.f32.mrb[0].mxu0
        %v2119 = vadd.f32 0.0, %v2118
        %v2120 = vpop.f32.mrb[0].mxu0
        %v2121 = vadd.f32 0.0, %v2120
        %v2122 = vpop.f32.mrb[0].mxu0
        %v2123 = vadd.f32 0.0, %v2122
        %v2124 = vpop.f32.mrb[0].mxu0
        %v2125 = vadd.f32 0.0, %v2124
        %2126 = vmatprep.mubr.bf16.mxu0 0
        %2127 = vmatmul.mubr.bf16.gmra.mrb[0].mxu0 %v1950
        %v2128 = vpop.f32.mrb[0].mxu0
        %v2129 = vadd.f32 0.0, %v2128
        %v2130 = vpop.f32.mrb[0].mxu0
        %v2131 = vadd.f32 0.0, %v2130
        %v2132 = vpop.f32.mrb[0].mxu0
        %v2133 = vadd.f32 0.0, %v2132
        %v2134 = vpop.f32.mrb[0].mxu0
        %v2135 = vadd.f32 0.0, %v2134
        %2136 = vmatprep.mubr.bf16.mxu0 0
        %2137 = vmatmul.mubr.bf16.gmra.mrb[0].mxu0 %v1953
        %v2138 = vpop.f32.mrb[0].mxu0
        %v2139 = vadd.f32 0.0, %v2138
        %v2140 = vpop.f32.mrb[0].mxu0
        %v2141 = vadd.f32 0.0, %v2140
        %v2142 = vpop.f32.mrb[0].mxu0
        %v2143 = vadd.f32 0.0, %v2142
        %v2144 = vpop.f32.mrb[0].mxu0
        %v2145 = vadd.f32 0.0, %v2144
        %2146 = vmatprep.mubr.bf16.mxu0 0
        %2147 = vmatmul.mubr.bf16.gmra.mrb[0].mxu0 %v1956
        %v2148 = vpop.f32.mrb[0].mxu0
        %v2149 = vadd.f32 0.0, %v2148
        %v2150 = vpop.f32.mrb[0].mxu0
        %v2151 = vadd.f32 0.0, %v2150
        %v2152 = vpop.f32.mrb[0].mxu0
        %v2153 = vadd.f32 0.0, %v2152
        %v2154 = vpop.f32.mrb[0].mxu0
        %v2155 = vadd.f32 0.0, %v2154
        %2156 = vdwg.mxu0
        %v2158 = vsel %vm1167, %v1039, 0
        %v2161 = vsel %vm1167, %v1040, 0
        %v2164 = vsel %vm1167, %v1041, 0
        %v2167 = vsel %vm1167, %v1042, 0
        %v2170 = vsel %vm1167, %v1043, 0
        %v2173 = vsel %vm1167, %v1044, 0
        %v2176 = vsel %vm1167, %v1045, 0
        %v2179 = vsel %vm1167, %v1046, 0
        %v2182 = vsel %vm1167, %v1047, 0
        %v2185 = vsel %vm1167, %v1048, 0
        %v2188 = vsel %vm1167, %v1049, 0
        %v2191 = vsel %vm1167, %v1050, 0
        %v2194 = vsel %vm1167, %v1051, 0
        %v2197 = vsel %vm1167, %v1052, 0
        %v2200 = vsel %vm1167, %v1053, 0
        %v2203 = vsel %vm1167, %v1054, 0
        %v2206 = vsel %vm1216, %v1127, 0
        %v2209 = vsel %vm1216, %v1128, 0
        %2211 = vmatprep.subr.bf16.mxu0 %v2209
        %2212 = vmatpush1.bf16.msra.mxu0 %v2206
        %2213 = vmatprep.subr.bf16.mxu0 0
        %2214 = vmatpush1.bf16.msra.mxu0 0
        %2215 = vmatprep.subr.bf16.mxu0 0
        %2216 = vmatpush1.bf16.msra.mxu0 0
        %2217 = vmatprep.subr.bf16.mxu0 0
        %2218 = vmatpush1.bf16.msra.mxu0 0
        %2219 = vmatprep.subr.bf16.mxu0 0
        %2220 = vmatpush1.bf16.msra.mxu0 0
        %2221 = vmatprep.subr.bf16.mxu0 0
        %2222 = vmatpush1.bf16.msra.mxu0 0
        %2223 = vmatprep.subr.bf16.mxu0 0
        %2224 = vmatpush1.bf16.msra.mxu0 0
        %2225 = vmatprep.subr.bf16.mxu0 0
        %2226 = vmatpush1.bf16.msra.mxu0 0
        %2227 = vmatprep.subr.bf16.mxu0 0
        %2228 = vmatpush1.bf16.msra.mxu0 0
        %2229 = vmatprep.subr.bf16.mxu0 0
        %2230 = vmatpush1.bf16.msra.mxu0 0
        %2231 = vmatprep.subr.bf16.mxu0 0
        %2232 = vmatpush1.bf16.msra.mxu0 0
        %2233 = vmatprep.subr.bf16.mxu0 0
        %2234 = vmatpush1.bf16.msra.mxu0 0
        %2235 = vmatprep.subr.bf16.mxu0 0
        %2236 = vmatpush1.bf16.msra.mxu0 0
        %2237 = vmatprep.subr.bf16.mxu0 0
        %2238 = vmatpush1.bf16.msra.mxu0 0
        %2239 = vmatprep.subr.bf16.mxu0 0
        %2240 = vmatpush1.bf16.msra.mxu0 0
        %2241 = vmatprep.subr.bf16.mxu0 0
        %2242 = vmatpush1.bf16.msra.mxu0 0
        %2243 = vmatprep.mubr.bf16.mxu0 0
        %2244 = vmatmul.mubr.bf16.gmra.mrb[0].mxu0 %v2158
        %v2245 = vpop.f32.mrb[0].mxu0
        %v2246 = vadd.f32 0.0, %v2245
        %v2247 = vpop.f32.mrb[0].mxu0
        %v2248 = vadd.f32 0.0, %v2247
        %v2249 = vpop.f32.mrb[0].mxu0
        %v2250 = vadd.f32 0.0, %v2249
        %v2251 = vpop.f32.mrb[0].mxu0
        %v2252 = vadd.f32 0.0, %v2251
        %2253 = vmatprep.mubr.bf16.mxu0 0
        %2254 = vmatmul.mubr.bf16.gmra.mrb[0].mxu0 %v2161
        %v2255 = vpop.f32.mrb[0].mxu0
        %v2256 = vadd.f32 0.0, %v2255
        %v2257 = vpop.f32.mrb[0].mxu0
        %v2258 = vadd.f32 0.0, %v2257
        %v2259 = vpop.f32.mrb[0].mxu0
        %v2260 = vadd.f32 0.0, %v2259
        %v2261 = vpop.f32.mrb[0].mxu0
        %v2262 = vadd.f32 0.0, %v2261
        %2263 = vmatprep.mubr.bf16.mxu0 0
        %2264 = vmatmul.mubr.bf16.gmra.mrb[0].mxu0 %v2164
        %v2265 = vpop.f32.mrb[0].mxu0
        %v2266 = vadd.f32 0.0, %v2265
        %v2267 = vpop.f32.mrb[0].mxu0
        %v2268 = vadd.f32 0.0, %v2267
        %v2269 = vpop.f32.mrb[0].mxu0
        %v2270 = vadd.f32 0.0, %v2269
        %v2271 = vpop.f32.mrb[0].mxu0
        %v2272 = vadd.f32 0.0, %v2271
        %2273 = vmatprep.mubr.bf16.mxu0 0
        %2274 = vmatmul.mubr.bf16.gmra.mrb[0].mxu0 %v2167
        %v2275 = vpop.f32.mrb[0].mxu0
        %v2276 = vadd.f32 0.0, %v2275
        %v2277 = vpop.f32.mrb[0].mxu0
        %v2278 = vadd.f32 0.0, %v2277
        %v2279 = vpop.f32.mrb[0].mxu0
        %v2280 = vadd.f32 0.0, %v2279
        %v2281 = vpop.f32.mrb[0].mxu0
        %v2282 = vadd.f32 0.0, %v2281
        %2283 = vmatprep.mubr.bf16.mxu0 0
        %2284 = vmatmul.mubr.bf16.gmra.mrb[0].mxu0 %v2170
        %v2285 = vpop.f32.mrb[0].mxu0
        %v2286 = vadd.f32 0.0, %v2285
        %v2287 = vpop.f32.mrb[0].mxu0
        %v2288 = vadd.f32 0.0, %v2287
        %v2289 = vpop.f32.mrb[0].mxu0
        %v2290 = vadd.f32 0.0, %v2289
        %v2291 = vpop.f32.mrb[0].mxu0
        %v2292 = vadd.f32 0.0, %v2291
        %2293 = vmatprep.mubr.bf16.mxu0 0
        %2294 = vmatmul.mubr.bf16.gmra.mrb[0].mxu0 %v2173
        %v2295 = vpop.f32.mrb[0].mxu0
        %v2296 = vadd.f32 0.0, %v2295
        %v2297 = vpop.f32.mrb[0].mxu0
        %v2298 = vadd.f32 0.0, %v2297
        %v2299 = vpop.f32.mrb[0].mxu0
        %v2300 = vadd.f32 0.0, %v2299
        %v2301 = vpop.f32.mrb[0].mxu0
        %v2302 = vadd.f32 0.0, %v2301
        %2303 = vmatprep.mubr.bf16.mxu0 0
        %2304 = vmatmul.mubr.bf16.gmra.mrb[0].mxu0 %v2176
        %v2305 = vpop.f32.mrb[0].mxu0
        %v2306 = vadd.f32 0.0, %v2305
        %v2307 = vpop.f32.mrb[0].mxu0
        %v2308 = vadd.f32 0.0, %v2307
        %v2309 = vpop.f32.mrb[0].mxu0
        %v2310 = vadd.f32 0.0, %v2309
        %v2311 = vpop.f32.mrb[0].mxu0
        %v2312 = vadd.f32 0.0, %v2311
        %2313 = vmatprep.mubr.bf16.mxu0 0
        %2314 = vmatmul.mubr.bf16.gmra.mrb[0].mxu0 %v2179
        %v2315 = vpop.f32.mrb[0].mxu0
        %v2316 = vadd.f32 0.0, %v2315
        %v2317 = vpop.f32.mrb[0].mxu0
        %v2318 = vadd.f32 0.0, %v2317
        %v2319 = vpop.f32.mrb[0].mxu0
        %v2320 = vadd.f32 0.0, %v2319
        %v2321 = vpop.f32.mrb[0].mxu0
        %v2322 = vadd.f32 0.0, %v2321
        %2323 = vmatprep.mubr.bf16.mxu0 0
        %2324 = vmatmul.mubr.bf16.gmra.mrb[0].mxu0 %v2182
        %v2325 = vpop.f32.mrb[0].mxu0
        %v2326 = vadd.f32 0.0, %v2325
        %v2327 = vpop.f32.mrb[0].mxu0
        %v2328 = vadd.f32 0.0, %v2327
        %v2329 = vpop.f32.mrb[0].mxu0
        %v2330 = vadd.f32 0.0, %v2329
        %v2331 = vpop.f32.mrb[0].mxu0
        %v2332 = vadd.f32 0.0, %v2331
        %2333 = vmatprep.mubr.bf16.mxu0 0
        %2334 = vmatmul.mubr.bf16.gmra.mrb[0].mxu0 %v2185
        %v2335 = vpop.f32.mrb[0].mxu0
        %v2336 = vadd.f32 0.0, %v2335
        %v2337 = vpop.f32.mrb[0].mxu0
        %v2338 = vadd.f32 0.0, %v2337
        %v2339 = vpop.f32.mrb[0].mxu0
        %v2340 = vadd.f32 0.0, %v2339
        %v2341 = vpop.f32.mrb[0].mxu0
        %v2342 = vadd.f32 0.0, %v2341
        %2343 = vmatprep.mubr.bf16.mxu0 0
        %2344 = vmatmul.mubr.bf16.gmra.mrb[0].mxu0 %v2188
        %v2345 = vpop.f32.mrb[0].mxu0
        %v2346 = vadd.f32 0.0, %v2345
        %v2347 = vpop.f32.mrb[0].mxu0
        %v2348 = vadd.f32 0.0, %v2347
        %v2349 = vpop.f32.mrb[0].mxu0
        %v2350 = vadd.f32 0.0, %v2349
        %v2351 = vpop.f32.mrb[0].mxu0
        %v2352 = vadd.f32 0.0, %v2351
        %2353 = vmatprep.mubr.bf16.mxu0 0
        %2354 = vmatmul.mubr.bf16.gmra.mrb[0].mxu0 %v2191
        %v2355 = vpop.f32.mrb[0].mxu0
        %v2356 = vadd.f32 0.0, %v2355
        %v2357 = vpop.f32.mrb[0].mxu0
        %v2358 = vadd.f32 0.0, %v2357
        %v2359 = vpop.f32.mrb[0].mxu0
        %v2360 = vadd.f32 0.0, %v2359
        %v2361 = vpop.f32.mrb[0].mxu0
        %v2362 = vadd.f32 0.0, %v2361
        %2363 = vmatprep.mubr.bf16.mxu0 0
        %2364 = vmatmul.mubr.bf16.gmra.mrb[0].mxu0 %v2194
        %v2365 = vpop.f32.mrb[0].mxu0
        %v2366 = vadd.f32 0.0, %v2365
        %v2367 = vpop.f32.mrb[0].mxu0
        %v2368 = vadd.f32 0.0, %v2367
        %v2369 = vpop.f32.mrb[0].mxu0
        %v2370 = vadd.f32 0.0, %v2369
        %v2371 = vpop.f32.mrb[0].mxu0
        %v2372 = vadd.f32 0.0, %v2371
        %2373 = vmatprep.mubr.bf16.mxu0 0
        %2374 = vmatmul.mubr.bf16.gmra.mrb[0].mxu0 %v2197
        %v2375 = vpop.f32.mrb[0].mxu0
        %v2376 = vadd.f32 0.0, %v2375
        %v2377 = vpop.f32.mrb[0].mxu0
        %v2378 = vadd.f32 0.0, %v2377
        %v2379 = vpop.f32.mrb[0].mxu0
        %v2380 = vadd.f32 0.0, %v2379
        %v2381 = vpop.f32.mrb[0].mxu0
        %v2382 = vadd.f32 0.0, %v2381
        %2383 = vmatprep.mubr.bf16.mxu0 0
        %2384 = vmatmul.mubr.bf16.gmra.mrb[0].mxu0 %v2200
        %v2385 = vpop.f32.mrb[0].mxu0
        %v2386 = vadd.f32 0.0, %v2385
        %v2387 = vpop.f32.mrb[0].mxu0
        %v2388 = vadd.f32 0.0, %v2387
        %v2389 = vpop.f32.mrb[0].mxu0
        %v2390 = vadd.f32 0.0, %v2389
        %v2391 = vpop.f32.mrb[0].mxu0
        %v2392 = vadd.f32 0.0, %v2391
        %2393 = vmatprep.mubr.bf16.mxu0 0
        %2394 = vmatmul.mubr.bf16.gmra.mrb[0].mxu0 %v2203
        %v2395 = vpop.f32.mrb[0].mxu0
        %v2396 = vadd.f32 0.0, %v2395
        %v2397 = vpop.f32.mrb[0].mxu0
        %v2398 = vadd.f32 0.0, %v2397
        %v2399 = vpop.f32.mrb[0].mxu0
        %v2400 = vadd.f32 0.0, %v2399
        %v2401 = vpop.f32.mrb[0].mxu0
        %v2402 = vadd.f32 0.0, %v2401
        %2403 = vdwg.mxu0
        %v2405 = vsel %vm1167, %v1055, 0
        %v2408 = vsel %vm1167, %v1056, 0
        %v2411 = vsel %vm1167, %v1057, 0
        %v2414 = vsel %vm1167, %v1058, 0
        %v2417 = vsel %vm1167, %v1059, 0
        %v2420 = vsel %vm1167, %v1060, 0
        %v2423 = vsel %vm1167, %v1061, 0
        %v2426 = vsel %vm1167, %v1062, 0
        %v2429 = vsel %vm1167, %v1063, 0
        %v2432 = vsel %vm1167, %v1064, 0
        %v2435 = vsel %vm1167, %v1065, 0
        %v2438 = vsel %vm1167, %v1066, 0
        %v2441 = vsel %vm1167, %v1067, 0
        %v2444 = vsel %vm1167, %v1068, 0
        %v2447 = vsel %vm1167, %v1069, 0
        %v2450 = vsel %vm1167, %v1070, 0
        %v2453 = vsel %vm1216, %v1129, 0
        %v2456 = vsel %vm1216, %v1130, 0
        %2458 = vmatprep.subr.bf16.mxu0 %v2456
        %2459 = vmatpush1.bf16.msra.mxu0 %v2453
        %2460 = vmatprep.subr.bf16.mxu0 0
        %2461 = vmatpush1.bf16.msra.mxu0 0
        %2462 = vmatprep.subr.bf16.mxu0 0
        %2463 = vmatpush1.bf16.msra.mxu0 0
        %2464 = vmatprep.subr.bf16.mxu0 0
        %2465 = vmatpush1.bf16.msra.mxu0 0
        %2466 = vmatprep.subr.bf16.mxu0 0
        %2467 = vmatpush1.bf16.msra.mxu0 0
        %2468 = vmatprep.subr.bf16.mxu0 0
        %2469 = vmatpush1.bf16.msra.mxu0 0
        %2470 = vmatprep.subr.bf16.mxu0 0
        %2471 = vmatpush1.bf16.msra.mxu0 0
        %2472 = vmatprep.subr.bf16.mxu0 0
        %2473 = vmatpush1.bf16.msra.mxu0 0
        %2474 = vmatprep.subr.bf16.mxu0 0
        %2475 = vmatpush1.bf16.msra.mxu0 0
        %2476 = vmatprep.subr.bf16.mxu0 0
        %2477 = vmatpush1.bf16.msra.mxu0 0
        %2478 = vmatprep.subr.bf16.mxu0 0
        %2479 = vmatpush1.bf16.msra.mxu0 0
        %2480 = vmatprep.subr.bf16.mxu0 0
        %2481 = vmatpush1.bf16.msra.mxu0 0
        %2482 = vmatprep.subr.bf16.mxu0 0
        %2483 = vmatpush1.bf16.msra.mxu0 0
        %2484 = vmatprep.subr.bf16.mxu0 0
        %2485 = vmatpush1.bf16.msra.mxu0 0
        %2486 = vmatprep.subr.bf16.mxu0 0
        %2487 = vmatpush1.bf16.msra.mxu0 0
        %2488 = vmatprep.subr.bf16.mxu0 0
        %2489 = vmatpush1.bf16.msra.mxu0 0
        %2490 = vmatprep.mubr.bf16.mxu0 0
        %2491 = vmatmul.mubr.bf16.gmra.mrb[0].mxu0 %v2405
        %v2492 = vpop.f32.mrb[0].mxu0
        %v2493 = vadd.f32 0.0, %v2492
        %v2494 = vpop.f32.mrb[0].mxu0
        %v2495 = vadd.f32 0.0, %v2494
        %v2496 = vpop.f32.mrb[0].mxu0
        %v2497 = vadd.f32 0.0, %v2496
        %v2498 = vpop.f32.mrb[0].mxu0
        %v2499 = vadd.f32 0.0, %v2498
        %2500 = vmatprep.mubr.bf16.mxu0 0
        %2501 = vmatmul.mubr.bf16.gmra.mrb[0].mxu0 %v2408
        %v2502 = vpop.f32.mrb[0].mxu0
        %v2503 = vadd.f32 0.0, %v2502
        %v2504 = vpop.f32.mrb[0].mxu0
        %v2505 = vadd.f32 0.0, %v2504
        %v2506 = vpop.f32.mrb[0].mxu0
        %v2507 = vadd.f32 0.0, %v2506
        %v2508 = vpop.f32.mrb[0].mxu0
        %v2509 = vadd.f32 0.0, %v2508
        %2510 = vmatprep.mubr.bf16.mxu0 0
        %2511 = vmatmul.mubr.bf16.gmra.mrb[0].mxu0 %v2411
        %v2512 = vpop.f32.mrb[0].mxu0
        %v2513 = vadd.f32 0.0, %v2512
        %v2514 = vpop.f32.mrb[0].mxu0
        %v2515 = vadd.f32 0.0, %v2514
        %v2516 = vpop.f32.mrb[0].mxu0
        %v2517 = vadd.f32 0.0, %v2516
        %v2518 = vpop.f32.mrb[0].mxu0
        %v2519 = vadd.f32 0.0, %v2518
        %2520 = vmatprep.mubr.bf16.mxu0 0
        %2521 = vmatmul.mubr.bf16.gmra.mrb[0].mxu0 %v2414
        %v2522 = vpop.f32.mrb[0].mxu0
        %v2523 = vadd.f32 0.0, %v2522
        %v2524 = vpop.f32.mrb[0].mxu0
        %v2525 = vadd.f32 0.0, %v2524
        %v2526 = vpop.f32.mrb[0].mxu0
        %v2527 = vadd.f32 0.0, %v2526
        %v2528 = vpop.f32.mrb[0].mxu0
        %v2529 = vadd.f32 0.0, %v2528
        %2530 = vmatprep.mubr.bf16.mxu0 0
        %2531 = vmatmul.mubr.bf16.gmra.mrb[0].mxu0 %v2417
        %v2532 = vpop.f32.mrb[0].mxu0
        %v2533 = vadd.f32 0.0, %v2532
        %v2534 = vpop.f32.mrb[0].mxu0
        %v2535 = vadd.f32 0.0, %v2534
        %v2536 = vpop.f32.mrb[0].mxu0
        %v2537 = vadd.f32 0.0, %v2536
        %v2538 = vpop.f32.mrb[0].mxu0
        %v2539 = vadd.f32 0.0, %v2538
        %2540 = vmatprep.mubr.bf16.mxu0 0
        %2541 = vmatmul.mubr.bf16.gmra.mrb[0].mxu0 %v2420
        %v2542 = vpop.f32.mrb[0].mxu0
        %v2543 = vadd.f32 0.0, %v2542
        %v2544 = vpop.f32.mrb[0].mxu0
        %v2545 = vadd.f32 0.0, %v2544
        %v2546 = vpop.f32.mrb[0].mxu0
        %v2547 = vadd.f32 0.0, %v2546
        %v2548 = vpop.f32.mrb[0].mxu0
        %v2549 = vadd.f32 0.0, %v2548
        %2550 = vmatprep.mubr.bf16.mxu0 0
        %2551 = vmatmul.mubr.bf16.gmra.mrb[0].mxu0 %v2423
        %v2552 = vpop.f32.mrb[0].mxu0
        %v2553 = vadd.f32 0.0, %v2552
        %v2554 = vpop.f32.mrb[0].mxu0
        %v2555 = vadd.f32 0.0, %v2554
        %v2556 = vpop.f32.mrb[0].mxu0
        %v2557 = vadd.f32 0.0, %v2556
        %v2558 = vpop.f32.mrb[0].mxu0
        %v2559 = vadd.f32 0.0, %v2558
        %2560 = vmatprep.mubr.bf16.mxu0 0
        %2561 = vmatmul.mubr.bf16.gmra.mrb[0].mxu0 %v2426
        %v2562 = vpop.f32.mrb[0].mxu0
        %v2563 = vadd.f32 0.0, %v2562
        %v2564 = vpop.f32.mrb[0].mxu0
        %v2565 = vadd.f32 0.0, %v2564
        %v2566 = vpop.f32.mrb[0].mxu0
        %v2567 = vadd.f32 0.0, %v2566
        %v2568 = vpop.f32.mrb[0].mxu0
        %v2569 = vadd.f32 0.0, %v2568
        %2570 = vmatprep.mubr.bf16.mxu0 0
        %2571 = vmatmul.mubr.bf16.gmra.mrb[0].mxu0 %v2429
        %v2572 = vpop.f32.mrb[0].mxu0
        %v2573 = vadd.f32 0.0, %v2572
        %v2574 = vpop.f32.mrb[0].mxu0
        %v2575 = vadd.f32 0.0, %v2574
        %v2576 = vpop.f32.mrb[0].mxu0
        %v2577 = vadd.f32 0.0, %v2576
        %v2578 = vpop.f32.mrb[0].mxu0
        %v2579 = vadd.f32 0.0, %v2578
        %2580 = vmatprep.mubr.bf16.mxu0 0
        %2581 = vmatmul.mubr.bf16.gmra.mrb[0].mxu0 %v2432
        %v2582 = vpop.f32.mrb[0].mxu0
        %v2583 = vadd.f32 0.0, %v2582
        %v2584 = vpop.f32.mrb[0].mxu0
        %v2585 = vadd.f32 0.0, %v2584
        %v2586 = vpop.f32.mrb[0].mxu0
        %v2587 = vadd.f32 0.0, %v2586
        %v2588 = vpop.f32.mrb[0].mxu0
        %v2589 = vadd.f32 0.0, %v2588
        %2590 = vmatprep.mubr.bf16.mxu0 0
        %2591 = vmatmul.mubr.bf16.gmra.mrb[0].mxu0 %v2435
        %v2592 = vpop.f32.mrb[0].mxu0
        %v2593 = vadd.f32 0.0, %v2592
        %v2594 = vpop.f32.mrb[0].mxu0
        %v2595 = vadd.f32 0.0, %v2594
        %v2596 = vpop.f32.mrb[0].mxu0
        %v2597 = vadd.f32 0.0, %v2596
        %v2598 = vpop.f32.mrb[0].mxu0
        %v2599 = vadd.f32 0.0, %v2598
        %2600 = vmatprep.mubr.bf16.mxu0 0
        %2601 = vmatmul.mubr.bf16.gmra.mrb[0].mxu0 %v2438
        %v2602 = vpop.f32.mrb[0].mxu0
        %v2603 = vadd.f32 0.0, %v2602
        %v2604 = vpop.f32.mrb[0].mxu0
        %v2605 = vadd.f32 0.0, %v2604
        %v2606 = vpop.f32.mrb[0].mxu0
        %v2607 = vadd.f32 0.0, %v2606
        %v2608 = vpop.f32.mrb[0].mxu0
        %v2609 = vadd.f32 0.0, %v2608
        %2610 = vmatprep.mubr.bf16.mxu0 0
        %2611 = vmatmul.mubr.bf16.gmra.mrb[0].mxu0 %v2441
        %v2612 = vpop.f32.mrb[0].mxu0
        %v2613 = vadd.f32 0.0, %v2612
        %v2614 = vpop.f32.mrb[0].mxu0
        %v2615 = vadd.f32 0.0, %v2614
        %v2616 = vpop.f32.mrb[0].mxu0
        %v2617 = vadd.f32 0.0, %v2616
        %v2618 = vpop.f32.mrb[0].mxu0
        %v2619 = vadd.f32 0.0, %v2618
        %2620 = vmatprep.mubr.bf16.mxu0 0
        %2621 = vmatmul.mubr.bf16.gmra.mrb[0].mxu0 %v2444
        %v2622 = vpop.f32.mrb[0].mxu0
        %v2623 = vadd.f32 0.0, %v2622
        %v2624 = vpop.f32.mrb[0].mxu0
        %v2625 = vadd.f32 0.0, %v2624
        %v2626 = vpop.f32.mrb[0].mxu0
        %v2627 = vadd.f32 0.0, %v2626
        %v2628 = vpop.f32.mrb[0].mxu0
        %v2629 = vadd.f32 0.0, %v2628
        %2630 = vmatprep.mubr.bf16.mxu0 0
        %2631 = vmatmul.mubr.bf16.gmra.mrb[0].mxu0 %v2447
        %v2632 = vpop.f32.mrb[0].mxu0
        %v2633 = vadd.f32 0.0, %v2632
        %v2634 = vpop.f32.mrb[0].mxu0
        %v2635 = vadd.f32 0.0, %v2634
        %v2636 = vpop.f32.mrb[0].mxu0
        %v2637 = vadd.f32 0.0, %v2636
        %v2638 = vpop.f32.mrb[0].mxu0
        %v2639 = vadd.f32 0.0, %v2638
        %2640 = vmatprep.mubr.bf16.mxu0 0
        %2641 = vmatmul.mubr.bf16.gmra.mrb[0].mxu0 %v2450
        %v2642 = vpop.f32.mrb[0].mxu0
        %v2643 = vadd.f32 0.0, %v2642
        %v2644 = vpop.f32.mrb[0].mxu0
        %v2645 = vadd.f32 0.0, %v2644
        %v2646 = vpop.f32.mrb[0].mxu0
        %v2647 = vadd.f32 0.0, %v2646
        %v2648 = vpop.f32.mrb[0].mxu0
        %v2649 = vadd.f32 0.0, %v2648
        %2650 = vdwg.mxu0
        %v2652 = vsel %vm1167, %v1071, 0
        %v2655 = vsel %vm1167, %v1072, 0
        %v2658 = vsel %vm1167, %v1073, 0
        %v2661 = vsel %vm1167, %v1074, 0
        %v2664 = vsel %vm1167, %v1075, 0
        %v2667 = vsel %vm1167, %v1076, 0
        %v2670 = vsel %vm1167, %v1077, 0
        %v2673 = vsel %vm1167, %v1078, 0
        %v2676 = vsel %vm1167, %v1079, 0
        %v2679 = vsel %vm1167, %v1080, 0
        %v2682 = vsel %vm1167, %v1081, 0
        %v2685 = vsel %vm1167, %v1082, 0
        %v2688 = vsel %vm1167, %v1083, 0
        %v2691 = vsel %vm1167, %v1084, 0
        %v2694 = vsel %vm1167, %v1085, 0
        %v2697 = vsel %vm1167, %v1086, 0
        %v2700 = vsel %vm1216, %v1131, 0
        %v2703 = vsel %vm1216, %v1132, 0
        %2705 = vmatprep.subr.bf16.mxu0 %v2703
        %2706 = vmatpush1.bf16.msra.mxu0 %v2700
        %2707 = vmatprep.subr.bf16.mxu0 0
        %2708 = vmatpush1.bf16.msra.mxu0 0
        %2709 = vmatprep.subr.bf16.mxu0 0
        %2710 = vmatpush1.bf16.msra.mxu0 0
        %2711 = vmatprep.subr.bf16.mxu0 0
        %2712 = vmatpush1.bf16.msra.mxu0 0
        %2713 = vmatprep.subr.bf16.mxu0 0
        %2714 = vmatpush1.bf16.msra.mxu0 0
        %2715 = vmatprep.subr.bf16.mxu0 0
        %2716 = vmatpush1.bf16.msra.mxu0 0
        %2717 = vmatprep.subr.bf16.mxu0 0
        %2718 = vmatpush1.bf16.msra.mxu0 0
        %2719 = vmatprep.subr.bf16.mxu0 0
        %2720 = vmatpush1.bf16.msra.mxu0 0
        %2721 = vmatprep.subr.bf16.mxu0 0
        %2722 = vmatpush1.bf16.msra.mxu0 0
        %2723 = vmatprep.subr.bf16.mxu0 0
        %2724 = vmatpush1.bf16.msra.mxu0 0
        %2725 = vmatprep.subr.bf16.mxu0 0
        %2726 = vmatpush1.bf16.msra.mxu0 0
        %2727 = vmatprep.subr.bf16.mxu0 0
        %2728 = vmatpush1.bf16.msra.mxu0 0
        %2729 = vmatprep.subr.bf16.mxu0 0
        %2730 = vmatpush1.bf16.msra.mxu0 0
        %2731 = vmatprep.subr.bf16.mxu0 0
        %2732 = vmatpush1.bf16.msra.mxu0 0
        %2733 = vmatprep.subr.bf16.mxu0 0
        %2734 = vmatpush1.bf16.msra.mxu0 0
        %2735 = vmatprep.subr.bf16.mxu0 0
        %2736 = vmatpush1.bf16.msra.mxu0 0
        %2737 = vmatprep.mubr.bf16.mxu0 0
        %2738 = vmatmul.mubr.bf16.gmra.mrb[0].mxu0 %v2652
        %v2739 = vpop.f32.mrb[0].mxu0
        %v2740 = vadd.f32 0.0, %v2739
        %v2741 = vpop.f32.mrb[0].mxu0
        %v2742 = vadd.f32 0.0, %v2741
        %v2743 = vpop.f32.mrb[0].mxu0
        %v2744 = vadd.f32 0.0, %v2743
        %v2745 = vpop.f32.mrb[0].mxu0
        %v2746 = vadd.f32 0.0, %v2745
        %2747 = vmatprep.mubr.bf16.mxu0 0
        %2748 = vmatmul.mubr.bf16.gmra.mrb[0].mxu0 %v2655
        %v2749 = vpop.f32.mrb[0].mxu0
        %v2750 = vadd.f32 0.0, %v2749
        %v2751 = vpop.f32.mrb[0].mxu0
        %v2752 = vadd.f32 0.0, %v2751
        %v2753 = vpop.f32.mrb[0].mxu0
        %v2754 = vadd.f32 0.0, %v2753
        %v2755 = vpop.f32.mrb[0].mxu0
        %v2756 = vadd.f32 0.0, %v2755
        %2757 = vmatprep.mubr.bf16.mxu0 0
        %2758 = vmatmul.mubr.bf16.gmra.mrb[0].mxu0 %v2658
        %v2759 = vpop.f32.mrb[0].mxu0
        %v2760 = vadd.f32 0.0, %v2759
        %v2761 = vpop.f32.mrb[0].mxu0
        %v2762 = vadd.f32 0.0, %v2761
        %v2763 = vpop.f32.mrb[0].mxu0
        %v2764 = vadd.f32 0.0, %v2763
        %v2765 = vpop.f32.mrb[0].mxu0
        %v2766 = vadd.f32 0.0, %v2765
        %2767 = vmatprep.mubr.bf16.mxu0 0
        %2768 = vmatmul.mubr.bf16.gmra.mrb[0].mxu0 %v2661
        %v2769 = vpop.f32.mrb[0].mxu0
        %v2770 = vadd.f32 0.0, %v2769
        %v2771 = vpop.f32.mrb[0].mxu0
        %v2772 = vadd.f32 0.0, %v2771
        %v2773 = vpop.f32.mrb[0].mxu0
        %v2774 = vadd.f32 0.0, %v2773
        %v2775 = vpop.f32.mrb[0].mxu0
        %v2776 = vadd.f32 0.0, %v2775
        %2777 = vmatprep.mubr.bf16.mxu0 0
        %2778 = vmatmul.mubr.bf16.gmra.mrb[0].mxu0 %v2664
        %v2779 = vpop.f32.mrb[0].mxu0
        %v2780 = vadd.f32 0.0, %v2779
        %v2781 = vpop.f32.mrb[0].mxu0
        %v2782 = vadd.f32 0.0, %v2781
        %v2783 = vpop.f32.mrb[0].mxu0
        %v2784 = vadd.f32 0.0, %v2783
        %v2785 = vpop.f32.mrb[0].mxu0
        %v2786 = vadd.f32 0.0, %v2785
        %2787 = vmatprep.mubr.bf16.mxu0 0
        %2788 = vmatmul.mubr.bf16.gmra.mrb[0].mxu0 %v2667
        %v2789 = vpop.f32.mrb[0].mxu0
        %v2790 = vadd.f32 0.0, %v2789
        %v2791 = vpop.f32.mrb[0].mxu0
        %v2792 = vadd.f32 0.0, %v2791
        %v2793 = vpop.f32.mrb[0].mxu0
        %v2794 = vadd.f32 0.0, %v2793
        %v2795 = vpop.f32.mrb[0].mxu0
        %v2796 = vadd.f32 0.0, %v2795
        %2797 = vmatprep.mubr.bf16.mxu0 0
        %2798 = vmatmul.mubr.bf16.gmra.mrb[0].mxu0 %v2670
        %v2799 = vpop.f32.mrb[0].mxu0
        %v2800 = vadd.f32 0.0, %v2799
        %v2801 = vpop.f32.mrb[0].mxu0
        %v2802 = vadd.f32 0.0, %v2801
        %v2803 = vpop.f32.mrb[0].mxu0
        %v2804 = vadd.f32 0.0, %v2803
        %v2805 = vpop.f32.mrb[0].mxu0
        %v2806 = vadd.f32 0.0, %v2805
        %2807 = vmatprep.mubr.bf16.mxu0 0
        %2808 = vmatmul.mubr.bf16.gmra.mrb[0].mxu0 %v2673
        %v2809 = vpop.f32.mrb[0].mxu0
        %v2810 = vadd.f32 0.0, %v2809
        %v2811 = vpop.f32.mrb[0].mxu0
        %v2812 = vadd.f32 0.0, %v2811
        %v2813 = vpop.f32.mrb[0].mxu0
        %v2814 = vadd.f32 0.0, %v2813
        %v2815 = vpop.f32.mrb[0].mxu0
        %v2816 = vadd.f32 0.0, %v2815
        %2817 = vmatprep.mubr.bf16.mxu0 0
        %2818 = vmatmul.mubr.bf16.gmra.mrb[0].mxu0 %v2676
        %v2819 = vpop.f32.mrb[0].mxu0
        %v2820 = vadd.f32 0.0, %v2819
        %v2821 = vpop.f32.mrb[0].mxu0
        %v2822 = vadd.f32 0.0, %v2821
        %v2823 = vpop.f32.mrb[0].mxu0
        %v2824 = vadd.f32 0.0, %v2823
        %v2825 = vpop.f32.mrb[0].mxu0
        %v2826 = vadd.f32 0.0, %v2825
        %2827 = vmatprep.mubr.bf16.mxu0 0
        %2828 = vmatmul.mubr.bf16.gmra.mrb[0].mxu0 %v2679
        %v2829 = vpop.f32.mrb[0].mxu0
        %v2830 = vadd.f32 0.0, %v2829
        %v2831 = vpop.f32.mrb[0].mxu0
        %v2832 = vadd.f32 0.0, %v2831
        %v2833 = vpop.f32.mrb[0].mxu0
        %v2834 = vadd.f32 0.0, %v2833
        %v2835 = vpop.f32.mrb[0].mxu0
        %v2836 = vadd.f32 0.0, %v2835
        %2837 = vmatprep.mubr.bf16.mxu0 0
        %2838 = vmatmul.mubr.bf16.gmra.mrb[0].mxu0 %v2682
        %v2839 = vpop.f32.mrb[0].mxu0
        %v2840 = vadd.f32 0.0, %v2839
        %v2841 = vpop.f32.mrb[0].mxu0
        %v2842 = vadd.f32 0.0, %v2841
        %v2843 = vpop.f32.mrb[0].mxu0
        %v2844 = vadd.f32 0.0, %v2843
        %v2845 = vpop.f32.mrb[0].mxu0
        %v2846 = vadd.f32 0.0, %v2845
        %2847 = vmatprep.mubr.bf16.mxu0 0
        %2848 = vmatmul.mubr.bf16.gmra.mrb[0].mxu0 %v2685
        %v2849 = vpop.f32.mrb[0].mxu0
        %v2850 = vadd.f32 0.0, %v2849
        %v2851 = vpop.f32.mrb[0].mxu0
        %v2852 = vadd.f32 0.0, %v2851
        %v2853 = vpop.f32.mrb[0].mxu0
        %v2854 = vadd.f32 0.0, %v2853
        %v2855 = vpop.f32.mrb[0].mxu0
        %v2856 = vadd.f32 0.0, %v2855
        %2857 = vmatprep.mubr.bf16.mxu0 0
        %2858 = vmatmul.mubr.bf16.gmra.mrb[0].mxu0 %v2688
        %v2859 = vpop.f32.mrb[0].mxu0
        %v2860 = vadd.f32 0.0, %v2859
        %v2861 = vpop.f32.mrb[0].mxu0
        %v2862 = vadd.f32 0.0, %v2861
        %v2863 = vpop.f32.mrb[0].mxu0
        %v2864 = vadd.f32 0.0, %v2863
        %v2865 = vpop.f32.mrb[0].mxu0
        %v2866 = vadd.f32 0.0, %v2865
        %2867 = vmatprep.mubr.bf16.mxu0 0
        %2868 = vmatmul.mubr.bf16.gmra.mrb[0].mxu0 %v2691
        %v2869 = vpop.f32.mrb[0].mxu0
        %v2870 = vadd.f32 0.0, %v2869
        %v2871 = vpop.f32.mrb[0].mxu0
        %v2872 = vadd.f32 0.0, %v2871
        %v2873 = vpop.f32.mrb[0].mxu0
        %v2874 = vadd.f32 0.0, %v2873
        %v2875 = vpop.f32.mrb[0].mxu0
        %v2876 = vadd.f32 0.0, %v2875
        %2877 = vmatprep.mubr.bf16.mxu0 0
        %2878 = vmatmul.mubr.bf16.gmra.mrb[0].mxu0 %v2694
        %v2879 = vpop.f32.mrb[0].mxu0
        %v2880 = vadd.f32 0.0, %v2879
        %v2881 = vpop.f32.mrb[0].mxu0
        %v2882 = vadd.f32 0.0, %v2881
        %v2883 = vpop.f32.mrb[0].mxu0
        %v2884 = vadd.f32 0.0, %v2883
        %v2885 = vpop.f32.mrb[0].mxu0
        %v2886 = vadd.f32 0.0, %v2885
        %2887 = vmatprep.mubr.bf16.mxu0 0
        %2888 = vmatmul.mubr.bf16.gmra.mrb[0].mxu0 %v2697
        %v2889 = vpop.f32.mrb[0].mxu0
        %v2890 = vadd.f32 0.0, %v2889
        %v2891 = vpop.f32.mrb[0].mxu0
        %v2892 = vadd.f32 0.0, %v2891
        %v2893 = vpop.f32.mrb[0].mxu0
        %v2894 = vadd.f32 0.0, %v2893
        %v2895 = vpop.f32.mrb[0].mxu0
        %v2896 = vadd.f32 0.0, %v2895
        %2897 = vdwg.mxu0
        %v2899 = vsel %vm1167, %v1087, 0
        %v2902 = vsel %vm1167, %v1088, 0
        %v2905 = vsel %vm1167, %v1089, 0
        %v2908 = vsel %vm1167, %v1090, 0
        %v2911 = vsel %vm1167, %v1091, 0
        %v2914 = vsel %vm1167, %v1092, 0
        %v2917 = vsel %vm1167, %v1093, 0
        %v2920 = vsel %vm1167, %v1094, 0
        %v2923 = vsel %vm1167, %v1095, 0
        %v2926 = vsel %vm1167, %v1096, 0
        %v2929 = vsel %vm1167, %v1097, 0
        %v2932 = vsel %vm1167, %v1098, 0
        %v2935 = vsel %vm1167, %v1099, 0
        %v2938 = vsel %vm1167, %v1100, 0
        %v2941 = vsel %vm1167, %v1101, 0
        %v2944 = vsel %vm1167, %v1102, 0
        %v2947 = vsel %vm1216, %v1133, 0
        %v2950 = vsel %vm1216, %v1134, 0
        %2952 = vmatprep.subr.bf16.mxu0 %v2950
        %2953 = vmatpush1.bf16.msra.mxu0 %v2947
        %2954 = vmatprep.subr.bf16.mxu0 0
        %2955 = vmatpush1.bf16.msra.mxu0 0
        %2956 = vmatprep.subr.bf16.mxu0 0
        %2957 = vmatpush1.bf16.msra.mxu0 0
        %2958 = vmatprep.subr.bf16.mxu0 0
        %2959 = vmatpush1.bf16.msra.mxu0 0
        %2960 = vmatprep.subr.bf16.mxu0 0
        %2961 = vmatpush1.bf16.msra.mxu0 0
        %2962 = vmatprep.subr.bf16.mxu0 0
        %2963 = vmatpush1.bf16.msra.mxu0 0
        %2964 = vmatprep.subr.bf16.mxu0 0
        %2965 = vmatpush1.bf16.msra.mxu0 0
        %2966 = vmatprep.subr.bf16.mxu0 0
        %2967 = vmatpush1.bf16.msra.mxu0 0
        %2968 = vmatprep.subr.bf16.mxu0 0
        %2969 = vmatpush1.bf16.msra.mxu0 0
        %2970 = vmatprep.subr.bf16.mxu0 0
        %2971 = vmatpush1.bf16.msra.mxu0 0
        %2972 = vmatprep.subr.bf16.mxu0 0
        %2973 = vmatpush1.bf16.msra.mxu0 0
        %2974 = vmatprep.subr.bf16.mxu0 0
        %2975 = vmatpush1.bf16.msra.mxu0 0
        %2976 = vmatprep.subr.bf16.mxu0 0
        %2977 = vmatpush1.bf16.msra.mxu0 0
        %2978 = vmatprep.subr.bf16.mxu0 0
        %2979 = vmatpush1.bf16.msra.mxu0 0
        %2980 = vmatprep.subr.bf16.mxu0 0
        %2981 = vmatpush1.bf16.msra.mxu0 0
        %2982 = vmatprep.subr.bf16.mxu0 0
        %2983 = vmatpush1.bf16.msra.mxu0 0
        %2984 = vmatprep.mubr.bf16.mxu0 0
        %2985 = vmatmul.mubr.bf16.gmra.mrb[0].mxu0 %v2899
        %v2986 = vpop.f32.mrb[0].mxu0
        %v2987 = vadd.f32 0.0, %v2986
        %v2988 = vpop.f32.mrb[0].mxu0
        %v2989 = vadd.f32 0.0, %v2988
        %v2990 = vpop.f32.mrb[0].mxu0
        %v2991 = vadd.f32 0.0, %v2990
        %v2992 = vpop.f32.mrb[0].mxu0
        %v2993 = vadd.f32 0.0, %v2992
        %2994 = vmatprep.mubr.bf16.mxu0 0
        %2995 = vmatmul.mubr.bf16.gmra.mrb[0].mxu0 %v2902
        %v2996 = vpop.f32.mrb[0].mxu0
        %v2997 = vadd.f32 0.0, %v2996
        %v2998 = vpop.f32.mrb[0].mxu0
        %v2999 = vadd.f32 0.0, %v2998
        %v3000 = vpop.f32.mrb[0].mxu0
        %v3001 = vadd.f32 0.0, %v3000
        %v3002 = vpop.f32.mrb[0].mxu0
        %v3003 = vadd.f32 0.0, %v3002
        %3004 = vmatprep.mubr.bf16.mxu0 0
        %3005 = vmatmul.mubr.bf16.gmra.mrb[0].mxu0 %v2905
        %v3006 = vpop.f32.mrb[0].mxu0
        %v3007 = vadd.f32 0.0, %v3006
        %v3008 = vpop.f32.mrb[0].mxu0
        %v3009 = vadd.f32 0.0, %v3008
        %v3010 = vpop.f32.mrb[0].mxu0
        %v3011 = vadd.f32 0.0, %v3010
        %v3012 = vpop.f32.mrb[0].mxu0
        %v3013 = vadd.f32 0.0, %v3012
        %3014 = vmatprep.mubr.bf16.mxu0 0
        %3015 = vmatmul.mubr.bf16.gmra.mrb[0].mxu0 %v2908
        %v3016 = vpop.f32.mrb[0].mxu0
        %v3017 = vadd.f32 0.0, %v3016
        %v3018 = vpop.f32.mrb[0].mxu0
        %v3019 = vadd.f32 0.0, %v3018
        %v3020 = vpop.f32.mrb[0].mxu0
        %v3021 = vadd.f32 0.0, %v3020
        %v3022 = vpop.f32.mrb[0].mxu0
        %v3023 = vadd.f32 0.0, %v3022
        %3024 = vmatprep.mubr.bf16.mxu0 0
        %3025 = vmatmul.mubr.bf16.gmra.mrb[0].mxu0 %v2911
        %v3026 = vpop.f32.mrb[0].mxu0
        %v3027 = vadd.f32 0.0, %v3026
        %v3028 = vpop.f32.mrb[0].mxu0
        %v3029 = vadd.f32 0.0, %v3028
        %v3030 = vpop.f32.mrb[0].mxu0
        %v3031 = vadd.f32 0.0, %v3030
        %v3032 = vpop.f32.mrb[0].mxu0
        %v3033 = vadd.f32 0.0, %v3032
        %3034 = vmatprep.mubr.bf16.mxu0 0
        %3035 = vmatmul.mubr.bf16.gmra.mrb[0].mxu0 %v2914
        %v3036 = vpop.f32.mrb[0].mxu0
        %v3037 = vadd.f32 0.0, %v3036
        %v3038 = vpop.f32.mrb[0].mxu0
        %v3039 = vadd.f32 0.0, %v3038
        %v3040 = vpop.f32.mrb[0].mxu0
        %v3041 = vadd.f32 0.0, %v3040
        %v3042 = vpop.f32.mrb[0].mxu0
        %v3043 = vadd.f32 0.0, %v3042
        %3044 = vmatprep.mubr.bf16.mxu0 0
        %3045 = vmatmul.mubr.bf16.gmra.mrb[0].mxu0 %v2917
        %v3046 = vpop.f32.mrb[0].mxu0
        %v3047 = vadd.f32 0.0, %v3046
        %v3048 = vpop.f32.mrb[0].mxu0
        %v3049 = vadd.f32 0.0, %v3048
        %v3050 = vpop.f32.mrb[0].mxu0
        %v3051 = vadd.f32 0.0, %v3050
        %v3052 = vpop.f32.mrb[0].mxu0
        %v3053 = vadd.f32 0.0, %v3052
        %3054 = vmatprep.mubr.bf16.mxu0 0
        %3055 = vmatmul.mubr.bf16.gmra.mrb[0].mxu0 %v2920
        %v3056 = vpop.f32.mrb[0].mxu0
        %v3057 = vadd.f32 0.0, %v3056
        %v3058 = vpop.f32.mrb[0].mxu0
        %v3059 = vadd.f32 0.0, %v3058
        %v3060 = vpop.f32.mrb[0].mxu0
        %v3061 = vadd.f32 0.0, %v3060
        %v3062 = vpop.f32.mrb[0].mxu0
        %v3063 = vadd.f32 0.0, %v3062
        %3064 = vmatprep.mubr.bf16.mxu0 0
        %3065 = vmatmul.mubr.bf16.gmra.mrb[0].mxu0 %v2923
        %v3066 = vpop.f32.mrb[0].mxu0
        %v3067 = vadd.f32 0.0, %v3066
        %v3068 = vpop.f32.mrb[0].mxu0
        %v3069 = vadd.f32 0.0, %v3068
        %v3070 = vpop.f32.mrb[0].mxu0
        %v3071 = vadd.f32 0.0, %v3070
        %v3072 = vpop.f32.mrb[0].mxu0
        %v3073 = vadd.f32 0.0, %v3072
        %3074 = vmatprep.mubr.bf16.mxu0 0
        %3075 = vmatmul.mubr.bf16.gmra.mrb[0].mxu0 %v2926
        %v3076 = vpop.f32.mrb[0].mxu0
        %v3077 = vadd.f32 0.0, %v3076
        %v3078 = vpop.f32.mrb[0].mxu0
        %v3079 = vadd.f32 0.0, %v3078
        %v3080 = vpop.f32.mrb[0].mxu0
        %v3081 = vadd.f32 0.0, %v3080
        %v3082 = vpop.f32.mrb[0].mxu0
        %v3083 = vadd.f32 0.0, %v3082
        %3084 = vmatprep.mubr.bf16.mxu0 0
        %3085 = vmatmul.mubr.bf16.gmra.mrb[0].mxu0 %v2929
        %v3086 = vpop.f32.mrb[0].mxu0
        %v3087 = vadd.f32 0.0, %v3086
        %v3088 = vpop.f32.mrb[0].mxu0
        %v3089 = vadd.f32 0.0, %v3088
        %v3090 = vpop.f32.mrb[0].mxu0
        %v3091 = vadd.f32 0.0, %v3090
        %v3092 = vpop.f32.mrb[0].mxu0
        %v3093 = vadd.f32 0.0, %v3092
        %3094 = vmatprep.mubr.bf16.mxu0 0
        %3095 = vmatmul.mubr.bf16.gmra.mrb[0].mxu0 %v2932
        %v3096 = vpop.f32.mrb[0].mxu0
        %v3097 = vadd.f32 0.0, %v3096
        %v3098 = vpop.f32.mrb[0].mxu0
        %v3099 = vadd.f32 0.0, %v3098
        %v3100 = vpop.f32.mrb[0].mxu0
        %v3101 = vadd.f32 0.0, %v3100
        %v3102 = vpop.f32.mrb[0].mxu0
        %v3103 = vadd.f32 0.0, %v3102
        %3104 = vmatprep.mubr.bf16.mxu0 0
        %3105 = vmatmul.mubr.bf16.gmra.mrb[0].mxu0 %v2935
        %v3106 = vpop.f32.mrb[0].mxu0
        %v3107 = vadd.f32 0.0, %v3106
        %v3108 = vpop.f32.mrb[0].mxu0
        %v3109 = vadd.f32 0.0, %v3108
        %v3110 = vpop.f32.mrb[0].mxu0
        %v3111 = vadd.f32 0.0, %v3110
        %v3112 = vpop.f32.mrb[0].mxu0
        %v3113 = vadd.f32 0.0, %v3112
        %3114 = vmatprep.mubr.bf16.mxu0 0
        %3115 = vmatmul.mubr.bf16.gmra.mrb[0].mxu0 %v2938
        %v3116 = vpop.f32.mrb[0].mxu0
        %v3117 = vadd.f32 0.0, %v3116
        %v3118 = vpop.f32.mrb[0].mxu0
        %v3119 = vadd.f32 0.0, %v3118
        %v3120 = vpop.f32.mrb[0].mxu0
        %v3121 = vadd.f32 0.0, %v3120
        %v3122 = vpop.f32.mrb[0].mxu0
        %v3123 = vadd.f32 0.0, %v3122
        %3124 = vmatprep.mubr.bf16.mxu0 0
        %3125 = vmatmul.mubr.bf16.gmra.mrb[0].mxu0 %v2941
        %v3126 = vpop.f32.mrb[0].mxu0
        %v3127 = vadd.f32 0.0, %v3126
        %v3128 = vpop.f32.mrb[0].mxu0
        %v3129 = vadd.f32 0.0, %v3128
        %v3130 = vpop.f32.mrb[0].mxu0
        %v3131 = vadd.f32 0.0, %v3130
        %v3132 = vpop.f32.mrb[0].mxu0
        %v3133 = vadd.f32 0.0, %v3132
        %3134 = vmatprep.mubr.bf16.mxu0 0
        %3135 = vmatmul.mubr.bf16.gmra.mrb[0].mxu0 %v2944
        %v3136 = vpop.f32.mrb[0].mxu0
        %v3137 = vadd.f32 0.0, %v3136
        %v3138 = vpop.f32.mrb[0].mxu0
        %v3139 = vadd.f32 0.0, %v3138
        %v3140 = vpop.f32.mrb[0].mxu0
        %v3141 = vadd.f32 0.0, %v3140
        %v3142 = vpop.f32.mrb[0].mxu0
        %v3143 = vadd.f32 0.0, %v3142
        %3144 = vdwg.mxu0
        %v3145 = vmax.f32 %v1258, %v1260
        %3146 = vmax.xlane.f32.xlu0 %v3145
        %v3147 = vpop.xlane.xlu0 %3146
        %v3148 = vmax.f32 %v1262, %v1264
        %3149 = vmax.xlane.f32.xlu0 %v3148
        %v3150 = vpop.xlane.xlu0 %3149
        %v3151 = vmax.f32 %v1268, %v1270
        %3152 = vmax.xlane.f32.xlu0 %v3151
        %v3153 = vpop.xlane.xlu0 %3152
        %v3154 = vmax.f32 %v1272, %v1274
        %3155 = vmax.xlane.f32.xlu0 %v3154
        %v3156 = vpop.xlane.xlu0 %3155
        %v3157 = vmax.f32 %v1278, %v1280
        %3158 = vmax.xlane.f32.xlu0 %v3157
        %v3159 = vpop.xlane.xlu0 %3158
        %v3160 = vmax.f32 %v1282, %v1284
        %3161 = vmax.xlane.f32.xlu0 %v3160
        %v3162 = vpop.xlane.xlu0 %3161
        %v3163 = vmax.f32 %v1288, %v1290
        %3164 = vmax.xlane.f32.xlu0 %v3163
        %v3165 = vpop.xlane.xlu0 %3164
        %v3166 = vmax.f32 %v1292, %v1294
        %3167 = vmax.xlane.f32.xlu0 %v3166
        %v3168 = vpop.xlane.xlu0 %3167
        %v3169 = vmax.f32 %v1298, %v1300
        %3170 = vmax.xlane.f32.xlu0 %v3169
        %v3171 = vpop.xlane.xlu0 %3170
        %v3172 = vmax.f32 %v1302, %v1304
        %3173 = vmax.xlane.f32.xlu0 %v3172
        %v3174 = vpop.xlane.xlu0 %3173
        %v3175 = vmax.f32 %v1308, %v1310
        %3176 = vmax.xlane.f32.xlu0 %v3175
        %v3177 = vpop.xlane.xlu0 %3176
        %v3178 = vmax.f32 %v1312, %v1314
        %3179 = vmax.xlane.f32.xlu0 %v3178
        %v3180 = vpop.xlane.xlu0 %3179
        %v3181 = vmax.f32 %v1318, %v1320
        %3182 = vmax.xlane.f32.xlu0 %v3181
        %v3183 = vpop.xlane.xlu0 %3182
        %v3184 = vmax.f32 %v1322, %v1324
        %3185 = vmax.xlane.f32.xlu0 %v3184
        %v3186 = vpop.xlane.xlu0 %3185
        %v3187 = vmax.f32 %v1328, %v1330
        %3188 = vmax.xlane.f32.xlu0 %v3187
        %v3189 = vpop.xlane.xlu0 %3188
        %v3190 = vmax.f32 %v1332, %v1334
        %3191 = vmax.xlane.f32.xlu0 %v3190
        %v3192 = vpop.xlane.xlu0 %3191
        %v3193 = vmax.f32 %v1338, %v1340
        %3194 = vmax.xlane.f32.xlu0 %v3193
        %v3195 = vpop.xlane.xlu0 %3194
        %v3196 = vmax.f32 %v1342, %v1344
        %3197 = vmax.xlane.f32.xlu0 %v3196
        %v3198 = vpop.xlane.xlu0 %3197
        %v3199 = vmax.f32 %v1348, %v1350
        %3200 = vmax.xlane.f32.xlu0 %v3199
        %v3201 = vpop.xlane.xlu0 %3200
        %v3202 = vmax.f32 %v1352, %v1354
        %3203 = vmax.xlane.f32.xlu0 %v3202
        %v3204 = vpop.xlane.xlu0 %3203
        %v3205 = vmax.f32 %v1358, %v1360
        %3206 = vmax.xlane.f32.xlu0 %v3205
        %v3207 = vpop.xlane.xlu0 %3206
        %v3208 = vmax.f32 %v1362, %v1364
        %3209 = vmax.xlane.f32.xlu0 %v3208
        %v3210 = vpop.xlane.xlu0 %3209
        %v3211 = vmax.f32 %v1368, %v1370
        %3212 = vmax.xlane.f32.xlu0 %v3211
        %v3213 = vpop.xlane.xlu0 %3212
        %v3214 = vmax.f32 %v1372, %v1374
        %3215 = vmax.xlane.f32.xlu0 %v3214
        %v3216 = vpop.xlane.xlu0 %3215
        %v3217 = vmax.f32 %v1378, %v1380
        %3218 = vmax.xlane.f32.xlu0 %v3217
        %v3219 = vpop.xlane.xlu0 %3218
        %v3220 = vmax.f32 %v1382, %v1384
        %3221 = vmax.xlane.f32.xlu0 %v3220
        %v3222 = vpop.xlane.xlu0 %3221
        %v3223 = vmax.f32 %v1388, %v1390
        %3224 = vmax.xlane.f32.xlu0 %v3223
        %v3225 = vpop.xlane.xlu0 %3224
        %v3226 = vmax.f32 %v1392, %v1394
        %3227 = vmax.xlane.f32.xlu0 %v3226
        %v3228 = vpop.xlane.xlu0 %3227
        %v3229 = vmax.f32 %v1398, %v1400
        %3230 = vmax.xlane.f32.xlu0 %v3229
        %v3231 = vpop.xlane.xlu0 %3230
        %v3232 = vmax.f32 %v1402, %v1404
        %3233 = vmax.xlane.f32.xlu0 %v3232
        %v3234 = vpop.xlane.xlu0 %3233
        %v3235 = vmax.f32 %v1408, %v1410
        %3236 = vmax.xlane.f32.xlu0 %v3235
        %v3237 = vpop.xlane.xlu0 %3236
        %v3238 = vmax.f32 %v1412, %v1414
        %3239 = vmax.xlane.f32.xlu0 %v3238
        %v3240 = vpop.xlane.xlu0 %3239
        %v3241 = vmax.f32 %v1505, %v1507
        %3242 = vmax.xlane.f32.xlu0 %v3241
        %v3243 = vpop.xlane.xlu0 %3242
        %v3244 = vmax.f32 %v1509, %v1511
        %3245 = vmax.xlane.f32.xlu0 %v3244
        %v3246 = vpop.xlane.xlu0 %3245
        %v3247 = vmax.f32 %v1515, %v1517
        %3248 = vmax.xlane.f32.xlu0 %v3247
        %v3249 = vpop.xlane.xlu0 %3248
        %v3250 = vmax.f32 %v1519, %v1521
        %3251 = vmax.xlane.f32.xlu0 %v3250
        %v3252 = vpop.xlane.xlu0 %3251
        %v3253 = vmax.f32 %v1525, %v1527
        %3254 = vmax.xlane.f32.xlu0 %v3253
        %v3255 = vpop.xlane.xlu0 %3254
        %v3256 = vmax.f32 %v1529, %v1531
        %3257 = vmax.xlane.f32.xlu0 %v3256
        %v3258 = vpop.xlane.xlu0 %3257
        %v3259 = vmax.f32 %v1535, %v1537
        %3260 = vmax.xlane.f32.xlu0 %v3259
        %v3261 = vpop.xlane.xlu0 %3260
        %v3262 = vmax.f32 %v1539, %v1541
        %3263 = vmax.xlane.f32.xlu0 %v3262
        %v3264 = vpop.xlane.xlu0 %3263
        %v3265 = vmax.f32 %v1545, %v1547
        %3266 = vmax.xlane.f32.xlu0 %v3265
        %v3267 = vpop.xlane.xlu0 %3266
        %v3268 = vmax.f32 %v1549, %v1551
        %3269 = vmax.xlane.f32.xlu0 %v3268
        %v3270 = vpop.xlane.xlu0 %3269
        %v3271 = vmax.f32 %v1555, %v1557
        %3272 = vmax.xlane.f32.xlu0 %v3271
        %v3273 = vpop.xlane.xlu0 %3272
        %v3274 = vmax.f32 %v1559, %v1561
        %3275 = vmax.xlane.f32.xlu0 %v3274
        %v3276 = vpop.xlane.xlu0 %3275
        %v3277 = vmax.f32 %v1565, %v1567
        %3278 = vmax.xlane.f32.xlu0 %v3277
        %v3279 = vpop.xlane.xlu0 %3278
        %v3280 = vmax.f32 %v1569, %v1571
        %3281 = vmax.xlane.f32.xlu0 %v3280
        %v3282 = vpop.xlane.xlu0 %3281
        %v3283 = vmax.f32 %v1575, %v1577
        %3284 = vmax.xlane.f32.xlu0 %v3283
        %v3285 = vpop.xlane.xlu0 %3284
        %v3286 = vmax.f32 %v1579, %v1581
        %3287 = vmax.xlane.f32.xlu0 %v3286
        %v3288 = vpop.xlane.xlu0 %3287
        %v3289 = vmax.f32 %v1585, %v1587
        %3290 = vmax.xlane.f32.xlu0 %v3289
        %v3291 = vpop.xlane.xlu0 %3290
        %v3292 = vmax.f32 %v1589, %v1591
        %3293 = vmax.xlane.f32.xlu0 %v3292
        %v3294 = vpop.xlane.xlu0 %3293
        %v3295 = vmax.f32 %v1595, %v1597
        %3296 = vmax.xlane.f32.xlu0 %v3295
        %v3297 = vpop.xlane.xlu0 %3296
        %v3298 = vmax.f32 %v1599, %v1601
        %3299 = vmax.xlane.f32.xlu0 %v3298
        %v3300 = vpop.xlane.xlu0 %3299
        %v3301 = vmax.f32 %v1605, %v1607
        %3302 = vmax.xlane.f32.xlu0 %v3301
        %v3303 = vpop.xlane.xlu0 %3302
        %v3304 = vmax.f32 %v1609, %v1611
        %3305 = vmax.xlane.f32.xlu0 %v3304
        %v3306 = vpop.xlane.xlu0 %3305
        %v3307 = vmax.f32 %v1615, %v1617
        %3308 = vmax.xlane.f32.xlu0 %v3307
        %v3309 = vpop.xlane.xlu0 %3308
        %v3310 = vmax.f32 %v1619, %v1621
        %3311 = vmax.xlane.f32.xlu0 %v3310
        %v3312 = vpop.xlane.xlu0 %3311
        %v3313 = vmax.f32 %v1625, %v1627
        %3314 = vmax.xlane.f32.xlu0 %v3313
        %v3315 = vpop.xlane.xlu0 %3314
        %v3316 = vmax.f32 %v1629, %v1631
        %3317 = vmax.xlane.f32.xlu0 %v3316
        %v3318 = vpop.xlane.xlu0 %3317
        %v3319 = vmax.f32 %v1635, %v1637
        %3320 = vmax.xlane.f32.xlu0 %v3319
        %v3321 = vpop.xlane.xlu0 %3320
        %v3322 = vmax.f32 %v1639, %v1641
        %3323 = vmax.xlane.f32.xlu0 %v3322
        %v3324 = vpop.xlane.xlu0 %3323
        %v3325 = vmax.f32 %v1645, %v1647
        %3326 = vmax.xlane.f32.xlu0 %v3325
        %v3327 = vpop.xlane.xlu0 %3326
        %v3328 = vmax.f32 %v1649, %v1651
        %3329 = vmax.xlane.f32.xlu0 %v3328
        %v3330 = vpop.xlane.xlu0 %3329
        %v3331 = vmax.f32 %v1655, %v1657
        %3332 = vmax.xlane.f32.xlu0 %v3331
        %v3333 = vpop.xlane.xlu0 %3332
        %v3334 = vmax.f32 %v1659, %v1661
        %3335 = vmax.xlane.f32.xlu0 %v3334
        %v3336 = vpop.xlane.xlu0 %3335
        %v3337 = vmax.f32 %v1752, %v1754
        %3338 = vmax.xlane.f32.xlu0 %v3337
        %v3339 = vpop.xlane.xlu0 %3338
        %v3340 = vmax.f32 %v1756, %v1758
        %3341 = vmax.xlane.f32.xlu0 %v3340
        %v3342 = vpop.xlane.xlu0 %3341
        %v3343 = vmax.f32 %v1762, %v1764
        %3344 = vmax.xlane.f32.xlu0 %v3343
        %v3345 = vpop.xlane.xlu0 %3344
        %v3346 = vmax.f32 %v1766, %v1768
        %3347 = vmax.xlane.f32.xlu0 %v3346
        %v3348 = vpop.xlane.xlu0 %3347
        %v3349 = vmax.f32 %v1772, %v1774
        %3350 = vmax.xlane.f32.xlu0 %v3349
        %v3351 = vpop.xlane.xlu0 %3350
        %v3352 = vmax.f32 %v1776, %v1778
        %3353 = vmax.xlane.f32.xlu0 %v3352
        %v3354 = vpop.xlane.xlu0 %3353
        %v3355 = vmax.f32 %v1782, %v1784
        %3356 = vmax.xlane.f32.xlu0 %v3355
        %v3357 = vpop.xlane.xlu0 %3356
        %v3358 = vmax.f32 %v1786, %v1788
        %3359 = vmax.xlane.f32.xlu0 %v3358
        %v3360 = vpop.xlane.xlu0 %3359
        %v3361 = vmax.f32 %v1792, %v1794
        %3362 = vmax.xlane.f32.xlu0 %v3361
        %v3363 = vpop.xlane.xlu0 %3362
        %v3364 = vmax.f32 %v1796, %v1798
        %3365 = vmax.xlane.f32.xlu0 %v3364
        %v3366 = vpop.xlane.xlu0 %3365
        %v3367 = vmax.f32 %v1802, %v1804
        %3368 = vmax.xlane.f32.xlu0 %v3367
        %v3369 = vpop.xlane.xlu0 %3368
        %v3370 = vmax.f32 %v1806, %v1808
        %3371 = vmax.xlane.f32.xlu0 %v3370
        %v3372 = vpop.xlane.xlu0 %3371
        %v3373 = vmax.f32 %v1812, %v1814
        %3374 = vmax.xlane.f32.xlu0 %v3373
        %v3375 = vpop.xlane.xlu0 %3374
        %v3376 = vmax.f32 %v1816, %v1818
        %3377 = vmax.xlane.f32.xlu0 %v3376
        %v3378 = vpop.xlane.xlu0 %3377
        %v3379 = vmax.f32 %v1822, %v1824
        %3380 = vmax.xlane.f32.xlu0 %v3379
        %v3381 = vpop.xlane.xlu0 %3380
        %v3382 = vmax.f32 %v1826, %v1828
        %3383 = vmax.xlane.f32.xlu0 %v3382
        %v3384 = vpop.xlane.xlu0 %3383
        %v3385 = vmax.f32 %v1832, %v1834
        %3386 = vmax.xlane.f32.xlu0 %v3385
        %v3387 = vpop.xlane.xlu0 %3386
        %v3388 = vmax.f32 %v1836, %v1838
        %3389 = vmax.xlane.f32.xlu0 %v3388
        %v3390 = vpop.xlane.xlu0 %3389
        %v3391 = vmax.f32 %v1842, %v1844
        %3392 = vmax.xlane.f32.xlu0 %v3391
        %v3393 = vpop.xlane.xlu0 %3392
        %v3394 = vmax.f32 %v1846, %v1848
        %3395 = vmax.xlane.f32.xlu0 %v3394
        %v3396 = vpop.xlane.xlu0 %3395
        %v3397 = vmax.f32 %v1852, %v1854
        %3398 = vmax.xlane.f32.xlu0 %v3397
        %v3399 = vpop.xlane.xlu0 %3398
        %v3400 = vmax.f32 %v1856, %v1858
        %3401 = vmax.xlane.f32.xlu0 %v3400
        %v3402 = vpop.xlane.xlu0 %3401
        %v3403 = vmax.f32 %v1862, %v1864
        %3404 = vmax.xlane.f32.xlu0 %v3403
        %v3405 = vpop.xlane.xlu0 %3404
        %v3406 = vmax.f32 %v1866, %v1868
        %3407 = vmax.xlane.f32.xlu0 %v3406
        %v3408 = vpop.xlane.xlu0 %3407
        %v3409 = vmax.f32 %v1872, %v1874
        %3410 = vmax.xlane.f32.xlu0 %v3409
        %v3411 = vpop.xlane.xlu0 %3410
        %v3412 = vmax.f32 %v1876, %v1878
        %3413 = vmax.xlane.f32.xlu0 %v3412
        %v3414 = vpop.xlane.xlu0 %3413
        %v3415 = vmax.f32 %v1882, %v1884
        %3416 = vmax.xlane.f32.xlu0 %v3415
        %v3417 = vpop.xlane.xlu0 %3416
        %v3418 = vmax.f32 %v1886, %v1888
        %3419 = vmax.xlane.f32.xlu0 %v3418
        %v3420 = vpop.xlane.xlu0 %3419
        %v3421 = vmax.f32 %v1892, %v1894
        %3422 = vmax.xlane.f32.xlu0 %v3421
        %v3423 = vpop.xlane.xlu0 %3422
        %v3424 = vmax.f32 %v1896, %v1898
        %3425 = vmax.xlane.f32.xlu0 %v3424
        %v3426 = vpop.xlane.xlu0 %3425
        %v3427 = vmax.f32 %v1902, %v1904
        %3428 = vmax.xlane.f32.xlu0 %v3427
        %v3429 = vpop.xlane.xlu0 %3428
        %v3430 = vmax.f32 %v1906, %v1908
        %3431 = vmax.xlane.f32.xlu0 %v3430
        %v3432 = vpop.xlane.xlu0 %3431
        %v3433 = vmax.f32 %v1999, %v2001
        %3434 = vmax.xlane.f32.xlu0 %v3433
        %v3435 = vpop.xlane.xlu0 %3434
        %v3436 = vmax.f32 %v2003, %v2005
        %3437 = vmax.xlane.f32.xlu0 %v3436
        %v3438 = vpop.xlane.xlu0 %3437
        %v3439 = vmax.f32 %v2009, %v2011
        %3440 = vmax.xlane.f32.xlu0 %v3439
        %v3441 = vpop.xlane.xlu0 %3440
        %v3442 = vmax.f32 %v2013, %v2015
        %3443 = vmax.xlane.f32.xlu0 %v3442
        %v3444 = vpop.xlane.xlu0 %3443
        %v3445 = vmax.f32 %v2019, %v2021
        %3446 = vmax.xlane.f32.xlu0 %v3445
        %v3447 = vpop.xlane.xlu0 %3446
        %v3448 = vmax.f32 %v2023, %v2025
        %3449 = vmax.xlane.f32.xlu0 %v3448
        %v3450 = vpop.xlane.xlu0 %3449
        %v3451 = vmax.f32 %v2029, %v2031
        %3452 = vmax.xlane.f32.xlu0 %v3451
        %v3453 = vpop.xlane.xlu0 %3452
        %v3454 = vmax.f32 %v2033, %v2035
        %3455 = vmax.xlane.f32.xlu0 %v3454
        %v3456 = vpop.xlane.xlu0 %3455
        %v3457 = vmax.f32 %v2039, %v2041
        %3458 = vmax.xlane.f32.xlu0 %v3457
        %v3459 = vpop.xlane.xlu0 %3458
        %v3460 = vmax.f32 %v2043, %v2045
        %3461 = vmax.xlane.f32.xlu0 %v3460
        %v3462 = vpop.xlane.xlu0 %3461
        %v3463 = vmax.f32 %v2049, %v2051
        %3464 = vmax.xlane.f32.xlu0 %v3463
        %v3465 = vpop.xlane.xlu0 %3464
        %v3466 = vmax.f32 %v2053, %v2055
        %3467 = vmax.xlane.f32.xlu0 %v3466
        %v3468 = vpop.xlane.xlu0 %3467
        %v3469 = vmax.f32 %v2059, %v2061
        %3470 = vmax.xlane.f32.xlu0 %v3469
        %v3471 = vpop.xlane.xlu0 %3470
        %v3472 = vmax.f32 %v2063, %v2065
        %3473 = vmax.xlane.f32.xlu0 %v3472
        %v3474 = vpop.xlane.xlu0 %3473
        %v3475 = vmax.f32 %v2069, %v2071
        %3476 = vmax.xlane.f32.xlu0 %v3475
        %v3477 = vpop.xlane.xlu0 %3476
        %v3478 = vmax.f32 %v2073, %v2075
        %3479 = vmax.xlane.f32.xlu0 %v3478
        %v3480 = vpop.xlane.xlu0 %3479
        %v3481 = vmax.f32 %v2079, %v2081
        %3482 = vmax.xlane.f32.xlu0 %v3481
        %v3483 = vpop.xlane.xlu0 %3482
        %v3484 = vmax.f32 %v2083, %v2085
        %3485 = vmax.xlane.f32.xlu0 %v3484
        %v3486 = vpop.xlane.xlu0 %3485
        %v3487 = vmax.f32 %v2089, %v2091
        %3488 = vmax.xlane.f32.xlu0 %v3487
        %v3489 = vpop.xlane.xlu0 %3488
        %v3490 = vmax.f32 %v2093, %v2095
        %3491 = vmax.xlane.f32.xlu0 %v3490
        %v3492 = vpop.xlane.xlu0 %3491
        %v3493 = vmax.f32 %v2099, %v2101
        %3494 = vmax.xlane.f32.xlu0 %v3493
        %v3495 = vpop.xlane.xlu0 %3494
        %v3496 = vmax.f32 %v2103, %v2105
        %3497 = vmax.xlane.f32.xlu0 %v3496
        %v3498 = vpop.xlane.xlu0 %3497
        %v3499 = vmax.f32 %v2109, %v2111
        %3500 = vmax.xlane.f32.xlu0 %v3499
        %v3501 = vpop.xlane.xlu0 %3500
        %v3502 = vmax.f32 %v2113, %v2115
        %3503 = vmax.xlane.f32.xlu0 %v3502
        %v3504 = vpop.xlane.xlu0 %3503
        %v3505 = vmax.f32 %v2119, %v2121
        %3506 = vmax.xlane.f32.xlu0 %v3505
        %v3507 = vpop.xlane.xlu0 %3506
        %v3508 = vmax.f32 %v2123, %v2125
        %3509 = vmax.xlane.f32.xlu0 %v3508
        %v3510 = vpop.xlane.xlu0 %3509
        %v3511 = vmax.f32 %v2129, %v2131
        %3512 = vmax.xlane.f32.xlu0 %v3511
        %v3513 = vpop.xlane.xlu0 %3512
        %v3514 = vmax.f32 %v2133, %v2135
        %3515 = vmax.xlane.f32.xlu0 %v3514
        %v3516 = vpop.xlane.xlu0 %3515
        %v3517 = vmax.f32 %v2139, %v2141
        %3518 = vmax.xlane.f32.xlu0 %v3517
        %v3519 = vpop.xlane.xlu0 %3518
        %v3520 = vmax.f32 %v2143, %v2145
        %3521 = vmax.xlane.f32.xlu0 %v3520
        %v3522 = vpop.xlane.xlu0 %3521
        %v3523 = vmax.f32 %v2149, %v2151
        %3524 = vmax.xlane.f32.xlu0 %v3523
        %v3525 = vpop.xlane.xlu0 %3524
        %v3526 = vmax.f32 %v2153, %v2155
        %3527 = vmax.xlane.f32.xlu0 %v3526
        %v3528 = vpop.xlane.xlu0 %3527
        %v3529 = vmax.f32 %v2246, %v2248
        %3530 = vmax.xlane.f32.xlu0 %v3529
        %v3531 = vpop.xlane.xlu0 %3530
        %v3532 = vmax.f32 %v2250, %v2252
        %3533 = vmax.xlane.f32.xlu0 %v3532
        %v3534 = vpop.xlane.xlu0 %3533
        %v3535 = vmax.f32 %v2256, %v2258
        %3536 = vmax.xlane.f32.xlu0 %v3535
        %v3537 = vpop.xlane.xlu0 %3536
        %v3538 = vmax.f32 %v2260, %v2262
        %3539 = vmax.xlane.f32.xlu0 %v3538
        %v3540 = vpop.xlane.xlu0 %3539
        %v3541 = vmax.f32 %v2266, %v2268
        %3542 = vmax.xlane.f32.xlu0 %v3541
        %v3543 = vpop.xlane.xlu0 %3542
        %v3544 = vmax.f32 %v2270, %v2272
        %3545 = vmax.xlane.f32.xlu0 %v3544
        %v3546 = vpop.xlane.xlu0 %3545
        %v3547 = vmax.f32 %v2276, %v2278
        %3548 = vmax.xlane.f32.xlu0 %v3547
        %v3549 = vpop.xlane.xlu0 %3548
        %v3550 = vmax.f32 %v2280, %v2282
        %3551 = vmax.xlane.f32.xlu0 %v3550
        %v3552 = vpop.xlane.xlu0 %3551
        %v3553 = vmax.f32 %v2286, %v2288
        %3554 = vmax.xlane.f32.xlu0 %v3553
        %v3555 = vpop.xlane.xlu0 %3554
        %v3556 = vmax.f32 %v2290, %v2292
        %3557 = vmax.xlane.f32.xlu0 %v3556
        %v3558 = vpop.xlane.xlu0 %3557
        %v3559 = vmax.f32 %v2296, %v2298
        %3560 = vmax.xlane.f32.xlu0 %v3559
        %v3561 = vpop.xlane.xlu0 %3560
        %v3562 = vmax.f32 %v2300, %v2302
        %3563 = vmax.xlane.f32.xlu0 %v3562
        %v3564 = vpop.xlane.xlu0 %3563
        %v3565 = vmax.f32 %v2306, %v2308
        %3566 = vmax.xlane.f32.xlu0 %v3565
        %v3567 = vpop.xlane.xlu0 %3566
        %v3568 = vmax.f32 %v2310, %v2312
        %3569 = vmax.xlane.f32.xlu0 %v3568
        %v3570 = vpop.xlane.xlu0 %3569
        %v3571 = vmax.f32 %v2316, %v2318
        %3572 = vmax.xlane.f32.xlu0 %v3571
        %v3573 = vpop.xlane.xlu0 %3572
        %v3574 = vmax.f32 %v2320, %v2322
        %3575 = vmax.xlane.f32.xlu0 %v3574
        %v3576 = vpop.xlane.xlu0 %3575
        %v3577 = vmax.f32 %v2326, %v2328
        %3578 = vmax.xlane.f32.xlu0 %v3577
        %v3579 = vpop.xlane.xlu0 %3578
        %v3580 = vmax.f32 %v2330, %v2332
        %3581 = vmax.xlane.f32.xlu0 %v3580
        %v3582 = vpop.xlane.xlu0 %3581
        %v3583 = vmax.f32 %v2336, %v2338
        %3584 = vmax.xlane.f32.xlu0 %v3583
        %v3585 = vpop.xlane.xlu0 %3584
        %v3586 = vmax.f32 %v2340, %v2342
        %3587 = vmax.xlane.f32.xlu0 %v3586
        %v3588 = vpop.xlane.xlu0 %3587
        %v3589 = vmax.f32 %v2346, %v2348
        %3590 = vmax.xlane.f32.xlu0 %v3589
        %v3591 = vpop.xlane.xlu0 %3590
        %v3592 = vmax.f32 %v2350, %v2352
        %3593 = vmax.xlane.f32.xlu0 %v3592
        %v3594 = vpop.xlane.xlu0 %3593
        %v3595 = vmax.f32 %v2356, %v2358
        %3596 = vmax.xlane.f32.xlu0 %v3595
        %v3597 = vpop.xlane.xlu0 %3596
        %v3598 = vmax.f32 %v2360, %v2362
        %3599 = vmax.xlane.f32.xlu0 %v3598
        %v3600 = vpop.xlane.xlu0 %3599
        %v3601 = vmax.f32 %v2366, %v2368
        %3602 = vmax.xlane.f32.xlu0 %v3601
        %v3603 = vpop.xlane.xlu0 %3602
        %v3604 = vmax.f32 %v2370, %v2372
        %3605 = vmax.xlane.f32.xlu0 %v3604
        %v3606 = vpop.xlane.xlu0 %3605
        %v3607 = vmax.f32 %v2376, %v2378
        %3608 = vmax.xlane.f32.xlu0 %v3607
        %v3609 = vpop.xlane.xlu0 %3608
        %v3610 = vmax.f32 %v2380, %v2382
        %3611 = vmax.xlane.f32.xlu0 %v3610
        %v3612 = vpop.xlane.xlu0 %3611
        %v3613 = vmax.f32 %v2386, %v2388
        %3614 = vmax.xlane.f32.xlu0 %v3613
        %v3615 = vpop.xlane.xlu0 %3614
        %v3616 = vmax.f32 %v2390, %v2392
        %3617 = vmax.xlane.f32.xlu0 %v3616
        %v3618 = vpop.xlane.xlu0 %3617
        %v3619 = vmax.f32 %v2396, %v2398
        %3620 = vmax.xlane.f32.xlu0 %v3619
        %v3621 = vpop.xlane.xlu0 %3620
        %v3622 = vmax.f32 %v2400, %v2402
        %3623 = vmax.xlane.f32.xlu0 %v3622
        %v3624 = vpop.xlane.xlu0 %3623
        %v3625 = vmax.f32 %v2493, %v2495
        %3626 = vmax.xlane.f32.xlu0 %v3625
        %v3627 = vpop.xlane.xlu0 %3626
        %v3628 = vmax.f32 %v2497, %v2499
        %3629 = vmax.xlane.f32.xlu0 %v3628
        %v3630 = vpop.xlane.xlu0 %3629
        %v3631 = vmax.f32 %v2503, %v2505
        %3632 = vmax.xlane.f32.xlu0 %v3631
        %v3633 = vpop.xlane.xlu0 %3632
        %v3634 = vmax.f32 %v2507, %v2509
        %3635 = vmax.xlane.f32.xlu0 %v3634
        %v3636 = vpop.xlane.xlu0 %3635
        %v3637 = vmax.f32 %v2513, %v2515
        %3638 = vmax.xlane.f32.xlu0 %v3637
        %v3639 = vpop.xlane.xlu0 %3638
        %v3640 = vmax.f32 %v2517, %v2519
        %3641 = vmax.xlane.f32.xlu0 %v3640
        %v3642 = vpop.xlane.xlu0 %3641
        %v3643 = vmax.f32 %v2523, %v2525
        %3644 = vmax.xlane.f32.xlu0 %v3643
        %v3645 = vpop.xlane.xlu0 %3644
        %v3646 = vmax.f32 %v2527, %v2529
        %3647 = vmax.xlane.f32.xlu0 %v3646
        %v3648 = vpop.xlane.xlu0 %3647
        %v3649 = vmax.f32 %v2533, %v2535
        %3650 = vmax.xlane.f32.xlu0 %v3649
        %v3651 = vpop.xlane.xlu0 %3650
        %v3652 = vmax.f32 %v2537, %v2539
        %3653 = vmax.xlane.f32.xlu0 %v3652
        %v3654 = vpop.xlane.xlu0 %3653
        %v3655 = vmax.f32 %v2543, %v2545
        %3656 = vmax.xlane.f32.xlu0 %v3655
        %v3657 = vpop.xlane.xlu0 %3656
        %v3658 = vmax.f32 %v2547, %v2549
        %3659 = vmax.xlane.f32.xlu0 %v3658
        %v3660 = vpop.xlane.xlu0 %3659
        %v3661 = vmax.f32 %v2553, %v2555
        %3662 = vmax.xlane.f32.xlu0 %v3661
        %v3663 = vpop.xlane.xlu0 %3662
        %v3664 = vmax.f32 %v2557, %v2559
        %3665 = vmax.xlane.f32.xlu0 %v3664
        %v3666 = vpop.xlane.xlu0 %3665
        %v3667 = vmax.f32 %v2563, %v2565
        %3668 = vmax.xlane.f32.xlu0 %v3667
        %v3669 = vpop.xlane.xlu0 %3668
        %v3670 = vmax.f32 %v2567, %v2569
        %3671 = vmax.xlane.f32.xlu0 %v3670
        %v3672 = vpop.xlane.xlu0 %3671
        %v3673 = vmax.f32 %v2573, %v2575
        %3674 = vmax.xlane.f32.xlu0 %v3673
        %v3675 = vpop.xlane.xlu0 %3674
        %v3676 = vmax.f32 %v2577, %v2579
        %3677 = vmax.xlane.f32.xlu0 %v3676
        %v3678 = vpop.xlane.xlu0 %3677
        %v3679 = vmax.f32 %v2583, %v2585
        %3680 = vmax.xlane.f32.xlu0 %v3679
        %v3681 = vpop.xlane.xlu0 %3680
        %v3682 = vmax.f32 %v2587, %v2589
        %3683 = vmax.xlane.f32.xlu0 %v3682
        %v3684 = vpop.xlane.xlu0 %3683
        %v3685 = vmax.f32 %v2593, %v2595
        %3686 = vmax.xlane.f32.xlu0 %v3685
        %v3687 = vpop.xlane.xlu0 %3686
        %v3688 = vmax.f32 %v2597, %v2599
        %3689 = vmax.xlane.f32.xlu0 %v3688
        %v3690 = vpop.xlane.xlu0 %3689
        %v3691 = vmax.f32 %v2603, %v2605
        %3692 = vmax.xlane.f32.xlu0 %v3691
        %v3693 = vpop.xlane.xlu0 %3692
        %v3694 = vmax.f32 %v2607, %v2609
        %3695 = vmax.xlane.f32.xlu0 %v3694
        %v3696 = vpop.xlane.xlu0 %3695
        %v3697 = vmax.f32 %v2613, %v2615
        %3698 = vmax.xlane.f32.xlu0 %v3697
        %v3699 = vpop.xlane.xlu0 %3698
        %v3700 = vmax.f32 %v2617, %v2619
        %3701 = vmax.xlane.f32.xlu0 %v3700
        %v3702 = vpop.xlane.xlu0 %3701
        %v3703 = vmax.f32 %v2623, %v2625
        %3704 = vmax.xlane.f32.xlu0 %v3703
        %v3705 = vpop.xlane.xlu0 %3704
        %v3706 = vmax.f32 %v2627, %v2629
        %3707 = vmax.xlane.f32.xlu0 %v3706
        %v3708 = vpop.xlane.xlu0 %3707
        %v3709 = vmax.f32 %v2633, %v2635
        %3710 = vmax.xlane.f32.xlu0 %v3709
        %v3711 = vpop.xlane.xlu0 %3710
        %v3712 = vmax.f32 %v2637, %v2639
        %3713 = vmax.xlane.f32.xlu0 %v3712
        %v3714 = vpop.xlane.xlu0 %3713
        %v3715 = vmax.f32 %v2643, %v2645
        %3716 = vmax.xlane.f32.xlu0 %v3715
        %v3717 = vpop.xlane.xlu0 %3716
        %v3718 = vmax.f32 %v2647, %v2649
        %3719 = vmax.xlane.f32.xlu0 %v3718
        %v3720 = vpop.xlane.xlu0 %3719
        %v3721 = vmax.f32 %v2740, %v2742
        %3722 = vmax.xlane.f32.xlu0 %v3721
        %v3723 = vpop.xlane.xlu0 %3722
        %v3724 = vmax.f32 %v2744, %v2746
        %3725 = vmax.xlane.f32.xlu0 %v3724
        %v3726 = vpop.xlane.xlu0 %3725
        %v3727 = vmax.f32 %v2750, %v2752
        %3728 = vmax.xlane.f32.xlu0 %v3727
        %v3729 = vpop.xlane.xlu0 %3728
        %v3730 = vmax.f32 %v2754, %v2756
        %3731 = vmax.xlane.f32.xlu0 %v3730
        %v3732 = vpop.xlane.xlu0 %3731
        %v3733 = vmax.f32 %v2760, %v2762
        %3734 = vmax.xlane.f32.xlu0 %v3733
        %v3735 = vpop.xlane.xlu0 %3734
        %v3736 = vmax.f32 %v2764, %v2766
        %3737 = vmax.xlane.f32.xlu0 %v3736
        %v3738 = vpop.xlane.xlu0 %3737
        %v3739 = vmax.f32 %v2770, %v2772
        %3740 = vmax.xlane.f32.xlu0 %v3739
        %v3741 = vpop.xlane.xlu0 %3740
        %v3742 = vmax.f32 %v2774, %v2776
        %3743 = vmax.xlane.f32.xlu0 %v3742
        %v3744 = vpop.xlane.xlu0 %3743
        %v3745 = vmax.f32 %v2780, %v2782
        %3746 = vmax.xlane.f32.xlu0 %v3745
        %v3747 = vpop.xlane.xlu0 %3746
        %v3748 = vmax.f32 %v2784, %v2786
        %3749 = vmax.xlane.f32.xlu0 %v3748
        %v3750 = vpop.xlane.xlu0 %3749
        %v3751 = vmax.f32 %v2790, %v2792
        %3752 = vmax.xlane.f32.xlu0 %v3751
        %v3753 = vpop.xlane.xlu0 %3752
        %v3754 = vmax.f32 %v2794, %v2796
        %3755 = vmax.xlane.f32.xlu0 %v3754
        %v3756 = vpop.xlane.xlu0 %3755
        %v3757 = vmax.f32 %v2800, %v2802
        %3758 = vmax.xlane.f32.xlu0 %v3757
        %v3759 = vpop.xlane.xlu0 %3758
        %v3760 = vmax.f32 %v2804, %v2806
        %3761 = vmax.xlane.f32.xlu0 %v3760
        %v3762 = vpop.xlane.xlu0 %3761
        %v3763 = vmax.f32 %v2810, %v2812
        %3764 = vmax.xlane.f32.xlu0 %v3763
        %v3765 = vpop.xlane.xlu0 %3764
        %v3766 = vmax.f32 %v2814, %v2816
        %3767 = vmax.xlane.f32.xlu0 %v3766
        %v3768 = vpop.xlane.xlu0 %3767
        %v3769 = vmax.f32 %v2820, %v2822
        %3770 = vmax.xlane.f32.xlu0 %v3769
        %v3771 = vpop.xlane.xlu0 %3770
        %v3772 = vmax.f32 %v2824, %v2826
        %3773 = vmax.xlane.f32.xlu0 %v3772
        %v3774 = vpop.xlane.xlu0 %3773
        %v3775 = vmax.f32 %v2830, %v2832
        %3776 = vmax.xlane.f32.xlu0 %v3775
        %v3777 = vpop.xlane.xlu0 %3776
        %v3778 = vmax.f32 %v2834, %v2836
        %3779 = vmax.xlane.f32.xlu0 %v3778
        %v3780 = vpop.xlane.xlu0 %3779
        %v3781 = vmax.f32 %v2840, %v2842
        %3782 = vmax.xlane.f32.xlu0 %v3781
        %v3783 = vpop.xlane.xlu0 %3782
        %v3784 = vmax.f32 %v2844, %v2846
        %3785 = vmax.xlane.f32.xlu0 %v3784
        %v3786 = vpop.xlane.xlu0 %3785
        %v3787 = vmax.f32 %v2850, %v2852
        %3788 = vmax.xlane.f32.xlu0 %v3787
        %v3789 = vpop.xlane.xlu0 %3788
        %v3790 = vmax.f32 %v2854, %v2856
        %3791 = vmax.xlane.f32.xlu0 %v3790
        %v3792 = vpop.xlane.xlu0 %3791
        %v3793 = vmax.f32 %v2860, %v2862
        %3794 = vmax.xlane.f32.xlu0 %v3793
        %v3795 = vpop.xlane.xlu0 %3794
        %v3796 = vmax.f32 %v2864, %v2866
        %3797 = vmax.xlane.f32.xlu0 %v3796
        %v3798 = vpop.xlane.xlu0 %3797
        %v3799 = vmax.f32 %v2870, %v2872
        %3800 = vmax.xlane.f32.xlu0 %v3799
        %v3801 = vpop.xlane.xlu0 %3800
        %v3802 = vmax.f32 %v2874, %v2876
        %3803 = vmax.xlane.f32.xlu0 %v3802
        %v3804 = vpop.xlane.xlu0 %3803
        %v3805 = vmax.f32 %v2880, %v2882
        %3806 = vmax.xlane.f32.xlu0 %v3805
        %v3807 = vpop.xlane.xlu0 %3806
        %v3808 = vmax.f32 %v2884, %v2886
        %3809 = vmax.xlane.f32.xlu0 %v3808
        %v3810 = vpop.xlane.xlu0 %3809
        %v3811 = vmax.f32 %v2890, %v2892
        %3812 = vmax.xlane.f32.xlu0 %v3811
        %v3813 = vpop.xlane.xlu0 %3812
        %v3814 = vmax.f32 %v2894, %v2896
        %3815 = vmax.xlane.f32.xlu0 %v3814
        %v3816 = vpop.xlane.xlu0 %3815
        %v3817 = vmax.f32 %v2987, %v2989
        %3818 = vmax.xlane.f32.xlu0 %v3817
        %v3819 = vpop.xlane.xlu0 %3818
        %v3820 = vmax.f32 %v2991, %v2993
        %3821 = vmax.xlane.f32.xlu0 %v3820
        %v3822 = vpop.xlane.xlu0 %3821
        %v3823 = vmax.f32 %v2997, %v2999
        %3824 = vmax.xlane.f32.xlu0 %v3823
        %v3825 = vpop.xlane.xlu0 %3824
        %v3826 = vmax.f32 %v3001, %v3003
        %3827 = vmax.xlane.f32.xlu0 %v3826
        %v3828 = vpop.xlane.xlu0 %3827
        %v3829 = vmax.f32 %v3007, %v3009
        %3830 = vmax.xlane.f32.xlu0 %v3829
        %v3831 = vpop.xlane.xlu0 %3830
        %v3832 = vmax.f32 %v3011, %v3013
        %3833 = vmax.xlane.f32.xlu0 %v3832
        %v3834 = vpop.xlane.xlu0 %3833
        %v3835 = vmax.f32 %v3017, %v3019
        %3836 = vmax.xlane.f32.xlu0 %v3835
        %v3837 = vpop.xlane.xlu0 %3836
        %v3838 = vmax.f32 %v3021, %v3023
        %3839 = vmax.xlane.f32.xlu0 %v3838
        %v3840 = vpop.xlane.xlu0 %3839
        %v3841 = vmax.f32 %v3027, %v3029
        %3842 = vmax.xlane.f32.xlu0 %v3841
        %v3843 = vpop.xlane.xlu0 %3842
        %v3844 = vmax.f32 %v3031, %v3033
        %3845 = vmax.xlane.f32.xlu0 %v3844
        %v3846 = vpop.xlane.xlu0 %3845
        %v3847 = vmax.f32 %v3037, %v3039
        %3848 = vmax.xlane.f32.xlu0 %v3847
        %v3849 = vpop.xlane.xlu0 %3848
        %v3850 = vmax.f32 %v3041, %v3043
        %3851 = vmax.xlane.f32.xlu0 %v3850
        %v3852 = vpop.xlane.xlu0 %3851
        %v3853 = vmax.f32 %v3047, %v3049
        %3854 = vmax.xlane.f32.xlu0 %v3853
        %v3855 = vpop.xlane.xlu0 %3854
        %v3856 = vmax.f32 %v3051, %v3053
        %3857 = vmax.xlane.f32.xlu0 %v3856
        %v3858 = vpop.xlane.xlu0 %3857
        %v3859 = vmax.f32 %v3057, %v3059
        %3860 = vmax.xlane.f32.xlu0 %v3859
        %v3861 = vpop.xlane.xlu0 %3860
        %v3862 = vmax.f32 %v3061, %v3063
        %3863 = vmax.xlane.f32.xlu0 %v3862
        %v3864 = vpop.xlane.xlu0 %3863
        %v3865 = vmax.f32 %v3067, %v3069
        %3866 = vmax.xlane.f32.xlu0 %v3865
        %v3867 = vpop.xlane.xlu0 %3866
        %v3868 = vmax.f32 %v3071, %v3073
        %3869 = vmax.xlane.f32.xlu0 %v3868
        %v3870 = vpop.xlane.xlu0 %3869
        %v3871 = vmax.f32 %v3077, %v3079
        %3872 = vmax.xlane.f32.xlu0 %v3871
        %v3873 = vpop.xlane.xlu0 %3872
        %v3874 = vmax.f32 %v3081, %v3083
        %3875 = vmax.xlane.f32.xlu0 %v3874
        %v3876 = vpop.xlane.xlu0 %3875
        %v3877 = vmax.f32 %v3087, %v3089
        %3878 = vmax.xlane.f32.xlu0 %v3877
        %v3879 = vpop.xlane.xlu0 %3878
        %v3880 = vmax.f32 %v3091, %v3093
        %3881 = vmax.xlane.f32.xlu0 %v3880
        %v3882 = vpop.xlane.xlu0 %3881
        %v3883 = vmax.f32 %v3097, %v3099
        %3884 = vmax.xlane.f32.xlu0 %v3883
        %v3885 = vpop.xlane.xlu0 %3884
        %v3886 = vmax.f32 %v3101, %v3103
        %3887 = vmax.xlane.f32.xlu0 %v3886
        %v3888 = vpop.xlane.xlu0 %3887
        %v3889 = vmax.f32 %v3107, %v3109
        %3890 = vmax.xlane.f32.xlu0 %v3889
        %v3891 = vpop.xlane.xlu0 %3890
        %v3892 = vmax.f32 %v3111, %v3113
        %3893 = vmax.xlane.f32.xlu0 %v3892
        %v3894 = vpop.xlane.xlu0 %3893
        %v3895 = vmax.f32 %v3117, %v3119
        %3896 = vmax.xlane.f32.xlu0 %v3895
        %v3897 = vpop.xlane.xlu0 %3896
        %v3898 = vmax.f32 %v3121, %v3123
        %3899 = vmax.xlane.f32.xlu0 %v3898
        %v3900 = vpop.xlane.xlu0 %3899
        %v3901 = vmax.f32 %v3127, %v3129
        %3902 = vmax.xlane.f32.xlu0 %v3901
        %v3903 = vpop.xlane.xlu0 %3902
        %v3904 = vmax.f32 %v3131, %v3133
        %3905 = vmax.xlane.f32.xlu0 %v3904
        %v3906 = vpop.xlane.xlu0 %3905
        %v3907 = vmax.f32 %v3137, %v3139
        %3908 = vmax.xlane.f32.xlu0 %v3907
        %v3909 = vpop.xlane.xlu0 %3908
        %v3910 = vmax.f32 %v3141, %v3143
        %3911 = vmax.xlane.f32.xlu0 %v3910
        %v3912 = vpop.xlane.xlu0 %3911
        %v3913 = vsub.f32 %v1258, %v3147
        %v3914 = vsub.f32 %v1260, %v3147
        %v3915 = vsub.f32 %v1262, %v3150
        %v3916 = vsub.f32 %v1264, %v3150
        %v3917 = vsub.f32 %v1268, %v3153
        %v3918 = vsub.f32 %v1270, %v3153
        %v3919 = vsub.f32 %v1272, %v3156
        %v3920 = vsub.f32 %v1274, %v3156
        %v3921 = vsub.f32 %v1278, %v3159
        %v3922 = vsub.f32 %v1280, %v3159
        %v3923 = vsub.f32 %v1282, %v3162
        %v3924 = vsub.f32 %v1284, %v3162
        %v3925 = vsub.f32 %v1288, %v3165
        %v3926 = vsub.f32 %v1290, %v3165
        %v3927 = vsub.f32 %v1292, %v3168
        %v3928 = vsub.f32 %v1294, %v3168
        %v3929 = vsub.f32 %v1298, %v3171
        %v3930 = vsub.f32 %v1300, %v3171
        %v3931 = vsub.f32 %v1302, %v3174
        %v3932 = vsub.f32 %v1304, %v3174
        %v3933 = vsub.f32 %v1308, %v3177
        %v3934 = vsub.f32 %v1310, %v3177
        %v3935 = vsub.f32 %v1312, %v3180
        %v3936 = vsub.f32 %v1314, %v3180
        %v3937 = vsub.f32 %v1318, %v3183
        %v3938 = vsub.f32 %v1320, %v3183
        %v3939 = vsub.f32 %v1322, %v3186
        %v3940 = vsub.f32 %v1324, %v3186
        %v3941 = vsub.f32 %v1328, %v3189
        %v3942 = vsub.f32 %v1330, %v3189
        %v3943 = vsub.f32 %v1332, %v3192
        %v3944 = vsub.f32 %v1334, %v3192
        %v3945 = vsub.f32 %v1338, %v3195
        %v3946 = vsub.f32 %v1340, %v3195
        %v3947 = vsub.f32 %v1342, %v3198
        %v3948 = vsub.f32 %v1344, %v3198
        %v3949 = vsub.f32 %v1348, %v3201
        %v3950 = vsub.f32 %v1350, %v3201
        %v3951 = vsub.f32 %v1352, %v3204
        %v3952 = vsub.f32 %v1354, %v3204
        %v3953 = vsub.f32 %v1358, %v3207
        %v3954 = vsub.f32 %v1360, %v3207
        %v3955 = vsub.f32 %v1362, %v3210
        %v3956 = vsub.f32 %v1364, %v3210
        %v3957 = vsub.f32 %v1368, %v3213
        %v3958 = vsub.f32 %v1370, %v3213
        %v3959 = vsub.f32 %v1372, %v3216
        %v3960 = vsub.f32 %v1374, %v3216
        %v3961 = vsub.f32 %v1378, %v3219
        %v3962 = vsub.f32 %v1380, %v3219
        %v3963 = vsub.f32 %v1382, %v3222
        %v3964 = vsub.f32 %v1384, %v3222
        %v3965 = vsub.f32 %v1388, %v3225
        %v3966 = vsub.f32 %v1390, %v3225
        %v3967 = vsub.f32 %v1392, %v3228
        %v3968 = vsub.f32 %v1394, %v3228
        %v3969 = vsub.f32 %v1398, %v3231
        %v3970 = vsub.f32 %v1400, %v3231
        %v3971 = vsub.f32 %v1402, %v3234
        %v3972 = vsub.f32 %v1404, %v3234
        %v3973 = vsub.f32 %v1408, %v3237
        %v3974 = vsub.f32 %v1410, %v3237
        %v3975 = vsub.f32 %v1412, %v3240
        %v3976 = vsub.f32 %v1414, %v3240
        %v3977 = vsub.f32 %v1505, %v3243
        %v3978 = vsub.f32 %v1507, %v3243
        %v3979 = vsub.f32 %v1509, %v3246
        %v3980 = vsub.f32 %v1511, %v3246
        %v3981 = vsub.f32 %v1515, %v3249
        %v3982 = vsub.f32 %v1517, %v3249
        %v3983 = vsub.f32 %v1519, %v3252
        %v3984 = vsub.f32 %v1521, %v3252
        %v3985 = vsub.f32 %v1525, %v3255
        %v3986 = vsub.f32 %v1527, %v3255
        %v3987 = vsub.f32 %v1529, %v3258
        %v3988 = vsub.f32 %v1531, %v3258
        %v3989 = vsub.f32 %v1535, %v3261
        %v3990 = vsub.f32 %v1537, %v3261
        %v3991 = vsub.f32 %v1539, %v3264
        %v3992 = vsub.f32 %v1541, %v3264
        %v3993 = vsub.f32 %v1545, %v3267
        %v3994 = vsub.f32 %v1547, %v3267
        %v3995 = vsub.f32 %v1549, %v3270
        %v3996 = vsub.f32 %v1551, %v3270
        %v3997 = vsub.f32 %v1555, %v3273
        %v3998 = vsub.f32 %v1557, %v3273
        %v3999 = vsub.f32 %v1559, %v3276
        %v4000 = vsub.f32 %v1561, %v3276
        %v4001 = vsub.f32 %v1565, %v3279
        %v4002 = vsub.f32 %v1567, %v3279
        %v4003 = vsub.f32 %v1569, %v3282
        %v4004 = vsub.f32 %v1571, %v3282
        %v4005 = vsub.f32 %v1575, %v3285
        %v4006 = vsub.f32 %v1577, %v3285
        %v4007 = vsub.f32 %v1579, %v3288
        %v4008 = vsub.f32 %v1581, %v3288
        %v4009 = vsub.f32 %v1585, %v3291
        %v4010 = vsub.f32 %v1587, %v3291
        %v4011 = vsub.f32 %v1589, %v3294
        %v4012 = vsub.f32 %v1591, %v3294
        %v4013 = vsub.f32 %v1595, %v3297
        %v4014 = vsub.f32 %v1597, %v3297
        %v4015 = vsub.f32 %v1599, %v3300
        %v4016 = vsub.f32 %v1601, %v3300
        %v4017 = vsub.f32 %v1605, %v3303
        %v4018 = vsub.f32 %v1607, %v3303
        %v4019 = vsub.f32 %v1609, %v3306
        %v4020 = vsub.f32 %v1611, %v3306
        %v4021 = vsub.f32 %v1615, %v3309
        %v4022 = vsub.f32 %v1617, %v3309
        %v4023 = vsub.f32 %v1619, %v3312
        %v4024 = vsub.f32 %v1621, %v3312
        %v4025 = vsub.f32 %v1625, %v3315
        %v4026 = vsub.f32 %v1627, %v3315
        %v4027 = vsub.f32 %v1629, %v3318
        %v4028 = vsub.f32 %v1631, %v3318
        %v4029 = vsub.f32 %v1635, %v3321
        %v4030 = vsub.f32 %v1637, %v3321
        %v4031 = vsub.f32 %v1639, %v3324
        %v4032 = vsub.f32 %v1641, %v3324
        %v4033 = vsub.f32 %v1645, %v3327
        %v4034 = vsub.f32 %v1647, %v3327
        %v4035 = vsub.f32 %v1649, %v3330
        %v4036 = vsub.f32 %v1651, %v3330
        %v4037 = vsub.f32 %v1655, %v3333
        %v4038 = vsub.f32 %v1657, %v3333
        %v4039 = vsub.f32 %v1659, %v3336
        %v4040 = vsub.f32 %v1661, %v3336
        %v4041 = vsub.f32 %v1752, %v3339
        %v4042 = vsub.f32 %v1754, %v3339
        %v4043 = vsub.f32 %v1756, %v3342
        %v4044 = vsub.f32 %v1758, %v3342
        %v4045 = vsub.f32 %v1762, %v3345
        %v4046 = vsub.f32 %v1764, %v3345
        %v4047 = vsub.f32 %v1766, %v3348
        %v4048 = vsub.f32 %v1768, %v3348
        %v4049 = vsub.f32 %v1772, %v3351
        %v4050 = vsub.f32 %v1774, %v3351
        %v4051 = vsub.f32 %v1776, %v3354
        %v4052 = vsub.f32 %v1778, %v3354
        %v4053 = vsub.f32 %v1782, %v3357
        %v4054 = vsub.f32 %v1784, %v3357
        %v4055 = vsub.f32 %v1786, %v3360
        %v4056 = vsub.f32 %v1788, %v3360
        %v4057 = vsub.f32 %v1792, %v3363
        %v4058 = vsub.f32 %v1794, %v3363
        %v4059 = vsub.f32 %v1796, %v3366
        %v4060 = vsub.f32 %v1798, %v3366
        %v4061 = vsub.f32 %v1802, %v3369
        %v4062 = vsub.f32 %v1804, %v3369
        %v4063 = vsub.f32 %v1806, %v3372
        %v4064 = vsub.f32 %v1808, %v3372
        %v4065 = vsub.f32 %v1812, %v3375
        %v4066 = vsub.f32 %v1814, %v3375
        %v4067 = vsub.f32 %v1816, %v3378
        %v4068 = vsub.f32 %v1818, %v3378
        %v4069 = vsub.f32 %v1822, %v3381
        %v4070 = vsub.f32 %v1824, %v3381
        %v4071 = vsub.f32 %v1826, %v3384
        %v4072 = vsub.f32 %v1828, %v3384
        %v4073 = vsub.f32 %v1832, %v3387
        %v4074 = vsub.f32 %v1834, %v3387
        %v4075 = vsub.f32 %v1836, %v3390
        %v4076 = vsub.f32 %v1838, %v3390
        %v4077 = vsub.f32 %v1842, %v3393
        %v4078 = vsub.f32 %v1844, %v3393
        %v4079 = vsub.f32 %v1846, %v3396
        %v4080 = vsub.f32 %v1848, %v3396
        %v4081 = vsub.f32 %v1852, %v3399
        %v4082 = vsub.f32 %v1854, %v3399
        %v4083 = vsub.f32 %v1856, %v3402
        %v4084 = vsub.f32 %v1858, %v3402
        %v4085 = vsub.f32 %v1862, %v3405
        %v4086 = vsub.f32 %v1864, %v3405
        %v4087 = vsub.f32 %v1866, %v3408
        %v4088 = vsub.f32 %v1868, %v3408
        %v4089 = vsub.f32 %v1872, %v3411
        %v4090 = vsub.f32 %v1874, %v3411
        %v4091 = vsub.f32 %v1876, %v3414
        %v4092 = vsub.f32 %v1878, %v3414
        %v4093 = vsub.f32 %v1882, %v3417
        %v4094 = vsub.f32 %v1884, %v3417
        %v4095 = vsub.f32 %v1886, %v3420
        %v4096 = vsub.f32 %v1888, %v3420
        %v4097 = vsub.f32 %v1892, %v3423
        %v4098 = vsub.f32 %v1894, %v3423
        %v4099 = vsub.f32 %v1896, %v3426
        %v4100 = vsub.f32 %v1898, %v3426
        %v4101 = vsub.f32 %v1902, %v3429
        %v4102 = vsub.f32 %v1904, %v3429
        %v4103 = vsub.f32 %v1906, %v3432
        %v4104 = vsub.f32 %v1908, %v3432
        %v4105 = vsub.f32 %v1999, %v3435
        %v4106 = vsub.f32 %v2001, %v3435
        %v4107 = vsub.f32 %v2003, %v3438
        %v4108 = vsub.f32 %v2005, %v3438
        %v4109 = vsub.f32 %v2009, %v3441
        %v4110 = vsub.f32 %v2011, %v3441
        %v4111 = vsub.f32 %v2013, %v3444
        %v4112 = vsub.f32 %v2015, %v3444
        %v4113 = vsub.f32 %v2019, %v3447
        %v4114 = vsub.f32 %v2021, %v3447
        %v4115 = vsub.f32 %v2023, %v3450
        %v4116 = vsub.f32 %v2025, %v3450
        %v4117 = vsub.f32 %v2029, %v3453
        %v4118 = vsub.f32 %v2031, %v3453
        %v4119 = vsub.f32 %v2033, %v3456
        %v4120 = vsub.f32 %v2035, %v3456
        %v4121 = vsub.f32 %v2039, %v3459
        %v4122 = vsub.f32 %v2041, %v3459
        %v4123 = vsub.f32 %v2043, %v3462
        %v4124 = vsub.f32 %v2045, %v3462
        %v4125 = vsub.f32 %v2049, %v3465
        %v4126 = vsub.f32 %v2051, %v3465
        %v4127 = vsub.f32 %v2053, %v3468
        %v4128 = vsub.f32 %v2055, %v3468
        %v4129 = vsub.f32 %v2059, %v3471
        %v4130 = vsub.f32 %v2061, %v3471
        %v4131 = vsub.f32 %v2063, %v3474
        %v4132 = vsub.f32 %v2065, %v3474
        %v4133 = vsub.f32 %v2069, %v3477
        %v4134 = vsub.f32 %v2071, %v3477
        %v4135 = vsub.f32 %v2073, %v3480
        %v4136 = vsub.f32 %v2075, %v3480
        %v4137 = vsub.f32 %v2079, %v3483
        %v4138 = vsub.f32 %v2081, %v3483
        %v4139 = vsub.f32 %v2083, %v3486
        %v4140 = vsub.f32 %v2085, %v3486
        %v4141 = vsub.f32 %v2089, %v3489
        %v4142 = vsub.f32 %v2091, %v3489
        %v4143 = vsub.f32 %v2093, %v3492
        %v4144 = vsub.f32 %v2095, %v3492
        %v4145 = vsub.f32 %v2099, %v3495
        %v4146 = vsub.f32 %v2101, %v3495
        %v4147 = vsub.f32 %v2103, %v3498
        %v4148 = vsub.f32 %v2105, %v3498
        %v4149 = vsub.f32 %v2109, %v3501
        %v4150 = vsub.f32 %v2111, %v3501
        %v4151 = vsub.f32 %v2113, %v3504
        %v4152 = vsub.f32 %v2115, %v3504
        %v4153 = vsub.f32 %v2119, %v3507
        %v4154 = vsub.f32 %v2121, %v3507
        %v4155 = vsub.f32 %v2123, %v3510
        %v4156 = vsub.f32 %v2125, %v3510
        %v4157 = vsub.f32 %v2129, %v3513
        %v4158 = vsub.f32 %v2131, %v3513
        %v4159 = vsub.f32 %v2133, %v3516
        %v4160 = vsub.f32 %v2135, %v3516
        %v4161 = vsub.f32 %v2139, %v3519
        %v4162 = vsub.f32 %v2141, %v3519
        %v4163 = vsub.f32 %v2143, %v3522
        %v4164 = vsub.f32 %v2145, %v3522
        %v4165 = vsub.f32 %v2149, %v3525
        %v4166 = vsub.f32 %v2151, %v3525
        %v4167 = vsub.f32 %v2153, %v3528
        %v4168 = vsub.f32 %v2155, %v3528
        %v4169 = vsub.f32 %v2246, %v3531
        %v4170 = vsub.f32 %v2248, %v3531
        %v4171 = vsub.f32 %v2250, %v3534
        %v4172 = vsub.f32 %v2252, %v3534
        %v4173 = vsub.f32 %v2256, %v3537
        %v4174 = vsub.f32 %v2258, %v3537
        %v4175 = vsub.f32 %v2260, %v3540
        %v4176 = vsub.f32 %v2262, %v3540
        %v4177 = vsub.f32 %v2266, %v3543
        %v4178 = vsub.f32 %v2268, %v3543
        %v4179 = vsub.f32 %v2270, %v3546
        %v4180 = vsub.f32 %v2272, %v3546
        %v4181 = vsub.f32 %v2276, %v3549
        %v4182 = vsub.f32 %v2278, %v3549
        %v4183 = vsub.f32 %v2280, %v3552
        %v4184 = vsub.f32 %v2282, %v3552
        %v4185 = vsub.f32 %v2286, %v3555
        %v4186 = vsub.f32 %v2288, %v3555
        %v4187 = vsub.f32 %v2290, %v3558
        %v4188 = vsub.f32 %v2292, %v3558
        %v4189 = vsub.f32 %v2296, %v3561
        %v4190 = vsub.f32 %v2298, %v3561
        %v4191 = vsub.f32 %v2300, %v3564
        %v4192 = vsub.f32 %v2302, %v3564
        %v4193 = vsub.f32 %v2306, %v3567
        %v4194 = vsub.f32 %v2308, %v3567
        %v4195 = vsub.f32 %v2310, %v3570
        %v4196 = vsub.f32 %v2312, %v3570
        %v4197 = vsub.f32 %v2316, %v3573
        %v4198 = vsub.f32 %v2318, %v3573
        %v4199 = vsub.f32 %v2320, %v3576
        %v4200 = vsub.f32 %v2322, %v3576
        %v4201 = vsub.f32 %v2326, %v3579
        %v4202 = vsub.f32 %v2328, %v3579
        %v4203 = vsub.f32 %v2330, %v3582
        %v4204 = vsub.f32 %v2332, %v3582
        %v4205 = vsub.f32 %v2336, %v3585
        %v4206 = vsub.f32 %v2338, %v3585
        %v4207 = vsub.f32 %v2340, %v3588
        %v4208 = vsub.f32 %v2342, %v3588
        %v4209 = vsub.f32 %v2346, %v3591
        %v4210 = vsub.f32 %v2348, %v3591
        %v4211 = vsub.f32 %v2350, %v3594
        %v4212 = vsub.f32 %v2352, %v3594
        %v4213 = vsub.f32 %v2356, %v3597
        %v4214 = vsub.f32 %v2358, %v3597
        %v4215 = vsub.f32 %v2360, %v3600
        %v4216 = vsub.f32 %v2362, %v3600
        %v4217 = vsub.f32 %v2366, %v3603
        %v4218 = vsub.f32 %v2368, %v3603
        %v4219 = vsub.f32 %v2370, %v3606
        %v4220 = vsub.f32 %v2372, %v3606
        %v4221 = vsub.f32 %v2376, %v3609
        %v4222 = vsub.f32 %v2378, %v3609
        %v4223 = vsub.f32 %v2380, %v3612
        %v4224 = vsub.f32 %v2382, %v3612
        %v4225 = vsub.f32 %v2386, %v3615
        %v4226 = vsub.f32 %v2388, %v3615
        %v4227 = vsub.f32 %v2390, %v3618
        %v4228 = vsub.f32 %v2392, %v3618
        %v4229 = vsub.f32 %v2396, %v3621
        %v4230 = vsub.f32 %v2398, %v3621
        %v4231 = vsub.f32 %v2400, %v3624
        %v4232 = vsub.f32 %v2402, %v3624
        %v4233 = vsub.f32 %v2493, %v3627
        %v4234 = vsub.f32 %v2495, %v3627
        %v4235 = vsub.f32 %v2497, %v3630
        %v4236 = vsub.f32 %v2499, %v3630
        %v4237 = vsub.f32 %v2503, %v3633
        %v4238 = vsub.f32 %v2505, %v3633
        %v4239 = vsub.f32 %v2507, %v3636
        %v4240 = vsub.f32 %v2509, %v3636
        %v4241 = vsub.f32 %v2513, %v3639
        %v4242 = vsub.f32 %v2515, %v3639
        %v4243 = vsub.f32 %v2517, %v3642
        %v4244 = vsub.f32 %v2519, %v3642
        %v4245 = vsub.f32 %v2523, %v3645
        %v4246 = vsub.f32 %v2525, %v3645
        %v4247 = vsub.f32 %v2527, %v3648
        %v4248 = vsub.f32 %v2529, %v3648
        %v4249 = vsub.f32 %v2533, %v3651
        %v4250 = vsub.f32 %v2535, %v3651
        %v4251 = vsub.f32 %v2537, %v3654
        %v4252 = vsub.f32 %v2539, %v3654
        %v4253 = vsub.f32 %v2543, %v3657
        %v4254 = vsub.f32 %v2545, %v3657
        %v4255 = vsub.f32 %v2547, %v3660
        %v4256 = vsub.f32 %v2549, %v3660
        %v4257 = vsub.f32 %v2553, %v3663
        %v4258 = vsub.f32 %v2555, %v3663
        %v4259 = vsub.f32 %v2557, %v3666
        %v4260 = vsub.f32 %v2559, %v3666
        %v4261 = vsub.f32 %v2563, %v3669
        %v4262 = vsub.f32 %v2565, %v3669
        %v4263 = vsub.f32 %v2567, %v3672
        %v4264 = vsub.f32 %v2569, %v3672
        %v4265 = vsub.f32 %v2573, %v3675
        %v4266 = vsub.f32 %v2575, %v3675
        %v4267 = vsub.f32 %v2577, %v3678
        %v4268 = vsub.f32 %v2579, %v3678
        %v4269 = vsub.f32 %v2583, %v3681
        %v4270 = vsub.f32 %v2585, %v3681
        %v4271 = vsub.f32 %v2587, %v3684
        %v4272 = vsub.f32 %v2589, %v3684
        %v4273 = vsub.f32 %v2593, %v3687
        %v4274 = vsub.f32 %v2595, %v3687
        %v4275 = vsub.f32 %v2597, %v3690
        %v4276 = vsub.f32 %v2599, %v3690
        %v4277 = vsub.f32 %v2603, %v3693
        %v4278 = vsub.f32 %v2605, %v3693
        %v4279 = vsub.f32 %v2607, %v3696
        %v4280 = vsub.f32 %v2609, %v3696
        %v4281 = vsub.f32 %v2613, %v3699
        %v4282 = vsub.f32 %v2615, %v3699
        %v4283 = vsub.f32 %v2617, %v3702
        %v4284 = vsub.f32 %v2619, %v3702
        %v4285 = vsub.f32 %v2623, %v3705
        %v4286 = vsub.f32 %v2625, %v3705
        %v4287 = vsub.f32 %v2627, %v3708
        %v4288 = vsub.f32 %v2629, %v3708
        %v4289 = vsub.f32 %v2633, %v3711
        %v4290 = vsub.f32 %v2635, %v3711
        %v4291 = vsub.f32 %v2637, %v3714
        %v4292 = vsub.f32 %v2639, %v3714
        %v4293 = vsub.f32 %v2643, %v3717
        %v4294 = vsub.f32 %v2645, %v3717
        %v4295 = vsub.f32 %v2647, %v3720
        %v4296 = vsub.f32 %v2649, %v3720
        %v4297 = vsub.f32 %v2740, %v3723
        %v4298 = vsub.f32 %v2742, %v3723
        %v4299 = vsub.f32 %v2744, %v3726
        %v4300 = vsub.f32 %v2746, %v3726
        %v4301 = vsub.f32 %v2750, %v3729
        %v4302 = vsub.f32 %v2752, %v3729
        %v4303 = vsub.f32 %v2754, %v3732
        %v4304 = vsub.f32 %v2756, %v3732
        %v4305 = vsub.f32 %v2760, %v3735
        %v4306 = vsub.f32 %v2762, %v3735
        %v4307 = vsub.f32 %v2764, %v3738
        %v4308 = vsub.f32 %v2766, %v3738
        %v4309 = vsub.f32 %v2770, %v3741
        %v4310 = vsub.f32 %v2772, %v3741
        %v4311 = vsub.f32 %v2774, %v3744
        %v4312 = vsub.f32 %v2776, %v3744
        %v4313 = vsub.f32 %v2780, %v3747
        %v4314 = vsub.f32 %v2782, %v3747
        %v4315 = vsub.f32 %v2784, %v3750
        %v4316 = vsub.f32 %v2786, %v3750
        %v4317 = vsub.f32 %v2790, %v3753
        %v4318 = vsub.f32 %v2792, %v3753
        %v4319 = vsub.f32 %v2794, %v3756
        %v4320 = vsub.f32 %v2796, %v3756
        %v4321 = vsub.f32 %v2800, %v3759
        %v4322 = vsub.f32 %v2802, %v3759
        %v4323 = vsub.f32 %v2804, %v3762
        %v4324 = vsub.f32 %v2806, %v3762
        %v4325 = vsub.f32 %v2810, %v3765
        %v4326 = vsub.f32 %v2812, %v3765
        %v4327 = vsub.f32 %v2814, %v3768
        %v4328 = vsub.f32 %v2816, %v3768
        %v4329 = vsub.f32 %v2820, %v3771
        %v4330 = vsub.f32 %v2822, %v3771
        %v4331 = vsub.f32 %v2824, %v3774
        %v4332 = vsub.f32 %v2826, %v3774
        %v4333 = vsub.f32 %v2830, %v3777
        %v4334 = vsub.f32 %v2832, %v3777
        %v4335 = vsub.f32 %v2834, %v3780
        %v4336 = vsub.f32 %v2836, %v3780
        %v4337 = vsub.f32 %v2840, %v3783
        %v4338 = vsub.f32 %v2842, %v3783
        %v4339 = vsub.f32 %v2844, %v3786
        %v4340 = vsub.f32 %v2846, %v3786
        %v4341 = vsub.f32 %v2850, %v3789
        %v4342 = vsub.f32 %v2852, %v3789
        %v4343 = vsub.f32 %v2854, %v3792
        %v4344 = vsub.f32 %v2856, %v3792
        %v4345 = vsub.f32 %v2860, %v3795
        %v4346 = vsub.f32 %v2862, %v3795
        %v4347 = vsub.f32 %v2864, %v3798
        %v4348 = vsub.f32 %v2866, %v3798
        %v4349 = vsub.f32 %v2870, %v3801
        %v4350 = vsub.f32 %v2872, %v3801
        %v4351 = vsub.f32 %v2874, %v3804
        %v4352 = vsub.f32 %v2876, %v3804
        %v4353 = vsub.f32 %v2880, %v3807
        %v4354 = vsub.f32 %v2882, %v3807
        %v4355 = vsub.f32 %v2884, %v3810
        %v4356 = vsub.f32 %v2886, %v3810
        %v4357 = vsub.f32 %v2890, %v3813
        %v4358 = vsub.f32 %v2892, %v3813
        %v4359 = vsub.f32 %v2894, %v3816
        %v4360 = vsub.f32 %v2896, %v3816
        %v4361 = vsub.f32 %v2987, %v3819
        %v4362 = vsub.f32 %v2989, %v3819
        %v4363 = vsub.f32 %v2991, %v3822
        %v4364 = vsub.f32 %v2993, %v3822
        %v4365 = vsub.f32 %v2997, %v3825
        %v4366 = vsub.f32 %v2999, %v3825
        %v4367 = vsub.f32 %v3001, %v3828
        %v4368 = vsub.f32 %v3003, %v3828
        %v4369 = vsub.f32 %v3007, %v3831
        %v4370 = vsub.f32 %v3009, %v3831
        %v4371 = vsub.f32 %v3011, %v3834
        %v4372 = vsub.f32 %v3013, %v3834
        %v4373 = vsub.f32 %v3017, %v3837
        %v4374 = vsub.f32 %v3019, %v3837
        %v4375 = vsub.f32 %v3021, %v3840
        %v4376 = vsub.f32 %v3023, %v3840
        %v4377 = vsub.f32 %v3027, %v3843
        %v4378 = vsub.f32 %v3029, %v3843
        %v4379 = vsub.f32 %v3031, %v3846
        %v4380 = vsub.f32 %v3033, %v3846
        %v4381 = vsub.f32 %v3037, %v3849
        %v4382 = vsub.f32 %v3039, %v3849
        %v4383 = vsub.f32 %v3041, %v3852
        %v4384 = vsub.f32 %v3043, %v3852
        %v4385 = vsub.f32 %v3047, %v3855
        %v4386 = vsub.f32 %v3049, %v3855
        %v4387 = vsub.f32 %v3051, %v3858
        %v4388 = vsub.f32 %v3053, %v3858
        %v4389 = vsub.f32 %v3057, %v3861
        %v4390 = vsub.f32 %v3059, %v3861
        %v4391 = vsub.f32 %v3061, %v3864
        %v4392 = vsub.f32 %v3063, %v3864
        %v4393 = vsub.f32 %v3067, %v3867
        %v4394 = vsub.f32 %v3069, %v3867
        %v4395 = vsub.f32 %v3071, %v3870
        %v4396 = vsub.f32 %v3073, %v3870
        %v4397 = vsub.f32 %v3077, %v3873
        %v4398 = vsub.f32 %v3079, %v3873
        %v4399 = vsub.f32 %v3081, %v3876
        %v4400 = vsub.f32 %v3083, %v3876
        %v4401 = vsub.f32 %v3087, %v3879
        %v4402 = vsub.f32 %v3089, %v3879
        %v4403 = vsub.f32 %v3091, %v3882
        %v4404 = vsub.f32 %v3093, %v3882
        %v4405 = vsub.f32 %v3097, %v3885
        %v4406 = vsub.f32 %v3099, %v3885
        %v4407 = vsub.f32 %v3101, %v3888
        %v4408 = vsub.f32 %v3103, %v3888
        %v4409 = vsub.f32 %v3107, %v3891
        %v4410 = vsub.f32 %v3109, %v3891
        %v4411 = vsub.f32 %v3111, %v3894
        %v4412 = vsub.f32 %v3113, %v3894
        %v4413 = vsub.f32 %v3117, %v3897
        %v4414 = vsub.f32 %v3119, %v3897
        %v4415 = vsub.f32 %v3121, %v3900
        %v4416 = vsub.f32 %v3123, %v3900
        %v4417 = vsub.f32 %v3127, %v3903
        %v4418 = vsub.f32 %v3129, %v3903
        %v4419 = vsub.f32 %v3131, %v3906
        %v4420 = vsub.f32 %v3133, %v3906
        %v4421 = vsub.f32 %v3137, %v3909
        %v4422 = vsub.f32 %v3139, %v3909
        %v4423 = vsub.f32 %v3141, %v3912
        %v4424 = vsub.f32 %v3143, %v3912
        %v4425 = vmul.f32 %v3913, 1.442695
        %v4426 = vpow.pop %v4425
        %v4427 = vmul.f32 %v3914, 1.442695
        %v4428 = vpow.pop %v4427
        %v4429 = vmul.f32 %v3915, 1.442695
        %v4430 = vpow.pop %v4429
        %v4431 = vmul.f32 %v3916, 1.442695
        %v4432 = vpow.pop %v4431
        %v4433 = vmul.f32 %v3917, 1.442695
        %v4434 = vpow.pop %v4433
        %v4435 = vmul.f32 %v3918, 1.442695
        %v4436 = vpow.pop %v4435
        %v4437 = vmul.f32 %v3919, 1.442695
        %v4438 = vpow.pop %v4437
        %v4439 = vmul.f32 %v3920, 1.442695
        %v4440 = vpow.pop %v4439
        %v4441 = vmul.f32 %v3921, 1.442695
        %v4442 = vpow.pop %v4441
        %v4443 = vmul.f32 %v3922, 1.442695
        %v4444 = vpow.pop %v4443
        %v4445 = vmul.f32 %v3923, 1.442695
        %v4446 = vpow.pop %v4445
        %v4447 = vmul.f32 %v3924, 1.442695
        %v4448 = vpow.pop %v4447
        %v4449 = vmul.f32 %v3925, 1.442695
        %v4450 = vpow.pop %v4449
        %v4451 = vmul.f32 %v3926, 1.442695
        %v4452 = vpow.pop %v4451
        %v4453 = vmul.f32 %v3927, 1.442695
        %v4454 = vpow.pop %v4453
        %v4455 = vmul.f32 %v3928, 1.442695
        %v4456 = vpow.pop %v4455
        %v4457 = vmul.f32 %v3929, 1.442695
        %v4458 = vpow.pop %v4457
        %v4459 = vmul.f32 %v3930, 1.442695
        %v4460 = vpow.pop %v4459
        %v4461 = vmul.f32 %v3931, 1.442695
        %v4462 = vpow.pop %v4461
        %v4463 = vmul.f32 %v3932, 1.442695
        %v4464 = vpow.pop %v4463
        %v4465 = vmul.f32 %v3933, 1.442695
        %v4466 = vpow.pop %v4465
        %v4467 = vmul.f32 %v3934, 1.442695
        %v4468 = vpow.pop %v4467
        %v4469 = vmul.f32 %v3935, 1.442695
        %v4470 = vpow.pop %v4469
        %v4471 = vmul.f32 %v3936, 1.442695
        %v4472 = vpow.pop %v4471
        %v4473 = vmul.f32 %v3937, 1.442695
        %v4474 = vpow.pop %v4473
        %v4475 = vmul.f32 %v3938, 1.442695
        %v4476 = vpow.pop %v4475
        %v4477 = vmul.f32 %v3939, 1.442695
        %v4478 = vpow.pop %v4477
        %v4479 = vmul.f32 %v3940, 1.442695
        %v4480 = vpow.pop %v4479
        %v4481 = vmul.f32 %v3941, 1.442695
        %v4482 = vpow.pop %v4481
        %v4483 = vmul.f32 %v3942, 1.442695
        %v4484 = vpow.pop %v4483
        %v4485 = vmul.f32 %v3943, 1.442695
        %v4486 = vpow.pop %v4485
        %v4487 = vmul.f32 %v3944, 1.442695
        %v4488 = vpow.pop %v4487
        %v4489 = vmul.f32 %v3945, 1.442695
        %v4490 = vpow.pop %v4489
        %v4491 = vmul.f32 %v3946, 1.442695
        %v4492 = vpow.pop %v4491
        %v4493 = vmul.f32 %v3947, 1.442695
        %v4494 = vpow.pop %v4493
        %v4495 = vmul.f32 %v3948, 1.442695
        %v4496 = vpow.pop %v4495
        %v4497 = vmul.f32 %v3949, 1.442695
        %v4498 = vpow.pop %v4497
        %v4499 = vmul.f32 %v3950, 1.442695
        %v4500 = vpow.pop %v4499
        %v4501 = vmul.f32 %v3951, 1.442695
        %v4502 = vpow.pop %v4501
        %v4503 = vmul.f32 %v3952, 1.442695
        %v4504 = vpow.pop %v4503
        %v4505 = vmul.f32 %v3953, 1.442695
        %v4506 = vpow.pop %v4505
        %v4507 = vmul.f32 %v3954, 1.442695
        %v4508 = vpow.pop %v4507
        %v4509 = vmul.f32 %v3955, 1.442695
        %v4510 = vpow.pop %v4509
        %v4511 = vmul.f32 %v3956, 1.442695
        %v4512 = vpow.pop %v4511
        %v4513 = vmul.f32 %v3957, 1.442695
        %v4514 = vpow.pop %v4513
        %v4515 = vmul.f32 %v3958, 1.442695
        %v4516 = vpow.pop %v4515
        %v4517 = vmul.f32 %v3959, 1.442695
        %v4518 = vpow.pop %v4517
        %v4519 = vmul.f32 %v3960, 1.442695
        %v4520 = vpow.pop %v4519
        %v4521 = vmul.f32 %v3961, 1.442695
        %v4522 = vpow.pop %v4521
        %v4523 = vmul.f32 %v3962, 1.442695
        %v4524 = vpow.pop %v4523
        %v4525 = vmul.f32 %v3963, 1.442695
        %v4526 = vpow.pop %v4525
        %v4527 = vmul.f32 %v3964, 1.442695
        %v4528 = vpow.pop %v4527
        %v4529 = vmul.f32 %v3965, 1.442695
        %v4530 = vpow.pop %v4529
        %v4531 = vmul.f32 %v3966, 1.442695
        %v4532 = vpow.pop %v4531
        %v4533 = vmul.f32 %v3967, 1.442695
        %v4534 = vpow.pop %v4533
        %v4535 = vmul.f32 %v3968, 1.442695
        %v4536 = vpow.pop %v4535
        %v4537 = vmul.f32 %v3969, 1.442695
        %v4538 = vpow.pop %v4537
        %v4539 = vmul.f32 %v3970, 1.442695
        %v4540 = vpow.pop %v4539
        %v4541 = vmul.f32 %v3971, 1.442695
        %v4542 = vpow.pop %v4541
        %v4543 = vmul.f32 %v3972, 1.442695
        %v4544 = vpow.pop %v4543
        %v4545 = vmul.f32 %v3973, 1.442695
        %v4546 = vpow.pop %v4545
        %v4547 = vmul.f32 %v3974, 1.442695
        %v4548 = vpow.pop %v4547
        %v4549 = vmul.f32 %v3975, 1.442695
        %v4550 = vpow.pop %v4549
        %v4551 = vmul.f32 %v3976, 1.442695
        %v4552 = vpow.pop %v4551
        %v4553 = vmul.f32 %v3977, 1.442695
        %v4554 = vpow.pop %v4553
        %v4555 = vmul.f32 %v3978, 1.442695
        %v4556 = vpow.pop %v4555
        %v4557 = vmul.f32 %v3979, 1.442695
        %v4558 = vpow.pop %v4557
        %v4559 = vmul.f32 %v3980, 1.442695
        %v4560 = vpow.pop %v4559
        %v4561 = vmul.f32 %v3981, 1.442695
        %v4562 = vpow.pop %v4561
        %v4563 = vmul.f32 %v3982, 1.442695
        %v4564 = vpow.pop %v4563
        %v4565 = vmul.f32 %v3983, 1.442695
        %v4566 = vpow.pop %v4565
        %v4567 = vmul.f32 %v3984, 1.442695
        %v4568 = vpow.pop %v4567
        %v4569 = vmul.f32 %v3985, 1.442695
        %v4570 = vpow.pop %v4569
        %v4571 = vmul.f32 %v3986, 1.442695
        %v4572 = vpow.pop %v4571
        %v4573 = vmul.f32 %v3987, 1.442695
        %v4574 = vpow.pop %v4573
        %v4575 = vmul.f32 %v3988, 1.442695
        %v4576 = vpow.pop %v4575
        %v4577 = vmul.f32 %v3989, 1.442695
        %v4578 = vpow.pop %v4577
        %v4579 = vmul.f32 %v3990, 1.442695
        %v4580 = vpow.pop %v4579
        %v4581 = vmul.f32 %v3991, 1.442695
        %v4582 = vpow.pop %v4581
        %v4583 = vmul.f32 %v3992, 1.442695
        %v4584 = vpow.pop %v4583
        %v4585 = vmul.f32 %v3993, 1.442695
        %v4586 = vpow.pop %v4585
        %v4587 = vmul.f32 %v3994, 1.442695
        %v4588 = vpow.pop %v4587
        %v4589 = vmul.f32 %v3995, 1.442695
        %v4590 = vpow.pop %v4589
        %v4591 = vmul.f32 %v3996, 1.442695
        %v4592 = vpow.pop %v4591
        %v4593 = vmul.f32 %v3997, 1.442695
        %v4594 = vpow.pop %v4593
        %v4595 = vmul.f32 %v3998, 1.442695
        %v4596 = vpow.pop %v4595
        %v4597 = vmul.f32 %v3999, 1.442695
        %v4598 = vpow.pop %v4597
        %v4599 = vmul.f32 %v4000, 1.442695
        %v4600 = vpow.pop %v4599
        %v4601 = vmul.f32 %v4001, 1.442695
        %v4602 = vpow.pop %v4601
        %v4603 = vmul.f32 %v4002, 1.442695
        %v4604 = vpow.pop %v4603
        %v4605 = vmul.f32 %v4003, 1.442695
        %v4606 = vpow.pop %v4605
        %v4607 = vmul.f32 %v4004, 1.442695
        %v4608 = vpow.pop %v4607
        %v4609 = vmul.f32 %v4005, 1.442695
        %v4610 = vpow.pop %v4609
        %v4611 = vmul.f32 %v4006, 1.442695
        %v4612 = vpow.pop %v4611
        %v4613 = vmul.f32 %v4007, 1.442695
        %v4614 = vpow.pop %v4613
        %v4615 = vmul.f32 %v4008, 1.442695
        %v4616 = vpow.pop %v4615
        %v4617 = vmul.f32 %v4009, 1.442695
        %v4618 = vpow.pop %v4617
        %v4619 = vmul.f32 %v4010, 1.442695
        %v4620 = vpow.pop %v4619
        %v4621 = vmul.f32 %v4011, 1.442695
        %v4622 = vpow.pop %v4621
        %v4623 = vmul.f32 %v4012, 1.442695
        %v4624 = vpow.pop %v4623
        %v4625 = vmul.f32 %v4013, 1.442695
        %v4626 = vpow.pop %v4625
        %v4627 = vmul.f32 %v4014, 1.442695
        %v4628 = vpow.pop %v4627
        %v4629 = vmul.f32 %v4015, 1.442695
        %v4630 = vpow.pop %v4629
        %v4631 = vmul.f32 %v4016, 1.442695
        %v4632 = vpow.pop %v4631
        %v4633 = vmul.f32 %v4017, 1.442695
        %v4634 = vpow.pop %v4633
        %v4635 = vmul.f32 %v4018, 1.442695
        %v4636 = vpow.pop %v4635
        %v4637 = vmul.f32 %v4019, 1.442695
        %v4638 = vpow.pop %v4637
        %v4639 = vmul.f32 %v4020, 1.442695
        %v4640 = vpow.pop %v4639
        %v4641 = vmul.f32 %v4021, 1.442695
        %v4642 = vpow.pop %v4641
        %v4643 = vmul.f32 %v4022, 1.442695
        %v4644 = vpow.pop %v4643
        %v4645 = vmul.f32 %v4023, 1.442695
        %v4646 = vpow.pop %v4645
        %v4647 = vmul.f32 %v4024, 1.442695
        %v4648 = vpow.pop %v4647
        %v4649 = vmul.f32 %v4025, 1.442695
        %v4650 = vpow.pop %v4649
        %v4651 = vmul.f32 %v4026, 1.442695
        %v4652 = vpow.pop %v4651
        %v4653 = vmul.f32 %v4027, 1.442695
        %v4654 = vpow.pop %v4653
        %v4655 = vmul.f32 %v4028, 1.442695
        %v4656 = vpow.pop %v4655
        %v4657 = vmul.f32 %v4029, 1.442695
        %v4658 = vpow.pop %v4657
        %v4659 = vmul.f32 %v4030, 1.442695
        %v4660 = vpow.pop %v4659
        %v4661 = vmul.f32 %v4031, 1.442695
        %v4662 = vpow.pop %v4661
        %v4663 = vmul.f32 %v4032, 1.442695
        %v4664 = vpow.pop %v4663
        %v4665 = vmul.f32 %v4033, 1.442695
        %v4666 = vpow.pop %v4665
        %v4667 = vmul.f32 %v4034, 1.442695
        %v4668 = vpow.pop %v4667
        %v4669 = vmul.f32 %v4035, 1.442695
        %v4670 = vpow.pop %v4669
        %v4671 = vmul.f32 %v4036, 1.442695
        %v4672 = vpow.pop %v4671
        %v4673 = vmul.f32 %v4037, 1.442695
        %v4674 = vpow.pop %v4673
        %v4675 = vmul.f32 %v4038, 1.442695
        %v4676 = vpow.pop %v4675
        %v4677 = vmul.f32 %v4039, 1.442695
        %v4678 = vpow.pop %v4677
        %v4679 = vmul.f32 %v4040, 1.442695
        %v4680 = vpow.pop %v4679
        %v4681 = vmul.f32 %v4041, 1.442695
        %v4682 = vpow.pop %v4681
        %v4683 = vmul.f32 %v4042, 1.442695
        %v4684 = vpow.pop %v4683
        %v4685 = vmul.f32 %v4043, 1.442695
        %v4686 = vpow.pop %v4685
        %v4687 = vmul.f32 %v4044, 1.442695
        %v4688 = vpow.pop %v4687
        %v4689 = vmul.f32 %v4045, 1.442695
        %v4690 = vpow.pop %v4689
        %v4691 = vmul.f32 %v4046, 1.442695
        %v4692 = vpow.pop %v4691
        %v4693 = vmul.f32 %v4047, 1.442695
        %v4694 = vpow.pop %v4693
        %v4695 = vmul.f32 %v4048, 1.442695
        %v4696 = vpow.pop %v4695
        %v4697 = vmul.f32 %v4049, 1.442695
        %v4698 = vpow.pop %v4697
        %v4699 = vmul.f32 %v4050, 1.442695
        %v4700 = vpow.pop %v4699
        %v4701 = vmul.f32 %v4051, 1.442695
        %v4702 = vpow.pop %v4701
        %v4703 = vmul.f32 %v4052, 1.442695
        %v4704 = vpow.pop %v4703
        %v4705 = vmul.f32 %v4053, 1.442695
        %v4706 = vpow.pop %v4705
        %v4707 = vmul.f32 %v4054, 1.442695
        %v4708 = vpow.pop %v4707
        %v4709 = vmul.f32 %v4055, 1.442695
        %v4710 = vpow.pop %v4709
        %v4711 = vmul.f32 %v4056, 1.442695
        %v4712 = vpow.pop %v4711
        %v4713 = vmul.f32 %v4057, 1.442695
        %v4714 = vpow.pop %v4713
        %v4715 = vmul.f32 %v4058, 1.442695
        %v4716 = vpow.pop %v4715
        %v4717 = vmul.f32 %v4059, 1.442695
        %v4718 = vpow.pop %v4717
        %v4719 = vmul.f32 %v4060, 1.442695
        %v4720 = vpow.pop %v4719
        %v4721 = vmul.f32 %v4061, 1.442695
        %v4722 = vpow.pop %v4721
        %v4723 = vmul.f32 %v4062, 1.442695
        %v4724 = vpow.pop %v4723
        %v4725 = vmul.f32 %v4063, 1.442695
        %v4726 = vpow.pop %v4725
        %v4727 = vmul.f32 %v4064, 1.442695
        %v4728 = vpow.pop %v4727
        %v4729 = vmul.f32 %v4065, 1.442695
        %v4730 = vpow.pop %v4729
        %v4731 = vmul.f32 %v4066, 1.442695
        %v4732 = vpow.pop %v4731
        %v4733 = vmul.f32 %v4067, 1.442695
        %v4734 = vpow.pop %v4733
        %v4735 = vmul.f32 %v4068, 1.442695
        %v4736 = vpow.pop %v4735
        %v4737 = vmul.f32 %v4069, 1.442695
        %v4738 = vpow.pop %v4737
        %v4739 = vmul.f32 %v4070, 1.442695
        %v4740 = vpow.pop %v4739
        %v4741 = vmul.f32 %v4071, 1.442695
        %v4742 = vpow.pop %v4741
        %v4743 = vmul.f32 %v4072, 1.442695
        %v4744 = vpow.pop %v4743
        %v4745 = vmul.f32 %v4073, 1.442695
        %v4746 = vpow.pop %v4745
        %v4747 = vmul.f32 %v4074, 1.442695
        %v4748 = vpow.pop %v4747
        %v4749 = vmul.f32 %v4075, 1.442695
        %v4750 = vpow.pop %v4749
        %v4751 = vmul.f32 %v4076, 1.442695
        %v4752 = vpow.pop %v4751
        %v4753 = vmul.f32 %v4077, 1.442695
        %v4754 = vpow.pop %v4753
        %v4755 = vmul.f32 %v4078, 1.442695
        %v4756 = vpow.pop %v4755
        %v4757 = vmul.f32 %v4079, 1.442695
        %v4758 = vpow.pop %v4757
        %v4759 = vmul.f32 %v4080, 1.442695
        %v4760 = vpow.pop %v4759
        %v4761 = vmul.f32 %v4081, 1.442695
        %v4762 = vpow.pop %v4761
        %v4763 = vmul.f32 %v4082, 1.442695
        %v4764 = vpow.pop %v4763
        %v4765 = vmul.f32 %v4083, 1.442695
        %v4766 = vpow.pop %v4765
        %v4767 = vmul.f32 %v4084, 1.442695
        %v4768 = vpow.pop %v4767
        %v4769 = vmul.f32 %v4085, 1.442695
        %v4770 = vpow.pop %v4769
        %v4771 = vmul.f32 %v4086, 1.442695
        %v4772 = vpow.pop %v4771
        %v4773 = vmul.f32 %v4087, 1.442695
        %v4774 = vpow.pop %v4773
        %v4775 = vmul.f32 %v4088, 1.442695
        %v4776 = vpow.pop %v4775
        %v4777 = vmul.f32 %v4089, 1.442695
        %v4778 = vpow.pop %v4777
        %v4779 = vmul.f32 %v4090, 1.442695
        %v4780 = vpow.pop %v4779
        %v4781 = vmul.f32 %v4091, 1.442695
        %v4782 = vpow.pop %v4781
        %v4783 = vmul.f32 %v4092, 1.442695
        %v4784 = vpow.pop %v4783
        %v4785 = vmul.f32 %v4093, 1.442695
        %v4786 = vpow.pop %v4785
        %v4787 = vmul.f32 %v4094, 1.442695
        %v4788 = vpow.pop %v4787
        %v4789 = vmul.f32 %v4095, 1.442695
        %v4790 = vpow.pop %v4789
        %v4791 = vmul.f32 %v4096, 1.442695
        %v4792 = vpow.pop %v4791
        %v4793 = vmul.f32 %v4097, 1.442695
        %v4794 = vpow.pop %v4793
        %v4795 = vmul.f32 %v4098, 1.442695
        %v4796 = vpow.pop %v4795
        %v4797 = vmul.f32 %v4099, 1.442695
        %v4798 = vpow.pop %v4797
        %v4799 = vmul.f32 %v4100, 1.442695
        %v4800 = vpow.pop %v4799
        %v4801 = vmul.f32 %v4101, 1.442695
        %v4802 = vpow.pop %v4801
        %v4803 = vmul.f32 %v4102, 1.442695
        %v4804 = vpow.pop %v4803
        %v4805 = vmul.f32 %v4103, 1.442695
        %v4806 = vpow.pop %v4805
        %v4807 = vmul.f32 %v4104, 1.442695
        %v4808 = vpow.pop %v4807
        %v4809 = vmul.f32 %v4105, 1.442695
        %v4810 = vpow.pop %v4809
        %v4811 = vmul.f32 %v4106, 1.442695
        %v4812 = vpow.pop %v4811
        %v4813 = vmul.f32 %v4107, 1.442695
        %v4814 = vpow.pop %v4813
        %v4815 = vmul.f32 %v4108, 1.442695
        %v4816 = vpow.pop %v4815
        %v4817 = vmul.f32 %v4109, 1.442695
        %v4818 = vpow.pop %v4817
        %v4819 = vmul.f32 %v4110, 1.442695
        %v4820 = vpow.pop %v4819
        %v4821 = vmul.f32 %v4111, 1.442695
        %v4822 = vpow.pop %v4821
        %v4823 = vmul.f32 %v4112, 1.442695
        %v4824 = vpow.pop %v4823
        %v4825 = vmul.f32 %v4113, 1.442695
        %v4826 = vpow.pop %v4825
        %v4827 = vmul.f32 %v4114, 1.442695
        %v4828 = vpow.pop %v4827
        %v4829 = vmul.f32 %v4115, 1.442695
        %v4830 = vpow.pop %v4829
        %v4831 = vmul.f32 %v4116, 1.442695
        %v4832 = vpow.pop %v4831
        %v4833 = vmul.f32 %v4117, 1.442695
        %v4834 = vpow.pop %v4833
        %v4835 = vmul.f32 %v4118, 1.442695
        %v4836 = vpow.pop %v4835
        %v4837 = vmul.f32 %v4119, 1.442695
        %v4838 = vpow.pop %v4837
        %v4839 = vmul.f32 %v4120, 1.442695
        %v4840 = vpow.pop %v4839
        %v4841 = vmul.f32 %v4121, 1.442695
        %v4842 = vpow.pop %v4841
        %v4843 = vmul.f32 %v4122, 1.442695
        %v4844 = vpow.pop %v4843
        %v4845 = vmul.f32 %v4123, 1.442695
        %v4846 = vpow.pop %v4845
        %v4847 = vmul.f32 %v4124, 1.442695
        %v4848 = vpow.pop %v4847
        %v4849 = vmul.f32 %v4125, 1.442695
        %v4850 = vpow.pop %v4849
        %v4851 = vmul.f32 %v4126, 1.442695
        %v4852 = vpow.pop %v4851
        %v4853 = vmul.f32 %v4127, 1.442695
        %v4854 = vpow.pop %v4853
        %v4855 = vmul.f32 %v4128, 1.442695
        %v4856 = vpow.pop %v4855
        %v4857 = vmul.f32 %v4129, 1.442695
        %v4858 = vpow.pop %v4857
        %v4859 = vmul.f32 %v4130, 1.442695
        %v4860 = vpow.pop %v4859
        %v4861 = vmul.f32 %v4131, 1.442695
        %v4862 = vpow.pop %v4861
        %v4863 = vmul.f32 %v4132, 1.442695
        %v4864 = vpow.pop %v4863
        %v4865 = vmul.f32 %v4133, 1.442695
        %v4866 = vpow.pop %v4865
        %v4867 = vmul.f32 %v4134, 1.442695
        %v4868 = vpow.pop %v4867
        %v4869 = vmul.f32 %v4135, 1.442695
        %v4870 = vpow.pop %v4869
        %v4871 = vmul.f32 %v4136, 1.442695
        %v4872 = vpow.pop %v4871
        %v4873 = vmul.f32 %v4137, 1.442695
        %v4874 = vpow.pop %v4873
        %v4875 = vmul.f32 %v4138, 1.442695
        %v4876 = vpow.pop %v4875
        %v4877 = vmul.f32 %v4139, 1.442695
        %v4878 = vpow.pop %v4877
        %v4879 = vmul.f32 %v4140, 1.442695
        %v4880 = vpow.pop %v4879
        %v4881 = vmul.f32 %v4141, 1.442695
        %v4882 = vpow.pop %v4881
        %v4883 = vmul.f32 %v4142, 1.442695
        %v4884 = vpow.pop %v4883
        %v4885 = vmul.f32 %v4143, 1.442695
        %v4886 = vpow.pop %v4885
        %v4887 = vmul.f32 %v4144, 1.442695
        %v4888 = vpow.pop %v4887
        %v4889 = vmul.f32 %v4145, 1.442695
        %v4890 = vpow.pop %v4889
        %v4891 = vmul.f32 %v4146, 1.442695
        %v4892 = vpow.pop %v4891
        %v4893 = vmul.f32 %v4147, 1.442695
        %v4894 = vpow.pop %v4893
        %v4895 = vmul.f32 %v4148, 1.442695
        %v4896 = vpow.pop %v4895
        %v4897 = vmul.f32 %v4149, 1.442695
        %v4898 = vpow.pop %v4897
        %v4899 = vmul.f32 %v4150, 1.442695
        %v4900 = vpow.pop %v4899
        %v4901 = vmul.f32 %v4151, 1.442695
        %v4902 = vpow.pop %v4901
        %v4903 = vmul.f32 %v4152, 1.442695
        %v4904 = vpow.pop %v4903
        %v4905 = vmul.f32 %v4153, 1.442695
        %v4906 = vpow.pop %v4905
        %v4907 = vmul.f32 %v4154, 1.442695
        %v4908 = vpow.pop %v4907
        %v4909 = vmul.f32 %v4155, 1.442695
        %v4910 = vpow.pop %v4909
        %v4911 = vmul.f32 %v4156, 1.442695
        %v4912 = vpow.pop %v4911
        %v4913 = vmul.f32 %v4157, 1.442695
        %v4914 = vpow.pop %v4913
        %v4915 = vmul.f32 %v4158, 1.442695
        %v4916 = vpow.pop %v4915
        %v4917 = vmul.f32 %v4159, 1.442695
        %v4918 = vpow.pop %v4917
        %v4919 = vmul.f32 %v4160, 1.442695
        %v4920 = vpow.pop %v4919
        %v4921 = vmul.f32 %v4161, 1.442695
        %v4922 = vpow.pop %v4921
        %v4923 = vmul.f32 %v4162, 1.442695
        %v4924 = vpow.pop %v4923
        %v4925 = vmul.f32 %v4163, 1.442695
        %v4926 = vpow.pop %v4925
        %v4927 = vmul.f32 %v4164, 1.442695
        %v4928 = vpow.pop %v4927
        %v4929 = vmul.f32 %v4165, 1.442695
        %v4930 = vpow.pop %v4929
        %v4931 = vmul.f32 %v4166, 1.442695
        %v4932 = vpow.pop %v4931
        %v4933 = vmul.f32 %v4167, 1.442695
        %v4934 = vpow.pop %v4933
        %v4935 = vmul.f32 %v4168, 1.442695
        %v4936 = vpow.pop %v4935
        %v4937 = vmul.f32 %v4169, 1.442695
        %v4938 = vpow.pop %v4937
        %v4939 = vmul.f32 %v4170, 1.442695
        %v4940 = vpow.pop %v4939
        %v4941 = vmul.f32 %v4171, 1.442695
        %v4942 = vpow.pop %v4941
        %v4943 = vmul.f32 %v4172, 1.442695
        %v4944 = vpow.pop %v4943
        %v4945 = vmul.f32 %v4173, 1.442695
        %v4946 = vpow.pop %v4945
        %v4947 = vmul.f32 %v4174, 1.442695
        %v4948 = vpow.pop %v4947
        %v4949 = vmul.f32 %v4175, 1.442695
        %v4950 = vpow.pop %v4949
        %v4951 = vmul.f32 %v4176, 1.442695
        %v4952 = vpow.pop %v4951
        %v4953 = vmul.f32 %v4177, 1.442695
        %v4954 = vpow.pop %v4953
        %v4955 = vmul.f32 %v4178, 1.442695
        %v4956 = vpow.pop %v4955
        %v4957 = vmul.f32 %v4179, 1.442695
        %v4958 = vpow.pop %v4957
        %v4959 = vmul.f32 %v4180, 1.442695
        %v4960 = vpow.pop %v4959
        %v4961 = vmul.f32 %v4181, 1.442695
        %v4962 = vpow.pop %v4961
        %v4963 = vmul.f32 %v4182, 1.442695
        %v4964 = vpow.pop %v4963
        %v4965 = vmul.f32 %v4183, 1.442695
        %v4966 = vpow.pop %v4965
        %v4967 = vmul.f32 %v4184, 1.442695
        %v4968 = vpow.pop %v4967
        %v4969 = vmul.f32 %v4185, 1.442695
        %v4970 = vpow.pop %v4969
        %v4971 = vmul.f32 %v4186, 1.442695
        %v4972 = vpow.pop %v4971
        %v4973 = vmul.f32 %v4187, 1.442695
        %v4974 = vpow.pop %v4973
        %v4975 = vmul.f32 %v4188, 1.442695
        %v4976 = vpow.pop %v4975
        %v4977 = vmul.f32 %v4189, 1.442695
        %v4978 = vpow.pop %v4977
        %v4979 = vmul.f32 %v4190, 1.442695
        %v4980 = vpow.pop %v4979
        %v4981 = vmul.f32 %v4191, 1.442695
        %v4982 = vpow.pop %v4981
        %v4983 = vmul.f32 %v4192, 1.442695
        %v4984 = vpow.pop %v4983
        %v4985 = vmul.f32 %v4193, 1.442695
        %v4986 = vpow.pop %v4985
        %v4987 = vmul.f32 %v4194, 1.442695
        %v4988 = vpow.pop %v4987
        %v4989 = vmul.f32 %v4195, 1.442695
        %v4990 = vpow.pop %v4989
        %v4991 = vmul.f32 %v4196, 1.442695
        %v4992 = vpow.pop %v4991
        %v4993 = vmul.f32 %v4197, 1.442695
        %v4994 = vpow.pop %v4993
        %v4995 = vmul.f32 %v4198, 1.442695
        %v4996 = vpow.pop %v4995
        %v4997 = vmul.f32 %v4199, 1.442695
        %v4998 = vpow.pop %v4997
        %v4999 = vmul.f32 %v4200, 1.442695
        %v5000 = vpow.pop %v4999
        %v5001 = vmul.f32 %v4201, 1.442695
        %v5002 = vpow.pop %v5001
        %v5003 = vmul.f32 %v4202, 1.442695
        %v5004 = vpow.pop %v5003
        %v5005 = vmul.f32 %v4203, 1.442695
        %v5006 = vpow.pop %v5005
        %v5007 = vmul.f32 %v4204, 1.442695
        %v5008 = vpow.pop %v5007
        %v5009 = vmul.f32 %v4205, 1.442695
        %v5010 = vpow.pop %v5009
        %v5011 = vmul.f32 %v4206, 1.442695
        %v5012 = vpow.pop %v5011
        %v5013 = vmul.f32 %v4207, 1.442695
        %v5014 = vpow.pop %v5013
        %v5015 = vmul.f32 %v4208, 1.442695
        %v5016 = vpow.pop %v5015
        %v5017 = vmul.f32 %v4209, 1.442695
        %v5018 = vpow.pop %v5017
        %v5019 = vmul.f32 %v4210, 1.442695
        %v5020 = vpow.pop %v5019
        %v5021 = vmul.f32 %v4211, 1.442695
        %v5022 = vpow.pop %v5021
        %v5023 = vmul.f32 %v4212, 1.442695
        %v5024 = vpow.pop %v5023
        %v5025 = vmul.f32 %v4213, 1.442695
        %v5026 = vpow.pop %v5025
        %v5027 = vmul.f32 %v4214, 1.442695
        %v5028 = vpow.pop %v5027
        %v5029 = vmul.f32 %v4215, 1.442695
        %v5030 = vpow.pop %v5029
        %v5031 = vmul.f32 %v4216, 1.442695
        %v5032 = vpow.pop %v5031
        %v5033 = vmul.f32 %v4217, 1.442695
        %v5034 = vpow.pop %v5033
        %v5035 = vmul.f32 %v4218, 1.442695
        %v5036 = vpow.pop %v5035
        %v5037 = vmul.f32 %v4219, 1.442695
        %v5038 = vpow.pop %v5037
        %v5039 = vmul.f32 %v4220, 1.442695
        %v5040 = vpow.pop %v5039
        %v5041 = vmul.f32 %v4221, 1.442695
        %v5042 = vpow.pop %v5041
        %v5043 = vmul.f32 %v4222, 1.442695
        %v5044 = vpow.pop %v5043
        %v5045 = vmul.f32 %v4223, 1.442695
        %v5046 = vpow.pop %v5045
        %v5047 = vmul.f32 %v4224, 1.442695
        %v5048 = vpow.pop %v5047
        %v5049 = vmul.f32 %v4225, 1.442695
        %v5050 = vpow.pop %v5049
        %v5051 = vmul.f32 %v4226, 1.442695
        %v5052 = vpow.pop %v5051
        %v5053 = vmul.f32 %v4227, 1.442695
        %v5054 = vpow.pop %v5053
        %v5055 = vmul.f32 %v4228, 1.442695
        %v5056 = vpow.pop %v5055
        %v5057 = vmul.f32 %v4229, 1.442695
        %v5058 = vpow.pop %v5057
        %v5059 = vmul.f32 %v4230, 1.442695
        %v5060 = vpow.pop %v5059
        %v5061 = vmul.f32 %v4231, 1.442695
        %v5062 = vpow.pop %v5061
        %v5063 = vmul.f32 %v4232, 1.442695
        %v5064 = vpow.pop %v5063
        %v5065 = vmul.f32 %v4233, 1.442695
        %v5066 = vpow.pop %v5065
        %v5067 = vmul.f32 %v4234, 1.442695
        %v5068 = vpow.pop %v5067
        %v5069 = vmul.f32 %v4235, 1.442695
        %v5070 = vpow.pop %v5069
        %v5071 = vmul.f32 %v4236, 1.442695
        %v5072 = vpow.pop %v5071
        %v5073 = vmul.f32 %v4237, 1.442695
        %v5074 = vpow.pop %v5073
        %v5075 = vmul.f32 %v4238, 1.442695
        %v5076 = vpow.pop %v5075
        %v5077 = vmul.f32 %v4239, 1.442695
        %v5078 = vpow.pop %v5077
        %v5079 = vmul.f32 %v4240, 1.442695
        %v5080 = vpow.pop %v5079
        %v5081 = vmul.f32 %v4241, 1.442695
        %v5082 = vpow.pop %v5081
        %v5083 = vmul.f32 %v4242, 1.442695
        %v5084 = vpow.pop %v5083
        %v5085 = vmul.f32 %v4243, 1.442695
        %v5086 = vpow.pop %v5085
        %v5087 = vmul.f32 %v4244, 1.442695
        %v5088 = vpow.pop %v5087
        %v5089 = vmul.f32 %v4245, 1.442695
        %v5090 = vpow.pop %v5089
        %v5091 = vmul.f32 %v4246, 1.442695
        %v5092 = vpow.pop %v5091
        %v5093 = vmul.f32 %v4247, 1.442695
        %v5094 = vpow.pop %v5093
        %v5095 = vmul.f32 %v4248, 1.442695
        %v5096 = vpow.pop %v5095
        %v5097 = vmul.f32 %v4249, 1.442695
        %v5098 = vpow.pop %v5097
        %v5099 = vmul.f32 %v4250, 1.442695
        %v5100 = vpow.pop %v5099
        %v5101 = vmul.f32 %v4251, 1.442695
        %v5102 = vpow.pop %v5101
        %v5103 = vmul.f32 %v4252, 1.442695
        %v5104 = vpow.pop %v5103
        %v5105 = vmul.f32 %v4253, 1.442695
        %v5106 = vpow.pop %v5105
        %v5107 = vmul.f32 %v4254, 1.442695
        %v5108 = vpow.pop %v5107
        %v5109 = vmul.f32 %v4255, 1.442695
        %v5110 = vpow.pop %v5109
        %v5111 = vmul.f32 %v4256, 1.442695
        %v5112 = vpow.pop %v5111
        %v5113 = vmul.f32 %v4257, 1.442695
        %v5114 = vpow.pop %v5113
        %v5115 = vmul.f32 %v4258, 1.442695
        %v5116 = vpow.pop %v5115
        %v5117 = vmul.f32 %v4259, 1.442695
        %v5118 = vpow.pop %v5117
        %v5119 = vmul.f32 %v4260, 1.442695
        %v5120 = vpow.pop %v5119
        %v5121 = vmul.f32 %v4261, 1.442695
        %v5122 = vpow.pop %v5121
        %v5123 = vmul.f32 %v4262, 1.442695
        %v5124 = vpow.pop %v5123
        %v5125 = vmul.f32 %v4263, 1.442695
        %v5126 = vpow.pop %v5125
        %v5127 = vmul.f32 %v4264, 1.442695
        %v5128 = vpow.pop %v5127
        %v5129 = vmul.f32 %v4265, 1.442695
        %v5130 = vpow.pop %v5129
        %v5131 = vmul.f32 %v4266, 1.442695
        %v5132 = vpow.pop %v5131
        %v5133 = vmul.f32 %v4267, 1.442695
        %v5134 = vpow.pop %v5133
        %v5135 = vmul.f32 %v4268, 1.442695
        %v5136 = vpow.pop %v5135
        %v5137 = vmul.f32 %v4269, 1.442695
        %v5138 = vpow.pop %v5137
        %v5139 = vmul.f32 %v4270, 1.442695
        %v5140 = vpow.pop %v5139
        %v5141 = vmul.f32 %v4271, 1.442695
        %v5142 = vpow.pop %v5141
        %v5143 = vmul.f32 %v4272, 1.442695
        %v5144 = vpow.pop %v5143
        %v5145 = vmul.f32 %v4273, 1.442695
        %v5146 = vpow.pop %v5145
        %v5147 = vmul.f32 %v4274, 1.442695
        %v5148 = vpow.pop %v5147
        %v5149 = vmul.f32 %v4275, 1.442695
        %v5150 = vpow.pop %v5149
        %v5151 = vmul.f32 %v4276, 1.442695
        %v5152 = vpow.pop %v5151
        %v5153 = vmul.f32 %v4277, 1.442695
        %v5154 = vpow.pop %v5153
        %v5155 = vmul.f32 %v4278, 1.442695
        %v5156 = vpow.pop %v5155
        %v5157 = vmul.f32 %v4279, 1.442695
        %v5158 = vpow.pop %v5157
        %v5159 = vmul.f32 %v4280, 1.442695
        %v5160 = vpow.pop %v5159
        %v5161 = vmul.f32 %v4281, 1.442695
        %v5162 = vpow.pop %v5161
        %v5163 = vmul.f32 %v4282, 1.442695
        %v5164 = vpow.pop %v5163
        %v5165 = vmul.f32 %v4283, 1.442695
        %v5166 = vpow.pop %v5165
        %v5167 = vmul.f32 %v4284, 1.442695
        %v5168 = vpow.pop %v5167
        %v5169 = vmul.f32 %v4285, 1.442695
        %v5170 = vpow.pop %v5169
        %v5171 = vmul.f32 %v4286, 1.442695
        %v5172 = vpow.pop %v5171
        %v5173 = vmul.f32 %v4287, 1.442695
        %v5174 = vpow.pop %v5173
        %v5175 = vmul.f32 %v4288, 1.442695
        %v5176 = vpow.pop %v5175
        %v5177 = vmul.f32 %v4289, 1.442695
        %v5178 = vpow.pop %v5177
        %v5179 = vmul.f32 %v4290, 1.442695
        %v5180 = vpow.pop %v5179
        %v5181 = vmul.f32 %v4291, 1.442695
        %v5182 = vpow.pop %v5181
        %v5183 = vmul.f32 %v4292, 1.442695
        %v5184 = vpow.pop %v5183
        %v5185 = vmul.f32 %v4293, 1.442695
        %v5186 = vpow.pop %v5185
        %v5187 = vmul.f32 %v4294, 1.442695
        %v5188 = vpow.pop %v5187
        %v5189 = vmul.f32 %v4295, 1.442695
        %v5190 = vpow.pop %v5189
        %v5191 = vmul.f32 %v4296, 1.442695
        %v5192 = vpow.pop %v5191
        %v5193 = vmul.f32 %v4297, 1.442695
        %v5194 = vpow.pop %v5193
        %v5195 = vmul.f32 %v4298, 1.442695
        %v5196 = vpow.pop %v5195
        %v5197 = vmul.f32 %v4299, 1.442695
        %v5198 = vpow.pop %v5197
        %v5199 = vmul.f32 %v4300, 1.442695
        %v5200 = vpow.pop %v5199
        %v5201 = vmul.f32 %v4301, 1.442695
        %v5202 = vpow.pop %v5201
        %v5203 = vmul.f32 %v4302, 1.442695
        %v5204 = vpow.pop %v5203
        %v5205 = vmul.f32 %v4303, 1.442695
        %v5206 = vpow.pop %v5205
        %v5207 = vmul.f32 %v4304, 1.442695
        %v5208 = vpow.pop %v5207
        %v5209 = vmul.f32 %v4305, 1.442695
        %v5210 = vpow.pop %v5209
        %v5211 = vmul.f32 %v4306, 1.442695
        %v5212 = vpow.pop %v5211
        %v5213 = vmul.f32 %v4307, 1.442695
        %v5214 = vpow.pop %v5213
        %v5215 = vmul.f32 %v4308, 1.442695
        %v5216 = vpow.pop %v5215
        %v5217 = vmul.f32 %v4309, 1.442695
        %v5218 = vpow.pop %v5217
        %v5219 = vmul.f32 %v4310, 1.442695
        %v5220 = vpow.pop %v5219
        %v5221 = vmul.f32 %v4311, 1.442695
        %v5222 = vpow.pop %v5221
        %v5223 = vmul.f32 %v4312, 1.442695
        %v5224 = vpow.pop %v5223
        %v5225 = vmul.f32 %v4313, 1.442695
        %v5226 = vpow.pop %v5225
        %v5227 = vmul.f32 %v4314, 1.442695
        %v5228 = vpow.pop %v5227
        %v5229 = vmul.f32 %v4315, 1.442695
        %v5230 = vpow.pop %v5229
        %v5231 = vmul.f32 %v4316, 1.442695
        %v5232 = vpow.pop %v5231
        %v5233 = vmul.f32 %v4317, 1.442695
        %v5234 = vpow.pop %v5233
        %v5235 = vmul.f32 %v4318, 1.442695
        %v5236 = vpow.pop %v5235
        %v5237 = vmul.f32 %v4319, 1.442695
        %v5238 = vpow.pop %v5237
        %v5239 = vmul.f32 %v4320, 1.442695
        %v5240 = vpow.pop %v5239
        %v5241 = vmul.f32 %v4321, 1.442695
        %v5242 = vpow.pop %v5241
        %v5243 = vmul.f32 %v4322, 1.442695
        %v5244 = vpow.pop %v5243
        %v5245 = vmul.f32 %v4323, 1.442695
        %v5246 = vpow.pop %v5245
        %v5247 = vmul.f32 %v4324, 1.442695
        %v5248 = vpow.pop %v5247
        %v5249 = vmul.f32 %v4325, 1.442695
        %v5250 = vpow.pop %v5249
        %v5251 = vmul.f32 %v4326, 1.442695
        %v5252 = vpow.pop %v5251
        %v5253 = vmul.f32 %v4327, 1.442695
        %v5254 = vpow.pop %v5253
        %v5255 = vmul.f32 %v4328, 1.442695
        %v5256 = vpow.pop %v5255
        %v5257 = vmul.f32 %v4329, 1.442695
        %v5258 = vpow.pop %v5257
        %v5259 = vmul.f32 %v4330, 1.442695
        %v5260 = vpow.pop %v5259
        %v5261 = vmul.f32 %v4331, 1.442695
        %v5262 = vpow.pop %v5261
        %v5263 = vmul.f32 %v4332, 1.442695
        %v5264 = vpow.pop %v5263
        %v5265 = vmul.f32 %v4333, 1.442695
        %v5266 = vpow.pop %v5265
        %v5267 = vmul.f32 %v4334, 1.442695
        %v5268 = vpow.pop %v5267
        %v5269 = vmul.f32 %v4335, 1.442695
        %v5270 = vpow.pop %v5269
        %v5271 = vmul.f32 %v4336, 1.442695
        %v5272 = vpow.pop %v5271
        %v5273 = vmul.f32 %v4337, 1.442695
        %v5274 = vpow.pop %v5273
        %v5275 = vmul.f32 %v4338, 1.442695
        %v5276 = vpow.pop %v5275
        %v5277 = vmul.f32 %v4339, 1.442695
        %v5278 = vpow.pop %v5277
        %v5279 = vmul.f32 %v4340, 1.442695
        %v5280 = vpow.pop %v5279
        %v5281 = vmul.f32 %v4341, 1.442695
        %v5282 = vpow.pop %v5281
        %v5283 = vmul.f32 %v4342, 1.442695
        %v5284 = vpow.pop %v5283
        %v5285 = vmul.f32 %v4343, 1.442695
        %v5286 = vpow.pop %v5285
        %v5287 = vmul.f32 %v4344, 1.442695
        %v5288 = vpow.pop %v5287
        %v5289 = vmul.f32 %v4345, 1.442695
        %v5290 = vpow.pop %v5289
        %v5291 = vmul.f32 %v4346, 1.442695
        %v5292 = vpow.pop %v5291
        %v5293 = vmul.f32 %v4347, 1.442695
        %v5294 = vpow.pop %v5293
        %v5295 = vmul.f32 %v4348, 1.442695
        %v5296 = vpow.pop %v5295
        %v5297 = vmul.f32 %v4349, 1.442695
        %v5298 = vpow.pop %v5297
        %v5299 = vmul.f32 %v4350, 1.442695
        %v5300 = vpow.pop %v5299
        %v5301 = vmul.f32 %v4351, 1.442695
        %v5302 = vpow.pop %v5301
        %v5303 = vmul.f32 %v4352, 1.442695
        %v5304 = vpow.pop %v5303
        %v5305 = vmul.f32 %v4353, 1.442695
        %v5306 = vpow.pop %v5305
        %v5307 = vmul.f32 %v4354, 1.442695
        %v5308 = vpow.pop %v5307
        %v5309 = vmul.f32 %v4355, 1.442695
        %v5310 = vpow.pop %v5309
        %v5311 = vmul.f32 %v4356, 1.442695
        %v5312 = vpow.pop %v5311
        %v5313 = vmul.f32 %v4357, 1.442695
        %v5314 = vpow.pop %v5313
        %v5315 = vmul.f32 %v4358, 1.442695
        %v5316 = vpow.pop %v5315
        %v5317 = vmul.f32 %v4359, 1.442695
        %v5318 = vpow.pop %v5317
        %v5319 = vmul.f32 %v4360, 1.442695
        %v5320 = vpow.pop %v5319
        %v5321 = vmul.f32 %v4361, 1.442695
        %v5322 = vpow.pop %v5321
        %v5323 = vmul.f32 %v4362, 1.442695
        %v5324 = vpow.pop %v5323
        %v5325 = vmul.f32 %v4363, 1.442695
        %v5326 = vpow.pop %v5325
        %v5327 = vmul.f32 %v4364, 1.442695
        %v5328 = vpow.pop %v5327
        %v5329 = vmul.f32 %v4365, 1.442695
        %v5330 = vpow.pop %v5329
        %v5331 = vmul.f32 %v4366, 1.442695
        %v5332 = vpow.pop %v5331
        %v5333 = vmul.f32 %v4367, 1.442695
        %v5334 = vpow.pop %v5333
        %v5335 = vmul.f32 %v4368, 1.442695
        %v5336 = vpow.pop %v5335
        %v5337 = vmul.f32 %v4369, 1.442695
        %v5338 = vpow.pop %v5337
        %v5339 = vmul.f32 %v4370, 1.442695
        %v5340 = vpow.pop %v5339
        %v5341 = vmul.f32 %v4371, 1.442695
        %v5342 = vpow.pop %v5341
        %v5343 = vmul.f32 %v4372, 1.442695
        %v5344 = vpow.pop %v5343
        %v5345 = vmul.f32 %v4373, 1.442695
        %v5346 = vpow.pop %v5345
        %v5347 = vmul.f32 %v4374, 1.442695
        %v5348 = vpow.pop %v5347
        %v5349 = vmul.f32 %v4375, 1.442695
        %v5350 = vpow.pop %v5349
        %v5351 = vmul.f32 %v4376, 1.442695
        %v5352 = vpow.pop %v5351
        %v5353 = vmul.f32 %v4377, 1.442695
        %v5354 = vpow.pop %v5353
        %v5355 = vmul.f32 %v4378, 1.442695
        %v5356 = vpow.pop %v5355
        %v5357 = vmul.f32 %v4379, 1.442695
        %v5358 = vpow.pop %v5357
        %v5359 = vmul.f32 %v4380, 1.442695
        %v5360 = vpow.pop %v5359
        %v5361 = vmul.f32 %v4381, 1.442695
        %v5362 = vpow.pop %v5361
        %v5363 = vmul.f32 %v4382, 1.442695
        %v5364 = vpow.pop %v5363
        %v5365 = vmul.f32 %v4383, 1.442695
        %v5366 = vpow.pop %v5365
        %v5367 = vmul.f32 %v4384, 1.442695
        %v5368 = vpow.pop %v5367
        %v5369 = vmul.f32 %v4385, 1.442695
        %v5370 = vpow.pop %v5369
        %v5371 = vmul.f32 %v4386, 1.442695
        %v5372 = vpow.pop %v5371
        %v5373 = vmul.f32 %v4387, 1.442695
        %v5374 = vpow.pop %v5373
        %v5375 = vmul.f32 %v4388, 1.442695
        %v5376 = vpow.pop %v5375
        %v5377 = vmul.f32 %v4389, 1.442695
        %v5378 = vpow.pop %v5377
        %v5379 = vmul.f32 %v4390, 1.442695
        %v5380 = vpow.pop %v5379
        %v5381 = vmul.f32 %v4391, 1.442695
        %v5382 = vpow.pop %v5381
        %v5383 = vmul.f32 %v4392, 1.442695
        %v5384 = vpow.pop %v5383
        %v5385 = vmul.f32 %v4393, 1.442695
        %v5386 = vpow.pop %v5385
        %v5387 = vmul.f32 %v4394, 1.442695
        %v5388 = vpow.pop %v5387
        %v5389 = vmul.f32 %v4395, 1.442695
        %v5390 = vpow.pop %v5389
        %v5391 = vmul.f32 %v4396, 1.442695
        %v5392 = vpow.pop %v5391
        %v5393 = vmul.f32 %v4397, 1.442695
        %v5394 = vpow.pop %v5393
        %v5395 = vmul.f32 %v4398, 1.442695
        %v5396 = vpow.pop %v5395
        %v5397 = vmul.f32 %v4399, 1.442695
        %v5398 = vpow.pop %v5397
        %v5399 = vmul.f32 %v4400, 1.442695
        %v5400 = vpow.pop %v5399
        %v5401 = vmul.f32 %v4401, 1.442695
        %v5402 = vpow.pop %v5401
        %v5403 = vmul.f32 %v4402, 1.442695
        %v5404 = vpow.pop %v5403
        %v5405 = vmul.f32 %v4403, 1.442695
        %v5406 = vpow.pop %v5405
        %v5407 = vmul.f32 %v4404, 1.442695
        %v5408 = vpow.pop %v5407
        %v5409 = vmul.f32 %v4405, 1.442695
        %v5410 = vpow.pop %v5409
        %v5411 = vmul.f32 %v4406, 1.442695
        %v5412 = vpow.pop %v5411
        %v5413 = vmul.f32 %v4407, 1.442695
        %v5414 = vpow.pop %v5413
        %v5415 = vmul.f32 %v4408, 1.442695
        %v5416 = vpow.pop %v5415
        %v5417 = vmul.f32 %v4409, 1.442695
        %v5418 = vpow.pop %v5417
        %v5419 = vmul.f32 %v4410, 1.442695
        %v5420 = vpow.pop %v5419
        %v5421 = vmul.f32 %v4411, 1.442695
        %v5422 = vpow.pop %v5421
        %v5423 = vmul.f32 %v4412, 1.442695
        %v5424 = vpow.pop %v5423
        %v5425 = vmul.f32 %v4413, 1.442695
        %v5426 = vpow.pop %v5425
        %v5427 = vmul.f32 %v4414, 1.442695
        %v5428 = vpow.pop %v5427
        %v5429 = vmul.f32 %v4415, 1.442695
        %v5430 = vpow.pop %v5429
        %v5431 = vmul.f32 %v4416, 1.442695
        %v5432 = vpow.pop %v5431
        %v5433 = vmul.f32 %v4417, 1.442695
        %v5434 = vpow.pop %v5433
        %v5435 = vmul.f32 %v4418, 1.442695
        %v5436 = vpow.pop %v5435
        %v5437 = vmul.f32 %v4419, 1.442695
        %v5438 = vpow.pop %v5437
        %v5439 = vmul.f32 %v4420, 1.442695
        %v5440 = vpow.pop %v5439
        %v5441 = vmul.f32 %v4421, 1.442695
        %v5442 = vpow.pop %v5441
        %v5443 = vmul.f32 %v4422, 1.442695
        %v5444 = vpow.pop %v5443
        %v5445 = vmul.f32 %v4423, 1.442695
        %v5446 = vpow.pop %v5445
        %v5447 = vmul.f32 %v4424, 1.442695
        %v5448 = vpow.pop %v5447
        %v5449 = vadd.f32 %v4426, %v4428
        %5450 = vadd.xlane.f32.xlu0 %v5449
        %v5451 = vpop.xlane.xlu0 %5450
        %v5452 = vadd.f32 %v4430, %v4432
        %5453 = vadd.xlane.f32.xlu0 %v5452
        %v5454 = vpop.xlane.xlu0 %5453
        %v5455 = vadd.f32 %v4434, %v4436
        %5456 = vadd.xlane.f32.xlu0 %v5455
        %v5457 = vpop.xlane.xlu0 %5456
        %v5458 = vadd.f32 %v4438, %v4440
        %5459 = vadd.xlane.f32.xlu0 %v5458
        %v5460 = vpop.xlane.xlu0 %5459
        %v5461 = vadd.f32 %v4442, %v4444
        %5462 = vadd.xlane.f32.xlu0 %v5461
        %v5463 = vpop.xlane.xlu0 %5462
        %v5464 = vadd.f32 %v4446, %v4448
        %5465 = vadd.xlane.f32.xlu0 %v5464
        %v5466 = vpop.xlane.xlu0 %5465
        %v5467 = vadd.f32 %v4450, %v4452
        %5468 = vadd.xlane.f32.xlu0 %v5467
        %v5469 = vpop.xlane.xlu0 %5468
        %v5470 = vadd.f32 %v4454, %v4456
        %5471 = vadd.xlane.f32.xlu0 %v5470
        %v5472 = vpop.xlane.xlu0 %5471
        %v5473 = vadd.f32 %v4458, %v4460
        %5474 = vadd.xlane.f32.xlu0 %v5473
        %v5475 = vpop.xlane.xlu0 %5474
        %v5476 = vadd.f32 %v4462, %v4464
        %5477 = vadd.xlane.f32.xlu0 %v5476
        %v5478 = vpop.xlane.xlu0 %5477
        %v5479 = vadd.f32 %v4466, %v4468
        %5480 = vadd.xlane.f32.xlu0 %v5479
        %v5481 = vpop.xlane.xlu0 %5480
        %v5482 = vadd.f32 %v4470, %v4472
        %5483 = vadd.xlane.f32.xlu0 %v5482
        %v5484 = vpop.xlane.xlu0 %5483
        %v5485 = vadd.f32 %v4474, %v4476
        %5486 = vadd.xlane.f32.xlu0 %v5485
        %v5487 = vpop.xlane.xlu0 %5486
        %v5488 = vadd.f32 %v4478, %v4480
        %5489 = vadd.xlane.f32.xlu0 %v5488
        %v5490 = vpop.xlane.xlu0 %5489
        %v5491 = vadd.f32 %v4482, %v4484
        %5492 = vadd.xlane.f32.xlu0 %v5491
        %v5493 = vpop.xlane.xlu0 %5492
        %v5494 = vadd.f32 %v4486, %v4488
        %5495 = vadd.xlane.f32.xlu0 %v5494
        %v5496 = vpop.xlane.xlu0 %5495
        %v5497 = vadd.f32 %v4490, %v4492
        %5498 = vadd.xlane.f32.xlu0 %v5497
        %v5499 = vpop.xlane.xlu0 %5498
        %v5500 = vadd.f32 %v4494, %v4496
        %5501 = vadd.xlane.f32.xlu0 %v5500
        %v5502 = vpop.xlane.xlu0 %5501
        %v5503 = vadd.f32 %v4498, %v4500
        %5504 = vadd.xlane.f32.xlu0 %v5503
        %v5505 = vpop.xlane.xlu0 %5504
        %v5506 = vadd.f32 %v4502, %v4504
        %5507 = vadd.xlane.f32.xlu0 %v5506
        %v5508 = vpop.xlane.xlu0 %5507
        %v5509 = vadd.f32 %v4506, %v4508
        %5510 = vadd.xlane.f32.xlu0 %v5509
        %v5511 = vpop.xlane.xlu0 %5510
        %v5512 = vadd.f32 %v4510, %v4512
        %5513 = vadd.xlane.f32.xlu0 %v5512
        %v5514 = vpop.xlane.xlu0 %5513
        %v5515 = vadd.f32 %v4514, %v4516
        %5516 = vadd.xlane.f32.xlu0 %v5515
        %v5517 = vpop.xlane.xlu0 %5516
        %v5518 = vadd.f32 %v4518, %v4520
        %5519 = vadd.xlane.f32.xlu0 %v5518
        %v5520 = vpop.xlane.xlu0 %5519
        %v5521 = vadd.f32 %v4522, %v4524
        %5522 = vadd.xlane.f32.xlu0 %v5521
        %v5523 = vpop.xlane.xlu0 %5522
        %v5524 = vadd.f32 %v4526, %v4528
        %5525 = vadd.xlane.f32.xlu0 %v5524
        %v5526 = vpop.xlane.xlu0 %5525
        %v5527 = vadd.f32 %v4530, %v4532
        %5528 = vadd.xlane.f32.xlu0 %v5527
        %v5529 = vpop.xlane.xlu0 %5528
        %v5530 = vadd.f32 %v4534, %v4536
        %5531 = vadd.xlane.f32.xlu0 %v5530
        %v5532 = vpop.xlane.xlu0 %5531
        %v5533 = vadd.f32 %v4538, %v4540
        %5534 = vadd.xlane.f32.xlu0 %v5533
        %v5535 = vpop.xlane.xlu0 %5534
        %v5536 = vadd.f32 %v4542, %v4544
        %5537 = vadd.xlane.f32.xlu0 %v5536
        %v5538 = vpop.xlane.xlu0 %5537
        %v5539 = vadd.f32 %v4546, %v4548
        %5540 = vadd.xlane.f32.xlu0 %v5539
        %v5541 = vpop.xlane.xlu0 %5540
        %v5542 = vadd.f32 %v4550, %v4552
        %5543 = vadd.xlane.f32.xlu0 %v5542
        %v5544 = vpop.xlane.xlu0 %5543
        %v5545 = vadd.f32 %v4554, %v4556
        %5546 = vadd.xlane.f32.xlu0 %v5545
        %v5547 = vpop.xlane.xlu0 %5546
        %v5548 = vadd.f32 %v4558, %v4560
        %5549 = vadd.xlane.f32.xlu0 %v5548
        %v5550 = vpop.xlane.xlu0 %5549
        %v5551 = vadd.f32 %v4562, %v4564
        %5552 = vadd.xlane.f32.xlu0 %v5551
        %v5553 = vpop.xlane.xlu0 %5552
        %v5554 = vadd.f32 %v4566, %v4568
        %5555 = vadd.xlane.f32.xlu0 %v5554
        %v5556 = vpop.xlane.xlu0 %5555
        %v5557 = vadd.f32 %v4570, %v4572
        %5558 = vadd.xlane.f32.xlu0 %v5557
        %v5559 = vpop.xlane.xlu0 %5558
        %v5560 = vadd.f32 %v4574, %v4576
        %5561 = vadd.xlane.f32.xlu0 %v5560
        %v5562 = vpop.xlane.xlu0 %5561
        %v5563 = vadd.f32 %v4578, %v4580
        %5564 = vadd.xlane.f32.xlu0 %v5563
        %v5565 = vpop.xlane.xlu0 %5564
        %v5566 = vadd.f32 %v4582, %v4584
        %5567 = vadd.xlane.f32.xlu0 %v5566
        %v5568 = vpop.xlane.xlu0 %5567
        %v5569 = vadd.f32 %v4586, %v4588
        %5570 = vadd.xlane.f32.xlu0 %v5569
        %v5571 = vpop.xlane.xlu0 %5570
        %v5572 = vadd.f32 %v4590, %v4592
        %5573 = vadd.xlane.f32.xlu0 %v5572
        %v5574 = vpop.xlane.xlu0 %5573
        %v5575 = vadd.f32 %v4594, %v4596
        %5576 = vadd.xlane.f32.xlu0 %v5575
        %v5577 = vpop.xlane.xlu0 %5576
        %v5578 = vadd.f32 %v4598, %v4600
        %5579 = vadd.xlane.f32.xlu0 %v5578
        %v5580 = vpop.xlane.xlu0 %5579
        %v5581 = vadd.f32 %v4602, %v4604
        %5582 = vadd.xlane.f32.xlu0 %v5581
        %v5583 = vpop.xlane.xlu0 %5582
        %v5584 = vadd.f32 %v4606, %v4608
        %5585 = vadd.xlane.f32.xlu0 %v5584
        %v5586 = vpop.xlane.xlu0 %5585
        %v5587 = vadd.f32 %v4610, %v4612
        %5588 = vadd.xlane.f32.xlu0 %v5587
        %v5589 = vpop.xlane.xlu0 %5588
        %v5590 = vadd.f32 %v4614, %v4616
        %5591 = vadd.xlane.f32.xlu0 %v5590
        %v5592 = vpop.xlane.xlu0 %5591
        %v5593 = vadd.f32 %v4618, %v4620
        %5594 = vadd.xlane.f32.xlu0 %v5593
        %v5595 = vpop.xlane.xlu0 %5594
        %v5596 = vadd.f32 %v4622, %v4624
        %5597 = vadd.xlane.f32.xlu0 %v5596
        %v5598 = vpop.xlane.xlu0 %5597
        %v5599 = vadd.f32 %v4626, %v4628
        %5600 = vadd.xlane.f32.xlu0 %v5599
        %v5601 = vpop.xlane.xlu0 %5600
        %v5602 = vadd.f32 %v4630, %v4632
        %5603 = vadd.xlane.f32.xlu0 %v5602
        %v5604 = vpop.xlane.xlu0 %5603
        %v5605 = vadd.f32 %v4634, %v4636
        %5606 = vadd.xlane.f32.xlu0 %v5605
        %v5607 = vpop.xlane.xlu0 %5606
        %v5608 = vadd.f32 %v4638, %v4640
        %5609 = vadd.xlane.f32.xlu0 %v5608
        %v5610 = vpop.xlane.xlu0 %5609
        %v5611 = vadd.f32 %v4642, %v4644
        %5612 = vadd.xlane.f32.xlu0 %v5611
        %v5613 = vpop.xlane.xlu0 %5612
        %v5614 = vadd.f32 %v4646, %v4648
        %5615 = vadd.xlane.f32.xlu0 %v5614
        %v5616 = vpop.xlane.xlu0 %5615
        %v5617 = vadd.f32 %v4650, %v4652
        %5618 = vadd.xlane.f32.xlu0 %v5617
        %v5619 = vpop.xlane.xlu0 %5618
        %v5620 = vadd.f32 %v4654, %v4656
        %5621 = vadd.xlane.f32.xlu0 %v5620
        %v5622 = vpop.xlane.xlu0 %5621
        %v5623 = vadd.f32 %v4658, %v4660
        %5624 = vadd.xlane.f32.xlu0 %v5623
        %v5625 = vpop.xlane.xlu0 %5624
        %v5626 = vadd.f32 %v4662, %v4664
        %5627 = vadd.xlane.f32.xlu0 %v5626
        %v5628 = vpop.xlane.xlu0 %5627
        %v5629 = vadd.f32 %v4666, %v4668
        %5630 = vadd.xlane.f32.xlu0 %v5629
        %v5631 = vpop.xlane.xlu0 %5630
        %v5632 = vadd.f32 %v4670, %v4672
        %5633 = vadd.xlane.f32.xlu0 %v5632
        %v5634 = vpop.xlane.xlu0 %5633
        %v5635 = vadd.f32 %v4674, %v4676
        %5636 = vadd.xlane.f32.xlu0 %v5635
        %v5637 = vpop.xlane.xlu0 %5636
        %v5638 = vadd.f32 %v4678, %v4680
        %5639 = vadd.xlane.f32.xlu0 %v5638
        %v5640 = vpop.xlane.xlu0 %5639
        %v5641 = vadd.f32 %v4682, %v4684
        %5642 = vadd.xlane.f32.xlu0 %v5641
        %v5643 = vpop.xlane.xlu0 %5642
        %v5644 = vadd.f32 %v4686, %v4688
        %5645 = vadd.xlane.f32.xlu0 %v5644
        %v5646 = vpop.xlane.xlu0 %5645
        %v5647 = vadd.f32 %v4690, %v4692
        %5648 = vadd.xlane.f32.xlu0 %v5647
        %v5649 = vpop.xlane.xlu0 %5648
        %v5650 = vadd.f32 %v4694, %v4696
        %5651 = vadd.xlane.f32.xlu0 %v5650
        %v5652 = vpop.xlane.xlu0 %5651
        %v5653 = vadd.f32 %v4698, %v4700
        %5654 = vadd.xlane.f32.xlu0 %v5653
        %v5655 = vpop.xlane.xlu0 %5654
        %v5656 = vadd.f32 %v4702, %v4704
        %5657 = vadd.xlane.f32.xlu0 %v5656
        %v5658 = vpop.xlane.xlu0 %5657
        %v5659 = vadd.f32 %v4706, %v4708
        %5660 = vadd.xlane.f32.xlu0 %v5659
        %v5661 = vpop.xlane.xlu0 %5660
        %v5662 = vadd.f32 %v4710, %v4712
        %5663 = vadd.xlane.f32.xlu0 %v5662
        %v5664 = vpop.xlane.xlu0 %5663
        %v5665 = vadd.f32 %v4714, %v4716
        %5666 = vadd.xlane.f32.xlu0 %v5665
        %v5667 = vpop.xlane.xlu0 %5666
        %v5668 = vadd.f32 %v4718, %v4720
        %5669 = vadd.xlane.f32.xlu0 %v5668
        %v5670 = vpop.xlane.xlu0 %5669
        %v5671 = vadd.f32 %v4722, %v4724
        %5672 = vadd.xlane.f32.xlu0 %v5671
        %v5673 = vpop.xlane.xlu0 %5672
        %v5674 = vadd.f32 %v4726, %v4728
        %5675 = vadd.xlane.f32.xlu0 %v5674
        %v5676 = vpop.xlane.xlu0 %5675
        %v5677 = vadd.f32 %v4730, %v4732
        %5678 = vadd.xlane.f32.xlu0 %v5677
        %v5679 = vpop.xlane.xlu0 %5678
        %v5680 = vadd.f32 %v4734, %v4736
        %5681 = vadd.xlane.f32.xlu0 %v5680
        %v5682 = vpop.xlane.xlu0 %5681
        %v5683 = vadd.f32 %v4738, %v4740
        %5684 = vadd.xlane.f32.xlu0 %v5683
        %v5685 = vpop.xlane.xlu0 %5684
        %v5686 = vadd.f32 %v4742, %v4744
        %5687 = vadd.xlane.f32.xlu0 %v5686
        %v5688 = vpop.xlane.xlu0 %5687
        %v5689 = vadd.f32 %v4746, %v4748
        %5690 = vadd.xlane.f32.xlu0 %v5689
        %v5691 = vpop.xlane.xlu0 %5690
        %v5692 = vadd.f32 %v4750, %v4752
        %5693 = vadd.xlane.f32.xlu0 %v5692
        %v5694 = vpop.xlane.xlu0 %5693
        %v5695 = vadd.f32 %v4754, %v4756
        %5696 = vadd.xlane.f32.xlu0 %v5695
        %v5697 = vpop.xlane.xlu0 %5696
        %v5698 = vadd.f32 %v4758, %v4760
        %5699 = vadd.xlane.f32.xlu0 %v5698
        %v5700 = vpop.xlane.xlu0 %5699
        %v5701 = vadd.f32 %v4762, %v4764
        %5702 = vadd.xlane.f32.xlu0 %v5701
        %v5703 = vpop.xlane.xlu0 %5702
        %v5704 = vadd.f32 %v4766, %v4768
        %5705 = vadd.xlane.f32.xlu0 %v5704
        %v5706 = vpop.xlane.xlu0 %5705
        %v5707 = vadd.f32 %v4770, %v4772
        %5708 = vadd.xlane.f32.xlu0 %v5707
        %v5709 = vpop.xlane.xlu0 %5708
        %v5710 = vadd.f32 %v4774, %v4776
        %5711 = vadd.xlane.f32.xlu0 %v5710
        %v5712 = vpop.xlane.xlu0 %5711
        %v5713 = vadd.f32 %v4778, %v4780
        %5714 = vadd.xlane.f32.xlu0 %v5713
        %v5715 = vpop.xlane.xlu0 %5714
        %v5716 = vadd.f32 %v4782, %v4784
        %5717 = vadd.xlane.f32.xlu0 %v5716
        %v5718 = vpop.xlane.xlu0 %5717
        %v5719 = vadd.f32 %v4786, %v4788
        %5720 = vadd.xlane.f32.xlu0 %v5719
        %v5721 = vpop.xlane.xlu0 %5720
        %v5722 = vadd.f32 %v4790, %v4792
        %5723 = vadd.xlane.f32.xlu0 %v5722
        %v5724 = vpop.xlane.xlu0 %5723
        %v5725 = vadd.f32 %v4794, %v4796
        %5726 = vadd.xlane.f32.xlu0 %v5725
        %v5727 = vpop.xlane.xlu0 %5726
        %v5728 = vadd.f32 %v4798, %v4800
        %5729 = vadd.xlane.f32.xlu0 %v5728
        %v5730 = vpop.xlane.xlu0 %5729
        %v5731 = vadd.f32 %v4802, %v4804
        %5732 = vadd.xlane.f32.xlu0 %v5731
        %v5733 = vpop.xlane.xlu0 %5732
        %v5734 = vadd.f32 %v4806, %v4808
        %5735 = vadd.xlane.f32.xlu0 %v5734
        %v5736 = vpop.xlane.xlu0 %5735
        %v5737 = vadd.f32 %v4810, %v4812
        %5738 = vadd.xlane.f32.xlu0 %v5737
        %v5739 = vpop.xlane.xlu0 %5738
        %v5740 = vadd.f32 %v4814, %v4816
        %5741 = vadd.xlane.f32.xlu0 %v5740
        %v5742 = vpop.xlane.xlu0 %5741
        %v5743 = vadd.f32 %v4818, %v4820
        %5744 = vadd.xlane.f32.xlu0 %v5743
        %v5745 = vpop.xlane.xlu0 %5744
        %v5746 = vadd.f32 %v4822, %v4824
        %5747 = vadd.xlane.f32.xlu0 %v5746
        %v5748 = vpop.xlane.xlu0 %5747
        %v5749 = vadd.f32 %v4826, %v4828
        %5750 = vadd.xlane.f32.xlu0 %v5749
        %v5751 = vpop.xlane.xlu0 %5750
        %v5752 = vadd.f32 %v4830, %v4832
        %5753 = vadd.xlane.f32.xlu0 %v5752
        %v5754 = vpop.xlane.xlu0 %5753
        %v5755 = vadd.f32 %v4834, %v4836
        %5756 = vadd.xlane.f32.xlu0 %v5755
        %v5757 = vpop.xlane.xlu0 %5756
        %v5758 = vadd.f32 %v4838, %v4840
        %5759 = vadd.xlane.f32.xlu0 %v5758
        %v5760 = vpop.xlane.xlu0 %5759
        %v5761 = vadd.f32 %v4842, %v4844
        %5762 = vadd.xlane.f32.xlu0 %v5761
        %v5763 = vpop.xlane.xlu0 %5762
        %v5764 = vadd.f32 %v4846, %v4848
        %5765 = vadd.xlane.f32.xlu0 %v5764
        %v5766 = vpop.xlane.xlu0 %5765
        %v5767 = vadd.f32 %v4850, %v4852
        %5768 = vadd.xlane.f32.xlu0 %v5767
        %v5769 = vpop.xlane.xlu0 %5768
        %v5770 = vadd.f32 %v4854, %v4856
        %5771 = vadd.xlane.f32.xlu0 %v5770
        %v5772 = vpop.xlane.xlu0 %5771
        %v5773 = vadd.f32 %v4858, %v4860
        %5774 = vadd.xlane.f32.xlu0 %v5773
        %v5775 = vpop.xlane.xlu0 %5774
        %v5776 = vadd.f32 %v4862, %v4864
        %5777 = vadd.xlane.f32.xlu0 %v5776
        %v5778 = vpop.xlane.xlu0 %5777
        %v5779 = vadd.f32 %v4866, %v4868
        %5780 = vadd.xlane.f32.xlu0 %v5779
        %v5781 = vpop.xlane.xlu0 %5780
        %v5782 = vadd.f32 %v4870, %v4872
        %5783 = vadd.xlane.f32.xlu0 %v5782
        %v5784 = vpop.xlane.xlu0 %5783
        %v5785 = vadd.f32 %v4874, %v4876
        %5786 = vadd.xlane.f32.xlu0 %v5785
        %v5787 = vpop.xlane.xlu0 %5786
        %v5788 = vadd.f32 %v4878, %v4880
        %5789 = vadd.xlane.f32.xlu0 %v5788
        %v5790 = vpop.xlane.xlu0 %5789
        %v5791 = vadd.f32 %v4882, %v4884
        %5792 = vadd.xlane.f32.xlu0 %v5791
        %v5793 = vpop.xlane.xlu0 %5792
        %v5794 = vadd.f32 %v4886, %v4888
        %5795 = vadd.xlane.f32.xlu0 %v5794
        %v5796 = vpop.xlane.xlu0 %5795
        %v5797 = vadd.f32 %v4890, %v4892
        %5798 = vadd.xlane.f32.xlu0 %v5797
        %v5799 = vpop.xlane.xlu0 %5798
        %v5800 = vadd.f32 %v4894, %v4896
        %5801 = vadd.xlane.f32.xlu0 %v5800
        %v5802 = vpop.xlane.xlu0 %5801
        %v5803 = vadd.f32 %v4898, %v4900
        %5804 = vadd.xlane.f32.xlu0 %v5803
        %v5805 = vpop.xlane.xlu0 %5804
        %v5806 = vadd.f32 %v4902, %v4904
        %5807 = vadd.xlane.f32.xlu0 %v5806
        %v5808 = vpop.xlane.xlu0 %5807
        %v5809 = vadd.f32 %v4906, %v4908
        %5810 = vadd.xlane.f32.xlu0 %v5809
        %v5811 = vpop.xlane.xlu0 %5810
        %v5812 = vadd.f32 %v4910, %v4912
        %5813 = vadd.xlane.f32.xlu0 %v5812
        %v5814 = vpop.xlane.xlu0 %5813
        %v5815 = vadd.f32 %v4914, %v4916
        %5816 = vadd.xlane.f32.xlu0 %v5815
        %v5817 = vpop.xlane.xlu0 %5816
        %v5818 = vadd.f32 %v4918, %v4920
        %5819 = vadd.xlane.f32.xlu0 %v5818
        %v5820 = vpop.xlane.xlu0 %5819
        %v5821 = vadd.f32 %v4922, %v4924
        %5822 = vadd.xlane.f32.xlu0 %v5821
        %v5823 = vpop.xlane.xlu0 %5822
        %v5824 = vadd.f32 %v4926, %v4928
        %5825 = vadd.xlane.f32.xlu0 %v5824
        %v5826 = vpop.xlane.xlu0 %5825
        %v5827 = vadd.f32 %v4930, %v4932
        %5828 = vadd.xlane.f32.xlu0 %v5827
        %v5829 = vpop.xlane.xlu0 %5828
        %v5830 = vadd.f32 %v4934, %v4936
        %5831 = vadd.xlane.f32.xlu0 %v5830
        %v5832 = vpop.xlane.xlu0 %5831
        %v5833 = vadd.f32 %v4938, %v4940
        %5834 = vadd.xlane.f32.xlu0 %v5833
        %v5835 = vpop.xlane.xlu0 %5834
        %v5836 = vadd.f32 %v4942, %v4944
        %5837 = vadd.xlane.f32.xlu0 %v5836
        %v5838 = vpop.xlane.xlu0 %5837
        %v5839 = vadd.f32 %v4946, %v4948
        %5840 = vadd.xlane.f32.xlu0 %v5839
        %v5841 = vpop.xlane.xlu0 %5840
        %v5842 = vadd.f32 %v4950, %v4952
        %5843 = vadd.xlane.f32.xlu0 %v5842
        %v5844 = vpop.xlane.xlu0 %5843
        %v5845 = vadd.f32 %v4954, %v4956
        %5846 = vadd.xlane.f32.xlu0 %v5845
        %v5847 = vpop.xlane.xlu0 %5846
        %v5848 = vadd.f32 %v4958, %v4960
        %5849 = vadd.xlane.f32.xlu0 %v5848
        %v5850 = vpop.xlane.xlu0 %5849
        %v5851 = vadd.f32 %v4962, %v4964
        %5852 = vadd.xlane.f32.xlu0 %v5851
        %v5853 = vpop.xlane.xlu0 %5852
        %v5854 = vadd.f32 %v4966, %v4968
        %5855 = vadd.xlane.f32.xlu0 %v5854
        %v5856 = vpop.xlane.xlu0 %5855
        %v5857 = vadd.f32 %v4970, %v4972
        %5858 = vadd.xlane.f32.xlu0 %v5857
        %v5859 = vpop.xlane.xlu0 %5858
        %v5860 = vadd.f32 %v4974, %v4976
        %5861 = vadd.xlane.f32.xlu0 %v5860
        %v5862 = vpop.xlane.xlu0 %5861
        %v5863 = vadd.f32 %v4978, %v4980
        %5864 = vadd.xlane.f32.xlu0 %v5863
        %v5865 = vpop.xlane.xlu0 %5864
        %v5866 = vadd.f32 %v4982, %v4984
        %5867 = vadd.xlane.f32.xlu0 %v5866
        %v5868 = vpop.xlane.xlu0 %5867
        %v5869 = vadd.f32 %v4986, %v4988
        %5870 = vadd.xlane.f32.xlu0 %v5869
        %v5871 = vpop.xlane.xlu0 %5870
        %v5872 = vadd.f32 %v4990, %v4992
        %5873 = vadd.xlane.f32.xlu0 %v5872
        %v5874 = vpop.xlane.xlu0 %5873
        %v5875 = vadd.f32 %v4994, %v4996
        %5876 = vadd.xlane.f32.xlu0 %v5875
        %v5877 = vpop.xlane.xlu0 %5876
        %v5878 = vadd.f32 %v4998, %v5000
        %5879 = vadd.xlane.f32.xlu0 %v5878
        %v5880 = vpop.xlane.xlu0 %5879
        %v5881 = vadd.f32 %v5002, %v5004
        %5882 = vadd.xlane.f32.xlu0 %v5881
        %v5883 = vpop.xlane.xlu0 %5882
        %v5884 = vadd.f32 %v5006, %v5008
        %5885 = vadd.xlane.f32.xlu0 %v5884
        %v5886 = vpop.xlane.xlu0 %5885
        %v5887 = vadd.f32 %v5010, %v5012
        %5888 = vadd.xlane.f32.xlu0 %v5887
        %v5889 = vpop.xlane.xlu0 %5888
        %v5890 = vadd.f32 %v5014, %v5016
        %5891 = vadd.xlane.f32.xlu0 %v5890
        %v5892 = vpop.xlane.xlu0 %5891
        %v5893 = vadd.f32 %v5018, %v5020
        %5894 = vadd.xlane.f32.xlu0 %v5893
        %v5895 = vpop.xlane.xlu0 %5894
        %v5896 = vadd.f32 %v5022, %v5024
        %5897 = vadd.xlane.f32.xlu0 %v5896
        %v5898 = vpop.xlane.xlu0 %5897
        %v5899 = vadd.f32 %v5026, %v5028
        %5900 = vadd.xlane.f32.xlu0 %v5899
        %v5901 = vpop.xlane.xlu0 %5900
        %v5902 = vadd.f32 %v5030, %v5032
        %5903 = vadd.xlane.f32.xlu0 %v5902
        %v5904 = vpop.xlane.xlu0 %5903
        %v5905 = vadd.f32 %v5034, %v5036
        %5906 = vadd.xlane.f32.xlu0 %v5905
        %v5907 = vpop.xlane.xlu0 %5906
        %v5908 = vadd.f32 %v5038, %v5040
        %5909 = vadd.xlane.f32.xlu0 %v5908
        %v5910 = vpop.xlane.xlu0 %5909
        %v5911 = vadd.f32 %v5042, %v5044
        %5912 = vadd.xlane.f32.xlu0 %v5911
        %v5913 = vpop.xlane.xlu0 %5912
        %v5914 = vadd.f32 %v5046, %v5048
        %5915 = vadd.xlane.f32.xlu0 %v5914
        %v5916 = vpop.xlane.xlu0 %5915
        %v5917 = vadd.f32 %v5050, %v5052
        %5918 = vadd.xlane.f32.xlu0 %v5917
        %v5919 = vpop.xlane.xlu0 %5918
        %v5920 = vadd.f32 %v5054, %v5056
        %5921 = vadd.xlane.f32.xlu0 %v5920
        %v5922 = vpop.xlane.xlu0 %5921
        %v5923 = vadd.f32 %v5058, %v5060
        %5924 = vadd.xlane.f32.xlu0 %v5923
        %v5925 = vpop.xlane.xlu0 %5924
        %v5926 = vadd.f32 %v5062, %v5064
        %5927 = vadd.xlane.f32.xlu0 %v5926
        %v5928 = vpop.xlane.xlu0 %5927
        %v5929 = vadd.f32 %v5066, %v5068
        %5930 = vadd.xlane.f32.xlu0 %v5929
        %v5931 = vpop.xlane.xlu0 %5930
        %v5932 = vadd.f32 %v5070, %v5072
        %5933 = vadd.xlane.f32.xlu0 %v5932
        %v5934 = vpop.xlane.xlu0 %5933
        %v5935 = vadd.f32 %v5074, %v5076
        %5936 = vadd.xlane.f32.xlu0 %v5935
        %v5937 = vpop.xlane.xlu0 %5936
        %v5938 = vadd.f32 %v5078, %v5080
        %5939 = vadd.xlane.f32.xlu0 %v5938
        %v5940 = vpop.xlane.xlu0 %5939
        %v5941 = vadd.f32 %v5082, %v5084
        %5942 = vadd.xlane.f32.xlu0 %v5941
        %v5943 = vpop.xlane.xlu0 %5942
        %v5944 = vadd.f32 %v5086, %v5088
        %5945 = vadd.xlane.f32.xlu0 %v5944
        %v5946 = vpop.xlane.xlu0 %5945
        %v5947 = vadd.f32 %v5090, %v5092
        %5948 = vadd.xlane.f32.xlu0 %v5947
        %v5949 = vpop.xlane.xlu0 %5948
        %v5950 = vadd.f32 %v5094, %v5096
        %5951 = vadd.xlane.f32.xlu0 %v5950
        %v5952 = vpop.xlane.xlu0 %5951
        %v5953 = vadd.f32 %v5098, %v5100
        %5954 = vadd.xlane.f32.xlu0 %v5953
        %v5955 = vpop.xlane.xlu0 %5954
        %v5956 = vadd.f32 %v5102, %v5104
        %5957 = vadd.xlane.f32.xlu0 %v5956
        %v5958 = vpop.xlane.xlu0 %5957
        %v5959 = vadd.f32 %v5106, %v5108
        %5960 = vadd.xlane.f32.xlu0 %v5959
        %v5961 = vpop.xlane.xlu0 %5960
        %v5962 = vadd.f32 %v5110, %v5112
        %5963 = vadd.xlane.f32.xlu0 %v5962
        %v5964 = vpop.xlane.xlu0 %5963
        %v5965 = vadd.f32 %v5114, %v5116
        %5966 = vadd.xlane.f32.xlu0 %v5965
        %v5967 = vpop.xlane.xlu0 %5966
        %v5968 = vadd.f32 %v5118, %v5120
        %5969 = vadd.xlane.f32.xlu0 %v5968
        %v5970 = vpop.xlane.xlu0 %5969
        %v5971 = vadd.f32 %v5122, %v5124
        %5972 = vadd.xlane.f32.xlu0 %v5971
        %v5973 = vpop.xlane.xlu0 %5972
        %v5974 = vadd.f32 %v5126, %v5128
        %5975 = vadd.xlane.f32.xlu0 %v5974
        %v5976 = vpop.xlane.xlu0 %5975
        %v5977 = vadd.f32 %v5130, %v5132
        %5978 = vadd.xlane.f32.xlu0 %v5977
        %v5979 = vpop.xlane.xlu0 %5978
        %v5980 = vadd.f32 %v5134, %v5136
        %5981 = vadd.xlane.f32.xlu0 %v5980
        %v5982 = vpop.xlane.xlu0 %5981
        %v5983 = vadd.f32 %v5138, %v5140
        %5984 = vadd.xlane.f32.xlu0 %v5983
        %v5985 = vpop.xlane.xlu0 %5984
        %v5986 = vadd.f32 %v5142, %v5144
        %5987 = vadd.xlane.f32.xlu0 %v5986
        %v5988 = vpop.xlane.xlu0 %5987
        %v5989 = vadd.f32 %v5146, %v5148
        %5990 = vadd.xlane.f32.xlu0 %v5989
        %v5991 = vpop.xlane.xlu0 %5990
        %v5992 = vadd.f32 %v5150, %v5152
        %5993 = vadd.xlane.f32.xlu0 %v5992
        %v5994 = vpop.xlane.xlu0 %5993
        %v5995 = vadd.f32 %v5154, %v5156
        %5996 = vadd.xlane.f32.xlu0 %v5995
        %v5997 = vpop.xlane.xlu0 %5996
        %v5998 = vadd.f32 %v5158, %v5160
        %5999 = vadd.xlane.f32.xlu0 %v5998
        %v6000 = vpop.xlane.xlu0 %5999
        %v6001 = vadd.f32 %v5162, %v5164
        %6002 = vadd.xlane.f32.xlu0 %v6001
        %v6003 = vpop.xlane.xlu0 %6002
        %v6004 = vadd.f32 %v5166, %v5168
        %6005 = vadd.xlane.f32.xlu0 %v6004
        %v6006 = vpop.xlane.xlu0 %6005
        %v6007 = vadd.f32 %v5170, %v5172
        %6008 = vadd.xlane.f32.xlu0 %v6007
        %v6009 = vpop.xlane.xlu0 %6008
        %v6010 = vadd.f32 %v5174, %v5176
        %6011 = vadd.xlane.f32.xlu0 %v6010
        %v6012 = vpop.xlane.xlu0 %6011
        %v6013 = vadd.f32 %v5178, %v5180
        %6014 = vadd.xlane.f32.xlu0 %v6013
        %v6015 = vpop.xlane.xlu0 %6014
        %v6016 = vadd.f32 %v5182, %v5184
        %6017 = vadd.xlane.f32.xlu0 %v6016
        %v6018 = vpop.xlane.xlu0 %6017
        %v6019 = vadd.f32 %v5186, %v5188
        %6020 = vadd.xlane.f32.xlu0 %v6019
        %v6021 = vpop.xlane.xlu0 %6020
        %v6022 = vadd.f32 %v5190, %v5192
        %6023 = vadd.xlane.f32.xlu0 %v6022
        %v6024 = vpop.xlane.xlu0 %6023
        %v6025 = vadd.f32 %v5194, %v5196
        %6026 = vadd.xlane.f32.xlu0 %v6025
        %v6027 = vpop.xlane.xlu0 %6026
        %v6028 = vadd.f32 %v5198, %v5200
        %6029 = vadd.xlane.f32.xlu0 %v6028
        %v6030 = vpop.xlane.xlu0 %6029
        %v6031 = vadd.f32 %v5202, %v5204
        %6032 = vadd.xlane.f32.xlu0 %v6031
        %v6033 = vpop.xlane.xlu0 %6032
        %v6034 = vadd.f32 %v5206, %v5208
        %6035 = vadd.xlane.f32.xlu0 %v6034
        %v6036 = vpop.xlane.xlu0 %6035
        %v6037 = vadd.f32 %v5210, %v5212
        %6038 = vadd.xlane.f32.xlu0 %v6037
        %v6039 = vpop.xlane.xlu0 %6038
        %v6040 = vadd.f32 %v5214, %v5216
        %6041 = vadd.xlane.f32.xlu0 %v6040
        %v6042 = vpop.xlane.xlu0 %6041
        %v6043 = vadd.f32 %v5218, %v5220
        %6044 = vadd.xlane.f32.xlu0 %v6043
        %v6045 = vpop.xlane.xlu0 %6044
        %v6046 = vadd.f32 %v5222, %v5224
        %6047 = vadd.xlane.f32.xlu0 %v6046
        %v6048 = vpop.xlane.xlu0 %6047
        %v6049 = vadd.f32 %v5226, %v5228
        %6050 = vadd.xlane.f32.xlu0 %v6049
        %v6051 = vpop.xlane.xlu0 %6050
        %v6052 = vadd.f32 %v5230, %v5232
        %6053 = vadd.xlane.f32.xlu0 %v6052
        %v6054 = vpop.xlane.xlu0 %6053
        %v6055 = vadd.f32 %v5234, %v5236
        %6056 = vadd.xlane.f32.xlu0 %v6055
        %v6057 = vpop.xlane.xlu0 %6056
        %v6058 = vadd.f32 %v5238, %v5240
        %6059 = vadd.xlane.f32.xlu0 %v6058
        %v6060 = vpop.xlane.xlu0 %6059
        %v6061 = vadd.f32 %v5242, %v5244
        %6062 = vadd.xlane.f32.xlu0 %v6061
        %v6063 = vpop.xlane.xlu0 %6062
        %v6064 = vadd.f32 %v5246, %v5248
        %6065 = vadd.xlane.f32.xlu0 %v6064
        %v6066 = vpop.xlane.xlu0 %6065
        %v6067 = vadd.f32 %v5250, %v5252
        %6068 = vadd.xlane.f32.xlu0 %v6067
        %v6069 = vpop.xlane.xlu0 %6068
        %v6070 = vadd.f32 %v5254, %v5256
        %6071 = vadd.xlane.f32.xlu0 %v6070
        %v6072 = vpop.xlane.xlu0 %6071
        %v6073 = vadd.f32 %v5258, %v5260
        %6074 = vadd.xlane.f32.xlu0 %v6073
        %v6075 = vpop.xlane.xlu0 %6074
        %v6076 = vadd.f32 %v5262, %v5264
        %6077 = vadd.xlane.f32.xlu0 %v6076
        %v6078 = vpop.xlane.xlu0 %6077
        %v6079 = vadd.f32 %v5266, %v5268
        %6080 = vadd.xlane.f32.xlu0 %v6079
        %v6081 = vpop.xlane.xlu0 %6080
        %v6082 = vadd.f32 %v5270, %v5272
        %6083 = vadd.xlane.f32.xlu0 %v6082
        %v6084 = vpop.xlane.xlu0 %6083
        %v6085 = vadd.f32 %v5274, %v5276
        %6086 = vadd.xlane.f32.xlu0 %v6085
        %v6087 = vpop.xlane.xlu0 %6086
        %v6088 = vadd.f32 %v5278, %v5280
        %6089 = vadd.xlane.f32.xlu0 %v6088
        %v6090 = vpop.xlane.xlu0 %6089
        %v6091 = vadd.f32 %v5282, %v5284
        %6092 = vadd.xlane.f32.xlu0 %v6091
        %v6093 = vpop.xlane.xlu0 %6092
        %v6094 = vadd.f32 %v5286, %v5288
        %6095 = vadd.xlane.f32.xlu0 %v6094
        %v6096 = vpop.xlane.xlu0 %6095
        %v6097 = vadd.f32 %v5290, %v5292
        %6098 = vadd.xlane.f32.xlu0 %v6097
        %v6099 = vpop.xlane.xlu0 %6098
        %v6100 = vadd.f32 %v5294, %v5296
        %6101 = vadd.xlane.f32.xlu0 %v6100
        %v6102 = vpop.xlane.xlu0 %6101
        %v6103 = vadd.f32 %v5298, %v5300
        %6104 = vadd.xlane.f32.xlu0 %v6103
        %v6105 = vpop.xlane.xlu0 %6104
        %v6106 = vadd.f32 %v5302, %v5304
        %6107 = vadd.xlane.f32.xlu0 %v6106
        %v6108 = vpop.xlane.xlu0 %6107
        %v6109 = vadd.f32 %v5306, %v5308
        %6110 = vadd.xlane.f32.xlu0 %v6109
        %v6111 = vpop.xlane.xlu0 %6110
        %v6112 = vadd.f32 %v5310, %v5312
        %6113 = vadd.xlane.f32.xlu0 %v6112
        %v6114 = vpop.xlane.xlu0 %6113
        %v6115 = vadd.f32 %v5314, %v5316
        %6116 = vadd.xlane.f32.xlu0 %v6115
        %v6117 = vpop.xlane.xlu0 %6116
        %v6118 = vadd.f32 %v5318, %v5320
        %6119 = vadd.xlane.f32.xlu0 %v6118
        %v6120 = vpop.xlane.xlu0 %6119
        %v6121 = vadd.f32 %v5322, %v5324
        %6122 = vadd.xlane.f32.xlu0 %v6121
        %v6123 = vpop.xlane.xlu0 %6122
        %v6124 = vadd.f32 %v5326, %v5328
        %6125 = vadd.xlane.f32.xlu0 %v6124
        %v6126 = vpop.xlane.xlu0 %6125
        %v6127 = vadd.f32 %v5330, %v5332
        %6128 = vadd.xlane.f32.xlu0 %v6127
        %v6129 = vpop.xlane.xlu0 %6128
        %v6130 = vadd.f32 %v5334, %v5336
        %6131 = vadd.xlane.f32.xlu0 %v6130
        %v6132 = vpop.xlane.xlu0 %6131
        %v6133 = vadd.f32 %v5338, %v5340
        %6134 = vadd.xlane.f32.xlu0 %v6133
        %v6135 = vpop.xlane.xlu0 %6134
        %v6136 = vadd.f32 %v5342, %v5344
        %6137 = vadd.xlane.f32.xlu0 %v6136
        %v6138 = vpop.xlane.xlu0 %6137
        %v6139 = vadd.f32 %v5346, %v5348
        %6140 = vadd.xlane.f32.xlu0 %v6139
        %v6141 = vpop.xlane.xlu0 %6140
        %v6142 = vadd.f32 %v5350, %v5352
        %6143 = vadd.xlane.f32.xlu0 %v6142
        %v6144 = vpop.xlane.xlu0 %6143
        %v6145 = vadd.f32 %v5354, %v5356
        %6146 = vadd.xlane.f32.xlu0 %v6145
        %v6147 = vpop.xlane.xlu0 %6146
        %v6148 = vadd.f32 %v5358, %v5360
        %6149 = vadd.xlane.f32.xlu0 %v6148
        %v6150 = vpop.xlane.xlu0 %6149
        %v6151 = vadd.f32 %v5362, %v5364
        %6152 = vadd.xlane.f32.xlu0 %v6151
        %v6153 = vpop.xlane.xlu0 %6152
        %v6154 = vadd.f32 %v5366, %v5368
        %6155 = vadd.xlane.f32.xlu0 %v6154
        %v6156 = vpop.xlane.xlu0 %6155
        %v6157 = vadd.f32 %v5370, %v5372
        %6158 = vadd.xlane.f32.xlu0 %v6157
        %v6159 = vpop.xlane.xlu0 %6158
        %v6160 = vadd.f32 %v5374, %v5376
        %6161 = vadd.xlane.f32.xlu0 %v6160
        %v6162 = vpop.xlane.xlu0 %6161
        %v6163 = vadd.f32 %v5378, %v5380
        %6164 = vadd.xlane.f32.xlu0 %v6163
        %v6165 = vpop.xlane.xlu0 %6164
        %v6166 = vadd.f32 %v5382, %v5384
        %6167 = vadd.xlane.f32.xlu0 %v6166
        %v6168 = vpop.xlane.xlu0 %6167
        %v6169 = vadd.f32 %v5386, %v5388
        %6170 = vadd.xlane.f32.xlu0 %v6169
        %v6171 = vpop.xlane.xlu0 %6170
        %v6172 = vadd.f32 %v5390, %v5392
        %6173 = vadd.xlane.f32.xlu0 %v6172
        %v6174 = vpop.xlane.xlu0 %6173
        %v6175 = vadd.f32 %v5394, %v5396
        %6176 = vadd.xlane.f32.xlu0 %v6175
        %v6177 = vpop.xlane.xlu0 %6176
        %v6178 = vadd.f32 %v5398, %v5400
        %6179 = vadd.xlane.f32.xlu0 %v6178
        %v6180 = vpop.xlane.xlu0 %6179
        %v6181 = vadd.f32 %v5402, %v5404
        %6182 = vadd.xlane.f32.xlu0 %v6181
        %v6183 = vpop.xlane.xlu0 %6182
        %v6184 = vadd.f32 %v5406, %v5408
        %6185 = vadd.xlane.f32.xlu0 %v6184
        %v6186 = vpop.xlane.xlu0 %6185
        %v6187 = vadd.f32 %v5410, %v5412
        %6188 = vadd.xlane.f32.xlu0 %v6187
        %v6189 = vpop.xlane.xlu0 %6188
        %v6190 = vadd.f32 %v5414, %v5416
        %6191 = vadd.xlane.f32.xlu0 %v6190
        %v6192 = vpop.xlane.xlu0 %6191
        %v6193 = vadd.f32 %v5418, %v5420
        %6194 = vadd.xlane.f32.xlu0 %v6193
        %v6195 = vpop.xlane.xlu0 %6194
        %v6196 = vadd.f32 %v5422, %v5424
        %6197 = vadd.xlane.f32.xlu0 %v6196
        %v6198 = vpop.xlane.xlu0 %6197
        %v6199 = vadd.f32 %v5426, %v5428
        %6200 = vadd.xlane.f32.xlu0 %v6199
        %v6201 = vpop.xlane.xlu0 %6200
        %v6202 = vadd.f32 %v5430, %v5432
        %6203 = vadd.xlane.f32.xlu0 %v6202
        %v6204 = vpop.xlane.xlu0 %6203
        %v6205 = vadd.f32 %v5434, %v5436
        %6206 = vadd.xlane.f32.xlu0 %v6205
        %v6207 = vpop.xlane.xlu0 %6206
        %v6208 = vadd.f32 %v5438, %v5440
        %6209 = vadd.xlane.f32.xlu0 %v6208
        %v6210 = vpop.xlane.xlu0 %6209
        %v6211 = vadd.f32 %v5442, %v5444
        %6212 = vadd.xlane.f32.xlu0 %v6211
        %v6213 = vpop.xlane.xlu0 %6212
        %v6214 = vadd.f32 %v5446, %v5448
        %6215 = vadd.xlane.f32.xlu0 %v6214
        %v6216 = vpop.xlane.xlu0 %6215
        %v6217 = vrcp.pop %v5451
        %v6218 = vrcp.pop %v5454
        %v6219 = vrcp.pop %v5457
        %v6220 = vrcp.pop %v5460
        %v6221 = vrcp.pop %v5463
        %v6222 = vrcp.pop %v5466
        %v6223 = vrcp.pop %v5469
        %v6224 = vrcp.pop %v5472
        %v6225 = vrcp.pop %v5475
        %v6226 = vrcp.pop %v5478
        %v6227 = vrcp.pop %v5481
        %v6228 = vrcp.pop %v5484
        %v6229 = vrcp.pop %v5487
        %v6230 = vrcp.pop %v5490
        %v6231 = vrcp.pop %v5493
        %v6232 = vrcp.pop %v5496
        %v6233 = vrcp.pop %v5499
        %v6234 = vrcp.pop %v5502
        %v6235 = vrcp.pop %v5505
        %v6236 = vrcp.pop %v5508
        %v6237 = vrcp.pop %v5511
        %v6238 = vrcp.pop %v5514
        %v6239 = vrcp.pop %v5517
        %v6240 = vrcp.pop %v5520
        %v6241 = vrcp.pop %v5523
        %v6242 = vrcp.pop %v5526
        %v6243 = vrcp.pop %v5529
        %v6244 = vrcp.pop %v5532
        %v6245 = vrcp.pop %v5535
        %v6246 = vrcp.pop %v5538
        %v6247 = vrcp.pop %v5541
        %v6248 = vrcp.pop %v5544
        %v6249 = vrcp.pop %v5547
        %v6250 = vrcp.pop %v5550
        %v6251 = vrcp.pop %v5553
        %v6252 = vrcp.pop %v5556
        %v6253 = vrcp.pop %v5559
        %v6254 = vrcp.pop %v5562
        %v6255 = vrcp.pop %v5565
        %v6256 = vrcp.pop %v5568
        %v6257 = vrcp.pop %v5571
        %v6258 = vrcp.pop %v5574
        %v6259 = vrcp.pop %v5577
        %v6260 = vrcp.pop %v5580
        %v6261 = vrcp.pop %v5583
        %v6262 = vrcp.pop %v5586
        %v6263 = vrcp.pop %v5589
        %v6264 = vrcp.pop %v5592
        %v6265 = vrcp.pop %v5595
        %v6266 = vrcp.pop %v5598
        %v6267 = vrcp.pop %v5601
        %v6268 = vrcp.pop %v5604
        %v6269 = vrcp.pop %v5607
        %v6270 = vrcp.pop %v5610
        %v6271 = vrcp.pop %v5613
        %v6272 = vrcp.pop %v5616
        %v6273 = vrcp.pop %v5619
        %v6274 = vrcp.pop %v5622
        %v6275 = vrcp.pop %v5625
        %v6276 = vrcp.pop %v5628
        %v6277 = vrcp.pop %v5631
        %v6278 = vrcp.pop %v5634
        %v6279 = vrcp.pop %v5637
        %v6280 = vrcp.pop %v5640
        %v6281 = vrcp.pop %v5643
        %v6282 = vrcp.pop %v5646
        %v6283 = vrcp.pop %v5649
        %v6284 = vrcp.pop %v5652
        %v6285 = vrcp.pop %v5655
        %v6286 = vrcp.pop %v5658
        %v6287 = vrcp.pop %v5661
        %v6288 = vrcp.pop %v5664
        %v6289 = vrcp.pop %v5667
        %v6290 = vrcp.pop %v5670
        %v6291 = vrcp.pop %v5673
        %v6292 = vrcp.pop %v5676
        %v6293 = vrcp.pop %v5679
        %v6294 = vrcp.pop %v5682
        %v6295 = vrcp.pop %v5685
        %v6296 = vrcp.pop %v5688
        %v6297 = vrcp.pop %v5691
        %v6298 = vrcp.pop %v5694
        %v6299 = vrcp.pop %v5697
        %v6300 = vrcp.pop %v5700
        %v6301 = vrcp.pop %v5703
        %v6302 = vrcp.pop %v5706
        %v6303 = vrcp.pop %v5709
        %v6304 = vrcp.pop %v5712
        %v6305 = vrcp.pop %v5715
        %v6306 = vrcp.pop %v5718
        %v6307 = vrcp.pop %v5721
        %v6308 = vrcp.pop %v5724
        %v6309 = vrcp.pop %v5727
        %v6310 = vrcp.pop %v5730
        %v6311 = vrcp.pop %v5733
        %v6312 = vrcp.pop %v5736
        %v6313 = vrcp.pop %v5739
        %v6314 = vrcp.pop %v5742
        %v6315 = vrcp.pop %v5745
        %v6316 = vrcp.pop %v5748
        %v6317 = vrcp.pop %v5751
        %v6318 = vrcp.pop %v5754
        %v6319 = vrcp.pop %v5757
        %v6320 = vrcp.pop %v5760
        %v6321 = vrcp.pop %v5763
        %v6322 = vrcp.pop %v5766
        %v6323 = vrcp.pop %v5769
        %v6324 = vrcp.pop %v5772
        %v6325 = vrcp.pop %v5775
        %v6326 = vrcp.pop %v5778
        %v6327 = vrcp.pop %v5781
        %v6328 = vrcp.pop %v5784
        %v6329 = vrcp.pop %v5787
        %v6330 = vrcp.pop %v5790
        %v6331 = vrcp.pop %v5793
        %v6332 = vrcp.pop %v5796
        %v6333 = vrcp.pop %v5799
        %v6334 = vrcp.pop %v5802
        %v6335 = vrcp.pop %v5805
        %v6336 = vrcp.pop %v5808
        %v6337 = vrcp.pop %v5811
        %v6338 = vrcp.pop %v5814
        %v6339 = vrcp.pop %v5817
        %v6340 = vrcp.pop %v5820
        %v6341 = vrcp.pop %v5823
        %v6342 = vrcp.pop %v5826
        %v6343 = vrcp.pop %v5829
        %v6344 = vrcp.pop %v5832
        %v6345 = vrcp.pop %v5835
        %v6346 = vrcp.pop %v5838
        %v6347 = vrcp.pop %v5841
        %v6348 = vrcp.pop %v5844
        %v6349 = vrcp.pop %v5847
        %v6350 = vrcp.pop %v5850
        %v6351 = vrcp.pop %v5853
        %v6352 = vrcp.pop %v5856
        %v6353 = vrcp.pop %v5859
        %v6354 = vrcp.pop %v5862
        %v6355 = vrcp.pop %v5865
        %v6356 = vrcp.pop %v5868
        %v6357 = vrcp.pop %v5871
        %v6358 = vrcp.pop %v5874
        %v6359 = vrcp.pop %v5877
        %v6360 = vrcp.pop %v5880
        %v6361 = vrcp.pop %v5883
        %v6362 = vrcp.pop %v5886
        %v6363 = vrcp.pop %v5889
        %v6364 = vrcp.pop %v5892
        %v6365 = vrcp.pop %v5895
        %v6366 = vrcp.pop %v5898
        %v6367 = vrcp.pop %v5901
        %v6368 = vrcp.pop %v5904
        %v6369 = vrcp.pop %v5907
        %v6370 = vrcp.pop %v5910
        %v6371 = vrcp.pop %v5913
        %v6372 = vrcp.pop %v5916
        %v6373 = vrcp.pop %v5919
        %v6374 = vrcp.pop %v5922
        %v6375 = vrcp.pop %v5925
        %v6376 = vrcp.pop %v5928
        %v6377 = vrcp.pop %v5931
        %v6378 = vrcp.pop %v5934
        %v6379 = vrcp.pop %v5937
        %v6380 = vrcp.pop %v5940
        %v6381 = vrcp.pop %v5943
        %v6382 = vrcp.pop %v5946
        %v6383 = vrcp.pop %v5949
        %v6384 = vrcp.pop %v5952
        %v6385 = vrcp.pop %v5955
        %v6386 = vrcp.pop %v5958
        %v6387 = vrcp.pop %v5961
        %v6388 = vrcp.pop %v5964
        %v6389 = vrcp.pop %v5967
        %v6390 = vrcp.pop %v5970
        %v6391 = vrcp.pop %v5973
        %v6392 = vrcp.pop %v5976
        %v6393 = vrcp.pop %v5979
        %v6394 = vrcp.pop %v5982
        %v6395 = vrcp.pop %v5985
        %v6396 = vrcp.pop %v5988
        %v6397 = vrcp.pop %v5991
        %v6398 = vrcp.pop %v5994
        %v6399 = vrcp.pop %v5997
        %v6400 = vrcp.pop %v6000
        %v6401 = vrcp.pop %v6003
        %v6402 = vrcp.pop %v6006
        %v6403 = vrcp.pop %v6009
        %v6404 = vrcp.pop %v6012
        %v6405 = vrcp.pop %v6015
        %v6406 = vrcp.pop %v6018
        %v6407 = vrcp.pop %v6021
        %v6408 = vrcp.pop %v6024
        %v6409 = vrcp.pop %v6027
        %v6410 = vrcp.pop %v6030
        %v6411 = vrcp.pop %v6033
        %v6412 = vrcp.pop %v6036
        %v6413 = vrcp.pop %v6039
        %v6414 = vrcp.pop %v6042
        %v6415 = vrcp.pop %v6045
        %v6416 = vrcp.pop %v6048
        %v6417 = vrcp.pop %v6051
        %v6418 = vrcp.pop %v6054
        %v6419 = vrcp.pop %v6057
        %v6420 = vrcp.pop %v6060
        %v6421 = vrcp.pop %v6063
        %v6422 = vrcp.pop %v6066
        %v6423 = vrcp.pop %v6069
        %v6424 = vrcp.pop %v6072
        %v6425 = vrcp.pop %v6075
        %v6426 = vrcp.pop %v6078
        %v6427 = vrcp.pop %v6081
        %v6428 = vrcp.pop %v6084
        %v6429 = vrcp.pop %v6087
        %v6430 = vrcp.pop %v6090
        %v6431 = vrcp.pop %v6093
        %v6432 = vrcp.pop %v6096
        %v6433 = vrcp.pop %v6099
        %v6434 = vrcp.pop %v6102
        %v6435 = vrcp.pop %v6105
        %v6436 = vrcp.pop %v6108
        %v6437 = vrcp.pop %v6111
        %v6438 = vrcp.pop %v6114
        %v6439 = vrcp.pop %v6117
        %v6440 = vrcp.pop %v6120
        %v6441 = vrcp.pop %v6123
        %v6442 = vrcp.pop %v6126
        %v6443 = vrcp.pop %v6129
        %v6444 = vrcp.pop %v6132
        %v6445 = vrcp.pop %v6135
        %v6446 = vrcp.pop %v6138
        %v6447 = vrcp.pop %v6141
        %v6448 = vrcp.pop %v6144
        %v6449 = vrcp.pop %v6147
        %v6450 = vrcp.pop %v6150
        %v6451 = vrcp.pop %v6153
        %v6452 = vrcp.pop %v6156
        %v6453 = vrcp.pop %v6159
        %v6454 = vrcp.pop %v6162
        %v6455 = vrcp.pop %v6165
        %v6456 = vrcp.pop %v6168
        %v6457 = vrcp.pop %v6171
        %v6458 = vrcp.pop %v6174
        %v6459 = vrcp.pop %v6177
        %v6460 = vrcp.pop %v6180
        %v6461 = vrcp.pop %v6183
        %v6462 = vrcp.pop %v6186
        %v6463 = vrcp.pop %v6189
        %v6464 = vrcp.pop %v6192
        %v6465 = vrcp.pop %v6195
        %v6466 = vrcp.pop %v6198
        %v6467 = vrcp.pop %v6201
        %v6468 = vrcp.pop %v6204
        %v6469 = vrcp.pop %v6207
        %v6470 = vrcp.pop %v6210
        %v6471 = vrcp.pop %v6213
        %v6472 = vrcp.pop %v6216
        %v6473 = vmul.f32 %v4426, %v6217
        %v6474 = vmul.f32 %v4428, %v6217
        %v6475 = vmul.f32 %v4430, %v6218
        %v6476 = vmul.f32 %v4432, %v6218
        %v6477 = vmul.f32 %v4434, %v6219
        %v6478 = vmul.f32 %v4436, %v6219
        %v6479 = vmul.f32 %v4438, %v6220
        %v6480 = vmul.f32 %v4440, %v6220
        %v6481 = vmul.f32 %v4442, %v6221
        %v6482 = vmul.f32 %v4444, %v6221
        %v6483 = vmul.f32 %v4446, %v6222
        %v6484 = vmul.f32 %v4448, %v6222
        %v6485 = vmul.f32 %v4450, %v6223
        %v6486 = vmul.f32 %v4452, %v6223
        %v6487 = vmul.f32 %v4454, %v6224
        %v6488 = vmul.f32 %v4456, %v6224
        %v6489 = vmul.f32 %v4458, %v6225
        %v6490 = vmul.f32 %v4460, %v6225
        %v6491 = vmul.f32 %v4462, %v6226
        %v6492 = vmul.f32 %v4464, %v6226
        %v6493 = vmul.f32 %v4466, %v6227
        %v6494 = vmul.f32 %v4468, %v6227
        %v6495 = vmul.f32 %v4470, %v6228
        %v6496 = vmul.f32 %v4472, %v6228
        %v6497 = vmul.f32 %v4474, %v6229
        %v6498 = vmul.f32 %v4476, %v6229
        %v6499 = vmul.f32 %v4478, %v6230
        %v6500 = vmul.f32 %v4480, %v6230
        %v6501 = vmul.f32 %v4482, %v6231
        %v6502 = vmul.f32 %v4484, %v6231
        %v6503 = vmul.f32 %v4486, %v6232
        %v6504 = vmul.f32 %v4488, %v6232
        %v6505 = vmul.f32 %v4490, %v6233
        %v6506 = vmul.f32 %v4492, %v6233
        %v6507 = vmul.f32 %v4494, %v6234
        %v6508 = vmul.f32 %v4496, %v6234
        %v6509 = vmul.f32 %v4498, %v6235
        %v6510 = vmul.f32 %v4500, %v6235
        %v6511 = vmul.f32 %v4502, %v6236
        %v6512 = vmul.f32 %v4504, %v6236
        %v6513 = vmul.f32 %v4506, %v6237
        %v6514 = vmul.f32 %v4508, %v6237
        %v6515 = vmul.f32 %v4510, %v6238
        %v6516 = vmul.f32 %v4512, %v6238
        %v6517 = vmul.f32 %v4514, %v6239
        %v6518 = vmul.f32 %v4516, %v6239
        %v6519 = vmul.f32 %v4518, %v6240
        %v6520 = vmul.f32 %v4520, %v6240
        %v6521 = vmul.f32 %v4522, %v6241
        %v6522 = vmul.f32 %v4524, %v6241
        %v6523 = vmul.f32 %v4526, %v6242
        %v6524 = vmul.f32 %v4528, %v6242
        %v6525 = vmul.f32 %v4530, %v6243
        %v6526 = vmul.f32 %v4532, %v6243
        %v6527 = vmul.f32 %v4534, %v6244
        %v6528 = vmul.f32 %v4536, %v6244
        %v6529 = vmul.f32 %v4538, %v6245
        %v6530 = vmul.f32 %v4540, %v6245
        %v6531 = vmul.f32 %v4542, %v6246
        %v6532 = vmul.f32 %v4544, %v6246
        %v6533 = vmul.f32 %v4546, %v6247
        %v6534 = vmul.f32 %v4548, %v6247
        %v6535 = vmul.f32 %v4550, %v6248
        %v6536 = vmul.f32 %v4552, %v6248
        %v6537 = vmul.f32 %v4554, %v6249
        %v6538 = vmul.f32 %v4556, %v6249
        %v6539 = vmul.f32 %v4558, %v6250
        %v6540 = vmul.f32 %v4560, %v6250
        %v6541 = vmul.f32 %v4562, %v6251
        %v6542 = vmul.f32 %v4564, %v6251
        %v6543 = vmul.f32 %v4566, %v6252
        %v6544 = vmul.f32 %v4568, %v6252
        %v6545 = vmul.f32 %v4570, %v6253
        %v6546 = vmul.f32 %v4572, %v6253
        %v6547 = vmul.f32 %v4574, %v6254
        %v6548 = vmul.f32 %v4576, %v6254
        %v6549 = vmul.f32 %v4578, %v6255
        %v6550 = vmul.f32 %v4580, %v6255
        %v6551 = vmul.f32 %v4582, %v6256
        %v6552 = vmul.f32 %v4584, %v6256
        %v6553 = vmul.f32 %v4586, %v6257
        %v6554 = vmul.f32 %v4588, %v6257
        %v6555 = vmul.f32 %v4590, %v6258
        %v6556 = vmul.f32 %v4592, %v6258
        %v6557 = vmul.f32 %v4594, %v6259
        %v6558 = vmul.f32 %v4596, %v6259
        %v6559 = vmul.f32 %v4598, %v6260
        %v6560 = vmul.f32 %v4600, %v6260
        %v6561 = vmul.f32 %v4602, %v6261
        %v6562 = vmul.f32 %v4604, %v6261
        %v6563 = vmul.f32 %v4606, %v6262
        %v6564 = vmul.f32 %v4608, %v6262
        %v6565 = vmul.f32 %v4610, %v6263
        %v6566 = vmul.f32 %v4612, %v6263
        %v6567 = vmul.f32 %v4614, %v6264
        %v6568 = vmul.f32 %v4616, %v6264
        %v6569 = vmul.f32 %v4618, %v6265
        %v6570 = vmul.f32 %v4620, %v6265
        %v6571 = vmul.f32 %v4622, %v6266
        %v6572 = vmul.f32 %v4624, %v6266
        %v6573 = vmul.f32 %v4626, %v6267
        %v6574 = vmul.f32 %v4628, %v6267
        %v6575 = vmul.f32 %v4630, %v6268
        %v6576 = vmul.f32 %v4632, %v6268
        %v6577 = vmul.f32 %v4634, %v6269
        %v6578 = vmul.f32 %v4636, %v6269
        %v6579 = vmul.f32 %v4638, %v6270
        %v6580 = vmul.f32 %v4640, %v6270
        %v6581 = vmul.f32 %v4642, %v6271
        %v6582 = vmul.f32 %v4644, %v6271
        %v6583 = vmul.f32 %v4646, %v6272
        %v6584 = vmul.f32 %v4648, %v6272
        %v6585 = vmul.f32 %v4650, %v6273
        %v6586 = vmul.f32 %v4652, %v6273
        %v6587 = vmul.f32 %v4654, %v6274
        %v6588 = vmul.f32 %v4656, %v6274
        %v6589 = vmul.f32 %v4658, %v6275
        %v6590 = vmul.f32 %v4660, %v6275
        %v6591 = vmul.f32 %v4662, %v6276
        %v6592 = vmul.f32 %v4664, %v6276
        %v6593 = vmul.f32 %v4666, %v6277
        %v6594 = vmul.f32 %v4668, %v6277
        %v6595 = vmul.f32 %v4670, %v6278
        %v6596 = vmul.f32 %v4672, %v6278
        %v6597 = vmul.f32 %v4674, %v6279
        %v6598 = vmul.f32 %v4676, %v6279
        %v6599 = vmul.f32 %v4678, %v6280
        %v6600 = vmul.f32 %v4680, %v6280
        %v6601 = vmul.f32 %v4682, %v6281
        %v6602 = vmul.f32 %v4684, %v6281
        %v6603 = vmul.f32 %v4686, %v6282
        %v6604 = vmul.f32 %v4688, %v6282
        %v6605 = vmul.f32 %v4690, %v6283
        %v6606 = vmul.f32 %v4692, %v6283
        %v6607 = vmul.f32 %v4694, %v6284
        %v6608 = vmul.f32 %v4696, %v6284
        %v6609 = vmul.f32 %v4698, %v6285
        %v6610 = vmul.f32 %v4700, %v6285
        %v6611 = vmul.f32 %v4702, %v6286
        %v6612 = vmul.f32 %v4704, %v6286
        %v6613 = vmul.f32 %v4706, %v6287
        %v6614 = vmul.f32 %v4708, %v6287
        %v6615 = vmul.f32 %v4710, %v6288
        %v6616 = vmul.f32 %v4712, %v6288
        %v6617 = vmul.f32 %v4714, %v6289
        %v6618 = vmul.f32 %v4716, %v6289
        %v6619 = vmul.f32 %v4718, %v6290
        %v6620 = vmul.f32 %v4720, %v6290
        %v6621 = vmul.f32 %v4722, %v6291
        %v6622 = vmul.f32 %v4724, %v6291
        %v6623 = vmul.f32 %v4726, %v6292
        %v6624 = vmul.f32 %v4728, %v6292
        %v6625 = vmul.f32 %v4730, %v6293
        %v6626 = vmul.f32 %v4732, %v6293
        %v6627 = vmul.f32 %v4734, %v6294
        %v6628 = vmul.f32 %v4736, %v6294
        %v6629 = vmul.f32 %v4738, %v6295
        %v6630 = vmul.f32 %v4740, %v6295
        %v6631 = vmul.f32 %v4742, %v6296
        %v6632 = vmul.f32 %v4744, %v6296
        %v6633 = vmul.f32 %v4746, %v6297
        %v6634 = vmul.f32 %v4748, %v6297
        %v6635 = vmul.f32 %v4750, %v6298
        %v6636 = vmul.f32 %v4752, %v6298
        %v6637 = vmul.f32 %v4754, %v6299
        %v6638 = vmul.f32 %v4756, %v6299
        %v6639 = vmul.f32 %v4758, %v6300
        %v6640 = vmul.f32 %v4760, %v6300
        %v6641 = vmul.f32 %v4762, %v6301
        %v6642 = vmul.f32 %v4764, %v6301
        %v6643 = vmul.f32 %v4766, %v6302
        %v6644 = vmul.f32 %v4768, %v6302
        %v6645 = vmul.f32 %v4770, %v6303
        %v6646 = vmul.f32 %v4772, %v6303
        %v6647 = vmul.f32 %v4774, %v6304
        %v6648 = vmul.f32 %v4776, %v6304
        %v6649 = vmul.f32 %v4778, %v6305
        %v6650 = vmul.f32 %v4780, %v6305
        %v6651 = vmul.f32 %v4782, %v6306
        %v6652 = vmul.f32 %v4784, %v6306
        %v6653 = vmul.f32 %v4786, %v6307
        %v6654 = vmul.f32 %v4788, %v6307
        %v6655 = vmul.f32 %v4790, %v6308
        %v6656 = vmul.f32 %v4792, %v6308
        %v6657 = vmul.f32 %v4794, %v6309
        %v6658 = vmul.f32 %v4796, %v6309
        %v6659 = vmul.f32 %v4798, %v6310
        %v6660 = vmul.f32 %v4800, %v6310
        %v6661 = vmul.f32 %v4802, %v6311
        %v6662 = vmul.f32 %v4804, %v6311
        %v6663 = vmul.f32 %v4806, %v6312
        %v6664 = vmul.f32 %v4808, %v6312
        %v6665 = vmul.f32 %v4810, %v6313
        %v6666 = vmul.f32 %v4812, %v6313
        %v6667 = vmul.f32 %v4814, %v6314
        %v6668 = vmul.f32 %v4816, %v6314
        %v6669 = vmul.f32 %v4818, %v6315
        %v6670 = vmul.f32 %v4820, %v6315
        %v6671 = vmul.f32 %v4822, %v6316
        %v6672 = vmul.f32 %v4824, %v6316
        %v6673 = vmul.f32 %v4826, %v6317
        %v6674 = vmul.f32 %v4828, %v6317
        %v6675 = vmul.f32 %v4830, %v6318
        %v6676 = vmul.f32 %v4832, %v6318
        %v6677 = vmul.f32 %v4834, %v6319
        %v6678 = vmul.f32 %v4836, %v6319
        %v6679 = vmul.f32 %v4838, %v6320
        %v6680 = vmul.f32 %v4840, %v6320
        %v6681 = vmul.f32 %v4842, %v6321
        %v6682 = vmul.f32 %v4844, %v6321
        %v6683 = vmul.f32 %v4846, %v6322
        %v6684 = vmul.f32 %v4848, %v6322
        %v6685 = vmul.f32 %v4850, %v6323
        %v6686 = vmul.f32 %v4852, %v6323
        %v6687 = vmul.f32 %v4854, %v6324
        %v6688 = vmul.f32 %v4856, %v6324
        %v6689 = vmul.f32 %v4858, %v6325
        %v6690 = vmul.f32 %v4860, %v6325
        %v6691 = vmul.f32 %v4862, %v6326
        %v6692 = vmul.f32 %v4864, %v6326
        %v6693 = vmul.f32 %v4866, %v6327
        %v6694 = vmul.f32 %v4868, %v6327
        %v6695 = vmul.f32 %v4870, %v6328
        %v6696 = vmul.f32 %v4872, %v6328
        %v6697 = vmul.f32 %v4874, %v6329
        %v6698 = vmul.f32 %v4876, %v6329
        %v6699 = vmul.f32 %v4878, %v6330
        %v6700 = vmul.f32 %v4880, %v6330
        %v6701 = vmul.f32 %v4882, %v6331
        %v6702 = vmul.f32 %v4884, %v6331
        %v6703 = vmul.f32 %v4886, %v6332
        %v6704 = vmul.f32 %v4888, %v6332
        %v6705 = vmul.f32 %v4890, %v6333
        %v6706 = vmul.f32 %v4892, %v6333
        %v6707 = vmul.f32 %v4894, %v6334
        %v6708 = vmul.f32 %v4896, %v6334
        %v6709 = vmul.f32 %v4898, %v6335
        %v6710 = vmul.f32 %v4900, %v6335
        %v6711 = vmul.f32 %v4902, %v6336
        %v6712 = vmul.f32 %v4904, %v6336
        %v6713 = vmul.f32 %v4906, %v6337
        %v6714 = vmul.f32 %v4908, %v6337
        %v6715 = vmul.f32 %v4910, %v6338
        %v6716 = vmul.f32 %v4912, %v6338
        %v6717 = vmul.f32 %v4914, %v6339
        %v6718 = vmul.f32 %v4916, %v6339
        %v6719 = vmul.f32 %v4918, %v6340
        %v6720 = vmul.f32 %v4920, %v6340
        %v6721 = vmul.f32 %v4922, %v6341
        %v6722 = vmul.f32 %v4924, %v6341
        %v6723 = vmul.f32 %v4926, %v6342
        %v6724 = vmul.f32 %v4928, %v6342
        %v6725 = vmul.f32 %v4930, %v6343
        %v6726 = vmul.f32 %v4932, %v6343
        %v6727 = vmul.f32 %v4934, %v6344
        %v6728 = vmul.f32 %v4936, %v6344
        %v6729 = vmul.f32 %v4938, %v6345
        %v6730 = vmul.f32 %v4940, %v6345
        %v6731 = vmul.f32 %v4942, %v6346
        %v6732 = vmul.f32 %v4944, %v6346
        %v6733 = vmul.f32 %v4946, %v6347
        %v6734 = vmul.f32 %v4948, %v6347
        %v6735 = vmul.f32 %v4950, %v6348
        %v6736 = vmul.f32 %v4952, %v6348
        %v6737 = vmul.f32 %v4954, %v6349
        %v6738 = vmul.f32 %v4956, %v6349
        %v6739 = vmul.f32 %v4958, %v6350
        %v6740 = vmul.f32 %v4960, %v6350
        %v6741 = vmul.f32 %v4962, %v6351
        %v6742 = vmul.f32 %v4964, %v6351
        %v6743 = vmul.f32 %v4966, %v6352
        %v6744 = vmul.f32 %v4968, %v6352
        %v6745 = vmul.f32 %v4970, %v6353
        %v6746 = vmul.f32 %v4972, %v6353
        %v6747 = vmul.f32 %v4974, %v6354
        %v6748 = vmul.f32 %v4976, %v6354
        %v6749 = vmul.f32 %v4978, %v6355
        %v6750 = vmul.f32 %v4980, %v6355
        %v6751 = vmul.f32 %v4982, %v6356
        %v6752 = vmul.f32 %v4984, %v6356
        %v6753 = vmul.f32 %v4986, %v6357
        %v6754 = vmul.f32 %v4988, %v6357
        %v6755 = vmul.f32 %v4990, %v6358
        %v6756 = vmul.f32 %v4992, %v6358
        %v6757 = vmul.f32 %v4994, %v6359
        %v6758 = vmul.f32 %v4996, %v6359
        %v6759 = vmul.f32 %v4998, %v6360
        %v6760 = vmul.f32 %v5000, %v6360
        %v6761 = vmul.f32 %v5002, %v6361
        %v6762 = vmul.f32 %v5004, %v6361
        %v6763 = vmul.f32 %v5006, %v6362
        %v6764 = vmul.f32 %v5008, %v6362
        %v6765 = vmul.f32 %v5010, %v6363
        %v6766 = vmul.f32 %v5012, %v6363
        %v6767 = vmul.f32 %v5014, %v6364
        %v6768 = vmul.f32 %v5016, %v6364
        %v6769 = vmul.f32 %v5018, %v6365
        %v6770 = vmul.f32 %v5020, %v6365
        %v6771 = vmul.f32 %v5022, %v6366
        %v6772 = vmul.f32 %v5024, %v6366
        %v6773 = vmul.f32 %v5026, %v6367
        %v6774 = vmul.f32 %v5028, %v6367
        %v6775 = vmul.f32 %v5030, %v6368
        %v6776 = vmul.f32 %v5032, %v6368
        %v6777 = vmul.f32 %v5034, %v6369
        %v6778 = vmul.f32 %v5036, %v6369
        %v6779 = vmul.f32 %v5038, %v6370
        %v6780 = vmul.f32 %v5040, %v6370
        %v6781 = vmul.f32 %v5042, %v6371
        %v6782 = vmul.f32 %v5044, %v6371
        %v6783 = vmul.f32 %v5046, %v6372
        %v6784 = vmul.f32 %v5048, %v6372
        %v6785 = vmul.f32 %v5050, %v6373
        %v6786 = vmul.f32 %v5052, %v6373
        %v6787 = vmul.f32 %v5054, %v6374
        %v6788 = vmul.f32 %v5056, %v6374
        %v6789 = vmul.f32 %v5058, %v6375
        %v6790 = vmul.f32 %v5060, %v6375
        %v6791 = vmul.f32 %v5062, %v6376
        %v6792 = vmul.f32 %v5064, %v6376
        %v6793 = vmul.f32 %v5066, %v6377
        %v6794 = vmul.f32 %v5068, %v6377
        %v6795 = vmul.f32 %v5070, %v6378
        %v6796 = vmul.f32 %v5072, %v6378
        %v6797 = vmul.f32 %v5074, %v6379
        %v6798 = vmul.f32 %v5076, %v6379
        %v6799 = vmul.f32 %v5078, %v6380
        %v6800 = vmul.f32 %v5080, %v6380
        %v6801 = vmul.f32 %v5082, %v6381
        %v6802 = vmul.f32 %v5084, %v6381
        %v6803 = vmul.f32 %v5086, %v6382
        %v6804 = vmul.f32 %v5088, %v6382
        %v6805 = vmul.f32 %v5090, %v6383
        %v6806 = vmul.f32 %v5092, %v6383
        %v6807 = vmul.f32 %v5094, %v6384
        %v6808 = vmul.f32 %v5096, %v6384
        %v6809 = vmul.f32 %v5098, %v6385
        %v6810 = vmul.f32 %v5100, %v6385
        %v6811 = vmul.f32 %v5102, %v6386
        %v6812 = vmul.f32 %v5104, %v6386
        %v6813 = vmul.f32 %v5106, %v6387
        %v6814 = vmul.f32 %v5108, %v6387
        %v6815 = vmul.f32 %v5110, %v6388
        %v6816 = vmul.f32 %v5112, %v6388
        %v6817 = vmul.f32 %v5114, %v6389
        %v6818 = vmul.f32 %v5116, %v6389
        %v6819 = vmul.f32 %v5118, %v6390
        %v6820 = vmul.f32 %v5120, %v6390
        %v6821 = vmul.f32 %v5122, %v6391
        %v6822 = vmul.f32 %v5124, %v6391
        %v6823 = vmul.f32 %v5126, %v6392
        %v6824 = vmul.f32 %v5128, %v6392
        %v6825 = vmul.f32 %v5130, %v6393
        %v6826 = vmul.f32 %v5132, %v6393
        %v6827 = vmul.f32 %v5134, %v6394
        %v6828 = vmul.f32 %v5136, %v6394
        %v6829 = vmul.f32 %v5138, %v6395
        %v6830 = vmul.f32 %v5140, %v6395
        %v6831 = vmul.f32 %v5142, %v6396
        %v6832 = vmul.f32 %v5144, %v6396
        %v6833 = vmul.f32 %v5146, %v6397
        %v6834 = vmul.f32 %v5148, %v6397
        %v6835 = vmul.f32 %v5150, %v6398
        %v6836 = vmul.f32 %v5152, %v6398
        %v6837 = vmul.f32 %v5154, %v6399
        %v6838 = vmul.f32 %v5156, %v6399
        %v6839 = vmul.f32 %v5158, %v6400
        %v6840 = vmul.f32 %v5160, %v6400
        %v6841 = vmul.f32 %v5162, %v6401
        %v6842 = vmul.f32 %v5164, %v6401
        %v6843 = vmul.f32 %v5166, %v6402
        %v6844 = vmul.f32 %v5168, %v6402
        %v6845 = vmul.f32 %v5170, %v6403
        %v6846 = vmul.f32 %v5172, %v6403
        %v6847 = vmul.f32 %v5174, %v6404
        %v6848 = vmul.f32 %v5176, %v6404
        %v6849 = vmul.f32 %v5178, %v6405
        %v6850 = vmul.f32 %v5180, %v6405
        %v6851 = vmul.f32 %v5182, %v6406
        %v6852 = vmul.f32 %v5184, %v6406
        %v6853 = vmul.f32 %v5186, %v6407
        %v6854 = vmul.f32 %v5188, %v6407
        %v6855 = vmul.f32 %v5190, %v6408
        %v6856 = vmul.f32 %v5192, %v6408
        %v6857 = vmul.f32 %v5194, %v6409
        %v6858 = vmul.f32 %v5196, %v6409
        %v6859 = vmul.f32 %v5198, %v6410
        %v6860 = vmul.f32 %v5200, %v6410
        %v6861 = vmul.f32 %v5202, %v6411
        %v6862 = vmul.f32 %v5204, %v6411
        %v6863 = vmul.f32 %v5206, %v6412
        %v6864 = vmul.f32 %v5208, %v6412
        %v6865 = vmul.f32 %v5210, %v6413
        %v6866 = vmul.f32 %v5212, %v6413
        %v6867 = vmul.f32 %v5214, %v6414
        %v6868 = vmul.f32 %v5216, %v6414
        %v6869 = vmul.f32 %v5218, %v6415
        %v6870 = vmul.f32 %v5220, %v6415
        %v6871 = vmul.f32 %v5222, %v6416
        %v6872 = vmul.f32 %v5224, %v6416
        %v6873 = vmul.f32 %v5226, %v6417
        %v6874 = vmul.f32 %v5228, %v6417
        %v6875 = vmul.f32 %v5230, %v6418
        %v6876 = vmul.f32 %v5232, %v6418
        %v6877 = vmul.f32 %v5234, %v6419
        %v6878 = vmul.f32 %v5236, %v6419
        %v6879 = vmul.f32 %v5238, %v6420
        %v6880 = vmul.f32 %v5240, %v6420
        %v6881 = vmul.f32 %v5242, %v6421
        %v6882 = vmul.f32 %v5244, %v6421
        %v6883 = vmul.f32 %v5246, %v6422
        %v6884 = vmul.f32 %v5248, %v6422
        %v6885 = vmul.f32 %v5250, %v6423
        %v6886 = vmul.f32 %v5252, %v6423
        %v6887 = vmul.f32 %v5254, %v6424
        %v6888 = vmul.f32 %v5256, %v6424
        %v6889 = vmul.f32 %v5258, %v6425
        %v6890 = vmul.f32 %v5260, %v6425
        %v6891 = vmul.f32 %v5262, %v6426
        %v6892 = vmul.f32 %v5264, %v6426
        %v6893 = vmul.f32 %v5266, %v6427
        %v6894 = vmul.f32 %v5268, %v6427
        %v6895 = vmul.f32 %v5270, %v6428
        %v6896 = vmul.f32 %v5272, %v6428
        %v6897 = vmul.f32 %v5274, %v6429
        %v6898 = vmul.f32 %v5276, %v6429
        %v6899 = vmul.f32 %v5278, %v6430
        %v6900 = vmul.f32 %v5280, %v6430
        %v6901 = vmul.f32 %v5282, %v6431
        %v6902 = vmul.f32 %v5284, %v6431
        %v6903 = vmul.f32 %v5286, %v6432
        %v6904 = vmul.f32 %v5288, %v6432
        %v6905 = vmul.f32 %v5290, %v6433
        %v6906 = vmul.f32 %v5292, %v6433
        %v6907 = vmul.f32 %v5294, %v6434
        %v6908 = vmul.f32 %v5296, %v6434
        %v6909 = vmul.f32 %v5298, %v6435
        %v6910 = vmul.f32 %v5300, %v6435
        %v6911 = vmul.f32 %v5302, %v6436
        %v6912 = vmul.f32 %v5304, %v6436
        %v6913 = vmul.f32 %v5306, %v6437
        %v6914 = vmul.f32 %v5308, %v6437
        %v6915 = vmul.f32 %v5310, %v6438
        %v6916 = vmul.f32 %v5312, %v6438
        %v6917 = vmul.f32 %v5314, %v6439
        %v6918 = vmul.f32 %v5316, %v6439
        %v6919 = vmul.f32 %v5318, %v6440
        %v6920 = vmul.f32 %v5320, %v6440
        %v6921 = vmul.f32 %v5322, %v6441
        %v6922 = vmul.f32 %v5324, %v6441
        %v6923 = vmul.f32 %v5326, %v6442
        %v6924 = vmul.f32 %v5328, %v6442
        %v6925 = vmul.f32 %v5330, %v6443
        %v6926 = vmul.f32 %v5332, %v6443
        %v6927 = vmul.f32 %v5334, %v6444
        %v6928 = vmul.f32 %v5336, %v6444
        %v6929 = vmul.f32 %v5338, %v6445
        %v6930 = vmul.f32 %v5340, %v6445
        %v6931 = vmul.f32 %v5342, %v6446
        %v6932 = vmul.f32 %v5344, %v6446
        %v6933 = vmul.f32 %v5346, %v6447
        %v6934 = vmul.f32 %v5348, %v6447
        %v6935 = vmul.f32 %v5350, %v6448
        %v6936 = vmul.f32 %v5352, %v6448
        %v6937 = vmul.f32 %v5354, %v6449
        %v6938 = vmul.f32 %v5356, %v6449
        %v6939 = vmul.f32 %v5358, %v6450
        %v6940 = vmul.f32 %v5360, %v6450
        %v6941 = vmul.f32 %v5362, %v6451
        %v6942 = vmul.f32 %v5364, %v6451
        %v6943 = vmul.f32 %v5366, %v6452
        %v6944 = vmul.f32 %v5368, %v6452
        %v6945 = vmul.f32 %v5370, %v6453
        %v6946 = vmul.f32 %v5372, %v6453
        %v6947 = vmul.f32 %v5374, %v6454
        %v6948 = vmul.f32 %v5376, %v6454
        %v6949 = vmul.f32 %v5378, %v6455
        %v6950 = vmul.f32 %v5380, %v6455
        %v6951 = vmul.f32 %v5382, %v6456
        %v6952 = vmul.f32 %v5384, %v6456
        %v6953 = vmul.f32 %v5386, %v6457
        %v6954 = vmul.f32 %v5388, %v6457
        %v6955 = vmul.f32 %v5390, %v6458
        %v6956 = vmul.f32 %v5392, %v6458
        %v6957 = vmul.f32 %v5394, %v6459
        %v6958 = vmul.f32 %v5396, %v6459
        %v6959 = vmul.f32 %v5398, %v6460
        %v6960 = vmul.f32 %v5400, %v6460
        %v6961 = vmul.f32 %v5402, %v6461
        %v6962 = vmul.f32 %v5404, %v6461
        %v6963 = vmul.f32 %v5406, %v6462
        %v6964 = vmul.f32 %v5408, %v6462
        %v6965 = vmul.f32 %v5410, %v6463
        %v6966 = vmul.f32 %v5412, %v6463
        %v6967 = vmul.f32 %v5414, %v6464
        %v6968 = vmul.f32 %v5416, %v6464
        %v6969 = vmul.f32 %v5418, %v6465
        %v6970 = vmul.f32 %v5420, %v6465
        %v6971 = vmul.f32 %v5422, %v6466
        %v6972 = vmul.f32 %v5424, %v6466
        %v6973 = vmul.f32 %v5426, %v6467
        %v6974 = vmul.f32 %v5428, %v6467
        %v6975 = vmul.f32 %v5430, %v6468
        %v6976 = vmul.f32 %v5432, %v6468
        %v6977 = vmul.f32 %v5434, %v6469
        %v6978 = vmul.f32 %v5436, %v6469
        %v6979 = vmul.f32 %v5438, %v6470
        %v6980 = vmul.f32 %v5440, %v6470
        %v6981 = vmul.f32 %v5442, %v6471
        %v6982 = vmul.f32 %v5444, %v6471
        %v6983 = vmul.f32 %v5446, %v6472
        %v6984 = vmul.f32 %v5448, %v6472
        %v6985 = vpack.c.bf16 %v6475, %v6473
        %v6986 = vpack.c.bf16 %v6476, %v6474
        %v6987 = vpack.c.bf16 %v6479, %v6477
        %v6988 = vpack.c.bf16 %v6480, %v6478
        %v6989 = vpack.c.bf16 %v6483, %v6481
        %v6990 = vpack.c.bf16 %v6484, %v6482
        %v6991 = vpack.c.bf16 %v6487, %v6485
        %v6992 = vpack.c.bf16 %v6488, %v6486
        %v6993 = vpack.c.bf16 %v6491, %v6489
        %v6994 = vpack.c.bf16 %v6492, %v6490
        %v6995 = vpack.c.bf16 %v6495, %v6493
        %v6996 = vpack.c.bf16 %v6496, %v6494
        %v6997 = vpack.c.bf16 %v6499, %v6497
        %v6998 = vpack.c.bf16 %v6500, %v6498
        %v6999 = vpack.c.bf16 %v6503, %v6501
        %v7000 = vpack.c.bf16 %v6504, %v6502
        %v7001 = vpack.c.bf16 %v6507, %v6505
        %v7002 = vpack.c.bf16 %v6508, %v6506
        %v7003 = vpack.c.bf16 %v6511, %v6509
        %v7004 = vpack.c.bf16 %v6512, %v6510
        %v7005 = vpack.c.bf16 %v6515, %v6513
        %v7006 = vpack.c.bf16 %v6516, %v6514
        %v7007 = vpack.c.bf16 %v6519, %v6517
        %v7008 = vpack.c.bf16 %v6520, %v6518
        %v7009 = vpack.c.bf16 %v6523, %v6521
        %v7010 = vpack.c.bf16 %v6524, %v6522
        %v7011 = vpack.c.bf16 %v6527, %v6525
        %v7012 = vpack.c.bf16 %v6528, %v6526
        %v7013 = vpack.c.bf16 %v6531, %v6529
        %v7014 = vpack.c.bf16 %v6532, %v6530
        %v7015 = vpack.c.bf16 %v6535, %v6533
        %v7016 = vpack.c.bf16 %v6536, %v6534
        %v7017 = vpack.c.bf16 %v6539, %v6537
        %v7018 = vpack.c.bf16 %v6540, %v6538
        %v7019 = vpack.c.bf16 %v6543, %v6541
        %v7020 = vpack.c.bf16 %v6544, %v6542
        %v7021 = vpack.c.bf16 %v6547, %v6545
        %v7022 = vpack.c.bf16 %v6548, %v6546
        %v7023 = vpack.c.bf16 %v6551, %v6549
        %v7024 = vpack.c.bf16 %v6552, %v6550
        %v7025 = vpack.c.bf16 %v6555, %v6553
        %v7026 = vpack.c.bf16 %v6556, %v6554
        %v7027 = vpack.c.bf16 %v6559, %v6557
        %v7028 = vpack.c.bf16 %v6560, %v6558
        %v7029 = vpack.c.bf16 %v6563, %v6561
        %v7030 = vpack.c.bf16 %v6564, %v6562
        %v7031 = vpack.c.bf16 %v6567, %v6565
        %v7032 = vpack.c.bf16 %v6568, %v6566
        %v7033 = vpack.c.bf16 %v6571, %v6569
        %v7034 = vpack.c.bf16 %v6572, %v6570
        %v7035 = vpack.c.bf16 %v6575, %v6573
        %v7036 = vpack.c.bf16 %v6576, %v6574
        %v7037 = vpack.c.bf16 %v6579, %v6577
        %v7038 = vpack.c.bf16 %v6580, %v6578
        %v7039 = vpack.c.bf16 %v6583, %v6581
        %v7040 = vpack.c.bf16 %v6584, %v6582
        %v7041 = vpack.c.bf16 %v6587, %v6585
        %v7042 = vpack.c.bf16 %v6588, %v6586
        %v7043 = vpack.c.bf16 %v6591, %v6589
        %v7044 = vpack.c.bf16 %v6592, %v6590
        %v7045 = vpack.c.bf16 %v6595, %v6593
        %v7046 = vpack.c.bf16 %v6596, %v6594
        %v7047 = vpack.c.bf16 %v6599, %v6597
        %v7048 = vpack.c.bf16 %v6600, %v6598
        %v7049 = vpack.c.bf16 %v6603, %v6601
        %v7050 = vpack.c.bf16 %v6604, %v6602
        %v7051 = vpack.c.bf16 %v6607, %v6605
        %v7052 = vpack.c.bf16 %v6608, %v6606
        %v7053 = vpack.c.bf16 %v6611, %v6609
        %v7054 = vpack.c.bf16 %v6612, %v6610
        %v7055 = vpack.c.bf16 %v6615, %v6613
        %v7056 = vpack.c.bf16 %v6616, %v6614
        %v7057 = vpack.c.bf16 %v6619, %v6617
        %v7058 = vpack.c.bf16 %v6620, %v6618
        %v7059 = vpack.c.bf16 %v6623, %v6621
        %v7060 = vpack.c.bf16 %v6624, %v6622
        %v7061 = vpack.c.bf16 %v6627, %v6625
        %v7062 = vpack.c.bf16 %v6628, %v6626
        %v7063 = vpack.c.bf16 %v6631, %v6629
        %v7064 = vpack.c.bf16 %v6632, %v6630
        %v7065 = vpack.c.bf16 %v6635, %v6633
        %v7066 = vpack.c.bf16 %v6636, %v6634
        %v7067 = vpack.c.bf16 %v6639, %v6637
        %v7068 = vpack.c.bf16 %v6640, %v6638
        %v7069 = vpack.c.bf16 %v6643, %v6641
        %v7070 = vpack.c.bf16 %v6644, %v6642
        %v7071 = vpack.c.bf16 %v6647, %v6645
        %v7072 = vpack.c.bf16 %v6648, %v6646
        %v7073 = vpack.c.bf16 %v6651, %v6649
        %v7074 = vpack.c.bf16 %v6652, %v6650
        %v7075 = vpack.c.bf16 %v6655, %v6653
        %v7076 = vpack.c.bf16 %v6656, %v6654
        %v7077 = vpack.c.bf16 %v6659, %v6657
        %v7078 = vpack.c.bf16 %v6660, %v6658
        %v7079 = vpack.c.bf16 %v6663, %v6661
        %v7080 = vpack.c.bf16 %v6664, %v6662
        %v7081 = vpack.c.bf16 %v6667, %v6665
        %v7082 = vpack.c.bf16 %v6668, %v6666
        %v7083 = vpack.c.bf16 %v6671, %v6669
        %v7084 = vpack.c.bf16 %v6672, %v6670
        %v7085 = vpack.c.bf16 %v6675, %v6673
        %v7086 = vpack.c.bf16 %v6676, %v6674
        %v7087 = vpack.c.bf16 %v6679, %v6677
        %v7088 = vpack.c.bf16 %v6680, %v6678
        %v7089 = vpack.c.bf16 %v6683, %v6681
        %v7090 = vpack.c.bf16 %v6684, %v6682
        %v7091 = vpack.c.bf16 %v6687, %v6685
        %v7092 = vpack.c.bf16 %v6688, %v6686
        %v7093 = vpack.c.bf16 %v6691, %v6689
        %v7094 = vpack.c.bf16 %v6692, %v6690
        %v7095 = vpack.c.bf16 %v6695, %v6693
        %v7096 = vpack.c.bf16 %v6696, %v6694
        %v7097 = vpack.c.bf16 %v6699, %v6697
        %v7098 = vpack.c.bf16 %v6700, %v6698
        %v7099 = vpack.c.bf16 %v6703, %v6701
        %v7100 = vpack.c.bf16 %v6704, %v6702
        %v7101 = vpack.c.bf16 %v6707, %v6705
        %v7102 = vpack.c.bf16 %v6708, %v6706
        %v7103 = vpack.c.bf16 %v6711, %v6709
        %v7104 = vpack.c.bf16 %v6712, %v6710
        %v7105 = vpack.c.bf16 %v6715, %v6713
        %v7106 = vpack.c.bf16 %v6716, %v6714
        %v7107 = vpack.c.bf16 %v6719, %v6717
        %v7108 = vpack.c.bf16 %v6720, %v6718
        %v7109 = vpack.c.bf16 %v6723, %v6721
        %v7110 = vpack.c.bf16 %v6724, %v6722
        %v7111 = vpack.c.bf16 %v6727, %v6725
        %v7112 = vpack.c.bf16 %v6728, %v6726
        %v7113 = vpack.c.bf16 %v6731, %v6729
        %v7114 = vpack.c.bf16 %v6732, %v6730
        %v7115 = vpack.c.bf16 %v6735, %v6733
        %v7116 = vpack.c.bf16 %v6736, %v6734
        %v7117 = vpack.c.bf16 %v6739, %v6737
        %v7118 = vpack.c.bf16 %v6740, %v6738
        %v7119 = vpack.c.bf16 %v6743, %v6741
        %v7120 = vpack.c.bf16 %v6744, %v6742
        %v7121 = vpack.c.bf16 %v6747, %v6745
        %v7122 = vpack.c.bf16 %v6748, %v6746
        %v7123 = vpack.c.bf16 %v6751, %v6749
        %v7124 = vpack.c.bf16 %v6752, %v6750
        %v7125 = vpack.c.bf16 %v6755, %v6753
        %v7126 = vpack.c.bf16 %v6756, %v6754
        %v7127 = vpack.c.bf16 %v6759, %v6757
        %v7128 = vpack.c.bf16 %v6760, %v6758
        %v7129 = vpack.c.bf16 %v6763, %v6761
        %v7130 = vpack.c.bf16 %v6764, %v6762
        %v7131 = vpack.c.bf16 %v6767, %v6765
        %v7132 = vpack.c.bf16 %v6768, %v6766
        %v7133 = vpack.c.bf16 %v6771, %v6769
        %v7134 = vpack.c.bf16 %v6772, %v6770
        %v7135 = vpack.c.bf16 %v6775, %v6773
        %v7136 = vpack.c.bf16 %v6776, %v6774
        %v7137 = vpack.c.bf16 %v6779, %v6777
        %v7138 = vpack.c.bf16 %v6780, %v6778
        %v7139 = vpack.c.bf16 %v6783, %v6781
        %v7140 = vpack.c.bf16 %v6784, %v6782
        %v7141 = vpack.c.bf16 %v6787, %v6785
        %v7142 = vpack.c.bf16 %v6788, %v6786
        %v7143 = vpack.c.bf16 %v6791, %v6789
        %v7144 = vpack.c.bf16 %v6792, %v6790
        %v7145 = vpack.c.bf16 %v6795, %v6793
        %v7146 = vpack.c.bf16 %v6796, %v6794
        %v7147 = vpack.c.bf16 %v6799, %v6797
        %v7148 = vpack.c.bf16 %v6800, %v6798
        %v7149 = vpack.c.bf16 %v6803, %v6801
        %v7150 = vpack.c.bf16 %v6804, %v6802
        %v7151 = vpack.c.bf16 %v6807, %v6805
        %v7152 = vpack.c.bf16 %v6808, %v6806
        %v7153 = vpack.c.bf16 %v6811, %v6809
        %v7154 = vpack.c.bf16 %v6812, %v6810
        %v7155 = vpack.c.bf16 %v6815, %v6813
        %v7156 = vpack.c.bf16 %v6816, %v6814
        %v7157 = vpack.c.bf16 %v6819, %v6817
        %v7158 = vpack.c.bf16 %v6820, %v6818
        %v7159 = vpack.c.bf16 %v6823, %v6821
        %v7160 = vpack.c.bf16 %v6824, %v6822
        %v7161 = vpack.c.bf16 %v6827, %v6825
        %v7162 = vpack.c.bf16 %v6828, %v6826
        %v7163 = vpack.c.bf16 %v6831, %v6829
        %v7164 = vpack.c.bf16 %v6832, %v6830
        %v7165 = vpack.c.bf16 %v6835, %v6833
        %v7166 = vpack.c.bf16 %v6836, %v6834
        %v7167 = vpack.c.bf16 %v6839, %v6837
        %v7168 = vpack.c.bf16 %v6840, %v6838
        %v7169 = vpack.c.bf16 %v6843, %v6841
        %v7170 = vpack.c.bf16 %v6844, %v6842
        %v7171 = vpack.c.bf16 %v6847, %v6845
        %v7172 = vpack.c.bf16 %v6848, %v6846
        %v7173 = vpack.c.bf16 %v6851, %v6849
        %v7174 = vpack.c.bf16 %v6852, %v6850
        %v7175 = vpack.c.bf16 %v6855, %v6853
        %v7176 = vpack.c.bf16 %v6856, %v6854
        %v7177 = vpack.c.bf16 %v6859, %v6857
        %v7178 = vpack.c.bf16 %v6860, %v6858
        %v7179 = vpack.c.bf16 %v6863, %v6861
        %v7180 = vpack.c.bf16 %v6864, %v6862
        %v7181 = vpack.c.bf16 %v6867, %v6865
        %v7182 = vpack.c.bf16 %v6868, %v6866
        %v7183 = vpack.c.bf16 %v6871, %v6869
        %v7184 = vpack.c.bf16 %v6872, %v6870
        %v7185 = vpack.c.bf16 %v6875, %v6873
        %v7186 = vpack.c.bf16 %v6876, %v6874
        %v7187 = vpack.c.bf16 %v6879, %v6877
        %v7188 = vpack.c.bf16 %v6880, %v6878
        %v7189 = vpack.c.bf16 %v6883, %v6881
        %v7190 = vpack.c.bf16 %v6884, %v6882
        %v7191 = vpack.c.bf16 %v6887, %v6885
        %v7192 = vpack.c.bf16 %v6888, %v6886
        %v7193 = vpack.c.bf16 %v6891, %v6889
        %v7194 = vpack.c.bf16 %v6892, %v6890
        %v7195 = vpack.c.bf16 %v6895, %v6893
        %v7196 = vpack.c.bf16 %v6896, %v6894
        %v7197 = vpack.c.bf16 %v6899, %v6897
        %v7198 = vpack.c.bf16 %v6900, %v6898
        %v7199 = vpack.c.bf16 %v6903, %v6901
        %v7200 = vpack.c.bf16 %v6904, %v6902
        %v7201 = vpack.c.bf16 %v6907, %v6905
        %v7202 = vpack.c.bf16 %v6908, %v6906
        %v7203 = vpack.c.bf16 %v6911, %v6909
        %v7204 = vpack.c.bf16 %v6912, %v6910
        %v7205 = vpack.c.bf16 %v6915, %v6913
        %v7206 = vpack.c.bf16 %v6916, %v6914
        %v7207 = vpack.c.bf16 %v6919, %v6917
        %v7208 = vpack.c.bf16 %v6920, %v6918
        %v7209 = vpack.c.bf16 %v6923, %v6921
        %v7210 = vpack.c.bf16 %v6924, %v6922
        %v7211 = vpack.c.bf16 %v6927, %v6925
        %v7212 = vpack.c.bf16 %v6928, %v6926
        %v7213 = vpack.c.bf16 %v6931, %v6929
        %v7214 = vpack.c.bf16 %v6932, %v6930
        %v7215 = vpack.c.bf16 %v6935, %v6933
        %v7216 = vpack.c.bf16 %v6936, %v6934
        %v7217 = vpack.c.bf16 %v6939, %v6937
        %v7218 = vpack.c.bf16 %v6940, %v6938
        %v7219 = vpack.c.bf16 %v6943, %v6941
        %v7220 = vpack.c.bf16 %v6944, %v6942
        %v7221 = vpack.c.bf16 %v6947, %v6945
        %v7222 = vpack.c.bf16 %v6948, %v6946
        %v7223 = vpack.c.bf16 %v6951, %v6949
        %v7224 = vpack.c.bf16 %v6952, %v6950
        %v7225 = vpack.c.bf16 %v6955, %v6953
        %v7226 = vpack.c.bf16 %v6956, %v6954
        %v7227 = vpack.c.bf16 %v6959, %v6957
        %v7228 = vpack.c.bf16 %v6960, %v6958
        %v7229 = vpack.c.bf16 %v6963, %v6961
        %v7230 = vpack.c.bf16 %v6964, %v6962
        %v7231 = vpack.c.bf16 %v6967, %v6965
        %v7232 = vpack.c.bf16 %v6968, %v6966
        %v7233 = vpack.c.bf16 %v6971, %v6969
        %v7234 = vpack.c.bf16 %v6972, %v6970
        %v7235 = vpack.c.bf16 %v6975, %v6973
        %v7236 = vpack.c.bf16 %v6976, %v6974
        %v7237 = vpack.c.bf16 %v6979, %v6977
        %v7238 = vpack.c.bf16 %v6980, %v6978
        %v7239 = vpack.c.bf16 %v6983, %v6981
        %v7240 = vpack.c.bf16 %v6984, %v6982
        %7241 = vmatprep.subr.bf16.mxu0 %v6986
        %7242 = vmatpush1.bf16.xpose.msra.mxu0 %v6985
        %7243 = vmatprep.subr.bf16.mxu0 %v6988
        %7244 = vmatpush1.bf16.xpose.msra.mxu0 %v6987
        %7245 = vmatprep.subr.bf16.mxu0 %v6990
        %7246 = vmatpush1.bf16.xpose.msra.mxu0 %v6989
        %7247 = vmatprep.subr.bf16.mxu0 %v6992
        %7248 = vmatpush1.bf16.xpose.msra.mxu0 %v6991
        %7249 = vmatprep.subr.bf16.mxu0 %v6994
        %7250 = vmatpush1.bf16.xpose.msra.mxu0 %v6993
        %7251 = vmatprep.subr.bf16.mxu0 %v6996
        %7252 = vmatpush1.bf16.xpose.msra.mxu0 %v6995
        %7253 = vmatprep.subr.bf16.mxu0 %v6998
        %7254 = vmatpush1.bf16.xpose.msra.mxu0 %v6997
        %7255 = vmatprep.subr.bf16.mxu0 %v7000
        %7256 = vmatpush1.bf16.xpose.msra.mxu0 %v6999
        %7257 = vmatprep.subr.bf16.mxu0 %v7002
        %7258 = vmatpush1.bf16.xpose.msra.mxu0 %v7001
        %7259 = vmatprep.subr.bf16.mxu0 %v7004
        %7260 = vmatpush1.bf16.xpose.msra.mxu0 %v7003
        %7261 = vmatprep.subr.bf16.mxu0 %v7006
        %7262 = vmatpush1.bf16.xpose.msra.mxu0 %v7005
        %7263 = vmatprep.subr.bf16.mxu0 %v7008
        %7264 = vmatpush1.bf16.xpose.msra.mxu0 %v7007
        %7265 = vmatprep.subr.bf16.mxu0 %v7010
        %7266 = vmatpush1.bf16.xpose.msra.mxu0 %v7009
        %7267 = vmatprep.subr.bf16.mxu0 %v7012
        %7268 = vmatpush1.bf16.xpose.msra.mxu0 %v7011
        %7269 = vmatprep.subr.bf16.mxu0 %v7014
        %7270 = vmatpush1.bf16.xpose.msra.mxu0 %v7013
        %7271 = vmatprep.subr.bf16.mxu0 %v7016
        %7272 = vmatpush1.bf16.xpose.msra.mxu0 %v7015
        %7273 = vmatprep.mubr.bf16.mxu0 %v1152
        %7274 = vmatmul.mubr.bf16.gmra.mrb[0].mxu0 %v1151
        %v7275 = vpop.f32.mrb[0].mxu0
        %v7276 = vadd.f32 0.0, %v7275
        %v7277 = vpop.f32.mrb[0].mxu0
        %v7278 = vadd.f32 0.0, %v7277
        %v7279 = vpop.f32.mrb[0].mxu0
        %v7280 = vpop.f32.mrb[0].mxu0
        %7281 = vdwg.mxu0
        %7282 = vmatprep.subr.bf16.mxu0 %v7018
        %7283 = vmatpush1.bf16.xpose.msra.mxu0 %v7017
        %7284 = vmatprep.subr.bf16.mxu0 %v7020
        %7285 = vmatpush1.bf16.xpose.msra.mxu0 %v7019
        %7286 = vmatprep.subr.bf16.mxu0 %v7022
        %7287 = vmatpush1.bf16.xpose.msra.mxu0 %v7021
        %7288 = vmatprep.subr.bf16.mxu0 %v7024
        %7289 = vmatpush1.bf16.xpose.msra.mxu0 %v7023
        %7290 = vmatprep.subr.bf16.mxu0 %v7026
        %7291 = vmatpush1.bf16.xpose.msra.mxu0 %v7025
        %7292 = vmatprep.subr.bf16.mxu0 %v7028
        %7293 = vmatpush1.bf16.xpose.msra.mxu0 %v7027
        %7294 = vmatprep.subr.bf16.mxu0 %v7030
        %7295 = vmatpush1.bf16.xpose.msra.mxu0 %v7029
        %7296 = vmatprep.subr.bf16.mxu0 %v7032
        %7297 = vmatpush1.bf16.xpose.msra.mxu0 %v7031
        %7298 = vmatprep.subr.bf16.mxu0 %v7034
        %7299 = vmatpush1.bf16.xpose.msra.mxu0 %v7033
        %7300 = vmatprep.subr.bf16.mxu0 %v7036
        %7301 = vmatpush1.bf16.xpose.msra.mxu0 %v7035
        %7302 = vmatprep.subr.bf16.mxu0 %v7038
        %7303 = vmatpush1.bf16.xpose.msra.mxu0 %v7037
        %7304 = vmatprep.subr.bf16.mxu0 %v7040
        %7305 = vmatpush1.bf16.xpose.msra.mxu0 %v7039
        %7306 = vmatprep.subr.bf16.mxu0 %v7042
        %7307 = vmatpush1.bf16.xpose.msra.mxu0 %v7041
        %7308 = vmatprep.subr.bf16.mxu0 %v7044
        %7309 = vmatpush1.bf16.xpose.msra.mxu0 %v7043
        %7310 = vmatprep.subr.bf16.mxu0 %v7046
        %7311 = vmatpush1.bf16.xpose.msra.mxu0 %v7045
        %7312 = vmatprep.subr.bf16.mxu0 %v7048
        %7313 = vmatpush1.bf16.xpose.msra.mxu0 %v7047
        %7314 = vmatprep.mubr.bf16.mxu0 %v1154
        %7315 = vmatmul.mubr.bf16.gmra.mrb[0].mxu0 %v1153
        %v7316 = vpop.f32.mrb[0].mxu0
        %v7317 = vadd.f32 0.0, %v7316
        %v7318 = vpop.f32.mrb[0].mxu0
        %v7319 = vadd.f32 0.0, %v7318
        %v7320 = vpop.f32.mrb[0].mxu0
        %v7321 = vpop.f32.mrb[0].mxu0
        %7322 = vdwg.mxu0
        %7323 = vmatprep.subr.bf16.mxu0 %v7050
        %7324 = vmatpush1.bf16.xpose.msra.mxu0 %v7049
        %7325 = vmatprep.subr.bf16.mxu0 %v7052
        %7326 = vmatpush1.bf16.xpose.msra.mxu0 %v7051
        %7327 = vmatprep.subr.bf16.mxu0 %v7054
        %7328 = vmatpush1.bf16.xpose.msra.mxu0 %v7053
        %7329 = vmatprep.subr.bf16.mxu0 %v7056
        %7330 = vmatpush1.bf16.xpose.msra.mxu0 %v7055
        %7331 = vmatprep.subr.bf16.mxu0 %v7058
        %7332 = vmatpush1.bf16.xpose.msra.mxu0 %v7057
        %7333 = vmatprep.subr.bf16.mxu0 %v7060
        %7334 = vmatpush1.bf16.xpose.msra.mxu0 %v7059
        %7335 = vmatprep.subr.bf16.mxu0 %v7062
        %7336 = vmatpush1.bf16.xpose.msra.mxu0 %v7061
        %7337 = vmatprep.subr.bf16.mxu0 %v7064
        %7338 = vmatpush1.bf16.xpose.msra.mxu0 %v7063
        %7339 = vmatprep.subr.bf16.mxu0 %v7066
        %7340 = vmatpush1.bf16.xpose.msra.mxu0 %v7065
        %7341 = vmatprep.subr.bf16.mxu0 %v7068
        %7342 = vmatpush1.bf16.xpose.msra.mxu0 %v7067
        %7343 = vmatprep.subr.bf16.mxu0 %v7070
        %7344 = vmatpush1.bf16.xpose.msra.mxu0 %v7069
        %7345 = vmatprep.subr.bf16.mxu0 %v7072
        %7346 = vmatpush1.bf16.xpose.msra.mxu0 %v7071
        %7347 = vmatprep.subr.bf16.mxu0 %v7074
        %7348 = vmatpush1.bf16.xpose.msra.mxu0 %v7073
        %7349 = vmatprep.subr.bf16.mxu0 %v7076
        %7350 = vmatpush1.bf16.xpose.msra.mxu0 %v7075
        %7351 = vmatprep.subr.bf16.mxu0 %v7078
        %7352 = vmatpush1.bf16.xpose.msra.mxu0 %v7077
        %7353 = vmatprep.subr.bf16.mxu0 %v7080
        %7354 = vmatpush1.bf16.xpose.msra.mxu0 %v7079
        %7355 = vmatprep.mubr.bf16.mxu0 %v1156
        %7356 = vmatmul.mubr.bf16.gmra.mrb[0].mxu0 %v1155
        %v7357 = vpop.f32.mrb[0].mxu0
        %v7358 = vadd.f32 0.0, %v7357
        %v7359 = vpop.f32.mrb[0].mxu0
        %v7360 = vadd.f32 0.0, %v7359
        %v7361 = vpop.f32.mrb[0].mxu0
        %v7362 = vpop.f32.mrb[0].mxu0
        %7363 = vdwg.mxu0
        %7364 = vmatprep.subr.bf16.mxu0 %v7082
        %7365 = vmatpush1.bf16.xpose.msra.mxu0 %v7081
        %7366 = vmatprep.subr.bf16.mxu0 %v7084
        %7367 = vmatpush1.bf16.xpose.msra.mxu0 %v7083
        %7368 = vmatprep.subr.bf16.mxu0 %v7086
        %7369 = vmatpush1.bf16.xpose.msra.mxu0 %v7085
        %7370 = vmatprep.subr.bf16.mxu0 %v7088
        %7371 = vmatpush1.bf16.xpose.msra.mxu0 %v7087
        %7372 = vmatprep.subr.bf16.mxu0 %v7090
        %7373 = vmatpush1.bf16.xpose.msra.mxu0 %v7089
        %7374 = vmatprep.subr.bf16.mxu0 %v7092
        %7375 = vmatpush1.bf16.xpose.msra.mxu0 %v7091
        %7376 = vmatprep.subr.bf16.mxu0 %v7094
        %7377 = vmatpush1.bf16.xpose.msra.mxu0 %v7093
        %7378 = vmatprep.subr.bf16.mxu0 %v7096
        %7379 = vmatpush1.bf16.xpose.msra.mxu0 %v7095
        %7380 = vmatprep.subr.bf16.mxu0 %v7098
        %7381 = vmatpush1.bf16.xpose.msra.mxu0 %v7097
        %7382 = vmatprep.subr.bf16.mxu0 %v7100
        %7383 = vmatpush1.bf16.xpose.msra.mxu0 %v7099
        %7384 = vmatprep.subr.bf16.mxu0 %v7102
        %7385 = vmatpush1.bf16.xpose.msra.mxu0 %v7101
        %7386 = vmatprep.subr.bf16.mxu0 %v7104
        %7387 = vmatpush1.bf16.xpose.msra.mxu0 %v7103
        %7388 = vmatprep.subr.bf16.mxu0 %v7106
        %7389 = vmatpush1.bf16.xpose.msra.mxu0 %v7105
        %7390 = vmatprep.subr.bf16.mxu0 %v7108
        %7391 = vmatpush1.bf16.xpose.msra.mxu0 %v7107
        %7392 = vmatprep.subr.bf16.mxu0 %v7110
        %7393 = vmatpush1.bf16.xpose.msra.mxu0 %v7109
        %7394 = vmatprep.subr.bf16.mxu0 %v7112
        %7395 = vmatpush1.bf16.xpose.msra.mxu0 %v7111
        %7396 = vmatprep.mubr.bf16.mxu0 %v1158
        %7397 = vmatmul.mubr.bf16.gmra.mrb[0].mxu0 %v1157
        %v7398 = vpop.f32.mrb[0].mxu0
        %v7399 = vadd.f32 0.0, %v7398
        %v7400 = vpop.f32.mrb[0].mxu0
        %v7401 = vadd.f32 0.0, %v7400
        %v7402 = vpop.f32.mrb[0].mxu0
        %v7403 = vpop.f32.mrb[0].mxu0
        %7404 = vdwg.mxu0
        %7405 = vmatprep.subr.bf16.mxu0 %v7114
        %7406 = vmatpush1.bf16.xpose.msra.mxu0 %v7113
        %7407 = vmatprep.subr.bf16.mxu0 %v7116
        %7408 = vmatpush1.bf16.xpose.msra.mxu0 %v7115
        %7409 = vmatprep.subr.bf16.mxu0 %v7118
        %7410 = vmatpush1.bf16.xpose.msra.mxu0 %v7117
        %7411 = vmatprep.subr.bf16.mxu0 %v7120
        %7412 = vmatpush1.bf16.xpose.msra.mxu0 %v7119
        %7413 = vmatprep.subr.bf16.mxu0 %v7122
        %7414 = vmatpush1.bf16.xpose.msra.mxu0 %v7121
        %7415 = vmatprep.subr.bf16.mxu0 %v7124
        %7416 = vmatpush1.bf16.xpose.msra.mxu0 %v7123
        %7417 = vmatprep.subr.bf16.mxu0 %v7126
        %7418 = vmatpush1.bf16.xpose.msra.mxu0 %v7125
        %7419 = vmatprep.subr.bf16.mxu0 %v7128
        %7420 = vmatpush1.bf16.xpose.msra.mxu0 %v7127
        %7421 = vmatprep.subr.bf16.mxu0 %v7130
        %7422 = vmatpush1.bf16.xpose.msra.mxu0 %v7129
        %7423 = vmatprep.subr.bf16.mxu0 %v7132
        %7424 = vmatpush1.bf16.xpose.msra.mxu0 %v7131
        %7425 = vmatprep.subr.bf16.mxu0 %v7134
        %7426 = vmatpush1.bf16.xpose.msra.mxu0 %v7133
        %7427 = vmatprep.subr.bf16.mxu0 %v7136
        %7428 = vmatpush1.bf16.xpose.msra.mxu0 %v7135
        %7429 = vmatprep.subr.bf16.mxu0 %v7138
        %7430 = vmatpush1.bf16.xpose.msra.mxu0 %v7137
        %7431 = vmatprep.subr.bf16.mxu0 %v7140
        %7432 = vmatpush1.bf16.xpose.msra.mxu0 %v7139
        %7433 = vmatprep.subr.bf16.mxu0 %v7142
        %7434 = vmatpush1.bf16.xpose.msra.mxu0 %v7141
        %7435 = vmatprep.subr.bf16.mxu0 %v7144
        %7436 = vmatpush1.bf16.xpose.msra.mxu0 %v7143
        %7437 = vmatprep.mubr.bf16.mxu0 %v1160
        %7438 = vmatmul.mubr.bf16.gmra.mrb[0].mxu0 %v1159
        %v7439 = vpop.f32.mrb[0].mxu0
        %v7440 = vadd.f32 0.0, %v7439
        %v7441 = vpop.f32.mrb[0].mxu0
        %v7442 = vadd.f32 0.0, %v7441
        %v7443 = vpop.f32.mrb[0].mxu0
        %v7444 = vpop.f32.mrb[0].mxu0
        %7445 = vdwg.mxu0
        %7446 = vmatprep.subr.bf16.mxu0 %v7146
        %7447 = vmatpush1.bf16.xpose.msra.mxu0 %v7145
        %7448 = vmatprep.subr.bf16.mxu0 %v7148
        %7449 = vmatpush1.bf16.xpose.msra.mxu0 %v7147
        %7450 = vmatprep.subr.bf16.mxu0 %v7150
        %7451 = vmatpush1.bf16.xpose.msra.mxu0 %v7149
        %7452 = vmatprep.subr.bf16.mxu0 %v7152
        %7453 = vmatpush1.bf16.xpose.msra.mxu0 %v7151
        %7454 = vmatprep.subr.bf16.mxu0 %v7154
        %7455 = vmatpush1.bf16.xpose.msra.mxu0 %v7153
        %7456 = vmatprep.subr.bf16.mxu0 %v7156
        %7457 = vmatpush1.bf16.xpose.msra.mxu0 %v7155
        %7458 = vmatprep.subr.bf16.mxu0 %v7158
        %7459 = vmatpush1.bf16.xpose.msra.mxu0 %v7157
        %7460 = vmatprep.subr.bf16.mxu0 %v7160
        %7461 = vmatpush1.bf16.xpose.msra.mxu0 %v7159
        %7462 = vmatprep.subr.bf16.mxu0 %v7162
        %7463 = vmatpush1.bf16.xpose.msra.mxu0 %v7161
        %7464 = vmatprep.subr.bf16.mxu0 %v7164
        %7465 = vmatpush1.bf16.xpose.msra.mxu0 %v7163
        %7466 = vmatprep.subr.bf16.mxu0 %v7166
        %7467 = vmatpush1.bf16.xpose.msra.mxu0 %v7165
        %7468 = vmatprep.subr.bf16.mxu0 %v7168
        %7469 = vmatpush1.bf16.xpose.msra.mxu0 %v7167
        %7470 = vmatprep.subr.bf16.mxu0 %v7170
        %7471 = vmatpush1.bf16.xpose.msra.mxu0 %v7169
        %7472 = vmatprep.subr.bf16.mxu0 %v7172
        %7473 = vmatpush1.bf16.xpose.msra.mxu0 %v7171
        %7474 = vmatprep.subr.bf16.mxu0 %v7174
        %7475 = vmatpush1.bf16.xpose.msra.mxu0 %v7173
        %7476 = vmatprep.subr.bf16.mxu0 %v7176
        %7477 = vmatpush1.bf16.xpose.msra.mxu0 %v7175
        %7478 = vmatprep.mubr.bf16.mxu0 %v1162
        %7479 = vmatmul.mubr.bf16.gmra.mrb[0].mxu0 %v1161
        %v7480 = vpop.f32.mrb[0].mxu0
        %v7481 = vadd.f32 0.0, %v7480
        %v7482 = vpop.f32.mrb[0].mxu0
        %v7483 = vadd.f32 0.0, %v7482
        %v7484 = vpop.f32.mrb[0].mxu0
        %v7485 = vpop.f32.mrb[0].mxu0
        %7486 = vdwg.mxu0
        %7487 = vmatprep.subr.bf16.mxu0 %v7178
        %7488 = vmatpush1.bf16.xpose.msra.mxu0 %v7177
        %7489 = vmatprep.subr.bf16.mxu0 %v7180
        %7490 = vmatpush1.bf16.xpose.msra.mxu0 %v7179
        %7491 = vmatprep.subr.bf16.mxu0 %v7182
        %7492 = vmatpush1.bf16.xpose.msra.mxu0 %v7181
        %7493 = vmatprep.subr.bf16.mxu0 %v7184
        %7494 = vmatpush1.bf16.xpose.msra.mxu0 %v7183
        %7495 = vmatprep.subr.bf16.mxu0 %v7186
        %7496 = vmatpush1.bf16.xpose.msra.mxu0 %v7185
        %7497 = vmatprep.subr.bf16.mxu0 %v7188
        %7498 = vmatpush1.bf16.xpose.msra.mxu0 %v7187
        %7499 = vmatprep.subr.bf16.mxu0 %v7190
        %7500 = vmatpush1.bf16.xpose.msra.mxu0 %v7189
        %7501 = vmatprep.subr.bf16.mxu0 %v7192
        %7502 = vmatpush1.bf16.xpose.msra.mxu0 %v7191
        %7503 = vmatprep.subr.bf16.mxu0 %v7194
        %7504 = vmatpush1.bf16.xpose.msra.mxu0 %v7193
        %7505 = vmatprep.subr.bf16.mxu0 %v7196
        %7506 = vmatpush1.bf16.xpose.msra.mxu0 %v7195
        %7507 = vmatprep.subr.bf16.mxu0 %v7198
        %7508 = vmatpush1.bf16.xpose.msra.mxu0 %v7197
        %7509 = vmatprep.subr.bf16.mxu0 %v7200
        %7510 = vmatpush1.bf16.xpose.msra.mxu0 %v7199
        %7511 = vmatprep.subr.bf16.mxu0 %v7202
        %7512 = vmatpush1.bf16.xpose.msra.mxu0 %v7201
        %7513 = vmatprep.subr.bf16.mxu0 %v7204
        %7514 = vmatpush1.bf16.xpose.msra.mxu0 %v7203
        %7515 = vmatprep.subr.bf16.mxu0 %v7206
        %7516 = vmatpush1.bf16.xpose.msra.mxu0 %v7205
        %7517 = vmatprep.subr.bf16.mxu0 %v7208
        %7518 = vmatpush1.bf16.xpose.msra.mxu0 %v7207
        %7519 = vmatprep.mubr.bf16.mxu0 %v1164
        %7520 = vmatmul.mubr.bf16.gmra.mrb[0].mxu0 %v1163
        %v7521 = vpop.f32.mrb[0].mxu0
        %v7522 = vadd.f32 0.0, %v7521
        %v7523 = vpop.f32.mrb[0].mxu0
        %v7524 = vadd.f32 0.0, %v7523
        %v7525 = vpop.f32.mrb[0].mxu0
        %v7526 = vpop.f32.mrb[0].mxu0
        %7527 = vdwg.mxu0
        %7528 = vmatprep.subr.bf16.mxu0 %v7210
        %7529 = vmatpush1.bf16.xpose.msra.mxu0 %v7209
        %7530 = vmatprep.subr.bf16.mxu0 %v7212
        %7531 = vmatpush1.bf16.xpose.msra.mxu0 %v7211
        %7532 = vmatprep.subr.bf16.mxu0 %v7214
        %7533 = vmatpush1.bf16.xpose.msra.mxu0 %v7213
        %7534 = vmatprep.subr.bf16.mxu0 %v7216
        %7535 = vmatpush1.bf16.xpose.msra.mxu0 %v7215
        %7536 = vmatprep.subr.bf16.mxu0 %v7218
        %7537 = vmatpush1.bf16.xpose.msra.mxu0 %v7217
        %7538 = vmatprep.subr.bf16.mxu0 %v7220
        %7539 = vmatpush1.bf16.xpose.msra.mxu0 %v7219
        %7540 = vmatprep.subr.bf16.mxu0 %v7222
        %7541 = vmatpush1.bf16.xpose.msra.mxu0 %v7221
        %7542 = vmatprep.subr.bf16.mxu0 %v7224
        %7543 = vmatpush1.bf16.xpose.msra.mxu0 %v7223
        %7544 = vmatprep.subr.bf16.mxu0 %v7226
        %7545 = vmatpush1.bf16.xpose.msra.mxu0 %v7225
        %7546 = vmatprep.subr.bf16.mxu0 %v7228
        %7547 = vmatpush1.bf16.xpose.msra.mxu0 %v7227
        %7548 = vmatprep.subr.bf16.mxu0 %v7230
        %7549 = vmatpush1.bf16.xpose.msra.mxu0 %v7229
        %7550 = vmatprep.subr.bf16.mxu0 %v7232
        %7551 = vmatpush1.bf16.xpose.msra.mxu0 %v7231
        %7552 = vmatprep.subr.bf16.mxu0 %v7234
        %7553 = vmatpush1.bf16.xpose.msra.mxu0 %v7233
        %7554 = vmatprep.subr.bf16.mxu0 %v7236
        %7555 = vmatpush1.bf16.xpose.msra.mxu0 %v7235
        %7556 = vmatprep.subr.bf16.mxu0 %v7238
        %7557 = vmatpush1.bf16.xpose.msra.mxu0 %v7237
        %7558 = vmatprep.subr.bf16.mxu0 %v7240
        %7559 = vmatpush1.bf16.xpose.msra.mxu0 %v7239
        %7560 = vmatprep.mubr.bf16.mxu0 %v1166
        %7561 = vmatmul.mubr.bf16.gmra.mrb[0].mxu0 %v1165
        %v7562 = vpop.f32.mrb[0].mxu0
        %v7563 = vadd.f32 0.0, %v7562
        %v7564 = vpop.f32.mrb[0].mxu0
        %v7565 = vadd.f32 0.0, %v7564
        %v7566 = vpop.f32.mrb[0].mxu0
        %v7567 = vpop.f32.mrb[0].mxu0
        %7568 = vdwg.mxu0
        %v7585 = vcombine.low %v7276, %v7278
        %v7586 = vcombine.low %v7317, %v7319
        %v7587 = vcombine.low %v7358, %v7360
        %v7588 = vcombine.low %v7399, %v7401
        %v7589 = vcombine.low %v7440, %v7442
        %v7590 = vcombine.low %v7481, %v7483
        %v7591 = vcombine.low %v7522, %v7524
        %v7592 = vcombine.low %v7563, %v7565
        %v7593 = vcombine.low %v7585, %v7586
        %v7594 = vcombine.high %v7585, %v7586
        %v7595 = vcombine.low %v7587, %v7588
        %v7596 = vcombine.high %v7587, %v7588
        %v7597 = vcombine.low %v7589, %v7590
        %v7598 = vcombine.high %v7589, %v7590
        %v7599 = vcombine.low %v7591, %v7592
        %v7600 = vcombine.high %v7591, %v7592
        %v7609 = vpack.c.bf16 %v7595, %v7593
        %v7610 = vpack.c.bf16 %v7596, %v7594
        %v7611 = vpack.c.bf16 %v7599, %v7597
        %v7612 = vpack.c.bf16 %v7600, %v7598
        %v7613 = vld [vmem:[%s2] sm:$0xf]
        %v7614 = vld [vmem:[%s2 + $0x4] sm:$0xf]
        %v7615 = vld [vmem:[%s2 + $0x8] sm:$0xf]
        %v7616 = vld [vmem:[%s2 + $0xc] sm:$0xf]
        %v7617 = vld [vmem:[%s3] sm:$0xff]
        %v7618 = vld [vmem:[%s3 + $0x8] sm:$0xff]
        %v7619 = vld [vmem:[%s3 + $0x10] sm:$0xff]
        %v7620 = vld [vmem:[%s3 + $0x18] sm:$0xff]
        %7622 = vset.pattern.permute.xlu0 0
        %7623 = vperm.xlu0 %7622, %v7617
        %v7624 = vpop.permute.xlu0 %7623
        %7627 = vset.pattern.permute.xlu0 0
        %7628 = vperm.xlu0 %7627, %v7618
        %v7629 = vpop.permute.xlu0 %7628
        %7632 = vset.pattern.permute.xlu0 0
        %7633 = vperm.xlu0 %7632, %v7619
        %v7634 = vpop.permute.xlu0 %7633
        %7637 = vset.pattern.permute.xlu0 0
        %7638 = vperm.xlu0 %7637, %v7620
        %v7639 = vpop.permute.xlu0 %7638
        %v7645 = vunpack.c.l.b16 %v7613
        %v7646 = vunpack.c.l.b16 %v7614
        %v7647 = vunpack.c.l.b16 %v7615
        %v7648 = vunpack.c.l.b16 %v7616
        %v7649 = vpack.c.b16 %v7646, %v7645
        %v7650 = vpack.c.b16 %v7648, %v7647
        %v7652 = vsel %vm263, %v7649, 0
        %v7655 = vsel %vm263, %v7650, 0
        %7657 = vmatprep.subr.bf16.mxu0 %v7610
        %7658 = vmatpush1.bf16.msra.mxu0 %v7609
        %7659 = vmatprep.subr.bf16.mxu0 %v7612
        %7660 = vmatpush1.bf16.msra.mxu0 %v7611
        %7661 = vmatprep.subr.bf16.mxu0 0
        %7662 = vmatpush1.bf16.msra.mxu0 0
        %7663 = vmatprep.subr.bf16.mxu0 0
        %7664 = vmatpush1.bf16.msra.mxu0 0
        %7665 = vmatprep.subr.bf16.mxu0 0
        %7666 = vmatpush1.bf16.msra.mxu0 0
        %7667 = vmatprep.subr.bf16.mxu0 0
        %7668 = vmatpush1.bf16.msra.mxu0 0
        %7669 = vmatprep.subr.bf16.mxu0 0
        %7670 = vmatpush1.bf16.msra.mxu0 0
        %7671 = vmatprep.subr.bf16.mxu0 0
        %7672 = vmatpush1.bf16.msra.mxu0 0
        %7673 = vmatprep.subr.bf16.mxu0 0
        %7674 = vmatpush1.bf16.msra.mxu0 0
        %7675 = vmatprep.subr.bf16.mxu0 0
        %7676 = vmatpush1.bf16.msra.mxu0 0
        %7677 = vmatprep.subr.bf16.mxu0 0
        %7678 = vmatpush1.bf16.msra.mxu0 0
        %7679 = vmatprep.subr.bf16.mxu0 0
        %7680 = vmatpush1.bf16.msra.mxu0 0
        %7681 = vmatprep.subr.bf16.mxu0 0
        %7682 = vmatpush1.bf16.msra.mxu0 0
        %7683 = vmatprep.subr.bf16.mxu0 0
        %7684 = vmatpush1.bf16.msra.mxu0 0
        %7685 = vmatprep.subr.bf16.mxu0 0
        %7686 = vmatpush1.bf16.msra.mxu0 0
        %7687 = vmatprep.subr.bf16.mxu0 0
        %7688 = vmatpush1.bf16.msra.mxu0 0
        %7689 = vmatprep.mubr.bf16.mxu0 0
        %7690 = vmatmul.mubr.bf16.gmra.mrb[0].mxu0 %v7652
        %v7691 = vpop.f32.mrb[0].mxu0
        %v7692 = vadd.f32 %v7624, %v7691
        %v7693 = vpop.f32.mrb[0].mxu0
        %v7694 = vadd.f32 %v7624, %v7693
        %v7695 = vpop.f32.mrb[0].mxu0
        %v7696 = vadd.f32 %v7629, %v7695
        %v7697 = vpop.f32.mrb[0].mxu0
        %v7698 = vadd.f32 %v7629, %v7697
        %7699 = vmatprep.mubr.bf16.mxu0 0
        %7700 = vmatmul.mubr.bf16.gmra.mrb[0].mxu0 %v7655
        %v7701 = vpop.f32.mrb[0].mxu0
        %v7702 = vadd.f32 %v7634, %v7701
        %v7703 = vpop.f32.mrb[0].mxu0
        %v7704 = vadd.f32 %v7634, %v7703
        %v7705 = vpop.f32.mrb[0].mxu0
        %v7706 = vadd.f32 %v7639, %v7705
        %v7707 = vpop.f32.mrb[0].mxu0
        %v7708 = vadd.f32 %v7639, %v7707
        %7709 = vdwg.mxu0
        %7710 = vst [vmem:[%s190] sm:$0xff] %v7692
        %7711 = vst [vmem:[%s190 + $0x8] sm:$0xff] %v7694
        %7712 = vst [vmem:[%s190 + $0x10] sm:$0xff] %v7696
        %7713 = vst [vmem:[%s190 + $0x18] sm:$0xff] %v7698
        %7714 = vst [vmem:[%s190 + $0x20] sm:$0xff] %v7702
        %7715 = vst [vmem:[%s190 + $0x28] sm:$0xff] %v7704
        %7716 = vst [vmem:[%s190 + $0x30] sm:$0xff] %v7706
        %7717 = vst [vmem:[%s190 + $0x38] sm:$0xff] %v7708
        %s7718 = sand.u32 %s115, 1
        %s7719 = scalar_lea.sflag [#allocation3], %s7718
        %s7720 = sand.u32 %s115, 1
        %s7721 = smul.addr %s7720, 64
        %s7722 = scalar_lea.vmem [#allocation2], %s7721
        // Predicated region
        $region37: #{tpu_custom_call.1} parent=35 // pred_check
          %p7723 = pneg %p125
        $region38: #{tpu_custom_call.1} parent=35 // pred_check_branch
          %7725 = sbr.rel (%p7723) target = $region40
        $region39: #{tpu_custom_call.1} parent=35 // pred_region
          %s7727 = ssub.s32 1024, 1024
          %7728 = vsyncadd %s7719, %s7727
          %s7729 = smul.addr %s18, 8
          %s7730 = smul.addr %s7729, 128
          %s7731 = scalar_lea.hbm %s4, %s7730
          %s7732 = sshll.u32 %s7722, 4
          %s7733 = int_to_ptr.vmem [resolvable:$true] %s7732
          %7738 = dma.vmem_to_hbm [thread:$0]  %s7733, 1024, %s7731, %s7719, 256, 256, 16
        $region40: #{tpu_custom_call.1} parent=35 // pred_fallthru
          _
      $region36: #{tpu_custom_call.1} parent=5 // pred_fallthru
        _
      %p7739 = scmp.le.s32.totalorder 2, %s13
      // Predicated region
      $region41: #{tpu_custom_call.1} parent=5 // pred_check
        %p7740 = pneg %p7739
      $region42: #{tpu_custom_call.1} parent=5 // pred_check_branch
        %7742 = sbr.rel (%p7740) target = $region44
      $region43: #{tpu_custom_call.1} parent=5 // pred_region
        %s7743 = ssub.s32 %s13, 2
        // Predicated region
        $region45: #{tpu_custom_call.1} parent=43 // pred_check
          %p7744 = pneg %p131
        $region46: #{tpu_custom_call.1} parent=43 // pred_check_branch
          %7746 = sbr.rel (%p7744) target = $region48
        $region47: #{tpu_custom_call.1} parent=43 // pred_region
          %s7747 = sand.u32 %s116, 1
          %s7748 = scalar_lea.sflag [#allocation3], %s7747
          %s7749 = sand.u32 %s116, 1
          %s7750 = smul.addr %s7749, 64
          %s7751 = scalar_lea.vmem [#allocation2], %s7750
          %7752 = dma.done %s7748, 1024
        $region48: #{tpu_custom_call.1} parent=43 // pred_fallthru
          _
      $region44: #{tpu_custom_call.1} parent=5 // pred_fallthru
        _
    $region6: #{tpu_custom_call.1} parent=1 // loop_footer
      %s17 = sadd.s32 1, %s13
    $region7: #{tpu_custom_call.1} parent=1 // loop_footer_branch
      %12 = sbr.rel target = $region3
    $region8: #{tpu_custom_call.1} parent=1 // loop_exit
      _
    %7753 = vsyncpa [#allocation3], 1
    %s7754 = scalar_lea.sflag [#allocation3], 1
    %7755 = vsyncpa %s7754, 1

</llo_original>
